<compile_context>
chip_gen: v5e
topology: v5e:2x2
jax: 0.10.0
libtpu: 0.0.40
codegen_flags: <defaults>
</compile_context>

<pallas_src>
import functools

import jax
import jax.numpy as jnp
from jax import lax
from jax.experimental import pallas as pl
from jax.experimental.pallas import tpu as pltpu

EPS = 1e-5  # PyTorch BatchNorm default eps


def _round_up(x, m):
    return ((x + m - 1) // m) * m


def _vmem_limit_bytes():
    """Generation-aware VMEM budget: ~70% of physical, clamped to [32,100] MiB.
    v5e/v6e (128 MiB) -> ~90 MiB; v7x (64 MiB) -> ~45 MiB; fallback 48 MiB."""
    try:
        cap = pltpu.get_tpu_info().vmem_capacity_bytes
        return int(max(32 * 1024 * 1024, min(cap * 0.7, 100 * 1024 * 1024)))
    except Exception:
        return 48 * 1024 * 1024


VMEM_LIMIT = _vmem_limit_bytes()


# ---------------------------------------------------------------------------
# kNN kernel: fused pairwise neg-sq-distance + top-k index extraction
# ---------------------------------------------------------------------------
def _knn_kernel(x_ref, sqc_ref, sqr_ref, idx_ref, *, k, tn, n_valid, mask_cols):
    i = pl.program_id(1)
    r0 = pl.multiple_of(i * tn, tn)

    xa = x_ref[0]                                   # (N_pad, C), resident per b
    xq = x_ref[0, pl.ds(r0, tn), :]                 # (tn, C) query rows (sliced)
    gram = lax.dot_general(
        xq, xa, (((1,), (1,)), ((), ())),
        preferred_element_type=jnp.float32)         # (tn, N_pad), f32 accumulate

    sq_q = sqc_ref[0, pl.ds(r0, tn), :]             # (tn, 1) f32, precomputed
    sq_a = sqr_ref[0]                               # (1, N_pad) f32, precomputed
    d = 2.0 * gram - sq_q - sq_a                    # negative squared distance

    n = d.shape[-1]
    col = lax.broadcasted_iota(jnp.int32, d.shape, 1)
    if mask_cols:                                   # exclude padded candidates
        d = jnp.where(col < n_valid, d, -jnp.inf)

    cols = []
    for _ in range(k):                              # small k, unrolled
        m = jnp.max(d, axis=-1, keepdims=True)
        j = jnp.min(jnp.where(d >= m, col, n), axis=-1, keepdims=True)  # (tn,1)
        cols.append(j)
        d = jnp.where(col == j, -jnp.inf, d)
    idx_ref[0] = jnp.concatenate(cols, axis=-1)     # (tn, k) int32


def knn_indices(x, k):
    """x: (B, N, C) -> (B, N, k) int32 nearest-neighbor indices (incl. self)."""
    B, N, C = x.shape
    # f32 Gram is essentially free for tiny C (layer 1); bf16 stream otherwise.
    x_in = x.astype(jnp.float32) if C <= 8 else x.astype(jnp.bfloat16)
    sq = jnp.sum(x.astype(jnp.float32) ** 2, axis=-1, keepdims=True)   # (B,N,1)

    tn = min(256, _round_up(N, 8))
    N_pad = _round_up(N, tn)
    if N_pad != N:                                  # pad; never full-N fallback
        x_in = jnp.pad(x_in, ((0, 0), (0, N_pad - N), (0, 0)))
        sq = jnp.pad(sq, ((0, 0), (0, N_pad - N), (0, 0)))
    sq_row = jnp.transpose(sq, (0, 2, 1))           # (B, 1, N_pad)

    idx = pl.pallas_call(
        functools.partial(_knn_kernel, k=k, tn=tn, n_valid=N,
                          mask_cols=(N_pad != N)),
        out_shape=jax.ShapeDtypeStruct((B, N_pad, k), jnp.int32),
        grid_spec=pltpu.PrefetchScalarGridSpec(
            num_scalar_prefetch=0,
            grid=(B, N_pad // tn),
            in_specs=[
                pl.BlockSpec((1, N_pad, C), lambda b, i: (b, 0, 0)),   # points
                pl.BlockSpec((1, N_pad, 1), lambda b, i: (b, 0, 0)),   # sq (col)
                pl.BlockSpec((1, 1, N_pad), lambda b, i: (b, 0, 0)),   # sq (row)
            ],
            out_specs=pl.BlockSpec((1, tn, k), lambda b, i: (b, i, 0)),
        ),
        compiler_params=pltpu.CompilerParams(
            dimension_semantics=("parallel", "parallel"),
            vmem_limit_bytes=VMEM_LIMIT),
    )(x_in, sq, sq_row)
    return idx[:, :N] if N_pad != N else idx


# ---------------------------------------------------------------------------
# Edge conv kernel: matmul + fused max-over-k + BN(fold) + LeakyReLU
# ---------------------------------------------------------------------------
def _edge_conv_kernel(feat_ref, xc_ref, w1_ref, wc_ref, o_ref, acc_ref, *, slope):
    j = pl.program_id(1)

    @pl.when(j == 0)
    def _():
        acc_ref[...] = jnp.full(acc_ref.shape, -jnp.inf, acc_ref.dtype)

    acc_ref[...] = jnp.maximum(
        acc_ref[...],
        jnp.dot(feat_ref[0], w1_ref[...], preferred_element_type=jnp.float32))

    @pl.when(j == pl.num_programs(1) - 1)
    def _():
        y = acc_ref[...] + jnp.dot(xc_ref[...], wc_ref[...],
                                   preferred_element_type=jnp.float32)
        o_ref[...] = jnp.where(y >= 0.0, y, slope * y).astype(o_ref.dtype)


def _gather_neighbors(x, idx):
    """x: (B, N, C), idx: (B, N, k) -> (k, B*N, C) gathered neighbor features."""
    B, N, C = x.shape
    k = idx.shape[-1]
    x_flat = x.reshape(B * N, C)
    base = (jnp.arange(B, dtype=idx.dtype) * N)[:, None, None]
    flat_idx = jnp.transpose(idx + base, (2, 0, 1)).reshape(k, B * N)
    return x_flat[flat_idx]                         # gathered in x.dtype (bf16)


def edge_conv(x, idx, w, *, slope=0.2, tm=1024):
    """DGCNN edge conv: (B,N,C) points + (B,N,k) knn idx + (2C,Cout) conv weight
    -> (B,N,Cout) bf16 after 1x1 conv, eval-BN, LeakyReLU and max over k."""
    B, N, C = x.shape
    Cout = w.shape[1]
    scale = 1.0 / (1.0 + EPS) ** 0.5            # BN(eval, default stats) folded
    w1 = (w[:C] * scale).astype(jnp.bfloat16)            # acts on neighbor feat
    wc = ((w[C:] - w[:C]) * scale).astype(jnp.bfloat16)  # acts on the center

    x_bf = x.astype(jnp.bfloat16)               # gather + pad in bf16
    feat = _gather_neighbors(x_bf, idx)         # (k, M, C) bf16
    xc = x_bf.reshape(B * N, C)
    k = idx.shape[-1]
    M = B * N
    tm_eff = min(tm, _round_up(M, 8))           # >=2 row blocks for big M (v7x)
    M_pad = _round_up(M, tm_eff)
    if M_pad != M:
        feat = jnp.pad(feat, ((0, 0), (0, M_pad - M), (0, 0)))
        xc = jnp.pad(xc, ((0, M_pad - M), (0, 0)))

    out = pl.pallas_call(
        functools.partial(_edge_conv_kernel, slope=slope),
        out_shape=jax.ShapeDtypeStruct((M_pad, Cout), jnp.bfloat16),
        grid_spec=pltpu.PrefetchScalarGridSpec(
            num_scalar_prefetch=0,
            grid=(M_pad // tm_eff, k),          # k reduction axis last
            in_specs=[
                pl.BlockSpec((1, tm_eff, C), lambda i, j: (j, i, 0)),  # neighbors
                pl.BlockSpec((tm_eff, C), lambda i, j: (i, 0)),        # centers
                pl.BlockSpec((C, Cout), lambda i, j: (0, 0)),          # w1
                pl.BlockSpec((C, Cout), lambda i, j: (0, 0)),          # wc
            ],
            out_specs=pl.BlockSpec((tm_eff, Cout), lambda i, j: (i, 0)),
            scratch_shapes=[pltpu.VMEM((tm_eff, Cout), jnp.float32)],
        ),
        compiler_params=pltpu.CompilerParams(
            dimension_semantics=("parallel", "arbitrary"),
            vmem_limit_bytes=VMEM_LIMIT),
    )(feat, xc, w1, wc)
    out = out[:M] if M_pad != M else out
    return out.reshape(B, N, Cout)


# ---------------------------------------------------------------------------
# conv5 + global max over points, fused
# ---------------------------------------------------------------------------
def _conv5_max_kernel(x_ref, w_ref, o_ref, acc_ref, *, slope, n_valid, mask_last):
    i = pl.program_id(1)
    last = pl.num_programs(1) - 1

    @pl.when(i == 0)
    def _():
        acc_ref[...] = jnp.full(acc_ref.shape, -jnp.inf, acc_ref.dtype)

    y = jnp.dot(x_ref[0], w_ref[...], preferred_element_type=jnp.float32)

    if mask_last:                               # padded rows only in last tile
        @pl.when(i != last)
        def _():
            acc_ref[...] = jnp.maximum(acc_ref[...],
                                       jnp.max(y, axis=0, keepdims=True))

        @pl.when(i == last)
        def _():
            tn = y.shape[0]
            row = i * tn + lax.broadcasted_iota(jnp.int32, y.shape, 0)
            ym = jnp.where(row < n_valid, y, -jnp.inf)
            acc_ref[...] = jnp.maximum(acc_ref[...],
                                       jnp.max(ym, axis=0, keepdims=True))
    else:
        acc_ref[...] = jnp.maximum(acc_ref[...],
                                   jnp.max(y, axis=0, keepdims=True))

    @pl.when(i == last)
    def _():
        z = acc_ref[...]                        # leaky after max is valid
        o_ref[0] = jnp.where(z >= 0.0, z, slope * z).astype(o_ref.dtype)


def conv5_global_max(xcat, w5, *, slope=0.2, tn=512):
    """xcat: (B, N, 512), w5: (512, emb) -> (B, 1, emb) = max_n leaky(BN(xcat@w5))."""
    B, N, Cin = xcat.shape
    emb = w5.shape[1]
    scale = 1.0 / (1.0 + EPS) ** 0.5
    w = (w5 * scale).astype(jnp.bfloat16)
    x = xcat.astype(jnp.bfloat16)
    tn_eff = min(tn, _round_up(N, 8))
    N_pad = _round_up(N, tn_eff)
    if N_pad != N:
        x = jnp.pad(x, ((0, 0), (0, N_pad - N), (0, 0)))

    return pl.pallas_call(
        functools.partial(_conv5_max_kernel, slope=slope, n_valid=N,
                          mask_last=(N_pad != N)),
        out_shape=jax.ShapeDtypeStruct((B, 1, emb), jnp.float32),
        grid_spec=pltpu.PrefetchScalarGridSpec(
            num_scalar_prefetch=0,
            grid=(B, N_pad // tn_eff),
            in_specs=[
                pl.BlockSpec((1, tn_eff, Cin), lambda b, i: (b, i, 0)),
                pl.BlockSpec((Cin, emb), lambda b, i: (0, 0)),
            ],
            out_specs=pl.BlockSpec((1, 1, emb), lambda b, i: (b, 0, 0)),
            scratch_shapes=[pltpu.VMEM((1, emb), jnp.float32)],
        ),
        compiler_params=pltpu.CompilerParams(
            dimension_semantics=("parallel", "arbitrary"),
            vmem_limit_bytes=VMEM_LIMIT),
    )(x, w)


# ---------------------------------------------------------------------------
# MLP head: fc1+ReLU -> fc2+ReLU -> fc3, single Pallas call (weights in VMEM)
# ---------------------------------------------------------------------------
def _mlp_head_kernel(x_ref, w1_ref, b1_ref, w2_ref, b2_ref, w3_ref, b3_ref, o_ref):
    h = jnp.dot(x_ref[...], w1_ref[...], preferred_element_type=jnp.float32)
    h = jnp.maximum(h + b1_ref[...], 0.0)
    h = jnp.dot(h.astype(w2_ref.dtype), w2_ref[...],
                preferred_element_type=jnp.float32)
    h = jnp.maximum(h + b2_ref[...], 0.0)
    h = jnp.dot(h.astype(w3_ref.dtype), w3_ref[...],
                preferred_element_type=jnp.float32)
    o_ref[...] = (h + b3_ref[...]).astype(o_ref.dtype)


def mlp_head(h, params):
    B = h.shape[0]
    feat_dim = params["fc3_w"].shape[1]
    return pl.pallas_call(
        _mlp_head_kernel,
        out_shape=jax.ShapeDtypeStruct((B, feat_dim), jnp.float32),
        compiler_params=pltpu.CompilerParams(vmem_limit_bytes=VMEM_LIMIT),
    )(h.astype(jnp.bfloat16),
      params["fc1_w"].astype(jnp.bfloat16), params["fc1_b"][None, :],
      params["fc2_w"].astype(jnp.bfloat16), params["fc2_b"][None, :],
      params["fc3_w"].astype(jnp.bfloat16), params["fc3_b"][None, :])


# ---------------------------------------------------------------------------
# Generator forward
# ---------------------------------------------------------------------------
def init_params(key, feat_dim=128, emb_dim=1024):
    ks = jax.random.split(key, 11)

    def w(kk, shape, scale=0.05):
        return (scale * jax.random.normal(kk, shape)).astype(jnp.float32)

    return {
        "conv1_w": w(ks[0], (6, 64)),
        "conv2_w": w(ks[1], (128, 64)),
        "conv3_w": w(ks[2], (128, 128)),
        "conv4_w": w(ks[3], (256, 256)),
        "conv5_w": w(ks[4], (512, emb_dim)),
        "fc1_w": w(ks[5], (emb_dim, 512)),
        "fc1_b": w(ks[6], (512,)),
        "fc2_w": w(ks[7], (512, 256)),
        "fc2_b": w(ks[8], (256,)),
        "fc3_w": w(ks[9], (256, feat_dim)),
        "fc3_b": w(ks[10], (feat_dim,)),
    }


def generator_forward(params, x_bcn, k=8):
    """x_bcn: (B, 3, num_points) in the PyTorch layout; returns (B, 1, feat_dim)."""
    x = jnp.transpose(x_bcn, (0, 2, 1)).astype(jnp.float32)   # (B, N, 3)
    B, N, _ = x.shape

    def layer(x_in, w):
        idx = knn_indices(x_in, k)                  # (B, N, k), no (N,N) in HBM
        return edge_conv(x_in, idx, w)              # bf16 output

    # ---- DGCNN encoder ----
    x1 = layer(x, params["conv1_w"])    # (B, N, 64)  bf16
    x2 = layer(x1, params["conv2_w"])   # (B, N, 64)  bf16
    x3 = layer(x2, params["conv3_w"])   # (B, N, 128) bf16
    x4 = layer(x3, params["conv4_w"])   # (B, N, 256) bf16

    xcat = jnp.concatenate([x1, x2, x3, x4], axis=-1)          # (B, N, 512) bf16
    feat = conv5_global_max(xcat, params["conv5_w"])           # (B, 1, emb) f32

    # ---- MLP head ----
    emb = params["conv5_w"].shape[1]
    out = mlp_head(feat.reshape(B, emb), params)               # (B, feat_dim)
    return out.reshape(B, 1, -1)


if __name__ == "__main__":
    key = jax.random.PRNGKey(0)
    kp, kx = jax.random.split(key)

    B, num_points, k, feat_dim = 2, 16, 8, 128
    params = init_params(kp, feat_dim=feat_dim)
    x = jax.random.normal(kx, (B, 3, num_points), jnp.float32)  # (B, C=3, N)

    fwd = jax.jit(functools.partial(generator_forward, k=k))
    out = jax.block_until_ready(fwd(params, x))
    assert out.shape == (B, 1, feat_dim), out.shape
    assert bool(jnp.all(jnp.isfinite(out)))
    print("KERNEL_OK")
</pallas_src>

<mosaic_0001>
module attributes {stable_mosaic.version = 11 : i64} {
  func.func @_knn_kernel(%arg0: i32, %arg1: i32, %arg2: memref<1x16x3xf32, #tpu.memory_space<vmem>>, %arg3: memref<1x16x1xf32, #tpu.memory_space<vmem>>, %arg4: memref<1x1x16xf32, #tpu.memory_space<vmem>>, %arg5: memref<1x16x8xi32, #tpu.memory_space<vmem>>) attributes {dimension_semantics = [#tpu.dimension_semantics<parallel>, #tpu.dimension_semantics<parallel>], iteration_bounds = array<i64: 2, 1>, scalar_prefetch = 0 : i64, scratch_operands = 0 : i64, tpu.core_type = #tpu.core_type<tc>, window_params = [{transform_indices = @transform_0, window_bounds = array<i64: 1, 16, 3>}, {transform_indices = @transform_1, window_bounds = array<i64: 1, 16, 1>}, {transform_indices = @transform_2, window_bounds = array<i64: 1, 1, 16>}, {transform_indices = @transform_3, window_bounds = array<i64: 1, 16, 8>}]} {
    %c16_i32 = arith.constant 16 : i32
    %0 = arith.muli %arg1, %c16_i32 : i32
    %1 = tpu.assume_multiple %0, 16 : i32
    %c0 = arith.constant 0 : index
    %c0_0 = arith.constant 0 : index
    %c0_1 = arith.constant 0 : index
    %2 = vector.load %arg2[%c0, %c0_0, %c0_1] : memref<1x16x3xf32, #tpu.memory_space<vmem>>, vector<1x16x3xf32>
    %3 = vector.shape_cast %2 : vector<1x16x3xf32> to vector<16x3xf32>
    %c0_2 = arith.constant 0 : index
    %4 = arith.index_cast %1 : i32 to index
    %c0_3 = arith.constant 0 : index
    %5 = vector.load %arg2[%c0_2, %4, %c0_3] : memref<1x16x3xf32, #tpu.memory_space<vmem>>, vector<1x16x3xf32>
    %6 = vector.shape_cast %5 : vector<1x16x3xf32> to vector<16x3xf32>
    %cst = arith.constant dense<0.000000e+00> : vector<16x16xf32>
    %7 = tpu.matmul %6, %3, %cst {dimension_numbers = #tpu.dot_dimension_numbers<[1], [1], [0], [0], [0, 0, 1, 0], [], []>} : vector<16x3xf32>, vector<16x3xf32>, vector<16x16xf32> -> vector<16x16xf32>
    %c0_4 = arith.constant 0 : index
    %8 = arith.index_cast %1 : i32 to index
    %c0_5 = arith.constant 0 : index
    %9 = vector.load %arg3[%c0_4, %8, %c0_5] : memref<1x16x1xf32, #tpu.memory_space<vmem>>, vector<1x16x1xf32>
    %10 = vector.shape_cast %9 : vector<1x16x1xf32> to vector<16x1xf32>
    %c0_6 = arith.constant 0 : index
    %c0_7 = arith.constant 0 : index
    %c0_8 = arith.constant 0 : index
    %11 = vector.load %arg4[%c0_6, %c0_7, %c0_8] : memref<1x1x16xf32, #tpu.memory_space<vmem>>, vector<1x1x16xf32>
    %12 = vector.shape_cast %11 : vector<1x1x16xf32> to vector<1x16xf32>
    %cst_9 = arith.constant 2.000000e+00 : f32
    %13 = vector.broadcast %cst_9 : f32 to vector<16x16xf32>
    %14 = arith.mulf %13, %7 : vector<16x16xf32>
    %15 = vector.broadcast %10 : vector<16x1xf32> to vector<16x16xf32>
    %16 = arith.subf %14, %15 : vector<16x16xf32>
    %17 = vector.broadcast %12 : vector<1x16xf32> to vector<16x16xf32>
    %18 = arith.subf %16, %17 : vector<16x16xf32>
    %19 = tpu.iota {dimensions = array<i32: 1>} : vector<16x16xi32>
    %cst_10 = arith.constant dense<0xFF800000> : vector<16xf32>
    %20 = vector.multi_reduction <maximumf>, %18, %cst_10 [1] : vector<16x16xf32> to vector<16xf32>
    %21 = vector.shape_cast %20 : vector<16xf32> to vector<16x1xf32>
    %22 = vector.broadcast %21 : vector<16x1xf32> to vector<16x16xf32>
    %23 = arith.cmpf oge, %18, %22 : vector<16x16xf32>
    %c16_i32_11 = arith.constant 16 : i32
    %24 = vector.broadcast %c16_i32_11 : i32 to vector<16x16xi32>
    %25 = arith.select %23, %19, %24 : vector<16x16xi1>, vector<16x16xi32>
    %cst_12 = arith.constant dense<2147483647> : vector<16xi32>
    %26 = vector.multi_reduction <minsi>, %25, %cst_12 [1] : vector<16x16xi32> to vector<16xi32>
    %27 = vector.shape_cast %26 : vector<16xi32> to vector<16x1xi32>
    %28 = vector.broadcast %27 : vector<16x1xi32> to vector<16x16xi32>
    %29 = arith.cmpi eq, %19, %28 : vector<16x16xi32>
    %cst_13 = arith.constant 0xFF800000 : f32
    %30 = vector.broadcast %cst_13 : f32 to vector<16x16xf32>
    %31 = arith.select %29, %30, %18 : vector<16x16xi1>, vector<16x16xf32>
    %cst_14 = arith.constant dense<0xFF800000> : vector<16xf32>
    %32 = vector.multi_reduction <maximumf>, %31, %cst_14 [1] : vector<16x16xf32> to vector<16xf32>
    %33 = vector.shape_cast %32 : vector<16xf32> to vector<16x1xf32>
    %34 = vector.broadcast %33 : vector<16x1xf32> to vector<16x16xf32>
    %35 = arith.cmpf oge, %31, %34 : vector<16x16xf32>
    %c16_i32_15 = arith.constant 16 : i32
    %36 = vector.broadcast %c16_i32_15 : i32 to vector<16x16xi32>
    %37 = arith.select %35, %19, %36 : vector<16x16xi1>, vector<16x16xi32>
    %cst_16 = arith.constant dense<2147483647> : vector<16xi32>
    %38 = vector.multi_reduction <minsi>, %37, %cst_16 [1] : vector<16x16xi32> to vector<16xi32>
    %39 = vector.shape_cast %38 : vector<16xi32> to vector<16x1xi32>
    %40 = vector.broadcast %39 : vector<16x1xi32> to vector<16x16xi32>
    %41 = arith.cmpi eq, %19, %40 : vector<16x16xi32>
    %cst_17 = arith.constant 0xFF800000 : f32
    %42 = vector.broadcast %cst_17 : f32 to vector<16x16xf32>
    %43 = arith.select %41, %42, %31 : vector<16x16xi1>, vector<16x16xf32>
    %cst_18 = arith.constant dense<0xFF800000> : vector<16xf32>
    %44 = vector.multi_reduction <maximumf>, %43, %cst_18 [1] : vector<16x16xf32> to vector<16xf32>
    %45 = vector.shape_cast %44 : vector<16xf32> to vector<16x1xf32>
    %46 = vector.broadcast %45 : vector<16x1xf32> to vector<16x16xf32>
    %47 = arith.cmpf oge, %43, %46 : vector<16x16xf32>
    %c16_i32_19 = arith.constant 16 : i32
    %48 = vector.broadcast %c16_i32_19 : i32 to vector<16x16xi32>
    %49 = arith.select %47, %19, %48 : vector<16x16xi1>, vector<16x16xi32>
    %cst_20 = arith.constant dense<2147483647> : vector<16xi32>
    %50 = vector.multi_reduction <minsi>, %49, %cst_20 [1] : vector<16x16xi32> to vector<16xi32>
    %51 = vector.shape_cast %50 : vector<16xi32> to vector<16x1xi32>
    %52 = vector.broadcast %51 : vector<16x1xi32> to vector<16x16xi32>
    %53 = arith.cmpi eq, %19, %52 : vector<16x16xi32>
    %cst_21 = arith.constant 0xFF800000 : f32
    %54 = vector.broadcast %cst_21 : f32 to vector<16x16xf32>
    %55 = arith.select %53, %54, %43 : vector<16x16xi1>, vector<16x16xf32>
    %cst_22 = arith.constant dense<0xFF800000> : vector<16xf32>
    %56 = vector.multi_reduction <maximumf>, %55, %cst_22 [1] : vector<16x16xf32> to vector<16xf32>
    %57 = vector.shape_cast %56 : vector<16xf32> to vector<16x1xf32>
    %58 = vector.broadcast %57 : vector<16x1xf32> to vector<16x16xf32>
    %59 = arith.cmpf oge, %55, %58 : vector<16x16xf32>
    %c16_i32_23 = arith.constant 16 : i32
    %60 = vector.broadcast %c16_i32_23 : i32 to vector<16x16xi32>
    %61 = arith.select %59, %19, %60 : vector<16x16xi1>, vector<16x16xi32>
    %cst_24 = arith.constant dense<2147483647> : vector<16xi32>
    %62 = vector.multi_reduction <minsi>, %61, %cst_24 [1] : vector<16x16xi32> to vector<16xi32>
    %63 = vector.shape_cast %62 : vector<16xi32> to vector<16x1xi32>
    %64 = vector.broadcast %63 : vector<16x1xi32> to vector<16x16xi32>
    %65 = arith.cmpi eq, %19, %64 : vector<16x16xi32>
    %cst_25 = arith.constant 0xFF800000 : f32
    %66 = vector.broadcast %cst_25 : f32 to vector<16x16xf32>
    %67 = arith.select %65, %66, %55 : vector<16x16xi1>, vector<16x16xf32>
    %cst_26 = arith.constant dense<0xFF800000> : vector<16xf32>
    %68 = vector.multi_reduction <maximumf>, %67, %cst_26 [1] : vector<16x16xf32> to vector<16xf32>
    %69 = vector.shape_cast %68 : vector<16xf32> to vector<16x1xf32>
    %70 = vector.broadcast %69 : vector<16x1xf32> to vector<16x16xf32>
    %71 = arith.cmpf oge, %67, %70 : vector<16x16xf32>
    %c16_i32_27 = arith.constant 16 : i32
    %72 = vector.broadcast %c16_i32_27 : i32 to vector<16x16xi32>
    %73 = arith.select %71, %19, %72 : vector<16x16xi1>, vector<16x16xi32>
    %cst_28 = arith.constant dense<2147483647> : vector<16xi32>
    %74 = vector.multi_reduction <minsi>, %73, %cst_28 [1] : vector<16x16xi32> to vector<16xi32>
    %75 = vector.shape_cast %74 : vector<16xi32> to vector<16x1xi32>
    %76 = vector.broadcast %75 : vector<16x1xi32> to vector<16x16xi32>
    %77 = arith.cmpi eq, %19, %76 : vector<16x16xi32>
    %cst_29 = arith.constant 0xFF800000 : f32
    %78 = vector.broadcast %cst_29 : f32 to vector<16x16xf32>
    %79 = arith.select %77, %78, %67 : vector<16x16xi1>, vector<16x16xf32>
    %cst_30 = arith.constant dense<0xFF800000> : vector<16xf32>
    %80 = vector.multi_reduction <maximumf>, %79, %cst_30 [1] : vector<16x16xf32> to vector<16xf32>
    %81 = vector.shape_cast %80 : vector<16xf32> to vector<16x1xf32>
    %82 = vector.broadcast %81 : vector<16x1xf32> to vector<16x16xf32>
    %83 = arith.cmpf oge, %79, %82 : vector<16x16xf32>
    %c16_i32_31 = arith.constant 16 : i32
    %84 = vector.broadcast %c16_i32_31 : i32 to vector<16x16xi32>
    %85 = arith.select %83, %19, %84 : vector<16x16xi1>, vector<16x16xi32>
    %cst_32 = arith.constant dense<2147483647> : vector<16xi32>
    %86 = vector.multi_reduction <minsi>, %85, %cst_32 [1] : vector<16x16xi32> to vector<16xi32>
    %87 = vector.shape_cast %86 : vector<16xi32> to vector<16x1xi32>
    %88 = vector.broadcast %87 : vector<16x1xi32> to vector<16x16xi32>
    %89 = arith.cmpi eq, %19, %88 : vector<16x16xi32>
    %cst_33 = arith.constant 0xFF800000 : f32
    %90 = vector.broadcast %cst_33 : f32 to vector<16x16xf32>
    %91 = arith.select %89, %90, %79 : vector<16x16xi1>, vector<16x16xf32>
    %cst_34 = arith.constant dense<0xFF800000> : vector<16xf32>
    %92 = vector.multi_reduction <maximumf>, %91, %cst_34 [1] : vector<16x16xf32> to vector<16xf32>
    %93 = vector.shape_cast %92 : vector<16xf32> to vector<16x1xf32>
    %94 = vector.broadcast %93 : vector<16x1xf32> to vector<16x16xf32>
    %95 = arith.cmpf oge, %91, %94 : vector<16x16xf32>
    %c16_i32_35 = arith.constant 16 : i32
    %96 = vector.broadcast %c16_i32_35 : i32 to vector<16x16xi32>
    %97 = arith.select %95, %19, %96 : vector<16x16xi1>, vector<16x16xi32>
    %cst_36 = arith.constant dense<2147483647> : vector<16xi32>
    %98 = vector.multi_reduction <minsi>, %97, %cst_36 [1] : vector<16x16xi32> to vector<16xi32>
    %99 = vector.shape_cast %98 : vector<16xi32> to vector<16x1xi32>
    %100 = vector.broadcast %99 : vector<16x1xi32> to vector<16x16xi32>
    %101 = arith.cmpi eq, %19, %100 : vector<16x16xi32>
    %cst_37 = arith.constant 0xFF800000 : f32
    %102 = vector.broadcast %cst_37 : f32 to vector<16x16xf32>
    %103 = arith.select %101, %102, %91 : vector<16x16xi1>, vector<16x16xf32>
    %cst_38 = arith.constant dense<0xFF800000> : vector<16xf32>
    %104 = vector.multi_reduction <maximumf>, %103, %cst_38 [1] : vector<16x16xf32> to vector<16xf32>
    %105 = vector.shape_cast %104 : vector<16xf32> to vector<16x1xf32>
    %106 = vector.broadcast %105 : vector<16x1xf32> to vector<16x16xf32>
    %107 = arith.cmpf oge, %103, %106 : vector<16x16xf32>
    %c16_i32_39 = arith.constant 16 : i32
    %108 = vector.broadcast %c16_i32_39 : i32 to vector<16x16xi32>
    %109 = arith.select %107, %19, %108 : vector<16x16xi1>, vector<16x16xi32>
    %cst_40 = arith.constant dense<2147483647> : vector<16xi32>
    %110 = vector.multi_reduction <minsi>, %109, %cst_40 [1] : vector<16x16xi32> to vector<16xi32>
    %111 = vector.shape_cast %110 : vector<16xi32> to vector<16x1xi32>
    %112 = tpu.concatenate %27, %39, %51, %63, %75, %87, %99, %111 in 1 : vector<16x1xi32>, vector<16x1xi32>, vector<16x1xi32>, vector<16x1xi32>, vector<16x1xi32>, vector<16x1xi32>, vector<16x1xi32>, vector<16x1xi32> -> vector<16x8xi32>
    %c0_41 = arith.constant 0 : index
    %c0_42 = arith.constant 0 : index
    %c0_43 = arith.constant 0 : index
    %113 = vector.load %arg5[%c0_41, %c0_42, %c0_43] : memref<1x16x8xi32, #tpu.memory_space<vmem>>, vector<1x16x8xi32>
    %114 = vector.shape_cast %113 : vector<1x16x8xi32> to vector<16x8xi32>
    %115 = vector.shape_cast %112 : vector<16x8xi32> to vector<1x16x8xi32>
    tpu.vector_store %arg5[%c0_41, %c0_42, %c0_43], %115 {strides = array<i32>} : memref<1x16x8xi32, #tpu.memory_space<vmem>>, vector<1x16x8xi32>,
    return
  }
  func.func @transform_0(%arg0: i32, %arg1: i32) -> (i32, i32, i32) {
    %c0_i32 = arith.constant 0 : i32
    %c0_i32_0 = arith.constant 0 : i32
    %c0_i32_1 = arith.constant 0 : i32
    return %arg0, %c0_i32, %c0_i32_0 : i32, i32, i32
  }
  func.func @transform_1(%arg0: i32, %arg1: i32) -> (i32, i32, i32) {
    %c0_i32 = arith.constant 0 : i32
    %c0_i32_0 = arith.constant 0 : i32
    %c0_i32_1 = arith.constant 0 : i32
    return %arg0, %c0_i32, %c0_i32_0 : i32, i32, i32
  }
  func.func @transform_2(%arg0: i32, %arg1: i32) -> (i32, i32, i32) {
    %c0_i32 = arith.constant 0 : i32
    %c0_i32_0 = arith.constant 0 : i32
    %c0_i32_1 = arith.constant 0 : i32
    return %arg0, %c0_i32, %c0_i32_0 : i32, i32, i32
  }
  func.func @transform_3(%arg0: i32, %arg1: i32) -> (i32, i32, i32) {
    %c0_i32 = arith.constant 0 : i32
    %c0_i32_0 = arith.constant 0 : i32
    return %arg0, %arg1, %c0_i32 : i32, i32, i32
  }
}

module attributes {stable_mosaic.version = 11 : i64} {
  func.func @_edge_conv_kernel(%arg0: i32, %arg1: i32, %arg2: memref<1x32x3xbf16, #tpu.memory_space<vmem>>, %arg3: memref<32x3xbf16, #tpu.memory_space<vmem>>, %arg4: memref<3x64xbf16, #tpu.memory_space<vmem>>, %arg5: memref<3x64xbf16, #tpu.memory_space<vmem>>, %arg6: memref<32x64xbf16, #tpu.memory_space<vmem>>, %arg7: memref<32x64xf32, #tpu.memory_space<vmem>>) attributes {dimension_semantics = [#tpu.dimension_semantics<parallel>, #tpu.dimension_semantics<arbitrary>], iteration_bounds = array<i64: 1, 8>, scalar_prefetch = 0 : i64, scratch_operands = 1 : i64, tpu.core_type = #tpu.core_type<tc>, window_params = [{transform_indices = @transform_0, window_bounds = array<i64: 1, 32, 3>}, {transform_indices = @transform_1, window_bounds = array<i64: 32, 3>}, {pipeline_mode = #tpu.pipeline_mode<synchronous>, transform_indices = @transform_2, window_bounds = array<i64: 3, 64>}, {pipeline_mode = #tpu.pipeline_mode<synchronous>, transform_indices = @transform_3, window_bounds = array<i64: 3, 64>}, {transform_indices = @transform_4, window_bounds = array<i64: 32, 64>}]} {
    %c0_i32 = arith.constant 0 : i32
    %0 = arith.cmpi eq, %arg1, %c0_i32 : i32
    %1 = arith.extui %0 : i1 to i32
    %c0_i32_0 = arith.constant 0 : i32
    %2 = arith.cmpi ne, %1, %c0_i32_0 : i32
    scf.if %2 {
      %cst_10 = arith.constant 0xFF800000 : f32
      %13 = vector.broadcast %cst_10 : f32 to vector<32x64xf32>
      %c0_11 = arith.constant 0 : index
      %c0_12 = arith.constant 0 : index
      %14 = vector.load %arg7[%c0_11, %c0_12] : memref<32x64xf32, #tpu.memory_space<vmem>>, vector<32x64xf32>
      tpu.vector_store %arg7[%c0_11, %c0_12], %13 {strides = array<i32>} : memref<32x64xf32, #tpu.memory_space<vmem>>, vector<32x64xf32>,
    } else {
    }
    %c0 = arith.constant 0 : index
    %c0_1 = arith.constant 0 : index
    %3 = vector.load %arg7[%c0, %c0_1] : memref<32x64xf32, #tpu.memory_space<vmem>>, vector<32x64xf32>
    %c0_2 = arith.constant 0 : index
    %c0_3 = arith.constant 0 : index
    %c0_4 = arith.constant 0 : index
    %4 = vector.load %arg2[%c0_2, %c0_3, %c0_4] : memref<1x32x3xbf16, #tpu.memory_space<vmem>>, vector<1x32x3xbf16>
    %5 = vector.shape_cast %4 : vector<1x32x3xbf16> to vector<32x3xbf16>
    %c0_5 = arith.constant 0 : index
    %c0_6 = arith.constant 0 : index
    %6 = vector.load %arg4[%c0_5, %c0_6] : memref<3x64xbf16, #tpu.memory_space<vmem>>, vector<3x64xbf16>
    %cst = arith.constant dense<0.000000e+00> : vector<32x64xf32>
    %7 = tpu.matmul %5, %6, %cst {dimension_numbers = #tpu.dot_dimension_numbers<[1], [0], [0], [1], [0, 0, 1, 1], [], []>} : vector<32x3xbf16>, vector<3x64xbf16>, vector<32x64xf32> -> vector<32x64xf32>
    %8 = arith.maximumf %3, %7 : vector<32x64xf32>
    %c0_7 = arith.constant 0 : index
    %c0_8 = arith.constant 0 : index
    %9 = vector.load %arg7[%c0_7, %c0_8] : memref<32x64xf32, #tpu.memory_space<vmem>>, vector<32x64xf32>
    tpu.vector_store %arg7[%c0_7, %c0_8], %8 {strides = array<i32>} : memref<32x64xf32, #tpu.memory_space<vmem>>, vector<32x64xf32>,
    %c7_i32 = arith.constant 7 : i32
    %10 = arith.cmpi eq, %arg1, %c7_i32 : i32
    %11 = arith.extui %10 : i1 to i32
    %c0_i32_9 = arith.constant 0 : i32
    %12 = arith.cmpi ne, %11, %c0_i32_9 : i32
    scf.if %12 {
      %c0_10 = arith.constant 0 : index
      %c0_11 = arith.constant 0 : index
      %13 = vector.load %arg7[%c0_10, %c0_11] : memref<32x64xf32, #tpu.memory_space<vmem>>, vector<32x64xf32>
      %c0_12 = arith.constant 0 : index
      %c0_13 = arith.constant 0 : index
      %14 = vector.load %arg3[%c0_12, %c0_13] : memref<32x3xbf16, #tpu.memory_space<vmem>>, vector<32x3xbf16>
      %c0_14 = arith.constant 0 : index
      %c0_15 = arith.constant 0 : index
      %15 = vector.load %arg5[%c0_14, %c0_15] : memref<3x64xbf16, #tpu.memory_space<vmem>>, vector<3x64xbf16>
      %cst_16 = arith.constant dense<0.000000e+00> : vector<32x64xf32>
      %16 = tpu.matmul %14, %15, %cst_16 {dimension_numbers = #tpu.dot_dimension_numbers<[1], [0], [0], [1], [0, 0, 1, 1], [], []>} : vector<32x3xbf16>, vector<3x64xbf16>, vector<32x64xf32> -> vector<32x64xf32>
      %17 = arith.addf %13, %16 : vector<32x64xf32>
      %cst_17 = arith.constant 0.000000e+00 : f32
      %18 = vector.broadcast %cst_17 : f32 to vector<32x64xf32>
      %19 = arith.cmpf oge, %17, %18 : vector<32x64xf32>
      %cst_18 = arith.constant 2.000000e-01 : f32
      %20 = vector.broadcast %cst_18 : f32 to vector<32x64xf32>
      %21 = arith.mulf %20, %17 : vector<32x64xf32>
      %22 = arith.select %19, %17, %21 : vector<32x64xi1>, vector<32x64xf32>
      %23 = arith.truncf %22 : vector<32x64xf32> to vector<32x64xbf16>
      %c0_19 = arith.constant 0 : index
      %c0_20 = arith.constant 0 : index
      %24 = vector.load %arg6[%c0_19, %c0_20] : memref<32x64xbf16, #tpu.memory_space<vmem>>, vector<32x64xbf16>
      tpu.vector_store %arg6[%c0_19, %c0_20], %23 {strides = array<i32>} : memref<32x64xbf16, #tpu.memory_space<vmem>>, vector<32x64xbf16>,
    } else {
    }
    return
  }
  func.func @transform_0(%arg0: i32, %arg1: i32) -> (i32, i32, i32) {
    %c0_i32 = arith.constant 0 : i32
    %c0_i32_0 = arith.constant 0 : i32
    return %arg1, %arg0, %c0_i32 : i32, i32, i32
  }
  func.func @transform_1(%arg0: i32, %arg1: i32) -> (i32, i32) {
    %c0_i32 = arith.constant 0 : i32
    %c0_i32_0 = arith.constant 0 : i32
    return %arg0, %c0_i32 : i32, i32
  }
  func.func @transform_2(%arg0: i32, %arg1: i32) -> (i32, i32) {
    %c0_i32 = arith.constant 0 : i32
    %c0_i32_0 = arith.constant 0 : i32
    %c0_i32_1 = arith.constant 0 : i32
    return %c0_i32, %c0_i32_0 : i32, i32
  }
  func.func @transform_3(%arg0: i32, %arg1: i32) -> (i32, i32) {
    %c0_i32 = arith.constant 0 : i32
    %c0_i32_0 = arith.constant 0 : i32
    %c0_i32_1 = arith.constant 0 : i32
    return %c0_i32, %c0_i32_0 : i32, i32
  }
  func.func @transform_4(%arg0: i32, %arg1: i32) -> (i32, i32) {
    %c0_i32 = arith.constant 0 : i32
    %c0_i32_0 = arith.constant 0 : i32
    return %arg0, %c0_i32 : i32, i32
  }
}

module attributes {stable_mosaic.version = 11 : i64} {
  func.func @_knn_kernel(%arg0: i32, %arg1: i32, %arg2: memref<1x16x64xbf16, #tpu.memory_space<vmem>>, %arg3: memref<1x16x1xf32, #tpu.memory_space<vmem>>, %arg4: memref<1x1x16xf32, #tpu.memory_space<vmem>>, %arg5: memref<1x16x8xi32, #tpu.memory_space<vmem>>) attributes {dimension_semantics = [#tpu.dimension_semantics<parallel>, #tpu.dimension_semantics<parallel>], iteration_bounds = array<i64: 2, 1>, scalar_prefetch = 0 : i64, scratch_operands = 0 : i64, tpu.core_type = #tpu.core_type<tc>, window_params = [{transform_indices = @transform_0, window_bounds = array<i64: 1, 16, 64>}, {transform_indices = @transform_1, window_bounds = array<i64: 1, 16, 1>}, {transform_indices = @transform_2, window_bounds = array<i64: 1, 1, 16>}, {transform_indices = @transform_3, window_bounds = array<i64: 1, 16, 8>}]} {
    %c16_i32 = arith.constant 16 : i32
    %0 = arith.muli %arg1, %c16_i32 : i32
    %1 = tpu.assume_multiple %0, 16 : i32
    %c0 = arith.constant 0 : index
    %c0_0 = arith.constant 0 : index
    %c0_1 = arith.constant 0 : index
    %2 = vector.load %arg2[%c0, %c0_0, %c0_1] : memref<1x16x64xbf16, #tpu.memory_space<vmem>>, vector<1x16x64xbf16>
    %3 = vector.shape_cast %2 : vector<1x16x64xbf16> to vector<16x64xbf16>
    %c0_2 = arith.constant 0 : index
    %4 = arith.index_cast %1 : i32 to index
    %c0_3 = arith.constant 0 : index
    %5 = vector.load %arg2[%c0_2, %4, %c0_3] : memref<1x16x64xbf16, #tpu.memory_space<vmem>>, vector<1x16x64xbf16>
    %6 = vector.shape_cast %5 : vector<1x16x64xbf16> to vector<16x64xbf16>
    %cst = arith.constant dense<0.000000e+00> : vector<16x16xf32>
    %7 = tpu.matmul %6, %3, %cst {dimension_numbers = #tpu.dot_dimension_numbers<[1], [1], [0], [0], [0, 0, 1, 0], [], []>} : vector<16x64xbf16>, vector<16x64xbf16>, vector<16x16xf32> -> vector<16x16xf32>
    %c0_4 = arith.constant 0 : index
    %8 = arith.index_cast %1 : i32 to index
    %c0_5 = arith.constant 0 : index
    %9 = vector.load %arg3[%c0_4, %8, %c0_5] : memref<1x16x1xf32, #tpu.memory_space<vmem>>, vector<1x16x1xf32>
    %10 = vector.shape_cast %9 : vector<1x16x1xf32> to vector<16x1xf32>
    %c0_6 = arith.constant 0 : index
    %c0_7 = arith.constant 0 : index
    %c0_8 = arith.constant 0 : index
    %11 = vector.load %arg4[%c0_6, %c0_7, %c0_8] : memref<1x1x16xf32, #tpu.memory_space<vmem>>, vector<1x1x16xf32>
    %12 = vector.shape_cast %11 : vector<1x1x16xf32> to vector<1x16xf32>
    %cst_9 = arith.constant 2.000000e+00 : f32
    %13 = vector.broadcast %cst_9 : f32 to vector<16x16xf32>
    %14 = arith.mulf %13, %7 : vector<16x16xf32>
    %15 = vector.broadcast %10 : vector<16x1xf32> to vector<16x16xf32>
    %16 = arith.subf %14, %15 : vector<16x16xf32>
    %17 = vector.broadcast %12 : vector<1x16xf32> to vector<16x16xf32>
    %18 = arith.subf %16, %17 : vector<16x16xf32>
    %19 = tpu.iota {dimensions = array<i32: 1>} : vector<16x16xi32>
    %cst_10 = arith.constant dense<0xFF800000> : vector<16xf32>
    %20 = vector.multi_reduction <maximumf>, %18, %cst_10 [1] : vector<16x16xf32> to vector<16xf32>
    %21 = vector.shape_cast %20 : vector<16xf32> to vector<16x1xf32>
    %22 = vector.broadcast %21 : vector<16x1xf32> to vector<16x16xf32>
    %23 = arith.cmpf oge, %18, %22 : vector<16x16xf32>
    %c16_i32_11 = arith.constant 16 : i32
    %24 = vector.broadcast %c16_i32_11 : i32 to vector<16x16xi32>
    %25 = arith.select %23, %19, %24 : vector<16x16xi1>, vector<16x16xi32>
    %cst_12 = arith.constant dense<2147483647> : vector<16xi32>
    %26 = vector.multi_reduction <minsi>, %25, %cst_12 [1] : vector<16x16xi32> to vector<16xi32>
    %27 = vector.shape_cast %26 : vector<16xi32> to vector<16x1xi32>
    %28 = vector.broadcast %27 : vector<16x1xi32> to vector<16x16xi32>
    %29 = arith.cmpi eq, %19, %28 : vector<16x16xi32>
    %cst_13 = arith.constant 0xFF800000 : f32
    %30 = vector.broadcast %cst_13 : f32 to vector<16x16xf32>
    %31 = arith.select %29, %30, %18 : vector<16x16xi1>, vector<16x16xf32>
    %cst_14 = arith.constant dense<0xFF800000> : vector<16xf32>
    %32 = vector.multi_reduction <maximumf>, %31, %cst_14 [1] : vector<16x16xf32> to vector<16xf32>
    %33 = vector.shape_cast %32 : vector<16xf32> to vector<16x1xf32>
    %34 = vector.broadcast %33 : vector<16x1xf32> to vector<16x16xf32>
    %35 = arith.cmpf oge, %31, %34 : vector<16x16xf32>
    %c16_i32_15 = arith.constant 16 : i32
    %36 = vector.broadcast %c16_i32_15 : i32 to vector<16x16xi32>
    %37 = arith.select %35, %19, %36 : vector<16x16xi1>, vector<16x16xi32>
    %cst_16 = arith.constant dense<2147483647> : vector<16xi32>
    %38 = vector.multi_reduction <minsi>, %37, %cst_16 [1] : vector<16x16xi32> to vector<16xi32>
    %39 = vector.shape_cast %38 : vector<16xi32> to vector<16x1xi32>
    %40 = vector.broadcast %39 : vector<16x1xi32> to vector<16x16xi32>
    %41 = arith.cmpi eq, %19, %40 : vector<16x16xi32>
    %cst_17 = arith.constant 0xFF800000 : f32
    %42 = vector.broadcast %cst_17 : f32 to vector<16x16xf32>
    %43 = arith.select %41, %42, %31 : vector<16x16xi1>, vector<16x16xf32>
    %cst_18 = arith.constant dense<0xFF800000> : vector<16xf32>
    %44 = vector.multi_reduction <maximumf>, %43, %cst_18 [1] : vector<16x16xf32> to vector<16xf32>
    %45 = vector.shape_cast %44 : vector<16xf32> to vector<16x1xf32>
    %46 = vector.broadcast %45 : vector<16x1xf32> to vector<16x16xf32>
    %47 = arith.cmpf oge, %43, %46 : vector<16x16xf32>
    %c16_i32_19 = arith.constant 16 : i32
    %48 = vector.broadcast %c16_i32_19 : i32 to vector<16x16xi32>
    %49 = arith.select %47, %19, %48 : vector<16x16xi1>, vector<16x16xi32>
    %cst_20 = arith.constant dense<2147483647> : vector<16xi32>
    %50 = vector.multi_reduction <minsi>, %49, %cst_20 [1] : vector<16x16xi32> to vector<16xi32>
    %51 = vector.shape_cast %50 : vector<16xi32> to vector<16x1xi32>
    %52 = vector.broadcast %51 : vector<16x1xi32> to vector<16x16xi32>
    %53 = arith.cmpi eq, %19, %52 : vector<16x16xi32>
    %cst_21 = arith.constant 0xFF800000 : f32
    %54 = vector.broadcast %cst_21 : f32 to vector<16x16xf32>
    %55 = arith.select %53, %54, %43 : vector<16x16xi1>, vector<16x16xf32>
    %cst_22 = arith.constant dense<0xFF800000> : vector<16xf32>
    %56 = vector.multi_reduction <maximumf>, %55, %cst_22 [1] : vector<16x16xf32> to vector<16xf32>
    %57 = vector.shape_cast %56 : vector<16xf32> to vector<16x1xf32>
    %58 = vector.broadcast %57 : vector<16x1xf32> to vector<16x16xf32>
    %59 = arith.cmpf oge, %55, %58 : vector<16x16xf32>
    %c16_i32_23 = arith.constant 16 : i32
    %60 = vector.broadcast %c16_i32_23 : i32 to vector<16x16xi32>
    %61 = arith.select %59, %19, %60 : vector<16x16xi1>, vector<16x16xi32>
    %cst_24 = arith.constant dense<2147483647> : vector<16xi32>
    %62 = vector.multi_reduction <minsi>, %61, %cst_24 [1] : vector<16x16xi32> to vector<16xi32>
    %63 = vector.shape_cast %62 : vector<16xi32> to vector<16x1xi32>
    %64 = vector.broadcast %63 : vector<16x1xi32> to vector<16x16xi32>
    %65 = arith.cmpi eq, %19, %64 : vector<16x16xi32>
    %cst_25 = arith.constant 0xFF800000 : f32
    %66 = vector.broadcast %cst_25 : f32 to vector<16x16xf32>
    %67 = arith.select %65, %66, %55 : vector<16x16xi1>, vector<16x16xf32>
    %cst_26 = arith.constant dense<0xFF800000> : vector<16xf32>
    %68 = vector.multi_reduction <maximumf>, %67, %cst_26 [1] : vector<16x16xf32> to vector<16xf32>
    %69 = vector.shape_cast %68 : vector<16xf32> to vector<16x1xf32>
    %70 = vector.broadcast %69 : vector<16x1xf32> to vector<16x16xf32>
    %71 = arith.cmpf oge, %67, %70 : vector<16x16xf32>
    %c16_i32_27 = arith.constant 16 : i32
    %72 = vector.broadcast %c16_i32_27 : i32 to vector<16x16xi32>
    %73 = arith.select %71, %19, %72 : vector<16x16xi1>, vector<16x16xi32>
    %cst_28 = arith.constant dense<2147483647> : vector<16xi32>
    %74 = vector.multi_reduction <minsi>, %73, %cst_28 [1] : vector<16x16xi32> to vector<16xi32>
    %75 = vector.shape_cast %74 : vector<16xi32> to vector<16x1xi32>
    %76 = vector.broadcast %75 : vector<16x1xi32> to vector<16x16xi32>
    %77 = arith.cmpi eq, %19, %76 : vector<16x16xi32>
    %cst_29 = arith.constant 0xFF800000 : f32
    %78 = vector.broadcast %cst_29 : f32 to vector<16x16xf32>
    %79 = arith.select %77, %78, %67 : vector<16x16xi1>, vector<16x16xf32>
    %cst_30 = arith.constant dense<0xFF800000> : vector<16xf32>
    %80 = vector.multi_reduction <maximumf>, %79, %cst_30 [1] : vector<16x16xf32> to vector<16xf32>
    %81 = vector.shape_cast %80 : vector<16xf32> to vector<16x1xf32>
    %82 = vector.broadcast %81 : vector<16x1xf32> to vector<16x16xf32>
    %83 = arith.cmpf oge, %79, %82 : vector<16x16xf32>
    %c16_i32_31 = arith.constant 16 : i32
    %84 = vector.broadcast %c16_i32_31 : i32 to vector<16x16xi32>
    %85 = arith.select %83, %19, %84 : vector<16x16xi1>, vector<16x16xi32>
    %cst_32 = arith.constant dense<2147483647> : vector<16xi32>
    %86 = vector.multi_reduction <minsi>, %85, %cst_32 [1] : vector<16x16xi32> to vector<16xi32>
    %87 = vector.shape_cast %86 : vector<16xi32> to vector<16x1xi32>
    %88 = vector.broadcast %87 : vector<16x1xi32> to vector<16x16xi32>
    %89 = arith.cmpi eq, %19, %88 : vector<16x16xi32>
    %cst_33 = arith.constant 0xFF800000 : f32
    %90 = vector.broadcast %cst_33 : f32 to vector<16x16xf32>
    %91 = arith.select %89, %90, %79 : vector<16x16xi1>, vector<16x16xf32>
    %cst_34 = arith.constant dense<0xFF800000> : vector<16xf32>
    %92 = vector.multi_reduction <maximumf>, %91, %cst_34 [1] : vector<16x16xf32> to vector<16xf32>
    %93 = vector.shape_cast %92 : vector<16xf32> to vector<16x1xf32>
    %94 = vector.broadcast %93 : vector<16x1xf32> to vector<16x16xf32>
    %95 = arith.cmpf oge, %91, %94 : vector<16x16xf32>
    %c16_i32_35 = arith.constant 16 : i32
    %96 = vector.broadcast %c16_i32_35 : i32 to vector<16x16xi32>
    %97 = arith.select %95, %19, %96 : vector<16x16xi1>, vector<16x16xi32>
    %cst_36 = arith.constant dense<2147483647> : vector<16xi32>
    %98 = vector.multi_reduction <minsi>, %97, %cst_36 [1] : vector<16x16xi32> to vector<16xi32>
    %99 = vector.shape_cast %98 : vector<16xi32> to vector<16x1xi32>
    %100 = vector.broadcast %99 : vector<16x1xi32> to vector<16x16xi32>
    %101 = arith.cmpi eq, %19, %100 : vector<16x16xi32>
    %cst_37 = arith.constant 0xFF800000 : f32
    %102 = vector.broadcast %cst_37 : f32 to vector<16x16xf32>
    %103 = arith.select %101, %102, %91 : vector<16x16xi1>, vector<16x16xf32>
    %cst_38 = arith.constant dense<0xFF800000> : vector<16xf32>
    %104 = vector.multi_reduction <maximumf>, %103, %cst_38 [1] : vector<16x16xf32> to vector<16xf32>
    %105 = vector.shape_cast %104 : vector<16xf32> to vector<16x1xf32>
    %106 = vector.broadcast %105 : vector<16x1xf32> to vector<16x16xf32>
    %107 = arith.cmpf oge, %103, %106 : vector<16x16xf32>
    %c16_i32_39 = arith.constant 16 : i32
    %108 = vector.broadcast %c16_i32_39 : i32 to vector<16x16xi32>
    %109 = arith.select %107, %19, %108 : vector<16x16xi1>, vector<16x16xi32>
    %cst_40 = arith.constant dense<2147483647> : vector<16xi32>
    %110 = vector.multi_reduction <minsi>, %109, %cst_40 [1] : vector<16x16xi32> to vector<16xi32>
    %111 = vector.shape_cast %110 : vector<16xi32> to vector<16x1xi32>
    %112 = tpu.concatenate %27, %39, %51, %63, %75, %87, %99, %111 in 1 : vector<16x1xi32>, vector<16x1xi32>, vector<16x1xi32>, vector<16x1xi32>, vector<16x1xi32>, vector<16x1xi32>, vector<16x1xi32>, vector<16x1xi32> -> vector<16x8xi32>
    %c0_41 = arith.constant 0 : index
    %c0_42 = arith.constant 0 : index
    %c0_43 = arith.constant 0 : index
    %113 = vector.load %arg5[%c0_41, %c0_42, %c0_43] : memref<1x16x8xi32, #tpu.memory_space<vmem>>, vector<1x16x8xi32>
    %114 = vector.shape_cast %113 : vector<1x16x8xi32> to vector<16x8xi32>
    %115 = vector.shape_cast %112 : vector<16x8xi32> to vector<1x16x8xi32>
    tpu.vector_store %arg5[%c0_41, %c0_42, %c0_43], %115 {strides = array<i32>} : memref<1x16x8xi32, #tpu.memory_space<vmem>>, vector<1x16x8xi32>,
    return
  }
  func.func @transform_0(%arg0: i32, %arg1: i32) -> (i32, i32, i32) {
    %c0_i32 = arith.constant 0 : i32
    %c0_i32_0 = arith.constant 0 : i32
    %c0_i32_1 = arith.constant 0 : i32
    return %arg0, %c0_i32, %c0_i32_0 : i32, i32, i32
  }
  func.func @transform_1(%arg0: i32, %arg1: i32) -> (i32, i32, i32) {
    %c0_i32 = arith.constant 0 : i32
    %c0_i32_0 = arith.constant 0 : i32
    %c0_i32_1 = arith.constant 0 : i32
    return %arg0, %c0_i32, %c0_i32_0 : i32, i32, i32
  }
  func.func @transform_2(%arg0: i32, %arg1: i32) -> (i32, i32, i32) {
    %c0_i32 = arith.constant 0 : i32
    %c0_i32_0 = arith.constant 0 : i32
    %c0_i32_1 = arith.constant 0 : i32
    return %arg0, %c0_i32, %c0_i32_0 : i32, i32, i32
  }
  func.func @transform_3(%arg0: i32, %arg1: i32) -> (i32, i32, i32) {
    %c0_i32 = arith.constant 0 : i32
    %c0_i32_0 = arith.constant 0 : i32
    return %arg0, %arg1, %c0_i32 : i32, i32, i32
  }
}

module attributes {stable_mosaic.version = 11 : i64} {
  func.func @_edge_conv_kernel(%arg0: i32, %arg1: i32, %arg2: memref<1x32x64xbf16, #tpu.memory_space<vmem>>, %arg3: memref<32x64xbf16, #tpu.memory_space<vmem>>, %arg4: memref<64x64xbf16, #tpu.memory_space<vmem>>, %arg5: memref<64x64xbf16, #tpu.memory_space<vmem>>, %arg6: memref<32x64xbf16, #tpu.memory_space<vmem>>, %arg7: memref<32x64xf32, #tpu.memory_space<vmem>>) attributes {dimension_semantics = [#tpu.dimension_semantics<parallel>, #tpu.dimension_semantics<arbitrary>], iteration_bounds = array<i64: 1, 8>, scalar_prefetch = 0 : i64, scratch_operands = 1 : i64, tpu.core_type = #tpu.core_type<tc>, window_params = [{transform_indices = @transform_0, window_bounds = array<i64: 1, 32, 64>}, {transform_indices = @transform_1, window_bounds = array<i64: 32, 64>}, {pipeline_mode = #tpu.pipeline_mode<synchronous>, transform_indices = @transform_2, window_bounds = array<i64: 64, 64>}, {pipeline_mode = #tpu.pipeline_mode<synchronous>, transform_indices = @transform_3, window_bounds = array<i64: 64, 64>}, {transform_indices = @transform_4, window_bounds = array<i64: 32, 64>}]} {
    %c0_i32 = arith.constant 0 : i32
    %0 = arith.cmpi eq, %arg1, %c0_i32 : i32
    %1 = arith.extui %0 : i1 to i32
    %c0_i32_0 = arith.constant 0 : i32
    %2 = arith.cmpi ne, %1, %c0_i32_0 : i32
    scf.if %2 {
      %cst_10 = arith.constant 0xFF800000 : f32
      %13 = vector.broadcast %cst_10 : f32 to vector<32x64xf32>
      %c0_11 = arith.constant 0 : index
      %c0_12 = arith.constant 0 : index
      %14 = vector.load %arg7[%c0_11, %c0_12] : memref<32x64xf32, #tpu.memory_space<vmem>>, vector<32x64xf32>
      tpu.vector_store %arg7[%c0_11, %c0_12], %13 {strides = array<i32>} : memref<32x64xf32, #tpu.memory_space<vmem>>, vector<32x64xf32>,
    } else {
    }
    %c0 = arith.constant 0 : index
    %c0_1 = arith.constant 0 : index
    %3 = vector.load %arg7[%c0, %c0_1] : memref<32x64xf32, #tpu.memory_space<vmem>>, vector<32x64xf32>
    %c0_2 = arith.constant 0 : index
    %c0_3 = arith.constant 0 : index
    %c0_4 = arith.constant 0 : index
    %4 = vector.load %arg2[%c0_2, %c0_3, %c0_4] : memref<1x32x64xbf16, #tpu.memory_space<vmem>>, vector<1x32x64xbf16>
    %5 = vector.shape_cast %4 : vector<1x32x64xbf16> to vector<32x64xbf16>
    %c0_5 = arith.constant 0 : index
    %c0_6 = arith.constant 0 : index
    %6 = vector.load %arg4[%c0_5, %c0_6] : memref<64x64xbf16, #tpu.memory_space<vmem>>, vector<64x64xbf16>
    %cst = arith.constant dense<0.000000e+00> : vector<32x64xf32>
    %7 = tpu.matmul %5, %6, %cst {dimension_numbers = #tpu.dot_dimension_numbers<[1], [0], [0], [1], [0, 0, 1, 1], [], []>} : vector<32x64xbf16>, vector<64x64xbf16>, vector<32x64xf32> -> vector<32x64xf32>
    %8 = arith.maximumf %3, %7 : vector<32x64xf32>
    %c0_7 = arith.constant 0 : index
    %c0_8 = arith.constant 0 : index
    %9 = vector.load %arg7[%c0_7, %c0_8] : memref<32x64xf32, #tpu.memory_space<vmem>>, vector<32x64xf32>
    tpu.vector_store %arg7[%c0_7, %c0_8], %8 {strides = array<i32>} : memref<32x64xf32, #tpu.memory_space<vmem>>, vector<32x64xf32>,
    %c7_i32 = arith.constant 7 : i32
    %10 = arith.cmpi eq, %arg1, %c7_i32 : i32
    %11 = arith.extui %10 : i1 to i32
    %c0_i32_9 = arith.constant 0 : i32
    %12 = arith.cmpi ne, %11, %c0_i32_9 : i32
    scf.if %12 {
      %c0_10 = arith.constant 0 : index
      %c0_11 = arith.constant 0 : index
      %13 = vector.load %arg7[%c0_10, %c0_11] : memref<32x64xf32, #tpu.memory_space<vmem>>, vector<32x64xf32>
      %c0_12 = arith.constant 0 : index
      %c0_13 = arith.constant 0 : index
      %14 = vector.load %arg3[%c0_12, %c0_13] : memref<32x64xbf16, #tpu.memory_space<vmem>>, vector<32x64xbf16>
      %c0_14 = arith.constant 0 : index
      %c0_15 = arith.constant 0 : index
      %15 = vector.load %arg5[%c0_14, %c0_15] : memref<64x64xbf16, #tpu.memory_space<vmem>>, vector<64x64xbf16>
      %cst_16 = arith.constant dense<0.000000e+00> : vector<32x64xf32>
      %16 = tpu.matmul %14, %15, %cst_16 {dimension_numbers = #tpu.dot_dimension_numbers<[1], [0], [0], [1], [0, 0, 1, 1], [], []>} : vector<32x64xbf16>, vector<64x64xbf16>, vector<32x64xf32> -> vector<32x64xf32>
      %17 = arith.addf %13, %16 : vector<32x64xf32>
      %cst_17 = arith.constant 0.000000e+00 : f32
      %18 = vector.broadcast %cst_17 : f32 to vector<32x64xf32>
      %19 = arith.cmpf oge, %17, %18 : vector<32x64xf32>
      %cst_18 = arith.constant 2.000000e-01 : f32
      %20 = vector.broadcast %cst_18 : f32 to vector<32x64xf32>
      %21 = arith.mulf %20, %17 : vector<32x64xf32>
      %22 = arith.select %19, %17, %21 : vector<32x64xi1>, vector<32x64xf32>
      %23 = arith.truncf %22 : vector<32x64xf32> to vector<32x64xbf16>
      %c0_19 = arith.constant 0 : index
      %c0_20 = arith.constant 0 : index
      %24 = vector.load %arg6[%c0_19, %c0_20] : memref<32x64xbf16, #tpu.memory_space<vmem>>, vector<32x64xbf16>
      tpu.vector_store %arg6[%c0_19, %c0_20], %23 {strides = array<i32>} : memref<32x64xbf16, #tpu.memory_space<vmem>>, vector<32x64xbf16>,
    } else {
    }
    return
  }
  func.func @transform_0(%arg0: i32, %arg1: i32) -> (i32, i32, i32) {
    %c0_i32 = arith.constant 0 : i32
    %c0_i32_0 = arith.constant 0 : i32
    return %arg1, %arg0, %c0_i32 : i32, i32, i32
  }
  func.func @transform_1(%arg0: i32, %arg1: i32) -> (i32, i32) {
    %c0_i32 = arith.constant 0 : i32
    %c0_i32_0 = arith.constant 0 : i32
    return %arg0, %c0_i32 : i32, i32
  }
  func.func @transform_2(%arg0: i32, %arg1: i32) -> (i32, i32) {
    %c0_i32 = arith.constant 0 : i32
    %c0_i32_0 = arith.constant 0 : i32
    %c0_i32_1 = arith.constant 0 : i32
    return %c0_i32, %c0_i32_0 : i32, i32
  }
  func.func @transform_3(%arg0: i32, %arg1: i32) -> (i32, i32) {
    %c0_i32 = arith.constant 0 : i32
    %c0_i32_0 = arith.constant 0 : i32
    %c0_i32_1 = arith.constant 0 : i32
    return %c0_i32, %c0_i32_0 : i32, i32
  }
  func.func @transform_4(%arg0: i32, %arg1: i32) -> (i32, i32) {
    %c0_i32 = arith.constant 0 : i32
    %c0_i32_0 = arith.constant 0 : i32
    return %arg0, %c0_i32 : i32, i32
  }
}

module attributes {stable_mosaic.version = 11 : i64} {
  func.func @_edge_conv_kernel(%arg0: i32, %arg1: i32, %arg2: memref<1x32x64xbf16, #tpu.memory_space<vmem>>, %arg3: memref<32x64xbf16, #tpu.memory_space<vmem>>, %arg4: memref<64x128xbf16, #tpu.memory_space<vmem>>, %arg5: memref<64x128xbf16, #tpu.memory_space<vmem>>, %arg6: memref<32x128xbf16, #tpu.memory_space<vmem>>, %arg7: memref<32x128xf32, #tpu.memory_space<vmem>>) attributes {dimension_semantics = [#tpu.dimension_semantics<parallel>, #tpu.dimension_semantics<arbitrary>], iteration_bounds = array<i64: 1, 8>, scalar_prefetch = 0 : i64, scratch_operands = 1 : i64, tpu.core_type = #tpu.core_type<tc>, window_params = [{transform_indices = @transform_0, window_bounds = array<i64: 1, 32, 64>}, {transform_indices = @transform_1, window_bounds = array<i64: 32, 64>}, {pipeline_mode = #tpu.pipeline_mode<synchronous>, transform_indices = @transform_2, window_bounds = array<i64: 64, 128>}, {pipeline_mode = #tpu.pipeline_mode<synchronous>, transform_indices = @transform_3, window_bounds = array<i64: 64, 128>}, {transform_indices = @transform_4, window_bounds = array<i64: 32, 128>}]} {
    %c0_i32 = arith.constant 0 : i32
    %0 = arith.cmpi eq, %arg1, %c0_i32 : i32
    %1 = arith.extui %0 : i1 to i32
    %c0_i32_0 = arith.constant 0 : i32
    %2 = arith.cmpi ne, %1, %c0_i32_0 : i32
    scf.if %2 {
      %cst_10 = arith.constant 0xFF800000 : f32
      %13 = vector.broadcast %cst_10 : f32 to vector<32x128xf32>
      %c0_11 = arith.constant 0 : index
      %c0_12 = arith.constant 0 : index
      %14 = vector.load %arg7[%c0_11, %c0_12] : memref<32x128xf32, #tpu.memory_space<vmem>>, vector<32x128xf32>
      tpu.vector_store %arg7[%c0_11, %c0_12], %13 {strides = array<i32>} : memref<32x128xf32, #tpu.memory_space<vmem>>, vector<32x128xf32>,
    } else {
    }
    %c0 = arith.constant 0 : index
    %c0_1 = arith.constant 0 : index
    %3 = vector.load %arg7[%c0, %c0_1] : memref<32x128xf32, #tpu.memory_space<vmem>>, vector<32x128xf32>
    %c0_2 = arith.constant 0 : index
    %c0_3 = arith.constant 0 : index
    %c0_4 = arith.constant 0 : index
    %4 = vector.load %arg2[%c0_2, %c0_3, %c0_4] : memref<1x32x64xbf16, #tpu.memory_space<vmem>>, vector<1x32x64xbf16>
    %5 = vector.shape_cast %4 : vector<1x32x64xbf16> to vector<32x64xbf16>
    %c0_5 = arith.constant 0 : index
    %c0_6 = arith.constant 0 : index
    %6 = vector.load %arg4[%c0_5, %c0_6] : memref<64x128xbf16, #tpu.memory_space<vmem>>, vector<64x128xbf16>
    %cst = arith.constant dense<0.000000e+00> : vector<32x128xf32>
    %7 = tpu.matmul %5, %6, %cst {dimension_numbers = #tpu.dot_dimension_numbers<[1], [0], [0], [1], [0, 0, 1, 1], [], []>} : vector<32x64xbf16>, vector<64x128xbf16>, vector<32x128xf32> -> vector<32x128xf32>
    %8 = arith.maximumf %3, %7 : vector<32x128xf32>
    %c0_7 = arith.constant 0 : index
    %c0_8 = arith.constant 0 : index
    %9 = vector.load %arg7[%c0_7, %c0_8] : memref<32x128xf32, #tpu.memory_space<vmem>>, vector<32x128xf32>
    tpu.vector_store %arg7[%c0_7, %c0_8], %8 {strides = array<i32>} : memref<32x128xf32, #tpu.memory_space<vmem>>, vector<32x128xf32>,
    %c7_i32 = arith.constant 7 : i32
    %10 = arith.cmpi eq, %arg1, %c7_i32 : i32
    %11 = arith.extui %10 : i1 to i32
    %c0_i32_9 = arith.constant 0 : i32
    %12 = arith.cmpi ne, %11, %c0_i32_9 : i32
    scf.if %12 {
      %c0_10 = arith.constant 0 : index
      %c0_11 = arith.constant 0 : index
      %13 = vector.load %arg7[%c0_10, %c0_11] : memref<32x128xf32, #tpu.memory_space<vmem>>, vector<32x128xf32>
      %c0_12 = arith.constant 0 : index
      %c0_13 = arith.constant 0 : index
      %14 = vector.load %arg3[%c0_12, %c0_13] : memref<32x64xbf16, #tpu.memory_space<vmem>>, vector<32x64xbf16>
      %c0_14 = arith.constant 0 : index
      %c0_15 = arith.constant 0 : index
      %15 = vector.load %arg5[%c0_14, %c0_15] : memref<64x128xbf16, #tpu.memory_space<vmem>>, vector<64x128xbf16>
      %cst_16 = arith.constant dense<0.000000e+00> : vector<32x128xf32>
      %16 = tpu.matmul %14, %15, %cst_16 {dimension_numbers = #tpu.dot_dimension_numbers<[1], [0], [0], [1], [0, 0, 1, 1], [], []>} : vector<32x64xbf16>, vector<64x128xbf16>, vector<32x128xf32> -> vector<32x128xf32>
      %17 = arith.addf %13, %16 : vector<32x128xf32>
      %cst_17 = arith.constant 0.000000e+00 : f32
      %18 = vector.broadcast %cst_17 : f32 to vector<32x128xf32>
      %19 = arith.cmpf oge, %17, %18 : vector<32x128xf32>
      %cst_18 = arith.constant 2.000000e-01 : f32
      %20 = vector.broadcast %cst_18 : f32 to vector<32x128xf32>
      %21 = arith.mulf %20, %17 : vector<32x128xf32>
      %22 = arith.select %19, %17, %21 : vector<32x128xi1>, vector<32x128xf32>
      %23 = arith.truncf %22 : vector<32x128xf32> to vector<32x128xbf16>
      %c0_19 = arith.constant 0 : index
      %c0_20 = arith.constant 0 : index
      %24 = vector.load %arg6[%c0_19, %c0_20] : memref<32x128xbf16, #tpu.memory_space<vmem>>, vector<32x128xbf16>
      tpu.vector_store %arg6[%c0_19, %c0_20], %23 {strides = array<i32>} : memref<32x128xbf16, #tpu.memory_space<vmem>>, vector<32x128xbf16>,
    } else {
    }
    return
  }
  func.func @transform_0(%arg0: i32, %arg1: i32) -> (i32, i32, i32) {
    %c0_i32 = arith.constant 0 : i32
    %c0_i32_0 = arith.constant 0 : i32
    return %arg1, %arg0, %c0_i32 : i32, i32, i32
  }
  func.func @transform_1(%arg0: i32, %arg1: i32) -> (i32, i32) {
    %c0_i32 = arith.constant 0 : i32
    %c0_i32_0 = arith.constant 0 : i32
    return %arg0, %c0_i32 : i32, i32
  }
  func.func @transform_2(%arg0: i32, %arg1: i32) -> (i32, i32) {
    %c0_i32 = arith.constant 0 : i32
    %c0_i32_0 = arith.constant 0 : i32
    %c0_i32_1 = arith.constant 0 : i32
    return %c0_i32, %c0_i32_0 : i32, i32
  }
  func.func @transform_3(%arg0: i32, %arg1: i32) -> (i32, i32) {
    %c0_i32 = arith.constant 0 : i32
    %c0_i32_0 = arith.constant 0 : i32
    %c0_i32_1 = arith.constant 0 : i32
    return %c0_i32, %c0_i32_0 : i32, i32
  }
  func.func @transform_4(%arg0: i32, %arg1: i32) -> (i32, i32) {
    %c0_i32 = arith.constant 0 : i32
    %c0_i32_0 = arith.constant 0 : i32
    return %arg0, %c0_i32 : i32, i32
  }
}

module attributes {stable_mosaic.version = 11 : i64} {
  func.func @_knn_kernel(%arg0: i32, %arg1: i32, %arg2: memref<1x16x128xbf16, #tpu.memory_space<vmem>>, %arg3: memref<1x16x1xf32, #tpu.memory_space<vmem>>, %arg4: memref<1x1x16xf32, #tpu.memory_space<vmem>>, %arg5: memref<1x16x8xi32, #tpu.memory_space<vmem>>) attributes {dimension_semantics = [#tpu.dimension_semantics<parallel>, #tpu.dimension_semantics<parallel>], iteration_bounds = array<i64: 2, 1>, scalar_prefetch = 0 : i64, scratch_operands = 0 : i64, tpu.core_type = #tpu.core_type<tc>, window_params = [{transform_indices = @transform_0, window_bounds = array<i64: 1, 16, 128>}, {transform_indices = @transform_1, window_bounds = array<i64: 1, 16, 1>}, {transform_indices = @transform_2, window_bounds = array<i64: 1, 1, 16>}, {transform_indices = @transform_3, window_bounds = array<i64: 1, 16, 8>}]} {
    %c16_i32 = arith.constant 16 : i32
    %0 = arith.muli %arg1, %c16_i32 : i32
    %1 = tpu.assume_multiple %0, 16 : i32
    %c0 = arith.constant 0 : index
    %c0_0 = arith.constant 0 : index
    %c0_1 = arith.constant 0 : index
    %2 = vector.load %arg2[%c0, %c0_0, %c0_1] : memref<1x16x128xbf16, #tpu.memory_space<vmem>>, vector<1x16x128xbf16>
    %3 = vector.shape_cast %2 : vector<1x16x128xbf16> to vector<16x128xbf16>
    %c0_2 = arith.constant 0 : index
    %4 = arith.index_cast %1 : i32 to index
    %c0_3 = arith.constant 0 : index
    %5 = vector.load %arg2[%c0_2, %4, %c0_3] : memref<1x16x128xbf16, #tpu.memory_space<vmem>>, vector<1x16x128xbf16>
    %6 = vector.shape_cast %5 : vector<1x16x128xbf16> to vector<16x128xbf16>
    %cst = arith.constant dense<0.000000e+00> : vector<16x16xf32>
    %7 = tpu.matmul %6, %3, %cst {dimension_numbers = #tpu.dot_dimension_numbers<[1], [1], [0], [0], [0, 0, 1, 0], [], []>} : vector<16x128xbf16>, vector<16x128xbf16>, vector<16x16xf32> -> vector<16x16xf32>
    %c0_4 = arith.constant 0 : index
    %8 = arith.index_cast %1 : i32 to index
    %c0_5 = arith.constant 0 : index
    %9 = vector.load %arg3[%c0_4, %8, %c0_5] : memref<1x16x1xf32, #tpu.memory_space<vmem>>, vector<1x16x1xf32>
    %10 = vector.shape_cast %9 : vector<1x16x1xf32> to vector<16x1xf32>
    %c0_6 = arith.constant 0 : index
    %c0_7 = arith.constant 0 : index
    %c0_8 = arith.constant 0 : index
    %11 = vector.load %arg4[%c0_6, %c0_7, %c0_8] : memref<1x1x16xf32, #tpu.memory_space<vmem>>, vector<1x1x16xf32>
    %12 = vector.shape_cast %11 : vector<1x1x16xf32> to vector<1x16xf32>
    %cst_9 = arith.constant 2.000000e+00 : f32
    %13 = vector.broadcast %cst_9 : f32 to vector<16x16xf32>
    %14 = arith.mulf %13, %7 : vector<16x16xf32>
    %15 = vector.broadcast %10 : vector<16x1xf32> to vector<16x16xf32>
    %16 = arith.subf %14, %15 : vector<16x16xf32>
    %17 = vector.broadcast %12 : vector<1x16xf32> to vector<16x16xf32>
    %18 = arith.subf %16, %17 : vector<16x16xf32>
    %19 = tpu.iota {dimensions = array<i32: 1>} : vector<16x16xi32>
    %cst_10 = arith.constant dense<0xFF800000> : vector<16xf32>
    %20 = vector.multi_reduction <maximumf>, %18, %cst_10 [1] : vector<16x16xf32> to vector<16xf32>
    %21 = vector.shape_cast %20 : vector<16xf32> to vector<16x1xf32>
    %22 = vector.broadcast %21 : vector<16x1xf32> to vector<16x16xf32>
    %23 = arith.cmpf oge, %18, %22 : vector<16x16xf32>
    %c16_i32_11 = arith.constant 16 : i32
    %24 = vector.broadcast %c16_i32_11 : i32 to vector<16x16xi32>
    %25 = arith.select %23, %19, %24 : vector<16x16xi1>, vector<16x16xi32>
    %cst_12 = arith.constant dense<2147483647> : vector<16xi32>
    %26 = vector.multi_reduction <minsi>, %25, %cst_12 [1] : vector<16x16xi32> to vector<16xi32>
    %27 = vector.shape_cast %26 : vector<16xi32> to vector<16x1xi32>
    %28 = vector.broadcast %27 : vector<16x1xi32> to vector<16x16xi32>
    %29 = arith.cmpi eq, %19, %28 : vector<16x16xi32>
    %cst_13 = arith.constant 0xFF800000 : f32
    %30 = vector.broadcast %cst_13 : f32 to vector<16x16xf32>
    %31 = arith.select %29, %30, %18 : vector<16x16xi1>, vector<16x16xf32>
    %cst_14 = arith.constant dense<0xFF800000> : vector<16xf32>
    %32 = vector.multi_reduction <maximumf>, %31, %cst_14 [1] : vector<16x16xf32> to vector<16xf32>
    %33 = vector.shape_cast %32 : vector<16xf32> to vector<16x1xf32>
    %34 = vector.broadcast %33 : vector<16x1xf32> to vector<16x16xf32>
    %35 = arith.cmpf oge, %31, %34 : vector<16x16xf32>
    %c16_i32_15 = arith.constant 16 : i32
    %36 = vector.broadcast %c16_i32_15 : i32 to vector<16x16xi32>
    %37 = arith.select %35, %19, %36 : vector<16x16xi1>, vector<16x16xi32>
    %cst_16 = arith.constant dense<2147483647> : vector<16xi32>
    %38 = vector.multi_reduction <minsi>, %37, %cst_16 [1] : vector<16x16xi32> to vector<16xi32>
    %39 = vector.shape_cast %38 : vector<16xi32> to vector<16x1xi32>
    %40 = vector.broadcast %39 : vector<16x1xi32> to vector<16x16xi32>
    %41 = arith.cmpi eq, %19, %40 : vector<16x16xi32>
    %cst_17 = arith.constant 0xFF800000 : f32
    %42 = vector.broadcast %cst_17 : f32 to vector<16x16xf32>
    %43 = arith.select %41, %42, %31 : vector<16x16xi1>, vector<16x16xf32>
    %cst_18 = arith.constant dense<0xFF800000> : vector<16xf32>
    %44 = vector.multi_reduction <maximumf>, %43, %cst_18 [1] : vector<16x16xf32> to vector<16xf32>
    %45 = vector.shape_cast %44 : vector<16xf32> to vector<16x1xf32>
    %46 = vector.broadcast %45 : vector<16x1xf32> to vector<16x16xf32>
    %47 = arith.cmpf oge, %43, %46 : vector<16x16xf32>
    %c16_i32_19 = arith.constant 16 : i32
    %48 = vector.broadcast %c16_i32_19 : i32 to vector<16x16xi32>
    %49 = arith.select %47, %19, %48 : vector<16x16xi1>, vector<16x16xi32>
    %cst_20 = arith.constant dense<2147483647> : vector<16xi32>
    %50 = vector.multi_reduction <minsi>, %49, %cst_20 [1] : vector<16x16xi32> to vector<16xi32>
    %51 = vector.shape_cast %50 : vector<16xi32> to vector<16x1xi32>
    %52 = vector.broadcast %51 : vector<16x1xi32> to vector<16x16xi32>
    %53 = arith.cmpi eq, %19, %52 : vector<16x16xi32>
    %cst_21 = arith.constant 0xFF800000 : f32
    %54 = vector.broadcast %cst_21 : f32 to vector<16x16xf32>
    %55 = arith.select %53, %54, %43 : vector<16x16xi1>, vector<16x16xf32>
    %cst_22 = arith.constant dense<0xFF800000> : vector<16xf32>
    %56 = vector.multi_reduction <maximumf>, %55, %cst_22 [1] : vector<16x16xf32> to vector<16xf32>
    %57 = vector.shape_cast %56 : vector<16xf32> to vector<16x1xf32>
    %58 = vector.broadcast %57 : vector<16x1xf32> to vector<16x16xf32>
    %59 = arith.cmpf oge, %55, %58 : vector<16x16xf32>
    %c16_i32_23 = arith.constant 16 : i32
    %60 = vector.broadcast %c16_i32_23 : i32 to vector<16x16xi32>
    %61 = arith.select %59, %19, %60 : vector<16x16xi1>, vector<16x16xi32>
    %cst_24 = arith.constant dense<2147483647> : vector<16xi32>
    %62 = vector.multi_reduction <minsi>, %61, %cst_24 [1] : vector<16x16xi32> to vector<16xi32>
    %63 = vector.shape_cast %62 : vector<16xi32> to vector<16x1xi32>
    %64 = vector.broadcast %63 : vector<16x1xi32> to vector<16x16xi32>
    %65 = arith.cmpi eq, %19, %64 : vector<16x16xi32>
    %cst_25 = arith.constant 0xFF800000 : f32
    %66 = vector.broadcast %cst_25 : f32 to vector<16x16xf32>
    %67 = arith.select %65, %66, %55 : vector<16x16xi1>, vector<16x16xf32>
    %cst_26 = arith.constant dense<0xFF800000> : vector<16xf32>
    %68 = vector.multi_reduction <maximumf>, %67, %cst_26 [1] : vector<16x16xf32> to vector<16xf32>
    %69 = vector.shape_cast %68 : vector<16xf32> to vector<16x1xf32>
    %70 = vector.broadcast %69 : vector<16x1xf32> to vector<16x16xf32>
    %71 = arith.cmpf oge, %67, %70 : vector<16x16xf32>
    %c16_i32_27 = arith.constant 16 : i32
    %72 = vector.broadcast %c16_i32_27 : i32 to vector<16x16xi32>
    %73 = arith.select %71, %19, %72 : vector<16x16xi1>, vector<16x16xi32>
    %cst_28 = arith.constant dense<2147483647> : vector<16xi32>
    %74 = vector.multi_reduction <minsi>, %73, %cst_28 [1] : vector<16x16xi32> to vector<16xi32>
    %75 = vector.shape_cast %74 : vector<16xi32> to vector<16x1xi32>
    %76 = vector.broadcast %75 : vector<16x1xi32> to vector<16x16xi32>
    %77 = arith.cmpi eq, %19, %76 : vector<16x16xi32>
    %cst_29 = arith.constant 0xFF800000 : f32
    %78 = vector.broadcast %cst_29 : f32 to vector<16x16xf32>
    %79 = arith.select %77, %78, %67 : vector<16x16xi1>, vector<16x16xf32>
    %cst_30 = arith.constant dense<0xFF800000> : vector<16xf32>
    %80 = vector.multi_reduction <maximumf>, %79, %cst_30 [1] : vector<16x16xf32> to vector<16xf32>
    %81 = vector.shape_cast %80 : vector<16xf32> to vector<16x1xf32>
    %82 = vector.broadcast %81 : vector<16x1xf32> to vector<16x16xf32>
    %83 = arith.cmpf oge, %79, %82 : vector<16x16xf32>
    %c16_i32_31 = arith.constant 16 : i32
    %84 = vector.broadcast %c16_i32_31 : i32 to vector<16x16xi32>
    %85 = arith.select %83, %19, %84 : vector<16x16xi1>, vector<16x16xi32>
    %cst_32 = arith.constant dense<2147483647> : vector<16xi32>
    %86 = vector.multi_reduction <minsi>, %85, %cst_32 [1] : vector<16x16xi32> to vector<16xi32>
    %87 = vector.shape_cast %86 : vector<16xi32> to vector<16x1xi32>
    %88 = vector.broadcast %87 : vector<16x1xi32> to vector<16x16xi32>
    %89 = arith.cmpi eq, %19, %88 : vector<16x16xi32>
    %cst_33 = arith.constant 0xFF800000 : f32
    %90 = vector.broadcast %cst_33 : f32 to vector<16x16xf32>
    %91 = arith.select %89, %90, %79 : vector<16x16xi1>, vector<16x16xf32>
    %cst_34 = arith.constant dense<0xFF800000> : vector<16xf32>
    %92 = vector.multi_reduction <maximumf>, %91, %cst_34 [1] : vector<16x16xf32> to vector<16xf32>
    %93 = vector.shape_cast %92 : vector<16xf32> to vector<16x1xf32>
    %94 = vector.broadcast %93 : vector<16x1xf32> to vector<16x16xf32>
    %95 = arith.cmpf oge, %91, %94 : vector<16x16xf32>
    %c16_i32_35 = arith.constant 16 : i32
    %96 = vector.broadcast %c16_i32_35 : i32 to vector<16x16xi32>
    %97 = arith.select %95, %19, %96 : vector<16x16xi1>, vector<16x16xi32>
    %cst_36 = arith.constant dense<2147483647> : vector<16xi32>
    %98 = vector.multi_reduction <minsi>, %97, %cst_36 [1] : vector<16x16xi32> to vector<16xi32>
    %99 = vector.shape_cast %98 : vector<16xi32> to vector<16x1xi32>
    %100 = vector.broadcast %99 : vector<16x1xi32> to vector<16x16xi32>
    %101 = arith.cmpi eq, %19, %100 : vector<16x16xi32>
    %cst_37 = arith.constant 0xFF800000 : f32
    %102 = vector.broadcast %cst_37 : f32 to vector<16x16xf32>
    %103 = arith.select %101, %102, %91 : vector<16x16xi1>, vector<16x16xf32>
    %cst_38 = arith.constant dense<0xFF800000> : vector<16xf32>
    %104 = vector.multi_reduction <maximumf>, %103, %cst_38 [1] : vector<16x16xf32> to vector<16xf32>
    %105 = vector.shape_cast %104 : vector<16xf32> to vector<16x1xf32>
    %106 = vector.broadcast %105 : vector<16x1xf32> to vector<16x16xf32>
    %107 = arith.cmpf oge, %103, %106 : vector<16x16xf32>
    %c16_i32_39 = arith.constant 16 : i32
    %108 = vector.broadcast %c16_i32_39 : i32 to vector<16x16xi32>
    %109 = arith.select %107, %19, %108 : vector<16x16xi1>, vector<16x16xi32>
    %cst_40 = arith.constant dense<2147483647> : vector<16xi32>
    %110 = vector.multi_reduction <minsi>, %109, %cst_40 [1] : vector<16x16xi32> to vector<16xi32>
    %111 = vector.shape_cast %110 : vector<16xi32> to vector<16x1xi32>
    %112 = tpu.concatenate %27, %39, %51, %63, %75, %87, %99, %111 in 1 : vector<16x1xi32>, vector<16x1xi32>, vector<16x1xi32>, vector<16x1xi32>, vector<16x1xi32>, vector<16x1xi32>, vector<16x1xi32>, vector<16x1xi32> -> vector<16x8xi32>
    %c0_41 = arith.constant 0 : index
    %c0_42 = arith.constant 0 : index
    %c0_43 = arith.constant 0 : index
    %113 = vector.load %arg5[%c0_41, %c0_42, %c0_43] : memref<1x16x8xi32, #tpu.memory_space<vmem>>, vector<1x16x8xi32>
    %114 = vector.shape_cast %113 : vector<1x16x8xi32> to vector<16x8xi32>
    %115 = vector.shape_cast %112 : vector<16x8xi32> to vector<1x16x8xi32>
    tpu.vector_store %arg5[%c0_41, %c0_42, %c0_43], %115 {strides = array<i32>} : memref<1x16x8xi32, #tpu.memory_space<vmem>>, vector<1x16x8xi32>,
    return
  }
  func.func @transform_0(%arg0: i32, %arg1: i32) -> (i32, i32, i32) {
    %c0_i32 = arith.constant 0 : i32
    %c0_i32_0 = arith.constant 0 : i32
    %c0_i32_1 = arith.constant 0 : i32
    return %arg0, %c0_i32, %c0_i32_0 : i32, i32, i32
  }
  func.func @transform_1(%arg0: i32, %arg1: i32) -> (i32, i32, i32) {
    %c0_i32 = arith.constant 0 : i32
    %c0_i32_0 = arith.constant 0 : i32
    %c0_i32_1 = arith.constant 0 : i32
    return %arg0, %c0_i32, %c0_i32_0 : i32, i32, i32
  }
  func.func @transform_2(%arg0: i32, %arg1: i32) -> (i32, i32, i32) {
    %c0_i32 = arith.constant 0 : i32
    %c0_i32_0 = arith.constant 0 : i32
    %c0_i32_1 = arith.constant 0 : i32
    return %arg0, %c0_i32, %c0_i32_0 : i32, i32, i32
  }
  func.func @transform_3(%arg0: i32, %arg1: i32) -> (i32, i32, i32) {
    %c0_i32 = arith.constant 0 : i32
    %c0_i32_0 = arith.constant 0 : i32
    return %arg0, %arg1, %c0_i32 : i32, i32, i32
  }
}

module attributes {stable_mosaic.version = 11 : i64} {
  func.func @_edge_conv_kernel(%arg0: i32, %arg1: i32, %arg2: memref<1x32x128xbf16, #tpu.memory_space<vmem>>, %arg3: memref<32x128xbf16, #tpu.memory_space<vmem>>, %arg4: memref<128x256xbf16, #tpu.memory_space<vmem>>, %arg5: memref<128x256xbf16, #tpu.memory_space<vmem>>, %arg6: memref<32x256xbf16, #tpu.memory_space<vmem>>, %arg7: memref<32x256xf32, #tpu.memory_space<vmem>>) attributes {dimension_semantics = [#tpu.dimension_semantics<parallel>, #tpu.dimension_semantics<arbitrary>], iteration_bounds = array<i64: 1, 8>, scalar_prefetch = 0 : i64, scratch_operands = 1 : i64, tpu.core_type = #tpu.core_type<tc>, window_params = [{transform_indices = @transform_0, window_bounds = array<i64: 1, 32, 128>}, {transform_indices = @transform_1, window_bounds = array<i64: 32, 128>}, {pipeline_mode = #tpu.pipeline_mode<synchronous>, transform_indices = @transform_2, window_bounds = array<i64: 128, 256>}, {pipeline_mode = #tpu.pipeline_mode<synchronous>, transform_indices = @transform_3, window_bounds = array<i64: 128, 256>}, {transform_indices = @transform_4, window_bounds = array<i64: 32, 256>}]} {
    %c0_i32 = arith.constant 0 : i32
    %0 = arith.cmpi eq, %arg1, %c0_i32 : i32
    %1 = arith.extui %0 : i1 to i32
    %c0_i32_0 = arith.constant 0 : i32
    %2 = arith.cmpi ne, %1, %c0_i32_0 : i32
    scf.if %2 {
      %cst_10 = arith.constant 0xFF800000 : f32
      %13 = vector.broadcast %cst_10 : f32 to vector<32x256xf32>
      %c0_11 = arith.constant 0 : index
      %c0_12 = arith.constant 0 : index
      %14 = vector.load %arg7[%c0_11, %c0_12] : memref<32x256xf32, #tpu.memory_space<vmem>>, vector<32x256xf32>
      tpu.vector_store %arg7[%c0_11, %c0_12], %13 {strides = array<i32>} : memref<32x256xf32, #tpu.memory_space<vmem>>, vector<32x256xf32>,
    } else {
    }
    %c0 = arith.constant 0 : index
    %c0_1 = arith.constant 0 : index
    %3 = vector.load %arg7[%c0, %c0_1] : memref<32x256xf32, #tpu.memory_space<vmem>>, vector<32x256xf32>
    %c0_2 = arith.constant 0 : index
    %c0_3 = arith.constant 0 : index
    %c0_4 = arith.constant 0 : index
    %4 = vector.load %arg2[%c0_2, %c0_3, %c0_4] : memref<1x32x128xbf16, #tpu.memory_space<vmem>>, vector<1x32x128xbf16>
    %5 = vector.shape_cast %4 : vector<1x32x128xbf16> to vector<32x128xbf16>
    %c0_5 = arith.constant 0 : index
    %c0_6 = arith.constant 0 : index
    %6 = vector.load %arg4[%c0_5, %c0_6] : memref<128x256xbf16, #tpu.memory_space<vmem>>, vector<128x256xbf16>
    %cst = arith.constant dense<0.000000e+00> : vector<32x256xf32>
    %7 = tpu.matmul %5, %6, %cst {dimension_numbers = #tpu.dot_dimension_numbers<[1], [0], [0], [1], [0, 0, 1, 1], [], []>} : vector<32x128xbf16>, vector<128x256xbf16>, vector<32x256xf32> -> vector<32x256xf32>
    %8 = arith.maximumf %3, %7 : vector<32x256xf32>
    %c0_7 = arith.constant 0 : index
    %c0_8 = arith.constant 0 : index
    %9 = vector.load %arg7[%c0_7, %c0_8] : memref<32x256xf32, #tpu.memory_space<vmem>>, vector<32x256xf32>
    tpu.vector_store %arg7[%c0_7, %c0_8], %8 {strides = array<i32>} : memref<32x256xf32, #tpu.memory_space<vmem>>, vector<32x256xf32>,
    %c7_i32 = arith.constant 7 : i32
    %10 = arith.cmpi eq, %arg1, %c7_i32 : i32
    %11 = arith.extui %10 : i1 to i32
    %c0_i32_9 = arith.constant 0 : i32
    %12 = arith.cmpi ne, %11, %c0_i32_9 : i32
    scf.if %12 {
      %c0_10 = arith.constant 0 : index
      %c0_11 = arith.constant 0 : index
      %13 = vector.load %arg7[%c0_10, %c0_11] : memref<32x256xf32, #tpu.memory_space<vmem>>, vector<32x256xf32>
      %c0_12 = arith.constant 0 : index
      %c0_13 = arith.constant 0 : index
      %14 = vector.load %arg3[%c0_12, %c0_13] : memref<32x128xbf16, #tpu.memory_space<vmem>>, vector<32x128xbf16>
      %c0_14 = arith.constant 0 : index
      %c0_15 = arith.constant 0 : index
      %15 = vector.load %arg5[%c0_14, %c0_15] : memref<128x256xbf16, #tpu.memory_space<vmem>>, vector<128x256xbf16>
      %cst_16 = arith.constant dense<0.000000e+00> : vector<32x256xf32>
      %16 = tpu.matmul %14, %15, %cst_16 {dimension_numbers = #tpu.dot_dimension_numbers<[1], [0], [0], [1], [0, 0, 1, 1], [], []>} : vector<32x128xbf16>, vector<128x256xbf16>, vector<32x256xf32> -> vector<32x256xf32>
      %17 = arith.addf %13, %16 : vector<32x256xf32>
      %cst_17 = arith.constant 0.000000e+00 : f32
      %18 = vector.broadcast %cst_17 : f32 to vector<32x256xf32>
      %19 = arith.cmpf oge, %17, %18 : vector<32x256xf32>
      %cst_18 = arith.constant 2.000000e-01 : f32
      %20 = vector.broadcast %cst_18 : f32 to vector<32x256xf32>
      %21 = arith.mulf %20, %17 : vector<32x256xf32>
      %22 = arith.select %19, %17, %21 : vector<32x256xi1>, vector<32x256xf32>
      %23 = arith.truncf %22 : vector<32x256xf32> to vector<32x256xbf16>
      %c0_19 = arith.constant 0 : index
      %c0_20 = arith.constant 0 : index
      %24 = vector.load %arg6[%c0_19, %c0_20] : memref<32x256xbf16, #tpu.memory_space<vmem>>, vector<32x256xbf16>
      tpu.vector_store %arg6[%c0_19, %c0_20], %23 {strides = array<i32>} : memref<32x256xbf16, #tpu.memory_space<vmem>>, vector<32x256xbf16>,
    } else {
    }
    return
  }
  func.func @transform_0(%arg0: i32, %arg1: i32) -> (i32, i32, i32) {
    %c0_i32 = arith.constant 0 : i32
    %c0_i32_0 = arith.constant 0 : i32
    return %arg1, %arg0, %c0_i32 : i32, i32, i32
  }
  func.func @transform_1(%arg0: i32, %arg1: i32) -> (i32, i32) {
    %c0_i32 = arith.constant 0 : i32
    %c0_i32_0 = arith.constant 0 : i32
    return %arg0, %c0_i32 : i32, i32
  }
  func.func @transform_2(%arg0: i32, %arg1: i32) -> (i32, i32) {
    %c0_i32 = arith.constant 0 : i32
    %c0_i32_0 = arith.constant 0 : i32
    %c0_i32_1 = arith.constant 0 : i32
    return %c0_i32, %c0_i32_0 : i32, i32
  }
  func.func @transform_3(%arg0: i32, %arg1: i32) -> (i32, i32) {
    %c0_i32 = arith.constant 0 : i32
    %c0_i32_0 = arith.constant 0 : i32
    %c0_i32_1 = arith.constant 0 : i32
    return %c0_i32, %c0_i32_0 : i32, i32
  }
  func.func @transform_4(%arg0: i32, %arg1: i32) -> (i32, i32) {
    %c0_i32 = arith.constant 0 : i32
    %c0_i32_0 = arith.constant 0 : i32
    return %arg0, %c0_i32 : i32, i32
  }
}

module attributes {stable_mosaic.version = 11 : i64} {
  func.func @_conv5_max_kernel(%arg0: i32, %arg1: i32, %arg2: memref<1x16x512xbf16, #tpu.memory_space<vmem>>, %arg3: memref<512x1024xbf16, #tpu.memory_space<vmem>>, %arg4: memref<1x1x1024xf32, #tpu.memory_space<vmem>>, %arg5: memref<1x1024xf32, #tpu.memory_space<vmem>>) attributes {dimension_semantics = [#tpu.dimension_semantics<parallel>, #tpu.dimension_semantics<arbitrary>], iteration_bounds = array<i64: 2, 1>, scalar_prefetch = 0 : i64, scratch_operands = 1 : i64, tpu.core_type = #tpu.core_type<tc>, window_params = [{transform_indices = @transform_0, window_bounds = array<i64: 1, 16, 512>}, {pipeline_mode = #tpu.pipeline_mode<synchronous>, transform_indices = @transform_1, window_bounds = array<i64: 512, 1024>}, {transform_indices = @transform_2, window_bounds = array<i64: 1, 1, 1024>}]} {
    %c0_i32 = arith.constant 0 : i32
    %0 = arith.cmpi eq, %arg1, %c0_i32 : i32
    %1 = arith.extui %0 : i1 to i32
    %c0_i32_0 = arith.constant 0 : i32
    %2 = arith.cmpi ne, %1, %c0_i32_0 : i32
    scf.if %2 {
      %cst_12 = arith.constant 0xFF800000 : f32
      %15 = vector.broadcast %cst_12 : f32 to vector<1x1024xf32>
      %c0_13 = arith.constant 0 : index
      %c0_14 = arith.constant 0 : index
      %16 = vector.load %arg5[%c0_13, %c0_14] : memref<1x1024xf32, #tpu.memory_space<vmem>>, vector<1x1024xf32>
      tpu.vector_store %arg5[%c0_13, %c0_14], %15 {strides = array<i32>} : memref<1x1024xf32, #tpu.memory_space<vmem>>, vector<1x1024xf32>,
    } else {
    }
    %c0 = arith.constant 0 : index
    %c0_1 = arith.constant 0 : index
    %c0_2 = arith.constant 0 : index
    %3 = vector.load %arg2[%c0, %c0_1, %c0_2] : memref<1x16x512xbf16, #tpu.memory_space<vmem>>, vector<1x16x512xbf16>
    %4 = vector.shape_cast %3 : vector<1x16x512xbf16> to vector<16x512xbf16>
    %c0_3 = arith.constant 0 : index
    %c0_4 = arith.constant 0 : index
    %5 = vector.load %arg3[%c0_3, %c0_4] : memref<512x1024xbf16, #tpu.memory_space<vmem>>, vector<512x1024xbf16>
    %cst = arith.constant dense<0.000000e+00> : vector<16x1024xf32>
    %6 = tpu.matmul %4, %5, %cst {dimension_numbers = #tpu.dot_dimension_numbers<[1], [0], [0], [1], [0, 0, 1, 1], [], []>} : vector<16x512xbf16>, vector<512x1024xbf16>, vector<16x1024xf32> -> vector<16x1024xf32>
    %c0_5 = arith.constant 0 : index
    %c0_6 = arith.constant 0 : index
    %7 = vector.load %arg5[%c0_5, %c0_6] : memref<1x1024xf32, #tpu.memory_space<vmem>>, vector<1x1024xf32>
    %cst_7 = arith.constant dense<0xFF800000> : vector<1024xf32>
    %8 = vector.multi_reduction <maximumf>, %6, %cst_7 [0] : vector<16x1024xf32> to vector<1024xf32>
    %9 = vector.shape_cast %8 : vector<1024xf32> to vector<1x1024xf32>
    %10 = arith.maximumf %7, %9 : vector<1x1024xf32>
    %c0_8 = arith.constant 0 : index
    %c0_9 = arith.constant 0 : index
    %11 = vector.load %arg5[%c0_8, %c0_9] : memref<1x1024xf32, #tpu.memory_space<vmem>>, vector<1x1024xf32>
    tpu.vector_store %arg5[%c0_8, %c0_9], %10 {strides = array<i32>} : memref<1x1024xf32, #tpu.memory_space<vmem>>, vector<1x1024xf32>,
    %c0_i32_10 = arith.constant 0 : i32
    %12 = arith.cmpi eq, %arg1, %c0_i32_10 : i32
    %13 = arith.extui %12 : i1 to i32
    %c0_i32_11 = arith.constant 0 : i32
    %14 = arith.cmpi ne, %13, %c0_i32_11 : i32
    scf.if %14 {
      %c0_12 = arith.constant 0 : index
      %c0_13 = arith.constant 0 : index
      %15 = vector.load %arg5[%c0_12, %c0_13] : memref<1x1024xf32, #tpu.memory_space<vmem>>, vector<1x1024xf32>
      %cst_14 = arith.constant 0.000000e+00 : f32
      %16 = vector.broadcast %cst_14 : f32 to vector<1x1024xf32>
      %17 = arith.cmpf oge, %15, %16 : vector<1x1024xf32>
      %cst_15 = arith.constant 2.000000e-01 : f32
      %18 = vector.broadcast %cst_15 : f32 to vector<1x1024xf32>
      %19 = arith.mulf %18, %15 : vector<1x1024xf32>
      %20 = arith.select %17, %15, %19 : vector<1x1024xi1>, vector<1x1024xf32>
      %c0_16 = arith.constant 0 : index
      %c0_17 = arith.constant 0 : index
      %c0_18 = arith.constant 0 : index
      %21 = vector.load %arg4[%c0_16, %c0_17, %c0_18] : memref<1x1x1024xf32, #tpu.memory_space<vmem>>, vector<1x1x1024xf32>
      %22 = vector.shape_cast %21 : vector<1x1x1024xf32> to vector<1x1024xf32>
      %23 = vector.shape_cast %20 : vector<1x1024xf32> to vector<1x1x1024xf32>
      tpu.vector_store %arg4[%c0_16, %c0_17, %c0_18], %23 {strides = array<i32>} : memref<1x1x1024xf32, #tpu.memory_space<vmem>>, vector<1x1x1024xf32>,
    } else {
    }
    return
  }
  func.func @transform_0(%arg0: i32, %arg1: i32) -> (i32, i32, i32) {
    %c0_i32 = arith.constant 0 : i32
    %c0_i32_0 = arith.constant 0 : i32
    return %arg0, %arg1, %c0_i32 : i32, i32, i32
  }
  func.func @transform_1(%arg0: i32, %arg1: i32) -> (i32, i32) {
    %c0_i32 = arith.constant 0 : i32
    %c0_i32_0 = arith.constant 0 : i32
    %c0_i32_1 = arith.constant 0 : i32
    return %c0_i32, %c0_i32_0 : i32, i32
  }
  func.func @transform_2(%arg0: i32, %arg1: i32) -> (i32, i32, i32) {
    %c0_i32 = arith.constant 0 : i32
    %c0_i32_0 = arith.constant 0 : i32
    %c0_i32_1 = arith.constant 0 : i32
    return %arg0, %c0_i32, %c0_i32_0 : i32, i32, i32
  }
}

module attributes {stable_mosaic.version = 11 : i64} {
  func.func @_mlp_head_kernel(%arg0: memref<2x1024xbf16, #tpu.memory_space<vmem>>, %arg1: memref<1024x512xbf16, #tpu.memory_space<vmem>>, %arg2: memref<1x512xf32, #tpu.memory_space<vmem>>, %arg3: memref<512x256xbf16, #tpu.memory_space<vmem>>, %arg4: memref<1x256xf32, #tpu.memory_space<vmem>>, %arg5: memref<256x128xbf16, #tpu.memory_space<vmem>>, %arg6: memref<1x128xf32, #tpu.memory_space<vmem>>, %arg7: memref<2x128xf32, #tpu.memory_space<vmem>>) attributes {dimension_semantics = [], scalar_prefetch = 0 : i64, scratch_operands = 0 : i64, tpu.core_type = #tpu.core_type<tc>} {
    %c0 = arith.constant 0 : index
    %c0_0 = arith.constant 0 : index
    %0 = vector.load %arg0[%c0, %c0_0] : memref<2x1024xbf16, #tpu.memory_space<vmem>>, vector<2x1024xbf16>
    %c0_1 = arith.constant 0 : index
    %c0_2 = arith.constant 0 : index
    %1 = vector.load %arg1[%c0_1, %c0_2] : memref<1024x512xbf16, #tpu.memory_space<vmem>>, vector<1024x512xbf16>
    %cst = arith.constant dense<0.000000e+00> : vector<2x512xf32>
    %2 = tpu.matmul %0, %1, %cst {dimension_numbers = #tpu.dot_dimension_numbers<[1], [0], [0], [1], [0, 0, 1, 1], [], []>} : vector<2x1024xbf16>, vector<1024x512xbf16>, vector<2x512xf32> -> vector<2x512xf32>
    %c0_3 = arith.constant 0 : index
    %c0_4 = arith.constant 0 : index
    %3 = vector.load %arg2[%c0_3, %c0_4] : memref<1x512xf32, #tpu.memory_space<vmem>>, vector<1x512xf32>
    %4 = vector.broadcast %3 : vector<1x512xf32> to vector<2x512xf32>
    %5 = arith.addf %2, %4 : vector<2x512xf32>
    %cst_5 = arith.constant 0.000000e+00 : f32
    %6 = vector.broadcast %cst_5 : f32 to vector<2x512xf32>
    %7 = arith.maximumf %5, %6 : vector<2x512xf32>
    %8 = arith.truncf %7 : vector<2x512xf32> to vector<2x512xbf16>
    %c0_6 = arith.constant 0 : index
    %c0_7 = arith.constant 0 : index
    %9 = vector.load %arg3[%c0_6, %c0_7] : memref<512x256xbf16, #tpu.memory_space<vmem>>, vector<512x256xbf16>
    %cst_8 = arith.constant dense<0.000000e+00> : vector<2x256xf32>
    %10 = tpu.matmul %8, %9, %cst_8 {dimension_numbers = #tpu.dot_dimension_numbers<[1], [0], [0], [1], [0, 0, 1, 1], [], []>} : vector<2x512xbf16>, vector<512x256xbf16>, vector<2x256xf32> -> vector<2x256xf32>
    %c0_9 = arith.constant 0 : index
    %c0_10 = arith.constant 0 : index
    %11 = vector.load %arg4[%c0_9, %c0_10] : memref<1x256xf32, #tpu.memory_space<vmem>>, vector<1x256xf32>
    %12 = vector.broadcast %11 : vector<1x256xf32> to vector<2x256xf32>
    %13 = arith.addf %10, %12 : vector<2x256xf32>
    %cst_11 = arith.constant 0.000000e+00 : f32
    %14 = vector.broadcast %cst_11 : f32 to vector<2x256xf32>
    %15 = arith.maximumf %13, %14 : vector<2x256xf32>
    %16 = arith.truncf %15 : vector<2x256xf32> to vector<2x256xbf16>
    %c0_12 = arith.constant 0 : index
    %c0_13 = arith.constant 0 : index
    %17 = vector.load %arg5[%c0_12, %c0_13] : memref<256x128xbf16, #tpu.memory_space<vmem>>, vector<256x128xbf16>
    %cst_14 = arith.constant dense<0.000000e+00> : vector<2x128xf32>
    %18 = tpu.matmul %16, %17, %cst_14 {dimension_numbers = #tpu.dot_dimension_numbers<[1], [0], [0], [1], [0, 0, 1, 1], [], []>} : vector<2x256xbf16>, vector<256x128xbf16>, vector<2x128xf32> -> vector<2x128xf32>
    %c0_15 = arith.constant 0 : index
    %c0_16 = arith.constant 0 : index
    %19 = vector.load %arg6[%c0_15, %c0_16] : memref<1x128xf32, #tpu.memory_space<vmem>>, vector<1x128xf32>
    %20 = vector.broadcast %19 : vector<1x128xf32> to vector<2x128xf32>
    %21 = arith.addf %18, %20 : vector<2x128xf32>
    %c0_17 = arith.constant 0 : index
    %c0_18 = arith.constant 0 : index
    %22 = vector.load %arg7[%c0_17, %c0_18] : memref<2x128xf32, #tpu.memory_space<vmem>>, vector<2x128xf32>
    tpu.vector_store %arg7[%c0_17, %c0_18], %21 {strides = array<i32>} : memref<2x128xf32, #tpu.memory_space<vmem>>, vector<2x128xf32>,
    return
  }
}

</mosaic_0001>

<llo_original>
// kernel: generator_forward.10
$region0: #{generator_forward.10}
  #allocation0 [shape = 'u32[]', space=smem, size = 0x4, offset = 0x4, fixed_abs, tag = 'smem constant byte address 0x4 - core index']
  #allocation1 [shape = 'u32[72,128]{1,0:T(1,128)}', space=vmem, size = 0x9000, scoped, tag = 'internal scratch']
  %s0 = inlined_call_operand.vmem [shape: f32[2,16,3], index: 0, kind: input, shape index: {}]
  %s1 = inlined_call_operand.vmem [shape: f32[2,16,1], index: 1, kind: input, shape index: {}]
  %s2 = inlined_call_operand.vmem [shape: f32[2,1,16], index: 2, kind: input, shape index: {}]
  %s3 = inlined_call_operand.vmem [shape: s32[2,16,8], index: 3, kind: output, shape index: {}]
  %s4 = sld [smem:[#allocation0]]
  $region45: #{generator_forward.10} parent=0
    _
  %s6 = ssub.s32 1, %s4
  %s7 = scalar_select 0, %s6, %s4
  loop: start=0, step=1, limit=4
  $region2: #{generator_forward.10} parent=0 // loop_pre_header
    _
  $region3: #{generator_forward.10} parent=0 // loop_header
    %s9 = sphi 0, %s13
    %p10 = scmp.ge.s32.totalorder %s9, 4
    %s16 = sphi 0, %s28
    %s17 = sphi 0, %s24
    %s18 = sphi 0, %s16
    %s19 = sphi 0, %s17
    %s20 = sphi 0, %s18
    %s21 = sphi 0, %s19
    %s31 = sphi 0, %s33
    %s34 = sphi 0, %s31
    %s35 = sphi 0, %s34
    %s51 = sphi 0, %s35
    %s57 = sphi 0, %s59
    %s60 = sphi 0, %s57
    %s61 = sphi 0, %s60
    %s77 = sphi 0, %s61
    %s83 = sphi 0, %s85
    %s86 = sphi 0, %s83
    %s87 = sphi 0, %s86
    %s103 = sphi 0, %s87
    %s111 = sphi 0, %s113
    %s114 = sphi 0, %s111
    %s115 = sphi 0, %s114
    %s131 = sphi 0, %s115
  $region4: #{generator_forward.10} parent=0 // loop_header_branch
    %12 = sbr.rel (%p10) target = $region8
  $region5: #{generator_forward.10} parent=0 // loop_body
    %s14 = ssub.s32 %s9, 1
    %s15 = ssub.s32 %s9, 2
    %s22 = sadd.s32 1, %s17
    %p23 = scmp.ge.s32.totalorder %s22, 1
    %s24 = scalar_select %p23, 0, %s22
    %s25 = sadd.s32 1, %s16
    %s26 = scalar_select %p23, %s25, %s16
    %p27 = scmp.ge.s32.totalorder %s26, 2
    %s28 = scalar_select %p27, 0, %s26
    %s29 = ssub.s32 %s16, %s28
    %p30 = scmp.eq.s32.totalorder %s29, 0
    %s32 = sadd.s32 %s31, 1
    %s33 = scalar_select %p30, %s31, %s32
    %p36 = pneg %p30
    %p37 = scmp.eq.s32.totalorder %s9, 1
    %p38 = por %p36, %p37
    %p39 = scmp.ne.s32.totalorder %s31, %s34
    %p40 = scmp.eq.s32.totalorder %s9, 0
    %p41 = por %p39, %p40
    %p42 = scmp.ne.s32.totalorder %s31, %s34
    %p43 = scmp.eq.s32.totalorder %s14, 1
    %p44 = por %p42, %p43
    %p45 = scmp.ne.s32.totalorder %s34, %s35
    %p46 = scmp.eq.s32.totalorder %s14, 0
    %p47 = por %p45, %p46
    %p48 = scmp.ne.s32.totalorder %s34, %s35
    %p49 = scmp.eq.s32.totalorder %s15, 1
    %p50 = por %p48, %p49
    %p52 = scmp.ne.s32.totalorder %s35, %s51
    %p53 = scmp.eq.s32.totalorder %s15, 0
    %p54 = por %p52, %p53
    %s55 = ssub.s32 %s16, %s28
    %p56 = scmp.eq.s32.totalorder %s55, 0
    %s58 = sadd.s32 %s57, 1
    %s59 = scalar_select %p56, %s57, %s58
    %p62 = pneg %p56
    %p63 = scmp.eq.s32.totalorder %s9, 1
    %p64 = por %p62, %p63
    %p65 = scmp.ne.s32.totalorder %s57, %s60
    %p66 = scmp.eq.s32.totalorder %s9, 0
    %p67 = por %p65, %p66
    %p68 = scmp.ne.s32.totalorder %s57, %s60
    %p69 = scmp.eq.s32.totalorder %s14, 1
    %p70 = por %p68, %p69
    %p71 = scmp.ne.s32.totalorder %s60, %s61
    %p72 = scmp.eq.s32.totalorder %s14, 0
    %p73 = por %p71, %p72
    %p74 = scmp.ne.s32.totalorder %s60, %s61
    %p75 = scmp.eq.s32.totalorder %s15, 1
    %p76 = por %p74, %p75
    %p78 = scmp.ne.s32.totalorder %s61, %s77
    %p79 = scmp.eq.s32.totalorder %s15, 0
    %p80 = por %p78, %p79
    %s81 = ssub.s32 %s16, %s28
    %p82 = scmp.eq.s32.totalorder %s81, 0
    %s84 = sadd.s32 %s83, 1
    %s85 = scalar_select %p82, %s83, %s84
    %p88 = pneg %p82
    %p89 = scmp.eq.s32.totalorder %s9, 1
    %p90 = por %p88, %p89
    %p91 = scmp.ne.s32.totalorder %s83, %s86
    %p92 = scmp.eq.s32.totalorder %s9, 0
    %p93 = por %p91, %p92
    %p94 = scmp.ne.s32.totalorder %s83, %s86
    %p95 = scmp.eq.s32.totalorder %s14, 1
    %p96 = por %p94, %p95
    %p97 = scmp.ne.s32.totalorder %s86, %s87
    %p98 = scmp.eq.s32.totalorder %s14, 0
    %p99 = por %p97, %p98
    %p100 = scmp.ne.s32.totalorder %s86, %s87
    %p101 = scmp.eq.s32.totalorder %s15, 1
    %p102 = por %p100, %p101
    %p104 = scmp.ne.s32.totalorder %s87, %s103
    %p105 = scmp.eq.s32.totalorder %s15, 0
    %p106 = por %p104, %p105
    %s107 = ssub.s32 %s16, %s28
    %s108 = ssub.s32 %s17, %s24
    %s109 = sor.u32 %s107, %s108
    %p110 = scmp.eq.s32.totalorder %s109, 0
    %s112 = sadd.s32 %s111, 1
    %s113 = scalar_select %p110, %s111, %s112
    %p116 = pneg %p110
    %p117 = scmp.eq.s32.totalorder %s9, 1
    %p118 = por %p116, %p117
    %p119 = scmp.ne.s32.totalorder %s111, %s114
    %p120 = scmp.eq.s32.totalorder %s9, 0
    %p121 = por %p119, %p120
    %p122 = scmp.ne.s32.totalorder %s111, %s114
    %p123 = scmp.eq.s32.totalorder %s14, 1
    %p124 = por %p122, %p123
    %p125 = scmp.ne.s32.totalorder %s114, %s115
    %p126 = scmp.eq.s32.totalorder %s14, 0
    %p127 = por %p125, %p126
    %p128 = scmp.ne.s32.totalorder %s114, %s115
    %p129 = scmp.eq.s32.totalorder %s15, 1
    %p130 = por %p128, %p129
    %p132 = scmp.ne.s32.totalorder %s115, %s131
    %p133 = scmp.eq.s32.totalorder %s15, 0
    %p134 = por %p132, %p133
    %p135 = scmp.le.s32.totalorder 1, %s9
    %p136 = scmp.lt.s32.totalorder %s9, 3
    %p137 = pnand %p135, %p136
    %p138 = pneg %p137
    // Predicated region
    $region9: #{generator_forward.10} parent=5 // pred_check
      _
    $region10: #{generator_forward.10} parent=5 // pred_check_branch
      %140 = sbr.rel (%p137) target = $region12
    $region11: #{generator_forward.10} parent=5 // pred_region
      %s141 = ssub.s32 %s9, 1
    $region12: #{generator_forward.10} parent=5 // pred_fallthru
      _
    %p142 = scmp.lt.s32.totalorder %s9, 2
    // Predicated region
    $region13: #{generator_forward.10} parent=5 // pred_check
      %p143 = pneg %p142
    $region14: #{generator_forward.10} parent=5 // pred_check_branch
      %145 = sbr.rel (%p143) target = $region16
    $region15: #{generator_forward.10} parent=5 // pred_region
      // Predicated region
      $region17: #{generator_forward.10} parent=15 // pred_check
        %p146 = pneg %p41
      $region18: #{generator_forward.10} parent=15 // pred_check_branch
        %148 = sbr.rel (%p146) target = $region20
      $region19: #{generator_forward.10} parent=15 // pred_region
        %p149 = scmp.lt.s32.totalorder %s16, 1
        %s150 = scalar_select %p149, %s16, 1
        %s151 = smul.addr %s150, 2
        %s152 = smul.addr %s151, 8
        %s153 = scalar_lea.vmem %s0, %s152
      $region20: #{generator_forward.10} parent=15 // pred_fallthru
        _
      // Predicated region
      $region21: #{generator_forward.10} parent=15 // pred_check
        %p154 = pneg %p67
      $region22: #{generator_forward.10} parent=15 // pred_check_branch
        %156 = sbr.rel (%p154) target = $region24
      $region23: #{generator_forward.10} parent=15 // pred_region
        %p157 = scmp.lt.s32.totalorder %s16, 1
        %s158 = scalar_select %p157, %s16, 1
        %s159 = smul.addr %s158, 2
        %s160 = smul.addr %s159, 8
        %s161 = scalar_lea.vmem %s1, %s160
      $region24: #{generator_forward.10} parent=15 // pred_fallthru
        _
      // Predicated region
      $region25: #{generator_forward.10} parent=15 // pred_check
        %p162 = pneg %p93
      $region26: #{generator_forward.10} parent=15 // pred_check_branch
        %164 = sbr.rel (%p162) target = $region28
      $region27: #{generator_forward.10} parent=15 // pred_region
        %p165 = scmp.lt.s32.totalorder %s16, 1
        %s166 = scalar_select %p165, %s16, 1
        %s167 = scalar_lea.vmem %s2, %s166
      $region28: #{generator_forward.10} parent=15 // pred_fallthru
        _
    $region16: #{generator_forward.10} parent=5 // pred_fallthru
      _
    %p168 = scmp.le.s32.totalorder 1, %s9
    %p169 = scmp.lt.s32.totalorder %s9, 3
    %p170 = pnand %p168, %p169
    %p171 = pneg %p170
    // Predicated region
    $region29: #{generator_forward.10} parent=5 // pred_check
      _
    $region30: #{generator_forward.10} parent=5 // pred_check_branch
      %173 = sbr.rel (%p170) target = $region32
    $region31: #{generator_forward.10} parent=5 // pred_region
      %s174 = ssub.s32 %s9, 1
      %p175 = scmp.lt.s32.totalorder %s18, 1
      %s176 = scalar_select %p175, %s18, 1
      %s177 = smul.addr %s176, 2
      %s178 = smul.addr %s177, 8
      %s179 = scalar_lea.vmem %s0, %s178
      %p180 = pneg %p47
      %p181 = pneg %p44
      %p182 = scmp.lt.s32.totalorder %s18, 1
      %s183 = scalar_select %p182, %s18, 1
      %s184 = smul.addr %s183, 2
      %s185 = smul.addr %s184, 8
      %s186 = scalar_lea.vmem %s1, %s185
      %p187 = pneg %p73
      %p188 = pneg %p70
      %p189 = scmp.lt.s32.totalorder %s18, 1
      %s190 = scalar_select %p189, %s18, 1
      %s191 = scalar_lea.vmem %s2, %s190
      %p192 = pneg %p99
      %p193 = pneg %p96
      %p194 = pneg %p127
      %p195 = pneg %p124
      %s196 = smul.u32 2, %s19
      %p197 = scmp.lt.s32.totalorder %s18, 1
      %s198 = scalar_select %p197, %s18, 1
      %p199 = scmp.lt.s32.totalorder %s196, 1
      %s200 = scalar_select %p199, %s196, 1
      %s201 = smul.addr %s198, 2
      %s202 = sadd.s32 %s200, %s201
      %s203 = smul.addr %s202, 8
      %s204 = scalar_lea.vmem %s3, %s203
      %p205 = scmp.lt.s32.totalorder %s18, 1
      %s206 = scalar_select %p205, %s18, 1
      %s207 = smul.addr %s206, 2
      %s208 = smul.addr %s207, 8
      %s209 = scalar_lea.vmem %s0, %s208
      %p210 = scmp.lt.s32.totalorder %s18, 1
      %s211 = scalar_select %p210, %s18, 1
      %s212 = smul.addr %s211, 2
      %s213 = smul.addr %s212, 8
      %s214 = scalar_lea.vmem %s1, %s213
      %p215 = scmp.lt.s32.totalorder %s18, 1
      %s216 = scalar_select %p215, %s18, 1
      %s217 = scalar_lea.vmem %s2, %s216
      %s218 = smul.u32 2, %s19
      %p219 = scmp.lt.s32.totalorder %s18, 1
      %s220 = scalar_select %p219, %s18, 1
      %p221 = scmp.lt.s32.totalorder %s218, 1
      %s222 = scalar_select %p221, %s218, 1
      %s223 = smul.addr %s220, 2
      %s224 = sadd.s32 %s222, %s223
      %s225 = smul.addr %s224, 8
      %s226 = scalar_lea.vmem %s3, %s225
      %s227 = smul.u32 2, %s19
      %s228 = smul.u32 %s19, 16
      %v229 = vld [vmem:[%s209] sm:$0xff]
      %v230 = vld [vmem:[%s209 + $0x8] sm:$0xff]
      %s231 = scalar_lea.vmem %s209, %s228
      %v232 = vld [vmem:[%s231] sm:$0xff]
      %v233 = vld [vmem:[%s231 + $0x8] sm:$0xff]
      %vm234 = vcmask 23552
      %v236 = vsel %vm234, %v232, 0
      %v239 = vsel %vm234, %v233, 0
      %v242 = vsel %vm234, %v229, 0
      %v245 = vsel %vm234, %v230, 0
      %247 = vmatpush.xpose.msra.mxu0 0.0
      %248 = vmatpush.xpose.msra.mxu0 0.0
      %249 = vmatpush.xpose.msra.mxu0 0.0
      %250 = vmatpush.xpose.msra.mxu0 0.0
      %251 = vmatpush.xpose.msra.mxu0 0.0
      %252 = vmatpush.xpose.msra.mxu0 0.0
      %253 = vmatpush.xpose.msra.mxu0 0.0
      %254 = vmatpush.xpose.msra.mxu0 0.0
      %255 = vmatpush.xpose.msra.mxu0 0.0
      %256 = vmatpush.xpose.msra.mxu0 0.0
      %257 = vmatpush.xpose.msra.mxu0 0.0
      %258 = vmatpush.xpose.msra.mxu0 0.0
      %259 = vmatpush.xpose.msra.mxu0 0.0
      %260 = vmatpush.xpose.msra.mxu0 0.0
      %261 = vmatpush.xpose.msra.mxu0 %v245
      %262 = vmatpush.xpose.msra.mxu0 %v242
      %263 = vmatmul.f32.gmra.mxu0 %v236
      %v264 = vpop.f32.mrf.mxu0
      %v265 = vadd.f32 0.0, %v264
      %266 = vmatmul.f32.gmra.mxu0 %v239
      %v267 = vpop.f32.mrf.mxu0
      %v268 = vadd.f32 0.0, %v267
      %269 = vdwg.mxu0
      %s270 = scalar_lea.vmem %s214, %s228
      %v271 = vld [vmem:[%s270] sm:$0xff]
      %v272 = vld [vmem:[%s270 + $0x8] sm:$0xff]
      %v273 = vld [vmem:[%s217] sm:$0x1]
      %v274 = vmul.f32 %v265, 2.0
      %v275 = vmul.f32 %v268, 2.0
      %277 = vset.pattern.permute.xlu0 0
      %278 = vperm.xlu0 %277, %v271
      %v279 = vpop.permute.xlu0 %278
      %282 = vset.pattern.permute.xlu0 0
      %283 = vperm.xlu0 %282, %v272
      %v284 = vpop.permute.xlu0 %283
      %v286 = vsub.f32 %v274, %v279
      %v287 = vsub.f32 %v275, %v284
      %v289 = vperm.slane %v273, 0
      %v291 = vsub.f32 %v286, %v289
      %v292 = vsub.f32 %v287, %v289
      %v293 = vlaneseq
      %v294 = vand.u32 %v293, 127
      %vm295 = vcmask 130048
      %v296 = vsel %vm295, %v291, -inf
      %297 = vmax.xlane.f32.xlu0 %v296
      %v298 = vpop.xlane.xlu0 %297
      %v299 = vsel %vm295, %v292, -inf
      %300 = vmax.xlane.f32.xlu0 %v299
      %v301 = vpop.xlane.xlu0 %300
      %vm302 = vcmp.ge.f32.partialorder %v291, %v298
      %vm303 = vcmp.ge.f32.partialorder %v292, %v301
      %v304 = vsel %vm302, %v294, 16
      %v305 = vsel %vm303, %v294, 16
      %v306 = vsel %vm295, %v304, 2147483647
      %v307 = vand.u32 %v306, 65535
      %v308 = vshra.s32 %v306, 16
      %v309 = vcvt.s32.f32 %v307
      %v310 = vcvt.s32.f32 %v308
      %311 = vmin.xlane.f32.xlu0 %v310
      %v312 = vpop.xlane.xlu0 %311
      %vm313 = vcmp.eq.f32.partialorder %v310, %v312
      %v314 = vsel %vm313, %v309, inf
      %315 = vmin.xlane.f32.xlu0 %v314
      %v316 = vpop.xlane.xlu0 %315
      %v317 = vcvt.f32.s32 %v316
      %v318 = vcvt.f32.s32 %v312
      %v319 = vshll.u32 %v318, 16
      %v320 = vadd.s32 %v319, %v317
      %v321 = vsel %vm295, %v305, 2147483647
      %v322 = vand.u32 %v321, 65535
      %v323 = vshra.s32 %v321, 16
      %v324 = vcvt.s32.f32 %v322
      %v325 = vcvt.s32.f32 %v323
      %326 = vmin.xlane.f32.xlu0 %v325
      %v327 = vpop.xlane.xlu0 %326
      %vm328 = vcmp.eq.f32.partialorder %v325, %v327
      %v329 = vsel %vm328, %v324, inf
      %330 = vmin.xlane.f32.xlu0 %v329
      %v331 = vpop.xlane.xlu0 %330
      %v332 = vcvt.f32.s32 %v331
      %v333 = vcvt.f32.s32 %v327
      %v334 = vshll.u32 %v333, 16
      %v335 = vadd.s32 %v334, %v332
      %vm336 = vcmp.eq.s32.totalorder %v294, %v320
      %vm337 = vcmp.eq.s32.totalorder %v294, %v335
      %v338 = vsel %vm336, -inf, %v291
      %v339 = vsel %vm337, -inf, %v292
      %v340 = vsel %vm295, %v338, -inf
      %341 = vmax.xlane.f32.xlu0 %v340
      %v342 = vpop.xlane.xlu0 %341
      %v343 = vsel %vm295, %v339, -inf
      %344 = vmax.xlane.f32.xlu0 %v343
      %v345 = vpop.xlane.xlu0 %344
      %vm346 = vcmp.ge.f32.partialorder %v338, %v342
      %vm347 = vcmp.ge.f32.partialorder %v339, %v345
      %v348 = vsel %vm346, %v294, 16
      %v349 = vsel %vm347, %v294, 16
      %v350 = vsel %vm295, %v348, 2147483647
      %v351 = vand.u32 %v350, 65535
      %v352 = vshra.s32 %v350, 16
      %v353 = vcvt.s32.f32 %v351
      %v354 = vcvt.s32.f32 %v352
      %355 = vmin.xlane.f32.xlu0 %v354
      %v356 = vpop.xlane.xlu0 %355
      %vm357 = vcmp.eq.f32.partialorder %v354, %v356
      %v358 = vsel %vm357, %v353, inf
      %359 = vmin.xlane.f32.xlu0 %v358
      %v360 = vpop.xlane.xlu0 %359
      %v361 = vcvt.f32.s32 %v360
      %v362 = vcvt.f32.s32 %v356
      %v363 = vshll.u32 %v362, 16
      %v364 = vadd.s32 %v363, %v361
      %v365 = vsel %vm295, %v349, 2147483647
      %v366 = vand.u32 %v365, 65535
      %v367 = vshra.s32 %v365, 16
      %v368 = vcvt.s32.f32 %v366
      %v369 = vcvt.s32.f32 %v367
      %370 = vmin.xlane.f32.xlu0 %v369
      %v371 = vpop.xlane.xlu0 %370
      %vm372 = vcmp.eq.f32.partialorder %v369, %v371
      %v373 = vsel %vm372, %v368, inf
      %374 = vmin.xlane.f32.xlu0 %v373
      %v375 = vpop.xlane.xlu0 %374
      %v376 = vcvt.f32.s32 %v375
      %v377 = vcvt.f32.s32 %v371
      %v378 = vshll.u32 %v377, 16
      %v379 = vadd.s32 %v378, %v376
      %vm380 = vcmp.eq.s32.totalorder %v294, %v364
      %vm381 = vcmp.eq.s32.totalorder %v294, %v379
      %v382 = vsel %vm380, -inf, %v338
      %v383 = vsel %vm381, -inf, %v339
      %v384 = vsel %vm295, %v382, -inf
      %385 = vmax.xlane.f32.xlu0 %v384
      %v386 = vpop.xlane.xlu0 %385
      %v387 = vsel %vm295, %v383, -inf
      %388 = vmax.xlane.f32.xlu0 %v387
      %v389 = vpop.xlane.xlu0 %388
      %vm390 = vcmp.ge.f32.partialorder %v382, %v386
      %vm391 = vcmp.ge.f32.partialorder %v383, %v389
      %v392 = vsel %vm390, %v294, 16
      %v393 = vsel %vm391, %v294, 16
      %v394 = vsel %vm295, %v392, 2147483647
      %v395 = vand.u32 %v394, 65535
      %v396 = vshra.s32 %v394, 16
      %v397 = vcvt.s32.f32 %v395
      %v398 = vcvt.s32.f32 %v396
      %399 = vmin.xlane.f32.xlu0 %v398
      %v400 = vpop.xlane.xlu0 %399
      %vm401 = vcmp.eq.f32.partialorder %v398, %v400
      %v402 = vsel %vm401, %v397, inf
      %403 = vmin.xlane.f32.xlu0 %v402
      %v404 = vpop.xlane.xlu0 %403
      %v405 = vcvt.f32.s32 %v404
      %v406 = vcvt.f32.s32 %v400
      %v407 = vshll.u32 %v406, 16
      %v408 = vadd.s32 %v407, %v405
      %v409 = vsel %vm295, %v393, 2147483647
      %v410 = vand.u32 %v409, 65535
      %v411 = vshra.s32 %v409, 16
      %v412 = vcvt.s32.f32 %v410
      %v413 = vcvt.s32.f32 %v411
      %414 = vmin.xlane.f32.xlu0 %v413
      %v415 = vpop.xlane.xlu0 %414
      %vm416 = vcmp.eq.f32.partialorder %v413, %v415
      %v417 = vsel %vm416, %v412, inf
      %418 = vmin.xlane.f32.xlu0 %v417
      %v419 = vpop.xlane.xlu0 %418
      %v420 = vcvt.f32.s32 %v419
      %v421 = vcvt.f32.s32 %v415
      %v422 = vshll.u32 %v421, 16
      %v423 = vadd.s32 %v422, %v420
      %vm424 = vcmp.eq.s32.totalorder %v294, %v408
      %vm425 = vcmp.eq.s32.totalorder %v294, %v423
      %v426 = vsel %vm424, -inf, %v382
      %v427 = vsel %vm425, -inf, %v383
      %v428 = vsel %vm295, %v426, -inf
      %429 = vmax.xlane.f32.xlu0 %v428
      %v430 = vpop.xlane.xlu0 %429
      %v431 = vsel %vm295, %v427, -inf
      %432 = vmax.xlane.f32.xlu0 %v431
      %v433 = vpop.xlane.xlu0 %432
      %vm434 = vcmp.ge.f32.partialorder %v426, %v430
      %vm435 = vcmp.ge.f32.partialorder %v427, %v433
      %v436 = vsel %vm434, %v294, 16
      %v437 = vsel %vm435, %v294, 16
      %v438 = vsel %vm295, %v436, 2147483647
      %v439 = vand.u32 %v438, 65535
      %v440 = vshra.s32 %v438, 16
      %v441 = vcvt.s32.f32 %v439
      %v442 = vcvt.s32.f32 %v440
      %443 = vmin.xlane.f32.xlu0 %v442
      %v444 = vpop.xlane.xlu0 %443
      %vm445 = vcmp.eq.f32.partialorder %v442, %v444
      %v446 = vsel %vm445, %v441, inf
      %447 = vmin.xlane.f32.xlu0 %v446
      %v448 = vpop.xlane.xlu0 %447
      %v449 = vcvt.f32.s32 %v448
      %v450 = vcvt.f32.s32 %v444
      %v451 = vshll.u32 %v450, 16
      %v452 = vadd.s32 %v451, %v449
      %v453 = vsel %vm295, %v437, 2147483647
      %v454 = vand.u32 %v453, 65535
      %v455 = vshra.s32 %v453, 16
      %v456 = vcvt.s32.f32 %v454
      %v457 = vcvt.s32.f32 %v455
      %458 = vmin.xlane.f32.xlu0 %v457
      %v459 = vpop.xlane.xlu0 %458
      %vm460 = vcmp.eq.f32.partialorder %v457, %v459
      %v461 = vsel %vm460, %v456, inf
      %462 = vmin.xlane.f32.xlu0 %v461
      %v463 = vpop.xlane.xlu0 %462
      %v464 = vcvt.f32.s32 %v463
      %v465 = vcvt.f32.s32 %v459
      %v466 = vshll.u32 %v465, 16
      %v467 = vadd.s32 %v466, %v464
      %vm468 = vcmp.eq.s32.totalorder %v294, %v452
      %vm469 = vcmp.eq.s32.totalorder %v294, %v467
      %v470 = vsel %vm468, -inf, %v426
      %v471 = vsel %vm469, -inf, %v427
      %v472 = vsel %vm295, %v470, -inf
      %473 = vmax.xlane.f32.xlu0 %v472
      %v474 = vpop.xlane.xlu0 %473
      %v475 = vsel %vm295, %v471, -inf
      %476 = vmax.xlane.f32.xlu0 %v475
      %v477 = vpop.xlane.xlu0 %476
      %vm478 = vcmp.ge.f32.partialorder %v470, %v474
      %vm479 = vcmp.ge.f32.partialorder %v471, %v477
      %v480 = vsel %vm478, %v294, 16
      %v481 = vsel %vm479, %v294, 16
      %v482 = vsel %vm295, %v480, 2147483647
      %v483 = vand.u32 %v482, 65535
      %v484 = vshra.s32 %v482, 16
      %v485 = vcvt.s32.f32 %v483
      %v486 = vcvt.s32.f32 %v484
      %487 = vmin.xlane.f32.xlu0 %v486
      %v488 = vpop.xlane.xlu0 %487
      %vm489 = vcmp.eq.f32.partialorder %v486, %v488
      %v490 = vsel %vm489, %v485, inf
      %491 = vmin.xlane.f32.xlu0 %v490
      %v492 = vpop.xlane.xlu0 %491
      %v493 = vcvt.f32.s32 %v492
      %v494 = vcvt.f32.s32 %v488
      %v495 = vshll.u32 %v494, 16
      %v496 = vadd.s32 %v495, %v493
      %v497 = vsel %vm295, %v481, 2147483647
      %v498 = vand.u32 %v497, 65535
      %v499 = vshra.s32 %v497, 16
      %v500 = vcvt.s32.f32 %v498
      %v501 = vcvt.s32.f32 %v499
      %502 = vmin.xlane.f32.xlu0 %v501
      %v503 = vpop.xlane.xlu0 %502
      %vm504 = vcmp.eq.f32.partialorder %v501, %v503
      %v505 = vsel %vm504, %v500, inf
      %506 = vmin.xlane.f32.xlu0 %v505
      %v507 = vpop.xlane.xlu0 %506
      %v508 = vcvt.f32.s32 %v507
      %v509 = vcvt.f32.s32 %v503
      %v510 = vshll.u32 %v509, 16
      %v511 = vadd.s32 %v510, %v508
      %vm512 = vcmp.eq.s32.totalorder %v294, %v496
      %vm513 = vcmp.eq.s32.totalorder %v294, %v511
      %v514 = vsel %vm512, -inf, %v470
      %v515 = vsel %vm513, -inf, %v471
      %v516 = vsel %vm295, %v514, -inf
      %517 = vmax.xlane.f32.xlu0 %v516
      %v518 = vpop.xlane.xlu0 %517
      %v519 = vsel %vm295, %v515, -inf
      %520 = vmax.xlane.f32.xlu0 %v519
      %v521 = vpop.xlane.xlu0 %520
      %vm522 = vcmp.ge.f32.partialorder %v514, %v518
      %vm523 = vcmp.ge.f32.partialorder %v515, %v521
      %v524 = vsel %vm522, %v294, 16
      %v525 = vsel %vm523, %v294, 16
      %v526 = vsel %vm295, %v524, 2147483647
      %v527 = vand.u32 %v526, 65535
      %v528 = vshra.s32 %v526, 16
      %v529 = vcvt.s32.f32 %v527
      %v530 = vcvt.s32.f32 %v528
      %531 = vmin.xlane.f32.xlu0 %v530
      %v532 = vpop.xlane.xlu0 %531
      %vm533 = vcmp.eq.f32.partialorder %v530, %v532
      %v534 = vsel %vm533, %v529, inf
      %535 = vmin.xlane.f32.xlu0 %v534
      %v536 = vpop.xlane.xlu0 %535
      %v537 = vcvt.f32.s32 %v536
      %v538 = vcvt.f32.s32 %v532
      %v539 = vshll.u32 %v538, 16
      %v540 = vadd.s32 %v539, %v537
      %v541 = vsel %vm295, %v525, 2147483647
      %v542 = vand.u32 %v541, 65535
      %v543 = vshra.s32 %v541, 16
      %v544 = vcvt.s32.f32 %v542
      %v545 = vcvt.s32.f32 %v543
      %546 = vmin.xlane.f32.xlu0 %v545
      %v547 = vpop.xlane.xlu0 %546
      %vm548 = vcmp.eq.f32.partialorder %v545, %v547
      %v549 = vsel %vm548, %v544, inf
      %550 = vmin.xlane.f32.xlu0 %v549
      %v551 = vpop.xlane.xlu0 %550
      %v552 = vcvt.f32.s32 %v551
      %v553 = vcvt.f32.s32 %v547
      %v554 = vshll.u32 %v553, 16
      %v555 = vadd.s32 %v554, %v552
      %vm556 = vcmp.eq.s32.totalorder %v294, %v540
      %vm557 = vcmp.eq.s32.totalorder %v294, %v555
      %v558 = vsel %vm556, -inf, %v514
      %v559 = vsel %vm557, -inf, %v515
      %v560 = vsel %vm295, %v558, -inf
      %561 = vmax.xlane.f32.xlu0 %v560
      %v562 = vpop.xlane.xlu0 %561
      %v563 = vsel %vm295, %v559, -inf
      %564 = vmax.xlane.f32.xlu0 %v563
      %v565 = vpop.xlane.xlu0 %564
      %vm566 = vcmp.ge.f32.partialorder %v558, %v562
      %vm567 = vcmp.ge.f32.partialorder %v559, %v565
      %v568 = vsel %vm566, %v294, 16
      %v569 = vsel %vm567, %v294, 16
      %v570 = vsel %vm295, %v568, 2147483647
      %v571 = vand.u32 %v570, 65535
      %v572 = vshra.s32 %v570, 16
      %v573 = vcvt.s32.f32 %v571
      %v574 = vcvt.s32.f32 %v572
      %575 = vmin.xlane.f32.xlu0 %v574
      %v576 = vpop.xlane.xlu0 %575
      %vm577 = vcmp.eq.f32.partialorder %v574, %v576
      %v578 = vsel %vm577, %v573, inf
      %579 = vmin.xlane.f32.xlu0 %v578
      %v580 = vpop.xlane.xlu0 %579
      %v581 = vcvt.f32.s32 %v580
      %v582 = vcvt.f32.s32 %v576
      %v583 = vshll.u32 %v582, 16
      %v584 = vadd.s32 %v583, %v581
      %v585 = vsel %vm295, %v569, 2147483647
      %v586 = vand.u32 %v585, 65535
      %v587 = vshra.s32 %v585, 16
      %v588 = vcvt.s32.f32 %v586
      %v589 = vcvt.s32.f32 %v587
      %590 = vmin.xlane.f32.xlu0 %v589
      %v591 = vpop.xlane.xlu0 %590
      %vm592 = vcmp.eq.f32.partialorder %v589, %v591
      %v593 = vsel %vm592, %v588, inf
      %594 = vmin.xlane.f32.xlu0 %v593
      %v595 = vpop.xlane.xlu0 %594
      %v596 = vcvt.f32.s32 %v595
      %v597 = vcvt.f32.s32 %v591
      %v598 = vshll.u32 %v597, 16
      %v599 = vadd.s32 %v598, %v596
      %vm600 = vcmp.eq.s32.totalorder %v294, %v584
      %vm601 = vcmp.eq.s32.totalorder %v294, %v599
      %v602 = vsel %vm600, -inf, %v558
      %v603 = vsel %vm601, -inf, %v559
      %v604 = vsel %vm295, %v602, -inf
      %605 = vmax.xlane.f32.xlu0 %v604
      %v606 = vpop.xlane.xlu0 %605
      %v607 = vsel %vm295, %v603, -inf
      %608 = vmax.xlane.f32.xlu0 %v607
      %v609 = vpop.xlane.xlu0 %608
      %vm610 = vcmp.ge.f32.partialorder %v602, %v606
      %vm611 = vcmp.ge.f32.partialorder %v603, %v609
      %v612 = vsel %vm610, %v294, 16
      %v613 = vsel %vm611, %v294, 16
      %v614 = vsel %vm295, %v612, 2147483647
      %v615 = vand.u32 %v614, 65535
      %v616 = vshra.s32 %v614, 16
      %v617 = vcvt.s32.f32 %v615
      %v618 = vcvt.s32.f32 %v616
      %619 = vmin.xlane.f32.xlu0 %v618
      %v620 = vpop.xlane.xlu0 %619
      %vm621 = vcmp.eq.f32.partialorder %v618, %v620
      %v622 = vsel %vm621, %v617, inf
      %623 = vmin.xlane.f32.xlu0 %v622
      %v624 = vpop.xlane.xlu0 %623
      %v625 = vcvt.f32.s32 %v624
      %v626 = vcvt.f32.s32 %v620
      %v627 = vshll.u32 %v626, 16
      %v628 = vadd.s32 %v627, %v625
      %v629 = vsel %vm295, %v613, 2147483647
      %v630 = vand.u32 %v629, 65535
      %v631 = vshra.s32 %v629, 16
      %v632 = vcvt.s32.f32 %v630
      %v633 = vcvt.s32.f32 %v631
      %634 = vmin.xlane.f32.xlu0 %v633
      %v635 = vpop.xlane.xlu0 %634
      %vm636 = vcmp.eq.f32.partialorder %v633, %v635
      %v637 = vsel %vm636, %v632, inf
      %638 = vmin.xlane.f32.xlu0 %v637
      %v639 = vpop.xlane.xlu0 %638
      %v640 = vcvt.f32.s32 %v639
      %v641 = vcvt.f32.s32 %v635
      %v642 = vshll.u32 %v641, 16
      %v643 = vadd.s32 %v642, %v640
      %vm644 = vcmask 7168
      %v645 = vsel %vm644, %v320, %v364
      %v646 = vsel %vm644, %v335, %v379
      %vm647 = vcmask 15360
      %v648 = vsel %vm647, %v645, %v408
      %v649 = vsel %vm647, %v646, %v423
      %v650 = vsel %vm234, %v648, %v452
      %v651 = vsel %vm234, %v649, %v467
      %vm652 = vcmask 31744
      %v653 = vsel %vm652, %v650, %v496
      %v654 = vsel %vm652, %v651, %v511
      %vm655 = vcmask 39936
      %v656 = vsel %vm655, %v653, %v540
      %v657 = vsel %vm655, %v654, %v555
      %vm658 = vcmask 48128
      %v659 = vsel %vm658, %v656, %v584
      %v660 = vsel %vm658, %v657, %v599
      %vm661 = vcmask 56320
      %v662 = vsel %vm661, %v659, %v628
      %v663 = vsel %vm661, %v660, %v643
      %vm664 = vcmask 64512
      %665 = vst.msk [vmem:[%s226] sm:$0xff] %vm664, %v662
      %666 = vst.msk [vmem:[%s226 + $0x8] sm:$0xff] %vm664, %v663
      %s667 = smul.u32 2, %s19
      %p668 = scmp.lt.s32.totalorder %s18, 1
      %s669 = scalar_select %p668, %s18, 1
      %p670 = scmp.lt.s32.totalorder %s667, 1
      %s671 = scalar_select %p670, %s667, 1
      %s672 = smul.addr %s669, 2
      %s673 = sadd.s32 %s671, %s672
      %s674 = smul.addr %s673, 8
      %s675 = scalar_lea.vmem %s3, %s674
      // Predicated region
      $region33: #{generator_forward.10} parent=31 // pred_check
        %p676 = pneg %p124
      $region34: #{generator_forward.10} parent=31 // pred_check_branch
        %678 = sbr.rel (%p676) target = $region36
      $region35: #{generator_forward.10} parent=31 // pred_region
        %s679 = smul.u32 2, %s19
      $region36: #{generator_forward.10} parent=31 // pred_fallthru
        _
    $region32: #{generator_forward.10} parent=5 // pred_fallthru
      _
    %p680 = scmp.le.s32.totalorder 2, %s9
    // Predicated region
    $region37: #{generator_forward.10} parent=5 // pred_check
      %p681 = pneg %p680
    $region38: #{generator_forward.10} parent=5 // pred_check_branch
      %683 = sbr.rel (%p681) target = $region40
    $region39: #{generator_forward.10} parent=5 // pred_region
      %s684 = ssub.s32 %s9, 2
      // Predicated region
      $region41: #{generator_forward.10} parent=39 // pred_check
        %p685 = pneg %p130
      $region42: #{generator_forward.10} parent=39 // pred_check_branch
        %687 = sbr.rel (%p685) target = $region44
      $region43: #{generator_forward.10} parent=39 // pred_region
        %s688 = smul.u32 2, %s21
        %p689 = scmp.lt.s32.totalorder %s20, 1
        %s690 = scalar_select %p689, %s20, 1
        %p691 = scmp.lt.s32.totalorder %s688, 1
        %s692 = scalar_select %p691, %s688, 1
        %s693 = smul.addr %s690, 2
        %s694 = sadd.s32 %s692, %s693
        %s695 = smul.addr %s694, 8
        %s696 = scalar_lea.vmem %s3, %s695
      $region44: #{generator_forward.10} parent=39 // pred_fallthru
        _
    $region40: #{generator_forward.10} parent=5 // pred_fallthru
      _
  $region6: #{generator_forward.10} parent=0 // loop_footer
    %s13 = sadd.s32 1, %s9
  $region7: #{generator_forward.10} parent=0 // loop_footer_branch
    %8 = sbr.rel target = $region3
  $region8: #{generator_forward.10} parent=0 // loop_exit
    _

// kernel: generator_forward.11
$region0: #{generator_forward.11}
  #allocation0 [shape = 'u32[]', space=smem, size = 0x4, offset = 0x4, fixed_abs, tag = 'smem constant byte address 0x4 - core index']
  #allocation1 [shape = 'u32[72,128]{1,0:T(1,128)}', space=vmem, size = 0x9000, scoped, tag = 'internal scratch']
  #allocation2 [shape = 'f32[32,64]{1,0:T(8,128)}', space=vmem, size = 0x4000, scoped, tag = 'scratch operand']
  %s0 = inlined_call_operand.vmem [shape: bf16[8,32,3], index: 0, kind: input, shape index: {}]
  %s1 = inlined_call_operand.vmem [shape: bf16[32,3], index: 1, kind: input, shape index: {}]
  %s2 = inlined_call_operand.vmem [shape: bf16[3,64], index: 2, kind: input, shape index: {}]
  %s3 = inlined_call_operand.vmem [shape: bf16[3,64], index: 3, kind: input, shape index: {}]
  %s4 = inlined_call_operand.vmem [shape: bf16[32,64], index: 4, kind: output, shape index: {}]
  %s5 = sld [smem:[#allocation0]]
  $region57: #{generator_forward.11} parent=0
    _
  %s7 = ssub.s32 1, %s5
  %s8 = scalar_select 0, %s7, %s5
  loop: start=0, step=1, limit=10
  $region2: #{generator_forward.11} parent=0 // loop_pre_header
    _
  $region3: #{generator_forward.11} parent=0 // loop_header
    %s10 = sphi 0, %s14
    %p11 = scmp.ge.s32.totalorder %s10, 10
    %s17 = sphi 0, %s29
    %s18 = sphi 0, %s25
    %s19 = sphi 0, %s17
    %s20 = sphi 0, %s18
    %s21 = sphi 0, %s19
    %s22 = sphi 0, %s20
    %s34 = sphi 0, %s36
    %s37 = sphi 0, %s34
    %s38 = sphi 0, %s37
    %s54 = sphi 0, %s38
    %s60 = sphi 0, %s62
    %s63 = sphi 0, %s60
    %s64 = sphi 0, %s63
    %s80 = sphi 0, %s64
    %s84 = sphi 0, %s84
    %s86 = sphi 0, %s84
    %s87 = sphi 0, %s86
    %s101 = sphi 0, %s87
    %s105 = sphi 0, %s105
    %s107 = sphi 0, %s105
    %s108 = sphi 0, %s107
    %s122 = sphi 0, %s108
    %s128 = sphi 0, %s130
    %s131 = sphi 0, %s128
    %s132 = sphi 0, %s131
    %s148 = sphi 0, %s132
  $region4: #{generator_forward.11} parent=0 // loop_header_branch
    %13 = sbr.rel (%p11) target = $region8
  $region5: #{generator_forward.11} parent=0 // loop_body
    %s15 = ssub.s32 %s10, 1
    %s16 = ssub.s32 %s10, 2
    %s23 = sadd.s32 1, %s18
    %p24 = scmp.ge.s32.totalorder %s23, 8
    %s25 = scalar_select %p24, 0, %s23
    %s26 = sadd.s32 1, %s17
    %s27 = scalar_select %p24, %s26, %s17
    %p28 = scmp.ge.s32.totalorder %s27, 1
    %s29 = scalar_select %p28, 0, %s27
    %s30 = ssub.s32 %s18, %s25
    %s31 = ssub.s32 %s17, %s29
    %s32 = sor.u32 %s30, %s31
    %p33 = scmp.eq.s32.totalorder %s32, 0
    %s35 = sadd.s32 %s34, 1
    %s36 = scalar_select %p33, %s34, %s35
    %p39 = pneg %p33
    %p40 = scmp.eq.s32.totalorder %s10, 7
    %p41 = por %p39, %p40
    %p42 = scmp.ne.s32.totalorder %s34, %s37
    %p43 = scmp.eq.s32.totalorder %s10, 0
    %p44 = por %p42, %p43
    %p45 = scmp.ne.s32.totalorder %s34, %s37
    %p46 = scmp.eq.s32.totalorder %s15, 7
    %p47 = por %p45, %p46
    %p48 = scmp.ne.s32.totalorder %s37, %s38
    %p49 = scmp.eq.s32.totalorder %s15, 0
    %p50 = por %p48, %p49
    %p51 = scmp.ne.s32.totalorder %s37, %s38
    %p52 = scmp.eq.s32.totalorder %s16, 7
    %p53 = por %p51, %p52
    %p55 = scmp.ne.s32.totalorder %s38, %s54
    %p56 = scmp.eq.s32.totalorder %s16, 0
    %p57 = por %p55, %p56
    %s58 = ssub.s32 %s17, %s29
    %p59 = scmp.eq.s32.totalorder %s58, 0
    %s61 = sadd.s32 %s60, 1
    %s62 = scalar_select %p59, %s60, %s61
    %p65 = pneg %p59
    %p66 = scmp.eq.s32.totalorder %s10, 7
    %p67 = por %p65, %p66
    %p68 = scmp.ne.s32.totalorder %s60, %s63
    %p69 = scmp.eq.s32.totalorder %s10, 0
    %p70 = por %p68, %p69
    %p71 = scmp.ne.s32.totalorder %s60, %s63
    %p72 = scmp.eq.s32.totalorder %s15, 7
    %p73 = por %p71, %p72
    %p74 = scmp.ne.s32.totalorder %s63, %s64
    %p75 = scmp.eq.s32.totalorder %s15, 0
    %p76 = por %p74, %p75
    %p77 = scmp.ne.s32.totalorder %s63, %s64
    %p78 = scmp.eq.s32.totalorder %s16, 7
    %p79 = por %p77, %p78
    %p81 = scmp.ne.s32.totalorder %s64, %s80
    %p82 = scmp.eq.s32.totalorder %s16, 0
    %p83 = por %p81, %p82
    %s85 = sadd.s32 %s84, 1
    %p88 = scmp.eq.s32.totalorder %s10, 7
    %p89 = scmp.ne.s32.totalorder %s84, %s86
    %p90 = scmp.eq.s32.totalorder %s10, 0
    %p91 = por %p89, %p90
    %p92 = scmp.ne.s32.totalorder %s84, %s86
    %p93 = scmp.eq.s32.totalorder %s15, 7
    %p94 = por %p92, %p93
    %p95 = scmp.ne.s32.totalorder %s86, %s87
    %p96 = scmp.eq.s32.totalorder %s15, 0
    %p97 = por %p95, %p96
    %p98 = scmp.ne.s32.totalorder %s86, %s87
    %p99 = scmp.eq.s32.totalorder %s16, 7
    %p100 = por %p98, %p99
    %p102 = scmp.ne.s32.totalorder %s87, %s101
    %p103 = scmp.eq.s32.totalorder %s16, 0
    %p104 = por %p102, %p103
    %s106 = sadd.s32 %s105, 1
    %p109 = scmp.eq.s32.totalorder %s10, 7
    %p110 = scmp.ne.s32.totalorder %s105, %s107
    %p111 = scmp.eq.s32.totalorder %s10, 0
    %p112 = por %p110, %p111
    %p113 = scmp.ne.s32.totalorder %s105, %s107
    %p114 = scmp.eq.s32.totalorder %s15, 7
    %p115 = por %p113, %p114
    %p116 = scmp.ne.s32.totalorder %s107, %s108
    %p117 = scmp.eq.s32.totalorder %s15, 0
    %p118 = por %p116, %p117
    %p119 = scmp.ne.s32.totalorder %s107, %s108
    %p120 = scmp.eq.s32.totalorder %s16, 7
    %p121 = por %p119, %p120
    %p123 = scmp.ne.s32.totalorder %s108, %s122
    %p124 = scmp.eq.s32.totalorder %s16, 0
    %p125 = por %p123, %p124
    %s126 = ssub.s32 %s17, %s29
    %p127 = scmp.eq.s32.totalorder %s126, 0
    %s129 = sadd.s32 %s128, 1
    %s130 = scalar_select %p127, %s128, %s129
    %p133 = pneg %p127
    %p134 = scmp.eq.s32.totalorder %s10, 7
    %p135 = por %p133, %p134
    %p136 = scmp.ne.s32.totalorder %s128, %s131
    %p137 = scmp.eq.s32.totalorder %s10, 0
    %p138 = por %p136, %p137
    %p139 = scmp.ne.s32.totalorder %s128, %s131
    %p140 = scmp.eq.s32.totalorder %s15, 7
    %p141 = por %p139, %p140
    %p142 = scmp.ne.s32.totalorder %s131, %s132
    %p143 = scmp.eq.s32.totalorder %s15, 0
    %p144 = por %p142, %p143
    %p145 = scmp.ne.s32.totalorder %s131, %s132
    %p146 = scmp.eq.s32.totalorder %s16, 7
    %p147 = por %p145, %p146
    %p149 = scmp.ne.s32.totalorder %s132, %s148
    %p150 = scmp.eq.s32.totalorder %s16, 0
    %p151 = por %p149, %p150
    %p152 = scmp.le.s32.totalorder 1, %s10
    %p153 = scmp.lt.s32.totalorder %s10, 9
    %p154 = pnand %p152, %p153
    %p155 = pneg %p154
    // Predicated region
    $region9: #{generator_forward.11} parent=5 // pred_check
      _
    $region10: #{generator_forward.11} parent=5 // pred_check_branch
      %157 = sbr.rel (%p154) target = $region12
    $region11: #{generator_forward.11} parent=5 // pred_region
      %s158 = ssub.s32 %s10, 1
      // Predicated region
      $region13: #{generator_forward.11} parent=11 // pred_check
        %p159 = pneg %p76
      $region14: #{generator_forward.11} parent=11 // pred_check_branch
        %161 = sbr.rel (%p159) target = $region16
      $region15: #{generator_forward.11} parent=11 // pred_region
        %s162 = smul.u32 4, %s19
        %p163 = scmp.lt.s32.totalorder %s162, 3
        %s164 = scalar_select %p163, %s162, 3
        %s165 = smul.addr %s164, 4
        %s166 = scalar_lea.vmem %s1, %s165
        %s167 = smul.u32 4, %s19
      $region16: #{generator_forward.11} parent=11 // pred_fallthru
        _
      // Predicated region
      $region17: #{generator_forward.11} parent=11 // pred_check
        %p168 = pneg %p97
      $region18: #{generator_forward.11} parent=11 // pred_check_branch
        %170 = sbr.rel (%p168) target = $region20
      $region19: #{generator_forward.11} parent=11 // pred_region
        _
      $region20: #{generator_forward.11} parent=11 // pred_fallthru
        _
      // Predicated region
      $region21: #{generator_forward.11} parent=11 // pred_check
        %p171 = pneg %p118
      $region22: #{generator_forward.11} parent=11 // pred_check_branch
        %173 = sbr.rel (%p171) target = $region24
      $region23: #{generator_forward.11} parent=11 // pred_region
        _
      $region24: #{generator_forward.11} parent=11 // pred_fallthru
        _
    $region12: #{generator_forward.11} parent=5 // pred_fallthru
      _
    %p174 = scmp.lt.s32.totalorder %s10, 8
    // Predicated region
    $region25: #{generator_forward.11} parent=5 // pred_check
      %p175 = pneg %p174
    $region26: #{generator_forward.11} parent=5 // pred_check_branch
      %177 = sbr.rel (%p175) target = $region28
    $region27: #{generator_forward.11} parent=5 // pred_region
      // Predicated region
      $region29: #{generator_forward.11} parent=27 // pred_check
        %p178 = pneg %p44
      $region30: #{generator_forward.11} parent=27 // pred_check_branch
        %180 = sbr.rel (%p178) target = $region32
      $region31: #{generator_forward.11} parent=27 // pred_region
        %s181 = smul.u32 4, %s17
        %p182 = scmp.lt.s32.totalorder %s18, 7
        %s183 = scalar_select %p182, %s18, 7
        %p184 = scmp.lt.s32.totalorder %s181, 3
        %s185 = scalar_select %p184, %s181, 3
        %s186 = smul.addr %s183, 4
        %s187 = sadd.s32 %s185, %s186
        %s188 = smul.addr %s187, 4
        %s189 = scalar_lea.vmem %s0, %s188
        %s190 = smul.u32 4, %s17
      $region32: #{generator_forward.11} parent=27 // pred_fallthru
        _
    $region28: #{generator_forward.11} parent=5 // pred_fallthru
      _
    %p191 = scmp.le.s32.totalorder 1, %s10
    %p192 = scmp.lt.s32.totalorder %s10, 9
    %p193 = pnand %p191, %p192
    %p194 = pneg %p193
    // Predicated region
    $region33: #{generator_forward.11} parent=5 // pred_check
      _
    $region34: #{generator_forward.11} parent=5 // pred_check_branch
      %196 = sbr.rel (%p193) target = $region36
    $region35: #{generator_forward.11} parent=5 // pred_region
      %s197 = ssub.s32 %s10, 1
      %s198 = smul.u32 4, %s19
      %p199 = scmp.lt.s32.totalorder %s20, 7
      %s200 = scalar_select %p199, %s20, 7
      %p201 = scmp.lt.s32.totalorder %s198, 3
      %s202 = scalar_select %p201, %s198, 3
      %s203 = smul.addr %s200, 4
      %s204 = sadd.s32 %s202, %s203
      %s205 = smul.addr %s204, 4
      %s206 = scalar_lea.vmem %s0, %s205
      %p207 = pneg %p50
      %p208 = pneg %p47
      %s209 = smul.u32 4, %s19
      %p210 = scmp.lt.s32.totalorder %s209, 3
      %s211 = scalar_select %p210, %s209, 3
      %s212 = smul.addr %s211, 4
      %s213 = scalar_lea.vmem %s1, %s212
      %p214 = pneg %p76
      %p215 = pneg %p73
      %p216 = pneg %p97
      %p217 = pneg %p94
      %p218 = pneg %p118
      %p219 = pneg %p115
      %p220 = pneg %p144
      %p221 = pneg %p141
      %s222 = smul.u32 4, %s19
      %p223 = scmp.lt.s32.totalorder %s222, 3
      %s224 = scalar_select %p223, %s222, 3
      %s225 = smul.addr %s224, 4
      %s226 = scalar_lea.vmem %s4, %s225
      %s227 = smul.u32 4, %s19
      %p228 = scmp.lt.s32.totalorder %s20, 7
      %s229 = scalar_select %p228, %s20, 7
      %p230 = scmp.lt.s32.totalorder %s227, 3
      %s231 = scalar_select %p230, %s227, 3
      %s232 = smul.addr %s229, 4
      %s233 = sadd.s32 %s231, %s232
      %s234 = smul.addr %s233, 4
      %s235 = scalar_lea.vmem %s0, %s234
      %s236 = smul.u32 4, %s19
      %s237 = smul.u32 4, %s19
      %p238 = scmp.lt.s32.totalorder %s237, 3
      %s239 = scalar_select %p238, %s237, 3
      %s240 = smul.addr %s239, 4
      %s241 = scalar_lea.vmem %s1, %s240
      %s242 = smul.u32 4, %s19
      %s243 = smul.u32 4, %s19
      %p244 = scmp.lt.s32.totalorder %s243, 3
      %s245 = scalar_select %p244, %s243, 3
      %s246 = smul.addr %s245, 4
      %s247 = scalar_lea.vmem %s4, %s246
      %s248 = smul.u32 4, %s19
      %p250 = scmp.eq.s32.totalorder %s20, 0
      // Predicated region
      $region37: #{generator_forward.11} parent=35 // pred_check
        %p251 = pneg %p250
      $region38: #{generator_forward.11} parent=35 // pred_check_branch
        %253 = sbr.rel (%p251) target = $region40
      $region39: #{generator_forward.11} parent=35 // pred_region
        %vm254 = vcmask 523264
        %255 = vst.msk [vmem:[#allocation2] sm:$0xff] %vm254, -inf
        %256 = vst.msk [vmem:[#allocation2 + $0x8] sm:$0xff] %vm254, -inf
        %257 = vst.msk [vmem:[#allocation2 + $0x10] sm:$0xff] %vm254, -inf
        %258 = vst.msk [vmem:[#allocation2 + $0x18] sm:$0xff] %vm254, -inf
      $region40: #{generator_forward.11} parent=35 // pred_fallthru
        _
      %v259 = vld [vmem:[#allocation2] sm:$0xff]
      %v260 = vld [vmem:[#allocation2 + $0x8] sm:$0xff]
      %v261 = vld [vmem:[#allocation2 + $0x10] sm:$0xff]
      %v262 = vld [vmem:[#allocation2 + $0x18] sm:$0xff]
      %v263 = vld [vmem:[%s235] sm:$0xf]
      %v264 = vld [vmem:[%s235 + $0x4] sm:$0xf]
      %v265 = vld [vmem:[%s235 + $0x8] sm:$0xf]
      %v266 = vld [vmem:[%s235 + $0xc] sm:$0xf]
      %v267 = vld [vmem:[%s2] sm:$0x3]
      %v272 = vunpack.c.l.b16 %v263
      %v273 = vunpack.c.l.b16 %v264
      %v274 = vunpack.c.l.b16 %v265
      %v275 = vunpack.c.l.b16 %v266
      %v276 = vpack.c.b16 %v273, %v272
      %v277 = vpack.c.b16 %v275, %v274
      %vm278 = vcmask 23552
      %v280 = vsel %vm278, %v276, 0
      %v283 = vsel %vm278, %v277, 0
      %vm285 = vcmask 1040384
      %vm286 = vcmask 1041408
      %v287 = vsel %vm285, 4294967295, 65535
      %v288 = vsel %vm286, %v287, 0
      %v290 = vand.u32 %v267, %v288
      %292 = vmatpush.bf16.msra.mxu0 0
      %293 = vmatpush.bf16.msra.mxu0 0
      %294 = vmatpush.bf16.msra.mxu0 0
      %295 = vmatpush.bf16.msra.mxu0 0
      %296 = vmatpush.bf16.msra.mxu0 0
      %297 = vmatpush.bf16.msra.mxu0 0
      %298 = vmatpush.bf16.msra.mxu0 0
      %299 = vmatpush.bf16.msra.mxu0 %v290
      %300 = vmatmul.bf16.gmra.mxu0 %v280
      %v301 = vpop.f32.mrf.mxu0
      %v302 = vadd.f32 0.0, %v301
      %v303 = vpop.f32.mrf.mxu0
      %v304 = vadd.f32 0.0, %v303
      %305 = vmatmul.bf16.gmra.mxu0 %v283
      %v306 = vpop.f32.mrf.mxu0
      %v307 = vadd.f32 0.0, %v306
      %v308 = vpop.f32.mrf.mxu0
      %v309 = vadd.f32 0.0, %v308
      %310 = vdwg.mxu0
      %v311 = vmax.f32 %v259, %v302
      %v312 = vmax.f32 %v260, %v304
      %v313 = vmax.f32 %v261, %v307
      %v314 = vmax.f32 %v262, %v309
      %vm315 = vcmask 523264
      %316 = vst.msk [vmem:[#allocation2] sm:$0xff] %vm315, %v311
      %317 = vst.msk [vmem:[#allocation2 + $0x8] sm:$0xff] %vm315, %v312
      %318 = vst.msk [vmem:[#allocation2 + $0x10] sm:$0xff] %vm315, %v313
      %319 = vst.msk [vmem:[#allocation2 + $0x18] sm:$0xff] %vm315, %v314
      %p320 = scmp.eq.s32.totalorder %s20, 7
      // Predicated region
      $region41: #{generator_forward.11} parent=35 // pred_check
        %p321 = pneg %p320
      $region42: #{generator_forward.11} parent=35 // pred_check_branch
        %323 = sbr.rel (%p321) target = $region44
      $region43: #{generator_forward.11} parent=35 // pred_region
        %v324 = vld [vmem:[#allocation2] sm:$0xff]
        %v325 = vld [vmem:[#allocation2 + $0x8] sm:$0xff]
        %v326 = vld [vmem:[#allocation2 + $0x10] sm:$0xff]
        %v327 = vld [vmem:[#allocation2 + $0x18] sm:$0xff]
        %v328 = vld [vmem:[%s241] sm:$0xf]
        %v329 = vld [vmem:[%s241 + $0x4] sm:$0xf]
        %v330 = vld [vmem:[%s241 + $0x8] sm:$0xf]
        %v331 = vld [vmem:[%s241 + $0xc] sm:$0xf]
        %v332 = vld [vmem:[%s3] sm:$0x3]
        %v337 = vunpack.c.l.b16 %v328
        %v338 = vunpack.c.l.b16 %v329
        %v339 = vunpack.c.l.b16 %v330
        %v340 = vunpack.c.l.b16 %v331
        %v341 = vpack.c.b16 %v338, %v337
        %v342 = vpack.c.b16 %v340, %v339
        %v344 = vsel %vm278, %v341, 0
        %v347 = vsel %vm278, %v342, 0
        %v350 = vand.u32 %v332, %v288
        %352 = vmatpush.bf16.msra.mxu0 0
        %353 = vmatpush.bf16.msra.mxu0 0
        %354 = vmatpush.bf16.msra.mxu0 0
        %355 = vmatpush.bf16.msra.mxu0 0
        %356 = vmatpush.bf16.msra.mxu0 0
        %357 = vmatpush.bf16.msra.mxu0 0
        %358 = vmatpush.bf16.msra.mxu0 0
        %359 = vmatpush.bf16.msra.mxu0 %v350
        %360 = vmatmul.bf16.gmra.mxu0 %v344
        %v361 = vpop.f32.mrf.mxu0
        %v362 = vadd.f32 0.0, %v361
        %v363 = vpop.f32.mrf.mxu0
        %v364 = vadd.f32 0.0, %v363
        %365 = vmatmul.bf16.gmra.mxu0 %v347
        %v366 = vpop.f32.mrf.mxu0
        %v367 = vadd.f32 0.0, %v366
        %v368 = vpop.f32.mrf.mxu0
        %v369 = vadd.f32 0.0, %v368
        %370 = vdwg.mxu0
        %v371 = vadd.f32 %v324, %v362
        %v372 = vadd.f32 %v325, %v364
        %v373 = vadd.f32 %v326, %v367
        %v374 = vadd.f32 %v327, %v369
        %vm375 = vcmp.ge.f32.partialorder %v371, 0.0
        %vm376 = vcmp.ge.f32.partialorder %v372, 0.0
        %vm377 = vcmp.ge.f32.partialorder %v373, 0.0
        %vm378 = vcmp.ge.f32.partialorder %v374, 0.0
        %v379 = vmul.f32 %v371, 0.2
        %v380 = vmul.f32 %v372, 0.2
        %v381 = vmul.f32 %v373, 0.2
        %v382 = vmul.f32 %v374, 0.2
        %v383 = vsel %vm375, %v371, %v379
        %v384 = vsel %vm376, %v372, %v380
        %v385 = vsel %vm377, %v373, %v381
        %v386 = vsel %vm378, %v374, %v382
        %v387 = vpack.c.bf16 %v383, %v383
        %v388 = vpack.c.bf16 %v384, %v384
        %v389 = vpack.c.bf16 %v385, %v385
        %v390 = vpack.c.bf16 %v386, %v386
        %vm391 = vcmask 519168
        %392 = vst.msk [vmem:[%s247] sm:$0xf] %vm391, %v387
        %393 = vst.msk [vmem:[%s247 + $0x4] sm:$0xf] %vm391, %v388
        %394 = vst.msk [vmem:[%s247 + $0x8] sm:$0xf] %vm391, %v389
        %395 = vst.msk [vmem:[%s247 + $0xc] sm:$0xf] %vm391, %v390
      $region44: #{generator_forward.11} parent=35 // pred_fallthru
        _
      %s396 = smul.u32 4, %s19
      %p397 = scmp.lt.s32.totalorder %s396, 3
      %s398 = scalar_select %p397, %s396, 3
      %s399 = smul.addr %s398, 4
      %s400 = scalar_lea.vmem %s4, %s399
      // Predicated region
      $region45: #{generator_forward.11} parent=35 // pred_check
        %p401 = pneg %p141
      $region46: #{generator_forward.11} parent=35 // pred_check_branch
        %403 = sbr.rel (%p401) target = $region48
      $region47: #{generator_forward.11} parent=35 // pred_region
        %s404 = smul.u32 4, %s19
      $region48: #{generator_forward.11} parent=35 // pred_fallthru
        _
      // Predicated region
      $region49: #{generator_forward.11} parent=35 // pred_check
        %p405 = pneg %p141
      $region50: #{generator_forward.11} parent=35 // pred_check_branch
        %407 = sbr.rel (%p405) target = $region52
      $region51: #{generator_forward.11} parent=35 // pred_region
        %s408 = smul.u32 4, %s19
        %p409 = scmp.lt.s32.totalorder %s408, 3
        %s410 = scalar_select %p409, %s408, 3
        %s411 = smul.addr %s410, 4
        %s412 = scalar_lea.vmem %s4, %s411
      $region52: #{generator_forward.11} parent=35 // pred_fallthru
        _
    $region36: #{generator_forward.11} parent=5 // pred_fallthru
      _
    %p413 = scmp.le.s32.totalorder 2, %s10
    // Predicated region
    $region53: #{generator_forward.11} parent=5 // pred_check
      %p414 = pneg %p413
    $region54: #{generator_forward.11} parent=5 // pred_check_branch
      %416 = sbr.rel (%p414) target = $region56
    $region55: #{generator_forward.11} parent=5 // pred_region
      %s417 = ssub.s32 %s10, 2
    $region56: #{generator_forward.11} parent=5 // pred_fallthru
      _
  $region6: #{generator_forward.11} parent=0 // loop_footer
    %s14 = sadd.s32 1, %s10
  $region7: #{generator_forward.11} parent=0 // loop_footer_branch
    %9 = sbr.rel target = $region3
  $region8: #{generator_forward.11} parent=0 // loop_exit
    _

// kernel: generator_forward.12
$region0: #{generator_forward.12}
  #allocation0 [shape = 'u32[]', space=smem, size = 0x4, offset = 0x4, fixed_abs, tag = 'smem constant byte address 0x4 - core index']
  #allocation1 [shape = 'u32[72,128]{1,0:T(1,128)}', space=vmem, size = 0x9000, scoped, tag = 'internal scratch']
  %s0 = inlined_call_operand.vmem [shape: bf16[2,16,64], index: 0, kind: input, shape index: {}]
  %s1 = inlined_call_operand.vmem [shape: f32[2,16,1], index: 1, kind: input, shape index: {}]
  %s2 = inlined_call_operand.vmem [shape: f32[2,1,16], index: 2, kind: input, shape index: {}]
  %s3 = inlined_call_operand.vmem [shape: s32[2,16,8], index: 3, kind: output, shape index: {}]
  %s4 = sld [smem:[#allocation0]]
  $region45: #{generator_forward.12} parent=0
    _
  %s6 = ssub.s32 1, %s4
  %s7 = scalar_select 0, %s6, %s4
  loop: start=0, step=1, limit=4
  $region2: #{generator_forward.12} parent=0 // loop_pre_header
    _
  $region3: #{generator_forward.12} parent=0 // loop_header
    %s9 = sphi 0, %s13
    %p10 = scmp.ge.s32.totalorder %s9, 4
    %s16 = sphi 0, %s28
    %s17 = sphi 0, %s24
    %s18 = sphi 0, %s16
    %s19 = sphi 0, %s17
    %s20 = sphi 0, %s18
    %s21 = sphi 0, %s19
    %s31 = sphi 0, %s33
    %s34 = sphi 0, %s31
    %s35 = sphi 0, %s34
    %s51 = sphi 0, %s35
    %s57 = sphi 0, %s59
    %s60 = sphi 0, %s57
    %s61 = sphi 0, %s60
    %s77 = sphi 0, %s61
    %s83 = sphi 0, %s85
    %s86 = sphi 0, %s83
    %s87 = sphi 0, %s86
    %s103 = sphi 0, %s87
    %s111 = sphi 0, %s113
    %s114 = sphi 0, %s111
    %s115 = sphi 0, %s114
    %s131 = sphi 0, %s115
  $region4: #{generator_forward.12} parent=0 // loop_header_branch
    %12 = sbr.rel (%p10) target = $region8
  $region5: #{generator_forward.12} parent=0 // loop_body
    %s14 = ssub.s32 %s9, 1
    %s15 = ssub.s32 %s9, 2
    %s22 = sadd.s32 1, %s17
    %p23 = scmp.ge.s32.totalorder %s22, 1
    %s24 = scalar_select %p23, 0, %s22
    %s25 = sadd.s32 1, %s16
    %s26 = scalar_select %p23, %s25, %s16
    %p27 = scmp.ge.s32.totalorder %s26, 2
    %s28 = scalar_select %p27, 0, %s26
    %s29 = ssub.s32 %s16, %s28
    %p30 = scmp.eq.s32.totalorder %s29, 0
    %s32 = sadd.s32 %s31, 1
    %s33 = scalar_select %p30, %s31, %s32
    %p36 = pneg %p30
    %p37 = scmp.eq.s32.totalorder %s9, 1
    %p38 = por %p36, %p37
    %p39 = scmp.ne.s32.totalorder %s31, %s34
    %p40 = scmp.eq.s32.totalorder %s9, 0
    %p41 = por %p39, %p40
    %p42 = scmp.ne.s32.totalorder %s31, %s34
    %p43 = scmp.eq.s32.totalorder %s14, 1
    %p44 = por %p42, %p43
    %p45 = scmp.ne.s32.totalorder %s34, %s35
    %p46 = scmp.eq.s32.totalorder %s14, 0
    %p47 = por %p45, %p46
    %p48 = scmp.ne.s32.totalorder %s34, %s35
    %p49 = scmp.eq.s32.totalorder %s15, 1
    %p50 = por %p48, %p49
    %p52 = scmp.ne.s32.totalorder %s35, %s51
    %p53 = scmp.eq.s32.totalorder %s15, 0
    %p54 = por %p52, %p53
    %s55 = ssub.s32 %s16, %s28
    %p56 = scmp.eq.s32.totalorder %s55, 0
    %s58 = sadd.s32 %s57, 1
    %s59 = scalar_select %p56, %s57, %s58
    %p62 = pneg %p56
    %p63 = scmp.eq.s32.totalorder %s9, 1
    %p64 = por %p62, %p63
    %p65 = scmp.ne.s32.totalorder %s57, %s60
    %p66 = scmp.eq.s32.totalorder %s9, 0
    %p67 = por %p65, %p66
    %p68 = scmp.ne.s32.totalorder %s57, %s60
    %p69 = scmp.eq.s32.totalorder %s14, 1
    %p70 = por %p68, %p69
    %p71 = scmp.ne.s32.totalorder %s60, %s61
    %p72 = scmp.eq.s32.totalorder %s14, 0
    %p73 = por %p71, %p72
    %p74 = scmp.ne.s32.totalorder %s60, %s61
    %p75 = scmp.eq.s32.totalorder %s15, 1
    %p76 = por %p74, %p75
    %p78 = scmp.ne.s32.totalorder %s61, %s77
    %p79 = scmp.eq.s32.totalorder %s15, 0
    %p80 = por %p78, %p79
    %s81 = ssub.s32 %s16, %s28
    %p82 = scmp.eq.s32.totalorder %s81, 0
    %s84 = sadd.s32 %s83, 1
    %s85 = scalar_select %p82, %s83, %s84
    %p88 = pneg %p82
    %p89 = scmp.eq.s32.totalorder %s9, 1
    %p90 = por %p88, %p89
    %p91 = scmp.ne.s32.totalorder %s83, %s86
    %p92 = scmp.eq.s32.totalorder %s9, 0
    %p93 = por %p91, %p92
    %p94 = scmp.ne.s32.totalorder %s83, %s86
    %p95 = scmp.eq.s32.totalorder %s14, 1
    %p96 = por %p94, %p95
    %p97 = scmp.ne.s32.totalorder %s86, %s87
    %p98 = scmp.eq.s32.totalorder %s14, 0
    %p99 = por %p97, %p98
    %p100 = scmp.ne.s32.totalorder %s86, %s87
    %p101 = scmp.eq.s32.totalorder %s15, 1
    %p102 = por %p100, %p101
    %p104 = scmp.ne.s32.totalorder %s87, %s103
    %p105 = scmp.eq.s32.totalorder %s15, 0
    %p106 = por %p104, %p105
    %s107 = ssub.s32 %s16, %s28
    %s108 = ssub.s32 %s17, %s24
    %s109 = sor.u32 %s107, %s108
    %p110 = scmp.eq.s32.totalorder %s109, 0
    %s112 = sadd.s32 %s111, 1
    %s113 = scalar_select %p110, %s111, %s112
    %p116 = pneg %p110
    %p117 = scmp.eq.s32.totalorder %s9, 1
    %p118 = por %p116, %p117
    %p119 = scmp.ne.s32.totalorder %s111, %s114
    %p120 = scmp.eq.s32.totalorder %s9, 0
    %p121 = por %p119, %p120
    %p122 = scmp.ne.s32.totalorder %s111, %s114
    %p123 = scmp.eq.s32.totalorder %s14, 1
    %p124 = por %p122, %p123
    %p125 = scmp.ne.s32.totalorder %s114, %s115
    %p126 = scmp.eq.s32.totalorder %s14, 0
    %p127 = por %p125, %p126
    %p128 = scmp.ne.s32.totalorder %s114, %s115
    %p129 = scmp.eq.s32.totalorder %s15, 1
    %p130 = por %p128, %p129
    %p132 = scmp.ne.s32.totalorder %s115, %s131
    %p133 = scmp.eq.s32.totalorder %s15, 0
    %p134 = por %p132, %p133
    %p135 = scmp.le.s32.totalorder 1, %s9
    %p136 = scmp.lt.s32.totalorder %s9, 3
    %p137 = pnand %p135, %p136
    %p138 = pneg %p137
    // Predicated region
    $region9: #{generator_forward.12} parent=5 // pred_check
      _
    $region10: #{generator_forward.12} parent=5 // pred_check_branch
      %140 = sbr.rel (%p137) target = $region12
    $region11: #{generator_forward.12} parent=5 // pred_region
      %s141 = ssub.s32 %s9, 1
    $region12: #{generator_forward.12} parent=5 // pred_fallthru
      _
    %p142 = scmp.lt.s32.totalorder %s9, 2
    // Predicated region
    $region13: #{generator_forward.12} parent=5 // pred_check
      %p143 = pneg %p142
    $region14: #{generator_forward.12} parent=5 // pred_check_branch
      %145 = sbr.rel (%p143) target = $region16
    $region15: #{generator_forward.12} parent=5 // pred_region
      // Predicated region
      $region17: #{generator_forward.12} parent=15 // pred_check
        %p146 = pneg %p41
      $region18: #{generator_forward.12} parent=15 // pred_check_branch
        %148 = sbr.rel (%p146) target = $region20
      $region19: #{generator_forward.12} parent=15 // pred_region
        %p149 = scmp.lt.s32.totalorder %s16, 1
        %s150 = scalar_select %p149, %s16, 1
        %s151 = smul.addr %s150, 2
        %s152 = smul.addr %s151, 4
        %s153 = scalar_lea.vmem %s0, %s152
      $region20: #{generator_forward.12} parent=15 // pred_fallthru
        _
      // Predicated region
      $region21: #{generator_forward.12} parent=15 // pred_check
        %p154 = pneg %p67
      $region22: #{generator_forward.12} parent=15 // pred_check_branch
        %156 = sbr.rel (%p154) target = $region24
      $region23: #{generator_forward.12} parent=15 // pred_region
        %p157 = scmp.lt.s32.totalorder %s16, 1
        %s158 = scalar_select %p157, %s16, 1
        %s159 = smul.addr %s158, 2
        %s160 = smul.addr %s159, 8
        %s161 = scalar_lea.vmem %s1, %s160
      $region24: #{generator_forward.12} parent=15 // pred_fallthru
        _
      // Predicated region
      $region25: #{generator_forward.12} parent=15 // pred_check
        %p162 = pneg %p93
      $region26: #{generator_forward.12} parent=15 // pred_check_branch
        %164 = sbr.rel (%p162) target = $region28
      $region27: #{generator_forward.12} parent=15 // pred_region
        %p165 = scmp.lt.s32.totalorder %s16, 1
        %s166 = scalar_select %p165, %s16, 1
        %s167 = scalar_lea.vmem %s2, %s166
      $region28: #{generator_forward.12} parent=15 // pred_fallthru
        _
    $region16: #{generator_forward.12} parent=5 // pred_fallthru
      _
    %p168 = scmp.le.s32.totalorder 1, %s9
    %p169 = scmp.lt.s32.totalorder %s9, 3
    %p170 = pnand %p168, %p169
    %p171 = pneg %p170
    // Predicated region
    $region29: #{generator_forward.12} parent=5 // pred_check
      _
    $region30: #{generator_forward.12} parent=5 // pred_check_branch
      %173 = sbr.rel (%p170) target = $region32
    $region31: #{generator_forward.12} parent=5 // pred_region
      %s174 = ssub.s32 %s9, 1
      %p175 = scmp.lt.s32.totalorder %s18, 1
      %s176 = scalar_select %p175, %s18, 1
      %s177 = smul.addr %s176, 2
      %s178 = smul.addr %s177, 4
      %s179 = scalar_lea.vmem %s0, %s178
      %p180 = pneg %p47
      %p181 = pneg %p44
      %p182 = scmp.lt.s32.totalorder %s18, 1
      %s183 = scalar_select %p182, %s18, 1
      %s184 = smul.addr %s183, 2
      %s185 = smul.addr %s184, 8
      %s186 = scalar_lea.vmem %s1, %s185
      %p187 = pneg %p73
      %p188 = pneg %p70
      %p189 = scmp.lt.s32.totalorder %s18, 1
      %s190 = scalar_select %p189, %s18, 1
      %s191 = scalar_lea.vmem %s2, %s190
      %p192 = pneg %p99
      %p193 = pneg %p96
      %p194 = pneg %p127
      %p195 = pneg %p124
      %s196 = smul.u32 2, %s19
      %p197 = scmp.lt.s32.totalorder %s18, 1
      %s198 = scalar_select %p197, %s18, 1
      %p199 = scmp.lt.s32.totalorder %s196, 1
      %s200 = scalar_select %p199, %s196, 1
      %s201 = smul.addr %s198, 2
      %s202 = sadd.s32 %s200, %s201
      %s203 = smul.addr %s202, 8
      %s204 = scalar_lea.vmem %s3, %s203
      %p205 = scmp.lt.s32.totalorder %s18, 1
      %s206 = scalar_select %p205, %s18, 1
      %s207 = smul.addr %s206, 2
      %s208 = smul.addr %s207, 4
      %s209 = scalar_lea.vmem %s0, %s208
      %p210 = scmp.lt.s32.totalorder %s18, 1
      %s211 = scalar_select %p210, %s18, 1
      %s212 = smul.addr %s211, 2
      %s213 = smul.addr %s212, 8
      %s214 = scalar_lea.vmem %s1, %s213
      %p215 = scmp.lt.s32.totalorder %s18, 1
      %s216 = scalar_select %p215, %s18, 1
      %s217 = scalar_lea.vmem %s2, %s216
      %s218 = smul.u32 2, %s19
      %p219 = scmp.lt.s32.totalorder %s18, 1
      %s220 = scalar_select %p219, %s18, 1
      %p221 = scmp.lt.s32.totalorder %s218, 1
      %s222 = scalar_select %p221, %s218, 1
      %s223 = smul.addr %s220, 2
      %s224 = sadd.s32 %s222, %s223
      %s225 = smul.addr %s224, 8
      %s226 = scalar_lea.vmem %s3, %s225
      %s227 = smul.u32 2, %s19
      %s229 = smul.u32 %s19, 16
      %v230 = vld [vmem:[%s209] sm:$0xf]
      %v231 = vld [vmem:[%s209 + $0x4] sm:$0xf]
      %s232 = sshra.s32 %s229, 3
      %s233 = sand.u32 %s229, 7
      %s234 = smul.addr %s232, 4
      %s235 = scalar_lea.vmem %s209, %s234
      %v236 = vld [vmem:[%s235] sm:$0xf]
      %v237 = vld [vmem:[%s235 + $0x4] sm:$0xf]
      %v240 = vunpack.c.l.b16 %v236
      %v241 = vunpack.c.l.b16 %v237
      %v242 = vpack.c.b16 %v241, %v240
      %v245 = vunpack.c.l.b16 %v230
      %v246 = vunpack.c.l.b16 %v231
      %v247 = vpack.c.b16 %v246, %v245
      %vm248 = vcmask 523264
      %v250 = vsel %vm248, %v242, 0
      %v253 = vsel %vm248, %v247, 0
      %255 = vmatpush.bf16.xpose.msra.mxu0 0
      %256 = vmatpush.bf16.xpose.msra.mxu0 0
      %257 = vmatpush.bf16.xpose.msra.mxu0 0
      %258 = vmatpush.bf16.xpose.msra.mxu0 0
      %259 = vmatpush.bf16.xpose.msra.mxu0 0
      %260 = vmatpush.bf16.xpose.msra.mxu0 0
      %261 = vmatpush.bf16.xpose.msra.mxu0 0
      %262 = vmatpush.bf16.xpose.msra.mxu0 %v253
      %263 = vmatmul.bf16.gmra.mxu0 %v250
      %v264 = vpop.f32.mrf.mxu0
      %v265 = vadd.f32 0.0, %v264
      %v266 = vpop.f32.mrf.mxu0
      %v267 = vadd.f32 0.0, %v266
      %268 = vdwg.mxu0
      %s269 = scalar_lea.vmem %s214, %s229
      %v270 = vld [vmem:[%s269] sm:$0xff]
      %v271 = vld [vmem:[%s269 + $0x8] sm:$0xff]
      %v272 = vld [vmem:[%s217] sm:$0x1]
      %v273 = vmul.f32 %v265, 2.0
      %v274 = vmul.f32 %v267, 2.0
      %276 = vset.pattern.permute.xlu0 0
      %277 = vperm.xlu0 %276, %v270
      %v278 = vpop.permute.xlu0 %277
      %281 = vset.pattern.permute.xlu0 0
      %282 = vperm.xlu0 %281, %v271
      %v283 = vpop.permute.xlu0 %282
      %v285 = vsub.f32 %v273, %v278
      %v286 = vsub.f32 %v274, %v283
      %v288 = vperm.slane %v272, 0
      %v290 = vsub.f32 %v285, %v288
      %v291 = vsub.f32 %v286, %v288
      %v292 = vlaneseq
      %v293 = vand.u32 %v292, 127
      %vm294 = vcmask 130048
      %v295 = vsel %vm294, %v290, -inf
      %296 = vmax.xlane.f32.xlu0 %v295
      %v297 = vpop.xlane.xlu0 %296
      %v298 = vsel %vm294, %v291, -inf
      %299 = vmax.xlane.f32.xlu0 %v298
      %v300 = vpop.xlane.xlu0 %299
      %vm301 = vcmp.ge.f32.partialorder %v290, %v297
      %vm302 = vcmp.ge.f32.partialorder %v291, %v300
      %v303 = vsel %vm301, %v293, 16
      %v304 = vsel %vm302, %v293, 16
      %v305 = vsel %vm294, %v303, 2147483647
      %v306 = vand.u32 %v305, 65535
      %v307 = vshra.s32 %v305, 16
      %v308 = vcvt.s32.f32 %v306
      %v309 = vcvt.s32.f32 %v307
      %310 = vmin.xlane.f32.xlu0 %v309
      %v311 = vpop.xlane.xlu0 %310
      %vm312 = vcmp.eq.f32.partialorder %v309, %v311
      %v313 = vsel %vm312, %v308, inf
      %314 = vmin.xlane.f32.xlu0 %v313
      %v315 = vpop.xlane.xlu0 %314
      %v316 = vcvt.f32.s32 %v315
      %v317 = vcvt.f32.s32 %v311
      %v318 = vshll.u32 %v317, 16
      %v319 = vadd.s32 %v318, %v316
      %v320 = vsel %vm294, %v304, 2147483647
      %v321 = vand.u32 %v320, 65535
      %v322 = vshra.s32 %v320, 16
      %v323 = vcvt.s32.f32 %v321
      %v324 = vcvt.s32.f32 %v322
      %325 = vmin.xlane.f32.xlu0 %v324
      %v326 = vpop.xlane.xlu0 %325
      %vm327 = vcmp.eq.f32.partialorder %v324, %v326
      %v328 = vsel %vm327, %v323, inf
      %329 = vmin.xlane.f32.xlu0 %v328
      %v330 = vpop.xlane.xlu0 %329
      %v331 = vcvt.f32.s32 %v330
      %v332 = vcvt.f32.s32 %v326
      %v333 = vshll.u32 %v332, 16
      %v334 = vadd.s32 %v333, %v331
      %vm335 = vcmp.eq.s32.totalorder %v293, %v319
      %vm336 = vcmp.eq.s32.totalorder %v293, %v334
      %v337 = vsel %vm335, -inf, %v290
      %v338 = vsel %vm336, -inf, %v291
      %v339 = vsel %vm294, %v337, -inf
      %340 = vmax.xlane.f32.xlu0 %v339
      %v341 = vpop.xlane.xlu0 %340
      %v342 = vsel %vm294, %v338, -inf
      %343 = vmax.xlane.f32.xlu0 %v342
      %v344 = vpop.xlane.xlu0 %343
      %vm345 = vcmp.ge.f32.partialorder %v337, %v341
      %vm346 = vcmp.ge.f32.partialorder %v338, %v344
      %v347 = vsel %vm345, %v293, 16
      %v348 = vsel %vm346, %v293, 16
      %v349 = vsel %vm294, %v347, 2147483647
      %v350 = vand.u32 %v349, 65535
      %v351 = vshra.s32 %v349, 16
      %v352 = vcvt.s32.f32 %v350
      %v353 = vcvt.s32.f32 %v351
      %354 = vmin.xlane.f32.xlu0 %v353
      %v355 = vpop.xlane.xlu0 %354
      %vm356 = vcmp.eq.f32.partialorder %v353, %v355
      %v357 = vsel %vm356, %v352, inf
      %358 = vmin.xlane.f32.xlu0 %v357
      %v359 = vpop.xlane.xlu0 %358
      %v360 = vcvt.f32.s32 %v359
      %v361 = vcvt.f32.s32 %v355
      %v362 = vshll.u32 %v361, 16
      %v363 = vadd.s32 %v362, %v360
      %v364 = vsel %vm294, %v348, 2147483647
      %v365 = vand.u32 %v364, 65535
      %v366 = vshra.s32 %v364, 16
      %v367 = vcvt.s32.f32 %v365
      %v368 = vcvt.s32.f32 %v366
      %369 = vmin.xlane.f32.xlu0 %v368
      %v370 = vpop.xlane.xlu0 %369
      %vm371 = vcmp.eq.f32.partialorder %v368, %v370
      %v372 = vsel %vm371, %v367, inf
      %373 = vmin.xlane.f32.xlu0 %v372
      %v374 = vpop.xlane.xlu0 %373
      %v375 = vcvt.f32.s32 %v374
      %v376 = vcvt.f32.s32 %v370
      %v377 = vshll.u32 %v376, 16
      %v378 = vadd.s32 %v377, %v375
      %vm379 = vcmp.eq.s32.totalorder %v293, %v363
      %vm380 = vcmp.eq.s32.totalorder %v293, %v378
      %v381 = vsel %vm379, -inf, %v337
      %v382 = vsel %vm380, -inf, %v338
      %v383 = vsel %vm294, %v381, -inf
      %384 = vmax.xlane.f32.xlu0 %v383
      %v385 = vpop.xlane.xlu0 %384
      %v386 = vsel %vm294, %v382, -inf
      %387 = vmax.xlane.f32.xlu0 %v386
      %v388 = vpop.xlane.xlu0 %387
      %vm389 = vcmp.ge.f32.partialorder %v381, %v385
      %vm390 = vcmp.ge.f32.partialorder %v382, %v388
      %v391 = vsel %vm389, %v293, 16
      %v392 = vsel %vm390, %v293, 16
      %v393 = vsel %vm294, %v391, 2147483647
      %v394 = vand.u32 %v393, 65535
      %v395 = vshra.s32 %v393, 16
      %v396 = vcvt.s32.f32 %v394
      %v397 = vcvt.s32.f32 %v395
      %398 = vmin.xlane.f32.xlu0 %v397
      %v399 = vpop.xlane.xlu0 %398
      %vm400 = vcmp.eq.f32.partialorder %v397, %v399
      %v401 = vsel %vm400, %v396, inf
      %402 = vmin.xlane.f32.xlu0 %v401
      %v403 = vpop.xlane.xlu0 %402
      %v404 = vcvt.f32.s32 %v403
      %v405 = vcvt.f32.s32 %v399
      %v406 = vshll.u32 %v405, 16
      %v407 = vadd.s32 %v406, %v404
      %v408 = vsel %vm294, %v392, 2147483647
      %v409 = vand.u32 %v408, 65535
      %v410 = vshra.s32 %v408, 16
      %v411 = vcvt.s32.f32 %v409
      %v412 = vcvt.s32.f32 %v410
      %413 = vmin.xlane.f32.xlu0 %v412
      %v414 = vpop.xlane.xlu0 %413
      %vm415 = vcmp.eq.f32.partialorder %v412, %v414
      %v416 = vsel %vm415, %v411, inf
      %417 = vmin.xlane.f32.xlu0 %v416
      %v418 = vpop.xlane.xlu0 %417
      %v419 = vcvt.f32.s32 %v418
      %v420 = vcvt.f32.s32 %v414
      %v421 = vshll.u32 %v420, 16
      %v422 = vadd.s32 %v421, %v419
      %vm423 = vcmp.eq.s32.totalorder %v293, %v407
      %vm424 = vcmp.eq.s32.totalorder %v293, %v422
      %v425 = vsel %vm423, -inf, %v381
      %v426 = vsel %vm424, -inf, %v382
      %v427 = vsel %vm294, %v425, -inf
      %428 = vmax.xlane.f32.xlu0 %v427
      %v429 = vpop.xlane.xlu0 %428
      %v430 = vsel %vm294, %v426, -inf
      %431 = vmax.xlane.f32.xlu0 %v430
      %v432 = vpop.xlane.xlu0 %431
      %vm433 = vcmp.ge.f32.partialorder %v425, %v429
      %vm434 = vcmp.ge.f32.partialorder %v426, %v432
      %v435 = vsel %vm433, %v293, 16
      %v436 = vsel %vm434, %v293, 16
      %v437 = vsel %vm294, %v435, 2147483647
      %v438 = vand.u32 %v437, 65535
      %v439 = vshra.s32 %v437, 16
      %v440 = vcvt.s32.f32 %v438
      %v441 = vcvt.s32.f32 %v439
      %442 = vmin.xlane.f32.xlu0 %v441
      %v443 = vpop.xlane.xlu0 %442
      %vm444 = vcmp.eq.f32.partialorder %v441, %v443
      %v445 = vsel %vm444, %v440, inf
      %446 = vmin.xlane.f32.xlu0 %v445
      %v447 = vpop.xlane.xlu0 %446
      %v448 = vcvt.f32.s32 %v447
      %v449 = vcvt.f32.s32 %v443
      %v450 = vshll.u32 %v449, 16
      %v451 = vadd.s32 %v450, %v448
      %v452 = vsel %vm294, %v436, 2147483647
      %v453 = vand.u32 %v452, 65535
      %v454 = vshra.s32 %v452, 16
      %v455 = vcvt.s32.f32 %v453
      %v456 = vcvt.s32.f32 %v454
      %457 = vmin.xlane.f32.xlu0 %v456
      %v458 = vpop.xlane.xlu0 %457
      %vm459 = vcmp.eq.f32.partialorder %v456, %v458
      %v460 = vsel %vm459, %v455, inf
      %461 = vmin.xlane.f32.xlu0 %v460
      %v462 = vpop.xlane.xlu0 %461
      %v463 = vcvt.f32.s32 %v462
      %v464 = vcvt.f32.s32 %v458
      %v465 = vshll.u32 %v464, 16
      %v466 = vadd.s32 %v465, %v463
      %vm467 = vcmp.eq.s32.totalorder %v293, %v451
      %vm468 = vcmp.eq.s32.totalorder %v293, %v466
      %v469 = vsel %vm467, -inf, %v425
      %v470 = vsel %vm468, -inf, %v426
      %v471 = vsel %vm294, %v469, -inf
      %472 = vmax.xlane.f32.xlu0 %v471
      %v473 = vpop.xlane.xlu0 %472
      %v474 = vsel %vm294, %v470, -inf
      %475 = vmax.xlane.f32.xlu0 %v474
      %v476 = vpop.xlane.xlu0 %475
      %vm477 = vcmp.ge.f32.partialorder %v469, %v473
      %vm478 = vcmp.ge.f32.partialorder %v470, %v476
      %v479 = vsel %vm477, %v293, 16
      %v480 = vsel %vm478, %v293, 16
      %v481 = vsel %vm294, %v479, 2147483647
      %v482 = vand.u32 %v481, 65535
      %v483 = vshra.s32 %v481, 16
      %v484 = vcvt.s32.f32 %v482
      %v485 = vcvt.s32.f32 %v483
      %486 = vmin.xlane.f32.xlu0 %v485
      %v487 = vpop.xlane.xlu0 %486
      %vm488 = vcmp.eq.f32.partialorder %v485, %v487
      %v489 = vsel %vm488, %v484, inf
      %490 = vmin.xlane.f32.xlu0 %v489
      %v491 = vpop.xlane.xlu0 %490
      %v492 = vcvt.f32.s32 %v491
      %v493 = vcvt.f32.s32 %v487
      %v494 = vshll.u32 %v493, 16
      %v495 = vadd.s32 %v494, %v492
      %v496 = vsel %vm294, %v480, 2147483647
      %v497 = vand.u32 %v496, 65535
      %v498 = vshra.s32 %v496, 16
      %v499 = vcvt.s32.f32 %v497
      %v500 = vcvt.s32.f32 %v498
      %501 = vmin.xlane.f32.xlu0 %v500
      %v502 = vpop.xlane.xlu0 %501
      %vm503 = vcmp.eq.f32.partialorder %v500, %v502
      %v504 = vsel %vm503, %v499, inf
      %505 = vmin.xlane.f32.xlu0 %v504
      %v506 = vpop.xlane.xlu0 %505
      %v507 = vcvt.f32.s32 %v506
      %v508 = vcvt.f32.s32 %v502
      %v509 = vshll.u32 %v508, 16
      %v510 = vadd.s32 %v509, %v507
      %vm511 = vcmp.eq.s32.totalorder %v293, %v495
      %vm512 = vcmp.eq.s32.totalorder %v293, %v510
      %v513 = vsel %vm511, -inf, %v469
      %v514 = vsel %vm512, -inf, %v470
      %v515 = vsel %vm294, %v513, -inf
      %516 = vmax.xlane.f32.xlu0 %v515
      %v517 = vpop.xlane.xlu0 %516
      %v518 = vsel %vm294, %v514, -inf
      %519 = vmax.xlane.f32.xlu0 %v518
      %v520 = vpop.xlane.xlu0 %519
      %vm521 = vcmp.ge.f32.partialorder %v513, %v517
      %vm522 = vcmp.ge.f32.partialorder %v514, %v520
      %v523 = vsel %vm521, %v293, 16
      %v524 = vsel %vm522, %v293, 16
      %v525 = vsel %vm294, %v523, 2147483647
      %v526 = vand.u32 %v525, 65535
      %v527 = vshra.s32 %v525, 16
      %v528 = vcvt.s32.f32 %v526
      %v529 = vcvt.s32.f32 %v527
      %530 = vmin.xlane.f32.xlu0 %v529
      %v531 = vpop.xlane.xlu0 %530
      %vm532 = vcmp.eq.f32.partialorder %v529, %v531
      %v533 = vsel %vm532, %v528, inf
      %534 = vmin.xlane.f32.xlu0 %v533
      %v535 = vpop.xlane.xlu0 %534
      %v536 = vcvt.f32.s32 %v535
      %v537 = vcvt.f32.s32 %v531
      %v538 = vshll.u32 %v537, 16
      %v539 = vadd.s32 %v538, %v536
      %v540 = vsel %vm294, %v524, 2147483647
      %v541 = vand.u32 %v540, 65535
      %v542 = vshra.s32 %v540, 16
      %v543 = vcvt.s32.f32 %v541
      %v544 = vcvt.s32.f32 %v542
      %545 = vmin.xlane.f32.xlu0 %v544
      %v546 = vpop.xlane.xlu0 %545
      %vm547 = vcmp.eq.f32.partialorder %v544, %v546
      %v548 = vsel %vm547, %v543, inf
      %549 = vmin.xlane.f32.xlu0 %v548
      %v550 = vpop.xlane.xlu0 %549
      %v551 = vcvt.f32.s32 %v550
      %v552 = vcvt.f32.s32 %v546
      %v553 = vshll.u32 %v552, 16
      %v554 = vadd.s32 %v553, %v551
      %vm555 = vcmp.eq.s32.totalorder %v293, %v539
      %vm556 = vcmp.eq.s32.totalorder %v293, %v554
      %v557 = vsel %vm555, -inf, %v513
      %v558 = vsel %vm556, -inf, %v514
      %v559 = vsel %vm294, %v557, -inf
      %560 = vmax.xlane.f32.xlu0 %v559
      %v561 = vpop.xlane.xlu0 %560
      %v562 = vsel %vm294, %v558, -inf
      %563 = vmax.xlane.f32.xlu0 %v562
      %v564 = vpop.xlane.xlu0 %563
      %vm565 = vcmp.ge.f32.partialorder %v557, %v561
      %vm566 = vcmp.ge.f32.partialorder %v558, %v564
      %v567 = vsel %vm565, %v293, 16
      %v568 = vsel %vm566, %v293, 16
      %v569 = vsel %vm294, %v567, 2147483647
      %v570 = vand.u32 %v569, 65535
      %v571 = vshra.s32 %v569, 16
      %v572 = vcvt.s32.f32 %v570
      %v573 = vcvt.s32.f32 %v571
      %574 = vmin.xlane.f32.xlu0 %v573
      %v575 = vpop.xlane.xlu0 %574
      %vm576 = vcmp.eq.f32.partialorder %v573, %v575
      %v577 = vsel %vm576, %v572, inf
      %578 = vmin.xlane.f32.xlu0 %v577
      %v579 = vpop.xlane.xlu0 %578
      %v580 = vcvt.f32.s32 %v579
      %v581 = vcvt.f32.s32 %v575
      %v582 = vshll.u32 %v581, 16
      %v583 = vadd.s32 %v582, %v580
      %v584 = vsel %vm294, %v568, 2147483647
      %v585 = vand.u32 %v584, 65535
      %v586 = vshra.s32 %v584, 16
      %v587 = vcvt.s32.f32 %v585
      %v588 = vcvt.s32.f32 %v586
      %589 = vmin.xlane.f32.xlu0 %v588
      %v590 = vpop.xlane.xlu0 %589
      %vm591 = vcmp.eq.f32.partialorder %v588, %v590
      %v592 = vsel %vm591, %v587, inf
      %593 = vmin.xlane.f32.xlu0 %v592
      %v594 = vpop.xlane.xlu0 %593
      %v595 = vcvt.f32.s32 %v594
      %v596 = vcvt.f32.s32 %v590
      %v597 = vshll.u32 %v596, 16
      %v598 = vadd.s32 %v597, %v595
      %vm599 = vcmp.eq.s32.totalorder %v293, %v583
      %vm600 = vcmp.eq.s32.totalorder %v293, %v598
      %v601 = vsel %vm599, -inf, %v557
      %v602 = vsel %vm600, -inf, %v558
      %v603 = vsel %vm294, %v601, -inf
      %604 = vmax.xlane.f32.xlu0 %v603
      %v605 = vpop.xlane.xlu0 %604
      %v606 = vsel %vm294, %v602, -inf
      %607 = vmax.xlane.f32.xlu0 %v606
      %v608 = vpop.xlane.xlu0 %607
      %vm609 = vcmp.ge.f32.partialorder %v601, %v605
      %vm610 = vcmp.ge.f32.partialorder %v602, %v608
      %v611 = vsel %vm609, %v293, 16
      %v612 = vsel %vm610, %v293, 16
      %v613 = vsel %vm294, %v611, 2147483647
      %v614 = vand.u32 %v613, 65535
      %v615 = vshra.s32 %v613, 16
      %v616 = vcvt.s32.f32 %v614
      %v617 = vcvt.s32.f32 %v615
      %618 = vmin.xlane.f32.xlu0 %v617
      %v619 = vpop.xlane.xlu0 %618
      %vm620 = vcmp.eq.f32.partialorder %v617, %v619
      %v621 = vsel %vm620, %v616, inf
      %622 = vmin.xlane.f32.xlu0 %v621
      %v623 = vpop.xlane.xlu0 %622
      %v624 = vcvt.f32.s32 %v623
      %v625 = vcvt.f32.s32 %v619
      %v626 = vshll.u32 %v625, 16
      %v627 = vadd.s32 %v626, %v624
      %v628 = vsel %vm294, %v612, 2147483647
      %v629 = vand.u32 %v628, 65535
      %v630 = vshra.s32 %v628, 16
      %v631 = vcvt.s32.f32 %v629
      %v632 = vcvt.s32.f32 %v630
      %633 = vmin.xlane.f32.xlu0 %v632
      %v634 = vpop.xlane.xlu0 %633
      %vm635 = vcmp.eq.f32.partialorder %v632, %v634
      %v636 = vsel %vm635, %v631, inf
      %637 = vmin.xlane.f32.xlu0 %v636
      %v638 = vpop.xlane.xlu0 %637
      %v639 = vcvt.f32.s32 %v638
      %v640 = vcvt.f32.s32 %v634
      %v641 = vshll.u32 %v640, 16
      %v642 = vadd.s32 %v641, %v639
      %vm643 = vcmask 7168
      %v644 = vsel %vm643, %v319, %v363
      %v645 = vsel %vm643, %v334, %v378
      %vm646 = vcmask 15360
      %v647 = vsel %vm646, %v644, %v407
      %v648 = vsel %vm646, %v645, %v422
      %vm649 = vcmask 23552
      %v650 = vsel %vm649, %v647, %v451
      %v651 = vsel %vm649, %v648, %v466
      %vm652 = vcmask 31744
      %v653 = vsel %vm652, %v650, %v495
      %v654 = vsel %vm652, %v651, %v510
      %vm655 = vcmask 39936
      %v656 = vsel %vm655, %v653, %v539
      %v657 = vsel %vm655, %v654, %v554
      %vm658 = vcmask 48128
      %v659 = vsel %vm658, %v656, %v583
      %v660 = vsel %vm658, %v657, %v598
      %vm661 = vcmask 56320
      %v662 = vsel %vm661, %v659, %v627
      %v663 = vsel %vm661, %v660, %v642
      %vm664 = vcmask 64512
      %665 = vst.msk [vmem:[%s226] sm:$0xff] %vm664, %v662
      %666 = vst.msk [vmem:[%s226 + $0x8] sm:$0xff] %vm664, %v663
      %s667 = smul.u32 2, %s19
      %p668 = scmp.lt.s32.totalorder %s18, 1
      %s669 = scalar_select %p668, %s18, 1
      %p670 = scmp.lt.s32.totalorder %s667, 1
      %s671 = scalar_select %p670, %s667, 1
      %s672 = smul.addr %s669, 2
      %s673 = sadd.s32 %s671, %s672
      %s674 = smul.addr %s673, 8
      %s675 = scalar_lea.vmem %s3, %s674
      // Predicated region
      $region33: #{generator_forward.12} parent=31 // pred_check
        %p676 = pneg %p124
      $region34: #{generator_forward.12} parent=31 // pred_check_branch
        %678 = sbr.rel (%p676) target = $region36
      $region35: #{generator_forward.12} parent=31 // pred_region
        %s679 = smul.u32 2, %s19
      $region36: #{generator_forward.12} parent=31 // pred_fallthru
        _
    $region32: #{generator_forward.12} parent=5 // pred_fallthru
      _
    %p680 = scmp.le.s32.totalorder 2, %s9
    // Predicated region
    $region37: #{generator_forward.12} parent=5 // pred_check
      %p681 = pneg %p680
    $region38: #{generator_forward.12} parent=5 // pred_check_branch
      %683 = sbr.rel (%p681) target = $region40
    $region39: #{generator_forward.12} parent=5 // pred_region
      %s684 = ssub.s32 %s9, 2
      // Predicated region
      $region41: #{generator_forward.12} parent=39 // pred_check
        %p685 = pneg %p130
      $region42: #{generator_forward.12} parent=39 // pred_check_branch
        %687 = sbr.rel (%p685) target = $region44
      $region43: #{generator_forward.12} parent=39 // pred_region
        %s688 = smul.u32 2, %s21
        %p689 = scmp.lt.s32.totalorder %s20, 1
        %s690 = scalar_select %p689, %s20, 1
        %p691 = scmp.lt.s32.totalorder %s688, 1
        %s692 = scalar_select %p691, %s688, 1
        %s693 = smul.addr %s690, 2
        %s694 = sadd.s32 %s692, %s693
        %s695 = smul.addr %s694, 8
        %s696 = scalar_lea.vmem %s3, %s695
      $region44: #{generator_forward.12} parent=39 // pred_fallthru
        _
    $region40: #{generator_forward.12} parent=5 // pred_fallthru
      _
  $region6: #{generator_forward.12} parent=0 // loop_footer
    %s13 = sadd.s32 1, %s9
  $region7: #{generator_forward.12} parent=0 // loop_footer_branch
    %8 = sbr.rel target = $region3
  $region8: #{generator_forward.12} parent=0 // loop_exit
    _

// kernel: generator_forward.13
$region0: #{generator_forward.13}
  #allocation0 [shape = 'u32[]', space=smem, size = 0x4, offset = 0x4, fixed_abs, tag = 'smem constant byte address 0x4 - core index']
  #allocation1 [shape = 'u32[72,128]{1,0:T(1,128)}', space=vmem, size = 0x9000, scoped, tag = 'internal scratch']
  #allocation2 [shape = 'f32[32,64]{1,0:T(8,128)}', space=vmem, size = 0x4000, scoped, tag = 'scratch operand']
  %s0 = inlined_call_operand.vmem [shape: bf16[8,32,64], index: 0, kind: input, shape index: {}]
  %s1 = inlined_call_operand.vmem [shape: bf16[32,64], index: 1, kind: input, shape index: {}]
  %s2 = inlined_call_operand.vmem [shape: bf16[64,64], index: 2, kind: input, shape index: {}]
  %s3 = inlined_call_operand.vmem [shape: bf16[64,64], index: 3, kind: input, shape index: {}]
  %s4 = inlined_call_operand.vmem [shape: bf16[32,64], index: 4, kind: output, shape index: {}]
  %s5 = sld [smem:[#allocation0]]
  $region57: #{generator_forward.13} parent=0
    _
  %s7 = ssub.s32 1, %s5
  %s8 = scalar_select 0, %s7, %s5
  loop: start=0, step=1, limit=10
  $region2: #{generator_forward.13} parent=0 // loop_pre_header
    _
  $region3: #{generator_forward.13} parent=0 // loop_header
    %s10 = sphi 0, %s14
    %p11 = scmp.ge.s32.totalorder %s10, 10
    %s17 = sphi 0, %s29
    %s18 = sphi 0, %s25
    %s19 = sphi 0, %s17
    %s20 = sphi 0, %s18
    %s21 = sphi 0, %s19
    %s22 = sphi 0, %s20
    %s34 = sphi 0, %s36
    %s37 = sphi 0, %s34
    %s38 = sphi 0, %s37
    %s54 = sphi 0, %s38
    %s60 = sphi 0, %s62
    %s63 = sphi 0, %s60
    %s64 = sphi 0, %s63
    %s80 = sphi 0, %s64
    %s84 = sphi 0, %s84
    %s86 = sphi 0, %s84
    %s87 = sphi 0, %s86
    %s101 = sphi 0, %s87
    %s105 = sphi 0, %s105
    %s107 = sphi 0, %s105
    %s108 = sphi 0, %s107
    %s122 = sphi 0, %s108
    %s128 = sphi 0, %s130
    %s131 = sphi 0, %s128
    %s132 = sphi 0, %s131
    %s148 = sphi 0, %s132
  $region4: #{generator_forward.13} parent=0 // loop_header_branch
    %13 = sbr.rel (%p11) target = $region8
  $region5: #{generator_forward.13} parent=0 // loop_body
    %s15 = ssub.s32 %s10, 1
    %s16 = ssub.s32 %s10, 2
    %s23 = sadd.s32 1, %s18
    %p24 = scmp.ge.s32.totalorder %s23, 8
    %s25 = scalar_select %p24, 0, %s23
    %s26 = sadd.s32 1, %s17
    %s27 = scalar_select %p24, %s26, %s17
    %p28 = scmp.ge.s32.totalorder %s27, 1
    %s29 = scalar_select %p28, 0, %s27
    %s30 = ssub.s32 %s18, %s25
    %s31 = ssub.s32 %s17, %s29
    %s32 = sor.u32 %s30, %s31
    %p33 = scmp.eq.s32.totalorder %s32, 0
    %s35 = sadd.s32 %s34, 1
    %s36 = scalar_select %p33, %s34, %s35
    %p39 = pneg %p33
    %p40 = scmp.eq.s32.totalorder %s10, 7
    %p41 = por %p39, %p40
    %p42 = scmp.ne.s32.totalorder %s34, %s37
    %p43 = scmp.eq.s32.totalorder %s10, 0
    %p44 = por %p42, %p43
    %p45 = scmp.ne.s32.totalorder %s34, %s37
    %p46 = scmp.eq.s32.totalorder %s15, 7
    %p47 = por %p45, %p46
    %p48 = scmp.ne.s32.totalorder %s37, %s38
    %p49 = scmp.eq.s32.totalorder %s15, 0
    %p50 = por %p48, %p49
    %p51 = scmp.ne.s32.totalorder %s37, %s38
    %p52 = scmp.eq.s32.totalorder %s16, 7
    %p53 = por %p51, %p52
    %p55 = scmp.ne.s32.totalorder %s38, %s54
    %p56 = scmp.eq.s32.totalorder %s16, 0
    %p57 = por %p55, %p56
    %s58 = ssub.s32 %s17, %s29
    %p59 = scmp.eq.s32.totalorder %s58, 0
    %s61 = sadd.s32 %s60, 1
    %s62 = scalar_select %p59, %s60, %s61
    %p65 = pneg %p59
    %p66 = scmp.eq.s32.totalorder %s10, 7
    %p67 = por %p65, %p66
    %p68 = scmp.ne.s32.totalorder %s60, %s63
    %p69 = scmp.eq.s32.totalorder %s10, 0
    %p70 = por %p68, %p69
    %p71 = scmp.ne.s32.totalorder %s60, %s63
    %p72 = scmp.eq.s32.totalorder %s15, 7
    %p73 = por %p71, %p72
    %p74 = scmp.ne.s32.totalorder %s63, %s64
    %p75 = scmp.eq.s32.totalorder %s15, 0
    %p76 = por %p74, %p75
    %p77 = scmp.ne.s32.totalorder %s63, %s64
    %p78 = scmp.eq.s32.totalorder %s16, 7
    %p79 = por %p77, %p78
    %p81 = scmp.ne.s32.totalorder %s64, %s80
    %p82 = scmp.eq.s32.totalorder %s16, 0
    %p83 = por %p81, %p82
    %s85 = sadd.s32 %s84, 1
    %p88 = scmp.eq.s32.totalorder %s10, 7
    %p89 = scmp.ne.s32.totalorder %s84, %s86
    %p90 = scmp.eq.s32.totalorder %s10, 0
    %p91 = por %p89, %p90
    %p92 = scmp.ne.s32.totalorder %s84, %s86
    %p93 = scmp.eq.s32.totalorder %s15, 7
    %p94 = por %p92, %p93
    %p95 = scmp.ne.s32.totalorder %s86, %s87
    %p96 = scmp.eq.s32.totalorder %s15, 0
    %p97 = por %p95, %p96
    %p98 = scmp.ne.s32.totalorder %s86, %s87
    %p99 = scmp.eq.s32.totalorder %s16, 7
    %p100 = por %p98, %p99
    %p102 = scmp.ne.s32.totalorder %s87, %s101
    %p103 = scmp.eq.s32.totalorder %s16, 0
    %p104 = por %p102, %p103
    %s106 = sadd.s32 %s105, 1
    %p109 = scmp.eq.s32.totalorder %s10, 7
    %p110 = scmp.ne.s32.totalorder %s105, %s107
    %p111 = scmp.eq.s32.totalorder %s10, 0
    %p112 = por %p110, %p111
    %p113 = scmp.ne.s32.totalorder %s105, %s107
    %p114 = scmp.eq.s32.totalorder %s15, 7
    %p115 = por %p113, %p114
    %p116 = scmp.ne.s32.totalorder %s107, %s108
    %p117 = scmp.eq.s32.totalorder %s15, 0
    %p118 = por %p116, %p117
    %p119 = scmp.ne.s32.totalorder %s107, %s108
    %p120 = scmp.eq.s32.totalorder %s16, 7
    %p121 = por %p119, %p120
    %p123 = scmp.ne.s32.totalorder %s108, %s122
    %p124 = scmp.eq.s32.totalorder %s16, 0
    %p125 = por %p123, %p124
    %s126 = ssub.s32 %s17, %s29
    %p127 = scmp.eq.s32.totalorder %s126, 0
    %s129 = sadd.s32 %s128, 1
    %s130 = scalar_select %p127, %s128, %s129
    %p133 = pneg %p127
    %p134 = scmp.eq.s32.totalorder %s10, 7
    %p135 = por %p133, %p134
    %p136 = scmp.ne.s32.totalorder %s128, %s131
    %p137 = scmp.eq.s32.totalorder %s10, 0
    %p138 = por %p136, %p137
    %p139 = scmp.ne.s32.totalorder %s128, %s131
    %p140 = scmp.eq.s32.totalorder %s15, 7
    %p141 = por %p139, %p140
    %p142 = scmp.ne.s32.totalorder %s131, %s132
    %p143 = scmp.eq.s32.totalorder %s15, 0
    %p144 = por %p142, %p143
    %p145 = scmp.ne.s32.totalorder %s131, %s132
    %p146 = scmp.eq.s32.totalorder %s16, 7
    %p147 = por %p145, %p146
    %p149 = scmp.ne.s32.totalorder %s132, %s148
    %p150 = scmp.eq.s32.totalorder %s16, 0
    %p151 = por %p149, %p150
    %p152 = scmp.le.s32.totalorder 1, %s10
    %p153 = scmp.lt.s32.totalorder %s10, 9
    %p154 = pnand %p152, %p153
    %p155 = pneg %p154
    // Predicated region
    $region9: #{generator_forward.13} parent=5 // pred_check
      _
    $region10: #{generator_forward.13} parent=5 // pred_check_branch
      %157 = sbr.rel (%p154) target = $region12
    $region11: #{generator_forward.13} parent=5 // pred_region
      %s158 = ssub.s32 %s10, 1
      // Predicated region
      $region13: #{generator_forward.13} parent=11 // pred_check
        %p159 = pneg %p76
      $region14: #{generator_forward.13} parent=11 // pred_check_branch
        %161 = sbr.rel (%p159) target = $region16
      $region15: #{generator_forward.13} parent=11 // pred_region
        %s162 = smul.u32 4, %s19
        %p163 = scmp.lt.s32.totalorder %s162, 3
        %s164 = scalar_select %p163, %s162, 3
        %s165 = smul.addr %s164, 4
        %s166 = scalar_lea.vmem %s1, %s165
        %s167 = smul.u32 4, %s19
      $region16: #{generator_forward.13} parent=11 // pred_fallthru
        _
      // Predicated region
      $region17: #{generator_forward.13} parent=11 // pred_check
        %p168 = pneg %p97
      $region18: #{generator_forward.13} parent=11 // pred_check_branch
        %170 = sbr.rel (%p168) target = $region20
      $region19: #{generator_forward.13} parent=11 // pred_region
        _
      $region20: #{generator_forward.13} parent=11 // pred_fallthru
        _
      // Predicated region
      $region21: #{generator_forward.13} parent=11 // pred_check
        %p171 = pneg %p118
      $region22: #{generator_forward.13} parent=11 // pred_check_branch
        %173 = sbr.rel (%p171) target = $region24
      $region23: #{generator_forward.13} parent=11 // pred_region
        _
      $region24: #{generator_forward.13} parent=11 // pred_fallthru
        _
    $region12: #{generator_forward.13} parent=5 // pred_fallthru
      _
    %p174 = scmp.lt.s32.totalorder %s10, 8
    // Predicated region
    $region25: #{generator_forward.13} parent=5 // pred_check
      %p175 = pneg %p174
    $region26: #{generator_forward.13} parent=5 // pred_check_branch
      %177 = sbr.rel (%p175) target = $region28
    $region27: #{generator_forward.13} parent=5 // pred_region
      // Predicated region
      $region29: #{generator_forward.13} parent=27 // pred_check
        %p178 = pneg %p44
      $region30: #{generator_forward.13} parent=27 // pred_check_branch
        %180 = sbr.rel (%p178) target = $region32
      $region31: #{generator_forward.13} parent=27 // pred_region
        %s181 = smul.u32 4, %s17
        %p182 = scmp.lt.s32.totalorder %s18, 7
        %s183 = scalar_select %p182, %s18, 7
        %p184 = scmp.lt.s32.totalorder %s181, 3
        %s185 = scalar_select %p184, %s181, 3
        %s186 = smul.addr %s183, 4
        %s187 = sadd.s32 %s185, %s186
        %s188 = smul.addr %s187, 4
        %s189 = scalar_lea.vmem %s0, %s188
        %s190 = smul.u32 4, %s17
      $region32: #{generator_forward.13} parent=27 // pred_fallthru
        _
    $region28: #{generator_forward.13} parent=5 // pred_fallthru
      _
    %p191 = scmp.le.s32.totalorder 1, %s10
    %p192 = scmp.lt.s32.totalorder %s10, 9
    %p193 = pnand %p191, %p192
    %p194 = pneg %p193
    // Predicated region
    $region33: #{generator_forward.13} parent=5 // pred_check
      _
    $region34: #{generator_forward.13} parent=5 // pred_check_branch
      %196 = sbr.rel (%p193) target = $region36
    $region35: #{generator_forward.13} parent=5 // pred_region
      %s197 = ssub.s32 %s10, 1
      %s198 = smul.u32 4, %s19
      %p199 = scmp.lt.s32.totalorder %s20, 7
      %s200 = scalar_select %p199, %s20, 7
      %p201 = scmp.lt.s32.totalorder %s198, 3
      %s202 = scalar_select %p201, %s198, 3
      %s203 = smul.addr %s200, 4
      %s204 = sadd.s32 %s202, %s203
      %s205 = smul.addr %s204, 4
      %s206 = scalar_lea.vmem %s0, %s205
      %p207 = pneg %p50
      %p208 = pneg %p47
      %s209 = smul.u32 4, %s19
      %p210 = scmp.lt.s32.totalorder %s209, 3
      %s211 = scalar_select %p210, %s209, 3
      %s212 = smul.addr %s211, 4
      %s213 = scalar_lea.vmem %s1, %s212
      %p214 = pneg %p76
      %p215 = pneg %p73
      %p216 = pneg %p97
      %p217 = pneg %p94
      %p218 = pneg %p118
      %p219 = pneg %p115
      %p220 = pneg %p144
      %p221 = pneg %p141
      %s222 = smul.u32 4, %s19
      %p223 = scmp.lt.s32.totalorder %s222, 3
      %s224 = scalar_select %p223, %s222, 3
      %s225 = smul.addr %s224, 4
      %s226 = scalar_lea.vmem %s4, %s225
      %s227 = smul.u32 4, %s19
      %p228 = scmp.lt.s32.totalorder %s20, 7
      %s229 = scalar_select %p228, %s20, 7
      %p230 = scmp.lt.s32.totalorder %s227, 3
      %s231 = scalar_select %p230, %s227, 3
      %s232 = smul.addr %s229, 4
      %s233 = sadd.s32 %s231, %s232
      %s234 = smul.addr %s233, 4
      %s235 = scalar_lea.vmem %s0, %s234
      %s236 = smul.u32 4, %s19
      %s237 = smul.u32 4, %s19
      %p238 = scmp.lt.s32.totalorder %s237, 3
      %s239 = scalar_select %p238, %s237, 3
      %s240 = smul.addr %s239, 4
      %s241 = scalar_lea.vmem %s1, %s240
      %s242 = smul.u32 4, %s19
      %s243 = smul.u32 4, %s19
      %p244 = scmp.lt.s32.totalorder %s243, 3
      %s245 = scalar_select %p244, %s243, 3
      %s246 = smul.addr %s245, 4
      %s247 = scalar_lea.vmem %s4, %s246
      %s248 = smul.u32 4, %s19
      %p250 = scmp.eq.s32.totalorder %s20, 0
      // Predicated region
      $region37: #{generator_forward.13} parent=35 // pred_check
        %p251 = pneg %p250
      $region38: #{generator_forward.13} parent=35 // pred_check_branch
        %253 = sbr.rel (%p251) target = $region40
      $region39: #{generator_forward.13} parent=35 // pred_region
        %vm254 = vcmask 523264
        %255 = vst.msk [vmem:[#allocation2] sm:$0xff] %vm254, -inf
        %256 = vst.msk [vmem:[#allocation2 + $0x8] sm:$0xff] %vm254, -inf
        %257 = vst.msk [vmem:[#allocation2 + $0x10] sm:$0xff] %vm254, -inf
        %258 = vst.msk [vmem:[#allocation2 + $0x18] sm:$0xff] %vm254, -inf
      $region40: #{generator_forward.13} parent=35 // pred_fallthru
        _
      %v259 = vld [vmem:[#allocation2] sm:$0xff]
      %v260 = vld [vmem:[#allocation2 + $0x8] sm:$0xff]
      %v261 = vld [vmem:[#allocation2 + $0x10] sm:$0xff]
      %v262 = vld [vmem:[#allocation2 + $0x18] sm:$0xff]
      %v263 = vld [vmem:[%s235] sm:$0xf]
      %v264 = vld [vmem:[%s235 + $0x4] sm:$0xf]
      %v265 = vld [vmem:[%s235 + $0x8] sm:$0xf]
      %v266 = vld [vmem:[%s235 + $0xc] sm:$0xf]
      %v267 = vld [vmem:[%s2] sm:$0xf]
      %v268 = vld [vmem:[%s2 + $0x4] sm:$0xf]
      %v269 = vld [vmem:[%s2 + $0x8] sm:$0xf]
      %v270 = vld [vmem:[%s2 + $0xc] sm:$0xf]
      %v271 = vld [vmem:[%s2 + $0x10] sm:$0xf]
      %v272 = vld [vmem:[%s2 + $0x14] sm:$0xf]
      %v273 = vld [vmem:[%s2 + $0x18] sm:$0xf]
      %v274 = vld [vmem:[%s2 + $0x1c] sm:$0xf]
      %v279 = vunpack.c.l.b16 %v263
      %v280 = vunpack.c.l.b16 %v264
      %v281 = vunpack.c.l.b16 %v265
      %v282 = vunpack.c.l.b16 %v266
      %v283 = vpack.c.b16 %v280, %v279
      %v284 = vpack.c.b16 %v282, %v281
      %v293 = vunpack.c.l.b16 %v267
      %v294 = vunpack.c.l.b16 %v268
      %v295 = vunpack.c.l.b16 %v269
      %v296 = vunpack.c.l.b16 %v270
      %v297 = vunpack.c.l.b16 %v271
      %v298 = vunpack.c.l.b16 %v272
      %v299 = vunpack.c.l.b16 %v273
      %v300 = vunpack.c.l.b16 %v274
      %v301 = vpack.c.b16 %v294, %v293
      %v302 = vpack.c.b16 %v296, %v295
      %v303 = vpack.c.b16 %v298, %v297
      %v304 = vpack.c.b16 %v300, %v299
      %vm309 = vcmask 523264
      %v311 = vsel %vm309, %v283, 0
      %v314 = vsel %vm309, %v284, 0
      %316 = vmatpush.bf16.msra.mxu0 0
      %317 = vmatpush.bf16.msra.mxu0 0
      %318 = vmatpush.bf16.msra.mxu0 0
      %319 = vmatpush.bf16.msra.mxu0 0
      %320 = vmatpush.bf16.msra.mxu0 %v304
      %321 = vmatpush.bf16.msra.mxu0 %v303
      %322 = vmatpush.bf16.msra.mxu0 %v302
      %323 = vmatpush.bf16.msra.mxu0 %v301
      %324 = vmatmul.bf16.gmra.mxu0 %v311
      %v325 = vpop.f32.mrf.mxu0
      %v326 = vadd.f32 0.0, %v325
      %v327 = vpop.f32.mrf.mxu0
      %v328 = vadd.f32 0.0, %v327
      %329 = vmatmul.bf16.gmra.mxu0 %v314
      %v330 = vpop.f32.mrf.mxu0
      %v331 = vadd.f32 0.0, %v330
      %v332 = vpop.f32.mrf.mxu0
      %v333 = vadd.f32 0.0, %v332
      %334 = vdwg.mxu0
      %v335 = vmax.f32 %v259, %v326
      %v336 = vmax.f32 %v260, %v328
      %v337 = vmax.f32 %v261, %v331
      %v338 = vmax.f32 %v262, %v333
      %339 = vst.msk [vmem:[#allocation2] sm:$0xff] %vm309, %v335
      %340 = vst.msk [vmem:[#allocation2 + $0x8] sm:$0xff] %vm309, %v336
      %341 = vst.msk [vmem:[#allocation2 + $0x10] sm:$0xff] %vm309, %v337
      %342 = vst.msk [vmem:[#allocation2 + $0x18] sm:$0xff] %vm309, %v338
      %p343 = scmp.eq.s32.totalorder %s20, 7
      // Predicated region
      $region41: #{generator_forward.13} parent=35 // pred_check
        %p344 = pneg %p343
      $region42: #{generator_forward.13} parent=35 // pred_check_branch
        %346 = sbr.rel (%p344) target = $region44
      $region43: #{generator_forward.13} parent=35 // pred_region
        %v347 = vld [vmem:[#allocation2] sm:$0xff]
        %v348 = vld [vmem:[#allocation2 + $0x8] sm:$0xff]
        %v349 = vld [vmem:[#allocation2 + $0x10] sm:$0xff]
        %v350 = vld [vmem:[#allocation2 + $0x18] sm:$0xff]
        %v351 = vld [vmem:[%s241] sm:$0xf]
        %v352 = vld [vmem:[%s241 + $0x4] sm:$0xf]
        %v353 = vld [vmem:[%s241 + $0x8] sm:$0xf]
        %v354 = vld [vmem:[%s241 + $0xc] sm:$0xf]
        %v355 = vld [vmem:[%s3] sm:$0xf]
        %v356 = vld [vmem:[%s3 + $0x4] sm:$0xf]
        %v357 = vld [vmem:[%s3 + $0x8] sm:$0xf]
        %v358 = vld [vmem:[%s3 + $0xc] sm:$0xf]
        %v359 = vld [vmem:[%s3 + $0x10] sm:$0xf]
        %v360 = vld [vmem:[%s3 + $0x14] sm:$0xf]
        %v361 = vld [vmem:[%s3 + $0x18] sm:$0xf]
        %v362 = vld [vmem:[%s3 + $0x1c] sm:$0xf]
        %v367 = vunpack.c.l.b16 %v351
        %v368 = vunpack.c.l.b16 %v352
        %v369 = vunpack.c.l.b16 %v353
        %v370 = vunpack.c.l.b16 %v354
        %v371 = vpack.c.b16 %v368, %v367
        %v372 = vpack.c.b16 %v370, %v369
        %v381 = vunpack.c.l.b16 %v355
        %v382 = vunpack.c.l.b16 %v356
        %v383 = vunpack.c.l.b16 %v357
        %v384 = vunpack.c.l.b16 %v358
        %v385 = vunpack.c.l.b16 %v359
        %v386 = vunpack.c.l.b16 %v360
        %v387 = vunpack.c.l.b16 %v361
        %v388 = vunpack.c.l.b16 %v362
        %v389 = vpack.c.b16 %v382, %v381
        %v390 = vpack.c.b16 %v384, %v383
        %v391 = vpack.c.b16 %v386, %v385
        %v392 = vpack.c.b16 %v388, %v387
        %v398 = vsel %vm309, %v371, 0
        %v401 = vsel %vm309, %v372, 0
        %403 = vmatpush.bf16.msra.mxu0 0
        %404 = vmatpush.bf16.msra.mxu0 0
        %405 = vmatpush.bf16.msra.mxu0 0
        %406 = vmatpush.bf16.msra.mxu0 0
        %407 = vmatpush.bf16.msra.mxu0 %v392
        %408 = vmatpush.bf16.msra.mxu0 %v391
        %409 = vmatpush.bf16.msra.mxu0 %v390
        %410 = vmatpush.bf16.msra.mxu0 %v389
        %411 = vmatmul.bf16.gmra.mxu0 %v398
        %v412 = vpop.f32.mrf.mxu0
        %v413 = vadd.f32 0.0, %v412
        %v414 = vpop.f32.mrf.mxu0
        %v415 = vadd.f32 0.0, %v414
        %416 = vmatmul.bf16.gmra.mxu0 %v401
        %v417 = vpop.f32.mrf.mxu0
        %v418 = vadd.f32 0.0, %v417
        %v419 = vpop.f32.mrf.mxu0
        %v420 = vadd.f32 0.0, %v419
        %421 = vdwg.mxu0
        %v422 = vadd.f32 %v347, %v413
        %v423 = vadd.f32 %v348, %v415
        %v424 = vadd.f32 %v349, %v418
        %v425 = vadd.f32 %v350, %v420
        %vm426 = vcmp.ge.f32.partialorder %v422, 0.0
        %vm427 = vcmp.ge.f32.partialorder %v423, 0.0
        %vm428 = vcmp.ge.f32.partialorder %v424, 0.0
        %vm429 = vcmp.ge.f32.partialorder %v425, 0.0
        %v430 = vmul.f32 %v422, 0.2
        %v431 = vmul.f32 %v423, 0.2
        %v432 = vmul.f32 %v424, 0.2
        %v433 = vmul.f32 %v425, 0.2
        %v434 = vsel %vm426, %v422, %v430
        %v435 = vsel %vm427, %v423, %v431
        %v436 = vsel %vm428, %v424, %v432
        %v437 = vsel %vm429, %v425, %v433
        %v438 = vpack.c.bf16 %v434, %v434
        %v439 = vpack.c.bf16 %v435, %v435
        %v440 = vpack.c.bf16 %v436, %v436
        %v441 = vpack.c.bf16 %v437, %v437
        %vm442 = vcmask 519168
        %443 = vst.msk [vmem:[%s247] sm:$0xf] %vm442, %v438
        %444 = vst.msk [vmem:[%s247 + $0x4] sm:$0xf] %vm442, %v439
        %445 = vst.msk [vmem:[%s247 + $0x8] sm:$0xf] %vm442, %v440
        %446 = vst.msk [vmem:[%s247 + $0xc] sm:$0xf] %vm442, %v441
      $region44: #{generator_forward.13} parent=35 // pred_fallthru
        _
      %s447 = smul.u32 4, %s19
      %p448 = scmp.lt.s32.totalorder %s447, 3
      %s449 = scalar_select %p448, %s447, 3
      %s450 = smul.addr %s449, 4
      %s451 = scalar_lea.vmem %s4, %s450
      // Predicated region
      $region45: #{generator_forward.13} parent=35 // pred_check
        %p452 = pneg %p141
      $region46: #{generator_forward.13} parent=35 // pred_check_branch
        %454 = sbr.rel (%p452) target = $region48
      $region47: #{generator_forward.13} parent=35 // pred_region
        %s455 = smul.u32 4, %s19
      $region48: #{generator_forward.13} parent=35 // pred_fallthru
        _
      // Predicated region
      $region49: #{generator_forward.13} parent=35 // pred_check
        %p456 = pneg %p141
      $region50: #{generator_forward.13} parent=35 // pred_check_branch
        %458 = sbr.rel (%p456) target = $region52
      $region51: #{generator_forward.13} parent=35 // pred_region
        %s459 = smul.u32 4, %s19
        %p460 = scmp.lt.s32.totalorder %s459, 3
        %s461 = scalar_select %p460, %s459, 3
        %s462 = smul.addr %s461, 4
        %s463 = scalar_lea.vmem %s4, %s462
      $region52: #{generator_forward.13} parent=35 // pred_fallthru
        _
    $region36: #{generator_forward.13} parent=5 // pred_fallthru
      _
    %p464 = scmp.le.s32.totalorder 2, %s10
    // Predicated region
    $region53: #{generator_forward.13} parent=5 // pred_check
      %p465 = pneg %p464
    $region54: #{generator_forward.13} parent=5 // pred_check_branch
      %467 = sbr.rel (%p465) target = $region56
    $region55: #{generator_forward.13} parent=5 // pred_region
      %s468 = ssub.s32 %s10, 2
    $region56: #{generator_forward.13} parent=5 // pred_fallthru
      _
  $region6: #{generator_forward.13} parent=0 // loop_footer
    %s14 = sadd.s32 1, %s10
  $region7: #{generator_forward.13} parent=0 // loop_footer_branch
    %9 = sbr.rel target = $region3
  $region8: #{generator_forward.13} parent=0 // loop_exit
    _

// kernel: generator_forward.16
$region0: #{generator_forward.16}
  #allocation0 [shape = 'u32[]', space=smem, size = 0x4, offset = 0x4, fixed_abs, tag = 'smem constant byte address 0x4 - core index']
  #allocation1 [shape = 'u32[72,128]{1,0:T(1,128)}', space=vmem, size = 0x9000, scoped, tag = 'internal scratch']
  %s0 = inlined_call_operand.vmem [shape: bf16[2,16,128], index: 0, kind: input, shape index: {}]
  %s1 = inlined_call_operand.vmem [shape: f32[2,16,1], index: 1, kind: input, shape index: {}]
  %s2 = inlined_call_operand.vmem [shape: f32[2,1,16], index: 2, kind: input, shape index: {}]
  %s3 = inlined_call_operand.vmem [shape: s32[2,16,8], index: 3, kind: output, shape index: {}]
  %s4 = sld [smem:[#allocation0]]
  $region45: #{generator_forward.16} parent=0
    _
  %s6 = ssub.s32 1, %s4
  %s7 = scalar_select 0, %s6, %s4
  loop: start=0, step=1, limit=4
  $region2: #{generator_forward.16} parent=0 // loop_pre_header
    _
  $region3: #{generator_forward.16} parent=0 // loop_header
    %s9 = sphi 0, %s13
    %p10 = scmp.ge.s32.totalorder %s9, 4
    %s16 = sphi 0, %s28
    %s17 = sphi 0, %s24
    %s18 = sphi 0, %s16
    %s19 = sphi 0, %s17
    %s20 = sphi 0, %s18
    %s21 = sphi 0, %s19
    %s31 = sphi 0, %s33
    %s34 = sphi 0, %s31
    %s35 = sphi 0, %s34
    %s51 = sphi 0, %s35
    %s57 = sphi 0, %s59
    %s60 = sphi 0, %s57
    %s61 = sphi 0, %s60
    %s77 = sphi 0, %s61
    %s83 = sphi 0, %s85
    %s86 = sphi 0, %s83
    %s87 = sphi 0, %s86
    %s103 = sphi 0, %s87
    %s111 = sphi 0, %s113
    %s114 = sphi 0, %s111
    %s115 = sphi 0, %s114
    %s131 = sphi 0, %s115
  $region4: #{generator_forward.16} parent=0 // loop_header_branch
    %12 = sbr.rel (%p10) target = $region8
  $region5: #{generator_forward.16} parent=0 // loop_body
    %s14 = ssub.s32 %s9, 1
    %s15 = ssub.s32 %s9, 2
    %s22 = sadd.s32 1, %s17
    %p23 = scmp.ge.s32.totalorder %s22, 1
    %s24 = scalar_select %p23, 0, %s22
    %s25 = sadd.s32 1, %s16
    %s26 = scalar_select %p23, %s25, %s16
    %p27 = scmp.ge.s32.totalorder %s26, 2
    %s28 = scalar_select %p27, 0, %s26
    %s29 = ssub.s32 %s16, %s28
    %p30 = scmp.eq.s32.totalorder %s29, 0
    %s32 = sadd.s32 %s31, 1
    %s33 = scalar_select %p30, %s31, %s32
    %p36 = pneg %p30
    %p37 = scmp.eq.s32.totalorder %s9, 1
    %p38 = por %p36, %p37
    %p39 = scmp.ne.s32.totalorder %s31, %s34
    %p40 = scmp.eq.s32.totalorder %s9, 0
    %p41 = por %p39, %p40
    %p42 = scmp.ne.s32.totalorder %s31, %s34
    %p43 = scmp.eq.s32.totalorder %s14, 1
    %p44 = por %p42, %p43
    %p45 = scmp.ne.s32.totalorder %s34, %s35
    %p46 = scmp.eq.s32.totalorder %s14, 0
    %p47 = por %p45, %p46
    %p48 = scmp.ne.s32.totalorder %s34, %s35
    %p49 = scmp.eq.s32.totalorder %s15, 1
    %p50 = por %p48, %p49
    %p52 = scmp.ne.s32.totalorder %s35, %s51
    %p53 = scmp.eq.s32.totalorder %s15, 0
    %p54 = por %p52, %p53
    %s55 = ssub.s32 %s16, %s28
    %p56 = scmp.eq.s32.totalorder %s55, 0
    %s58 = sadd.s32 %s57, 1
    %s59 = scalar_select %p56, %s57, %s58
    %p62 = pneg %p56
    %p63 = scmp.eq.s32.totalorder %s9, 1
    %p64 = por %p62, %p63
    %p65 = scmp.ne.s32.totalorder %s57, %s60
    %p66 = scmp.eq.s32.totalorder %s9, 0
    %p67 = por %p65, %p66
    %p68 = scmp.ne.s32.totalorder %s57, %s60
    %p69 = scmp.eq.s32.totalorder %s14, 1
    %p70 = por %p68, %p69
    %p71 = scmp.ne.s32.totalorder %s60, %s61
    %p72 = scmp.eq.s32.totalorder %s14, 0
    %p73 = por %p71, %p72
    %p74 = scmp.ne.s32.totalorder %s60, %s61
    %p75 = scmp.eq.s32.totalorder %s15, 1
    %p76 = por %p74, %p75
    %p78 = scmp.ne.s32.totalorder %s61, %s77
    %p79 = scmp.eq.s32.totalorder %s15, 0
    %p80 = por %p78, %p79
    %s81 = ssub.s32 %s16, %s28
    %p82 = scmp.eq.s32.totalorder %s81, 0
    %s84 = sadd.s32 %s83, 1
    %s85 = scalar_select %p82, %s83, %s84
    %p88 = pneg %p82
    %p89 = scmp.eq.s32.totalorder %s9, 1
    %p90 = por %p88, %p89
    %p91 = scmp.ne.s32.totalorder %s83, %s86
    %p92 = scmp.eq.s32.totalorder %s9, 0
    %p93 = por %p91, %p92
    %p94 = scmp.ne.s32.totalorder %s83, %s86
    %p95 = scmp.eq.s32.totalorder %s14, 1
    %p96 = por %p94, %p95
    %p97 = scmp.ne.s32.totalorder %s86, %s87
    %p98 = scmp.eq.s32.totalorder %s14, 0
    %p99 = por %p97, %p98
    %p100 = scmp.ne.s32.totalorder %s86, %s87
    %p101 = scmp.eq.s32.totalorder %s15, 1
    %p102 = por %p100, %p101
    %p104 = scmp.ne.s32.totalorder %s87, %s103
    %p105 = scmp.eq.s32.totalorder %s15, 0
    %p106 = por %p104, %p105
    %s107 = ssub.s32 %s16, %s28
    %s108 = ssub.s32 %s17, %s24
    %s109 = sor.u32 %s107, %s108
    %p110 = scmp.eq.s32.totalorder %s109, 0
    %s112 = sadd.s32 %s111, 1
    %s113 = scalar_select %p110, %s111, %s112
    %p116 = pneg %p110
    %p117 = scmp.eq.s32.totalorder %s9, 1
    %p118 = por %p116, %p117
    %p119 = scmp.ne.s32.totalorder %s111, %s114
    %p120 = scmp.eq.s32.totalorder %s9, 0
    %p121 = por %p119, %p120
    %p122 = scmp.ne.s32.totalorder %s111, %s114
    %p123 = scmp.eq.s32.totalorder %s14, 1
    %p124 = por %p122, %p123
    %p125 = scmp.ne.s32.totalorder %s114, %s115
    %p126 = scmp.eq.s32.totalorder %s14, 0
    %p127 = por %p125, %p126
    %p128 = scmp.ne.s32.totalorder %s114, %s115
    %p129 = scmp.eq.s32.totalorder %s15, 1
    %p130 = por %p128, %p129
    %p132 = scmp.ne.s32.totalorder %s115, %s131
    %p133 = scmp.eq.s32.totalorder %s15, 0
    %p134 = por %p132, %p133
    %p135 = scmp.le.s32.totalorder 1, %s9
    %p136 = scmp.lt.s32.totalorder %s9, 3
    %p137 = pnand %p135, %p136
    %p138 = pneg %p137
    // Predicated region
    $region9: #{generator_forward.16} parent=5 // pred_check
      _
    $region10: #{generator_forward.16} parent=5 // pred_check_branch
      %140 = sbr.rel (%p137) target = $region12
    $region11: #{generator_forward.16} parent=5 // pred_region
      %s141 = ssub.s32 %s9, 1
    $region12: #{generator_forward.16} parent=5 // pred_fallthru
      _
    %p142 = scmp.lt.s32.totalorder %s9, 2
    // Predicated region
    $region13: #{generator_forward.16} parent=5 // pred_check
      %p143 = pneg %p142
    $region14: #{generator_forward.16} parent=5 // pred_check_branch
      %145 = sbr.rel (%p143) target = $region16
    $region15: #{generator_forward.16} parent=5 // pred_region
      // Predicated region
      $region17: #{generator_forward.16} parent=15 // pred_check
        %p146 = pneg %p41
      $region18: #{generator_forward.16} parent=15 // pred_check_branch
        %148 = sbr.rel (%p146) target = $region20
      $region19: #{generator_forward.16} parent=15 // pred_region
        %p149 = scmp.lt.s32.totalorder %s16, 1
        %s150 = scalar_select %p149, %s16, 1
        %s151 = smul.addr %s150, 2
        %s152 = smul.addr %s151, 4
        %s153 = scalar_lea.vmem %s0, %s152
      $region20: #{generator_forward.16} parent=15 // pred_fallthru
        _
      // Predicated region
      $region21: #{generator_forward.16} parent=15 // pred_check
        %p154 = pneg %p67
      $region22: #{generator_forward.16} parent=15 // pred_check_branch
        %156 = sbr.rel (%p154) target = $region24
      $region23: #{generator_forward.16} parent=15 // pred_region
        %p157 = scmp.lt.s32.totalorder %s16, 1
        %s158 = scalar_select %p157, %s16, 1
        %s159 = smul.addr %s158, 2
        %s160 = smul.addr %s159, 8
        %s161 = scalar_lea.vmem %s1, %s160
      $region24: #{generator_forward.16} parent=15 // pred_fallthru
        _
      // Predicated region
      $region25: #{generator_forward.16} parent=15 // pred_check
        %p162 = pneg %p93
      $region26: #{generator_forward.16} parent=15 // pred_check_branch
        %164 = sbr.rel (%p162) target = $region28
      $region27: #{generator_forward.16} parent=15 // pred_region
        %p165 = scmp.lt.s32.totalorder %s16, 1
        %s166 = scalar_select %p165, %s16, 1
        %s167 = scalar_lea.vmem %s2, %s166
      $region28: #{generator_forward.16} parent=15 // pred_fallthru
        _
    $region16: #{generator_forward.16} parent=5 // pred_fallthru
      _
    %p168 = scmp.le.s32.totalorder 1, %s9
    %p169 = scmp.lt.s32.totalorder %s9, 3
    %p170 = pnand %p168, %p169
    %p171 = pneg %p170
    // Predicated region
    $region29: #{generator_forward.16} parent=5 // pred_check
      _
    $region30: #{generator_forward.16} parent=5 // pred_check_branch
      %173 = sbr.rel (%p170) target = $region32
    $region31: #{generator_forward.16} parent=5 // pred_region
      %s174 = ssub.s32 %s9, 1
      %p175 = scmp.lt.s32.totalorder %s18, 1
      %s176 = scalar_select %p175, %s18, 1
      %s177 = smul.addr %s176, 2
      %s178 = smul.addr %s177, 4
      %s179 = scalar_lea.vmem %s0, %s178
      %p180 = pneg %p47
      %p181 = pneg %p44
      %p182 = scmp.lt.s32.totalorder %s18, 1
      %s183 = scalar_select %p182, %s18, 1
      %s184 = smul.addr %s183, 2
      %s185 = smul.addr %s184, 8
      %s186 = scalar_lea.vmem %s1, %s185
      %p187 = pneg %p73
      %p188 = pneg %p70
      %p189 = scmp.lt.s32.totalorder %s18, 1
      %s190 = scalar_select %p189, %s18, 1
      %s191 = scalar_lea.vmem %s2, %s190
      %p192 = pneg %p99
      %p193 = pneg %p96
      %p194 = pneg %p127
      %p195 = pneg %p124
      %s196 = smul.u32 2, %s19
      %p197 = scmp.lt.s32.totalorder %s18, 1
      %s198 = scalar_select %p197, %s18, 1
      %p199 = scmp.lt.s32.totalorder %s196, 1
      %s200 = scalar_select %p199, %s196, 1
      %s201 = smul.addr %s198, 2
      %s202 = sadd.s32 %s200, %s201
      %s203 = smul.addr %s202, 8
      %s204 = scalar_lea.vmem %s3, %s203
      %p205 = scmp.lt.s32.totalorder %s18, 1
      %s206 = scalar_select %p205, %s18, 1
      %s207 = smul.addr %s206, 2
      %s208 = smul.addr %s207, 4
      %s209 = scalar_lea.vmem %s0, %s208
      %p210 = scmp.lt.s32.totalorder %s18, 1
      %s211 = scalar_select %p210, %s18, 1
      %s212 = smul.addr %s211, 2
      %s213 = smul.addr %s212, 8
      %s214 = scalar_lea.vmem %s1, %s213
      %p215 = scmp.lt.s32.totalorder %s18, 1
      %s216 = scalar_select %p215, %s18, 1
      %s217 = scalar_lea.vmem %s2, %s216
      %s218 = smul.u32 2, %s19
      %p219 = scmp.lt.s32.totalorder %s18, 1
      %s220 = scalar_select %p219, %s18, 1
      %p221 = scmp.lt.s32.totalorder %s218, 1
      %s222 = scalar_select %p221, %s218, 1
      %s223 = smul.addr %s220, 2
      %s224 = sadd.s32 %s222, %s223
      %s225 = smul.addr %s224, 8
      %s226 = scalar_lea.vmem %s3, %s225
      %s227 = smul.u32 2, %s19
      %s229 = smul.u32 %s19, 16
      %v230 = vld [vmem:[%s209] sm:$0xf]
      %v231 = vld [vmem:[%s209 + $0x4] sm:$0xf]
      %s232 = sshra.s32 %s229, 3
      %s233 = sand.u32 %s229, 7
      %s234 = smul.addr %s232, 4
      %s235 = scalar_lea.vmem %s209, %s234
      %v236 = vld [vmem:[%s235] sm:$0xf]
      %v237 = vld [vmem:[%s235 + $0x4] sm:$0xf]
      %v240 = vunpack.c.l.b16 %v236
      %v241 = vunpack.c.l.b16 %v237
      %v242 = vpack.c.b16 %v241, %v240
      %v246 = vunpack.c.l.b16 %v230
      %v247 = vunpack.c.l.b16 %v231
      %v248 = vpack.c.b16 %v247, %v246
      %250 = vmatpush.bf16.xpose.msra.mxu0 0
      %251 = vmatpush.bf16.xpose.msra.mxu0 0
      %252 = vmatpush.bf16.xpose.msra.mxu0 0
      %253 = vmatpush.bf16.xpose.msra.mxu0 0
      %254 = vmatpush.bf16.xpose.msra.mxu0 0
      %255 = vmatpush.bf16.xpose.msra.mxu0 0
      %256 = vmatpush.bf16.xpose.msra.mxu0 0
      %257 = vmatpush.bf16.xpose.msra.mxu0 %v248
      %258 = vmatmul.bf16.gmra.mxu0 %v242
      %v259 = vpop.f32.mrf.mxu0
      %v260 = vadd.f32 0.0, %v259
      %v261 = vpop.f32.mrf.mxu0
      %v262 = vadd.f32 0.0, %v261
      %263 = vdwg.mxu0
      %s264 = scalar_lea.vmem %s214, %s229
      %v265 = vld [vmem:[%s264] sm:$0xff]
      %v266 = vld [vmem:[%s264 + $0x8] sm:$0xff]
      %v267 = vld [vmem:[%s217] sm:$0x1]
      %v268 = vmul.f32 %v260, 2.0
      %v269 = vmul.f32 %v262, 2.0
      %271 = vset.pattern.permute.xlu0 0
      %272 = vperm.xlu0 %271, %v265
      %v273 = vpop.permute.xlu0 %272
      %276 = vset.pattern.permute.xlu0 0
      %277 = vperm.xlu0 %276, %v266
      %v278 = vpop.permute.xlu0 %277
      %v280 = vsub.f32 %v268, %v273
      %v281 = vsub.f32 %v269, %v278
      %v283 = vperm.slane %v267, 0
      %v285 = vsub.f32 %v280, %v283
      %v286 = vsub.f32 %v281, %v283
      %v287 = vlaneseq
      %v288 = vand.u32 %v287, 127
      %vm289 = vcmask 130048
      %v290 = vsel %vm289, %v285, -inf
      %291 = vmax.xlane.f32.xlu0 %v290
      %v292 = vpop.xlane.xlu0 %291
      %v293 = vsel %vm289, %v286, -inf
      %294 = vmax.xlane.f32.xlu0 %v293
      %v295 = vpop.xlane.xlu0 %294
      %vm296 = vcmp.ge.f32.partialorder %v285, %v292
      %vm297 = vcmp.ge.f32.partialorder %v286, %v295
      %v298 = vsel %vm296, %v288, 16
      %v299 = vsel %vm297, %v288, 16
      %v300 = vsel %vm289, %v298, 2147483647
      %v301 = vand.u32 %v300, 65535
      %v302 = vshra.s32 %v300, 16
      %v303 = vcvt.s32.f32 %v301
      %v304 = vcvt.s32.f32 %v302
      %305 = vmin.xlane.f32.xlu0 %v304
      %v306 = vpop.xlane.xlu0 %305
      %vm307 = vcmp.eq.f32.partialorder %v304, %v306
      %v308 = vsel %vm307, %v303, inf
      %309 = vmin.xlane.f32.xlu0 %v308
      %v310 = vpop.xlane.xlu0 %309
      %v311 = vcvt.f32.s32 %v310
      %v312 = vcvt.f32.s32 %v306
      %v313 = vshll.u32 %v312, 16
      %v314 = vadd.s32 %v313, %v311
      %v315 = vsel %vm289, %v299, 2147483647
      %v316 = vand.u32 %v315, 65535
      %v317 = vshra.s32 %v315, 16
      %v318 = vcvt.s32.f32 %v316
      %v319 = vcvt.s32.f32 %v317
      %320 = vmin.xlane.f32.xlu0 %v319
      %v321 = vpop.xlane.xlu0 %320
      %vm322 = vcmp.eq.f32.partialorder %v319, %v321
      %v323 = vsel %vm322, %v318, inf
      %324 = vmin.xlane.f32.xlu0 %v323
      %v325 = vpop.xlane.xlu0 %324
      %v326 = vcvt.f32.s32 %v325
      %v327 = vcvt.f32.s32 %v321
      %v328 = vshll.u32 %v327, 16
      %v329 = vadd.s32 %v328, %v326
      %vm330 = vcmp.eq.s32.totalorder %v288, %v314
      %vm331 = vcmp.eq.s32.totalorder %v288, %v329
      %v332 = vsel %vm330, -inf, %v285
      %v333 = vsel %vm331, -inf, %v286
      %v334 = vsel %vm289, %v332, -inf
      %335 = vmax.xlane.f32.xlu0 %v334
      %v336 = vpop.xlane.xlu0 %335
      %v337 = vsel %vm289, %v333, -inf
      %338 = vmax.xlane.f32.xlu0 %v337
      %v339 = vpop.xlane.xlu0 %338
      %vm340 = vcmp.ge.f32.partialorder %v332, %v336
      %vm341 = vcmp.ge.f32.partialorder %v333, %v339
      %v342 = vsel %vm340, %v288, 16
      %v343 = vsel %vm341, %v288, 16
      %v344 = vsel %vm289, %v342, 2147483647
      %v345 = vand.u32 %v344, 65535
      %v346 = vshra.s32 %v344, 16
      %v347 = vcvt.s32.f32 %v345
      %v348 = vcvt.s32.f32 %v346
      %349 = vmin.xlane.f32.xlu0 %v348
      %v350 = vpop.xlane.xlu0 %349
      %vm351 = vcmp.eq.f32.partialorder %v348, %v350
      %v352 = vsel %vm351, %v347, inf
      %353 = vmin.xlane.f32.xlu0 %v352
      %v354 = vpop.xlane.xlu0 %353
      %v355 = vcvt.f32.s32 %v354
      %v356 = vcvt.f32.s32 %v350
      %v357 = vshll.u32 %v356, 16
      %v358 = vadd.s32 %v357, %v355
      %v359 = vsel %vm289, %v343, 2147483647
      %v360 = vand.u32 %v359, 65535
      %v361 = vshra.s32 %v359, 16
      %v362 = vcvt.s32.f32 %v360
      %v363 = vcvt.s32.f32 %v361
      %364 = vmin.xlane.f32.xlu0 %v363
      %v365 = vpop.xlane.xlu0 %364
      %vm366 = vcmp.eq.f32.partialorder %v363, %v365
      %v367 = vsel %vm366, %v362, inf
      %368 = vmin.xlane.f32.xlu0 %v367
      %v369 = vpop.xlane.xlu0 %368
      %v370 = vcvt.f32.s32 %v369
      %v371 = vcvt.f32.s32 %v365
      %v372 = vshll.u32 %v371, 16
      %v373 = vadd.s32 %v372, %v370
      %vm374 = vcmp.eq.s32.totalorder %v288, %v358
      %vm375 = vcmp.eq.s32.totalorder %v288, %v373
      %v376 = vsel %vm374, -inf, %v332
      %v377 = vsel %vm375, -inf, %v333
      %v378 = vsel %vm289, %v376, -inf
      %379 = vmax.xlane.f32.xlu0 %v378
      %v380 = vpop.xlane.xlu0 %379
      %v381 = vsel %vm289, %v377, -inf
      %382 = vmax.xlane.f32.xlu0 %v381
      %v383 = vpop.xlane.xlu0 %382
      %vm384 = vcmp.ge.f32.partialorder %v376, %v380
      %vm385 = vcmp.ge.f32.partialorder %v377, %v383
      %v386 = vsel %vm384, %v288, 16
      %v387 = vsel %vm385, %v288, 16
      %v388 = vsel %vm289, %v386, 2147483647
      %v389 = vand.u32 %v388, 65535
      %v390 = vshra.s32 %v388, 16
      %v391 = vcvt.s32.f32 %v389
      %v392 = vcvt.s32.f32 %v390
      %393 = vmin.xlane.f32.xlu0 %v392
      %v394 = vpop.xlane.xlu0 %393
      %vm395 = vcmp.eq.f32.partialorder %v392, %v394
      %v396 = vsel %vm395, %v391, inf
      %397 = vmin.xlane.f32.xlu0 %v396
      %v398 = vpop.xlane.xlu0 %397
      %v399 = vcvt.f32.s32 %v398
      %v400 = vcvt.f32.s32 %v394
      %v401 = vshll.u32 %v400, 16
      %v402 = vadd.s32 %v401, %v399
      %v403 = vsel %vm289, %v387, 2147483647
      %v404 = vand.u32 %v403, 65535
      %v405 = vshra.s32 %v403, 16
      %v406 = vcvt.s32.f32 %v404
      %v407 = vcvt.s32.f32 %v405
      %408 = vmin.xlane.f32.xlu0 %v407
      %v409 = vpop.xlane.xlu0 %408
      %vm410 = vcmp.eq.f32.partialorder %v407, %v409
      %v411 = vsel %vm410, %v406, inf
      %412 = vmin.xlane.f32.xlu0 %v411
      %v413 = vpop.xlane.xlu0 %412
      %v414 = vcvt.f32.s32 %v413
      %v415 = vcvt.f32.s32 %v409
      %v416 = vshll.u32 %v415, 16
      %v417 = vadd.s32 %v416, %v414
      %vm418 = vcmp.eq.s32.totalorder %v288, %v402
      %vm419 = vcmp.eq.s32.totalorder %v288, %v417
      %v420 = vsel %vm418, -inf, %v376
      %v421 = vsel %vm419, -inf, %v377
      %v422 = vsel %vm289, %v420, -inf
      %423 = vmax.xlane.f32.xlu0 %v422
      %v424 = vpop.xlane.xlu0 %423
      %v425 = vsel %vm289, %v421, -inf
      %426 = vmax.xlane.f32.xlu0 %v425
      %v427 = vpop.xlane.xlu0 %426
      %vm428 = vcmp.ge.f32.partialorder %v420, %v424
      %vm429 = vcmp.ge.f32.partialorder %v421, %v427
      %v430 = vsel %vm428, %v288, 16
      %v431 = vsel %vm429, %v288, 16
      %v432 = vsel %vm289, %v430, 2147483647
      %v433 = vand.u32 %v432, 65535
      %v434 = vshra.s32 %v432, 16
      %v435 = vcvt.s32.f32 %v433
      %v436 = vcvt.s32.f32 %v434
      %437 = vmin.xlane.f32.xlu0 %v436
      %v438 = vpop.xlane.xlu0 %437
      %vm439 = vcmp.eq.f32.partialorder %v436, %v438
      %v440 = vsel %vm439, %v435, inf
      %441 = vmin.xlane.f32.xlu0 %v440
      %v442 = vpop.xlane.xlu0 %441
      %v443 = vcvt.f32.s32 %v442
      %v444 = vcvt.f32.s32 %v438
      %v445 = vshll.u32 %v444, 16
      %v446 = vadd.s32 %v445, %v443
      %v447 = vsel %vm289, %v431, 2147483647
      %v448 = vand.u32 %v447, 65535
      %v449 = vshra.s32 %v447, 16
      %v450 = vcvt.s32.f32 %v448
      %v451 = vcvt.s32.f32 %v449
      %452 = vmin.xlane.f32.xlu0 %v451
      %v453 = vpop.xlane.xlu0 %452
      %vm454 = vcmp.eq.f32.partialorder %v451, %v453
      %v455 = vsel %vm454, %v450, inf
      %456 = vmin.xlane.f32.xlu0 %v455
      %v457 = vpop.xlane.xlu0 %456
      %v458 = vcvt.f32.s32 %v457
      %v459 = vcvt.f32.s32 %v453
      %v460 = vshll.u32 %v459, 16
      %v461 = vadd.s32 %v460, %v458
      %vm462 = vcmp.eq.s32.totalorder %v288, %v446
      %vm463 = vcmp.eq.s32.totalorder %v288, %v461
      %v464 = vsel %vm462, -inf, %v420
      %v465 = vsel %vm463, -inf, %v421
      %v466 = vsel %vm289, %v464, -inf
      %467 = vmax.xlane.f32.xlu0 %v466
      %v468 = vpop.xlane.xlu0 %467
      %v469 = vsel %vm289, %v465, -inf
      %470 = vmax.xlane.f32.xlu0 %v469
      %v471 = vpop.xlane.xlu0 %470
      %vm472 = vcmp.ge.f32.partialorder %v464, %v468
      %vm473 = vcmp.ge.f32.partialorder %v465, %v471
      %v474 = vsel %vm472, %v288, 16
      %v475 = vsel %vm473, %v288, 16
      %v476 = vsel %vm289, %v474, 2147483647
      %v477 = vand.u32 %v476, 65535
      %v478 = vshra.s32 %v476, 16
      %v479 = vcvt.s32.f32 %v477
      %v480 = vcvt.s32.f32 %v478
      %481 = vmin.xlane.f32.xlu0 %v480
      %v482 = vpop.xlane.xlu0 %481
      %vm483 = vcmp.eq.f32.partialorder %v480, %v482
      %v484 = vsel %vm483, %v479, inf
      %485 = vmin.xlane.f32.xlu0 %v484
      %v486 = vpop.xlane.xlu0 %485
      %v487 = vcvt.f32.s32 %v486
      %v488 = vcvt.f32.s32 %v482
      %v489 = vshll.u32 %v488, 16
      %v490 = vadd.s32 %v489, %v487
      %v491 = vsel %vm289, %v475, 2147483647
      %v492 = vand.u32 %v491, 65535
      %v493 = vshra.s32 %v491, 16
      %v494 = vcvt.s32.f32 %v492
      %v495 = vcvt.s32.f32 %v493
      %496 = vmin.xlane.f32.xlu0 %v495
      %v497 = vpop.xlane.xlu0 %496
      %vm498 = vcmp.eq.f32.partialorder %v495, %v497
      %v499 = vsel %vm498, %v494, inf
      %500 = vmin.xlane.f32.xlu0 %v499
      %v501 = vpop.xlane.xlu0 %500
      %v502 = vcvt.f32.s32 %v501
      %v503 = vcvt.f32.s32 %v497
      %v504 = vshll.u32 %v503, 16
      %v505 = vadd.s32 %v504, %v502
      %vm506 = vcmp.eq.s32.totalorder %v288, %v490
      %vm507 = vcmp.eq.s32.totalorder %v288, %v505
      %v508 = vsel %vm506, -inf, %v464
      %v509 = vsel %vm507, -inf, %v465
      %v510 = vsel %vm289, %v508, -inf
      %511 = vmax.xlane.f32.xlu0 %v510
      %v512 = vpop.xlane.xlu0 %511
      %v513 = vsel %vm289, %v509, -inf
      %514 = vmax.xlane.f32.xlu0 %v513
      %v515 = vpop.xlane.xlu0 %514
      %vm516 = vcmp.ge.f32.partialorder %v508, %v512
      %vm517 = vcmp.ge.f32.partialorder %v509, %v515
      %v518 = vsel %vm516, %v288, 16
      %v519 = vsel %vm517, %v288, 16
      %v520 = vsel %vm289, %v518, 2147483647
      %v521 = vand.u32 %v520, 65535
      %v522 = vshra.s32 %v520, 16
      %v523 = vcvt.s32.f32 %v521
      %v524 = vcvt.s32.f32 %v522
      %525 = vmin.xlane.f32.xlu0 %v524
      %v526 = vpop.xlane.xlu0 %525
      %vm527 = vcmp.eq.f32.partialorder %v524, %v526
      %v528 = vsel %vm527, %v523, inf
      %529 = vmin.xlane.f32.xlu0 %v528
      %v530 = vpop.xlane.xlu0 %529
      %v531 = vcvt.f32.s32 %v530
      %v532 = vcvt.f32.s32 %v526
      %v533 = vshll.u32 %v532, 16
      %v534 = vadd.s32 %v533, %v531
      %v535 = vsel %vm289, %v519, 2147483647
      %v536 = vand.u32 %v535, 65535
      %v537 = vshra.s32 %v535, 16
      %v538 = vcvt.s32.f32 %v536
      %v539 = vcvt.s32.f32 %v537
      %540 = vmin.xlane.f32.xlu0 %v539
      %v541 = vpop.xlane.xlu0 %540
      %vm542 = vcmp.eq.f32.partialorder %v539, %v541
      %v543 = vsel %vm542, %v538, inf
      %544 = vmin.xlane.f32.xlu0 %v543
      %v545 = vpop.xlane.xlu0 %544
      %v546 = vcvt.f32.s32 %v545
      %v547 = vcvt.f32.s32 %v541
      %v548 = vshll.u32 %v547, 16
      %v549 = vadd.s32 %v548, %v546
      %vm550 = vcmp.eq.s32.totalorder %v288, %v534
      %vm551 = vcmp.eq.s32.totalorder %v288, %v549
      %v552 = vsel %vm550, -inf, %v508
      %v553 = vsel %vm551, -inf, %v509
      %v554 = vsel %vm289, %v552, -inf
      %555 = vmax.xlane.f32.xlu0 %v554
      %v556 = vpop.xlane.xlu0 %555
      %v557 = vsel %vm289, %v553, -inf
      %558 = vmax.xlane.f32.xlu0 %v557
      %v559 = vpop.xlane.xlu0 %558
      %vm560 = vcmp.ge.f32.partialorder %v552, %v556
      %vm561 = vcmp.ge.f32.partialorder %v553, %v559
      %v562 = vsel %vm560, %v288, 16
      %v563 = vsel %vm561, %v288, 16
      %v564 = vsel %vm289, %v562, 2147483647
      %v565 = vand.u32 %v564, 65535
      %v566 = vshra.s32 %v564, 16
      %v567 = vcvt.s32.f32 %v565
      %v568 = vcvt.s32.f32 %v566
      %569 = vmin.xlane.f32.xlu0 %v568
      %v570 = vpop.xlane.xlu0 %569
      %vm571 = vcmp.eq.f32.partialorder %v568, %v570
      %v572 = vsel %vm571, %v567, inf
      %573 = vmin.xlane.f32.xlu0 %v572
      %v574 = vpop.xlane.xlu0 %573
      %v575 = vcvt.f32.s32 %v574
      %v576 = vcvt.f32.s32 %v570
      %v577 = vshll.u32 %v576, 16
      %v578 = vadd.s32 %v577, %v575
      %v579 = vsel %vm289, %v563, 2147483647
      %v580 = vand.u32 %v579, 65535
      %v581 = vshra.s32 %v579, 16
      %v582 = vcvt.s32.f32 %v580
      %v583 = vcvt.s32.f32 %v581
      %584 = vmin.xlane.f32.xlu0 %v583
      %v585 = vpop.xlane.xlu0 %584
      %vm586 = vcmp.eq.f32.partialorder %v583, %v585
      %v587 = vsel %vm586, %v582, inf
      %588 = vmin.xlane.f32.xlu0 %v587
      %v589 = vpop.xlane.xlu0 %588
      %v590 = vcvt.f32.s32 %v589
      %v591 = vcvt.f32.s32 %v585
      %v592 = vshll.u32 %v591, 16
      %v593 = vadd.s32 %v592, %v590
      %vm594 = vcmp.eq.s32.totalorder %v288, %v578
      %vm595 = vcmp.eq.s32.totalorder %v288, %v593
      %v596 = vsel %vm594, -inf, %v552
      %v597 = vsel %vm595, -inf, %v553
      %v598 = vsel %vm289, %v596, -inf
      %599 = vmax.xlane.f32.xlu0 %v598
      %v600 = vpop.xlane.xlu0 %599
      %v601 = vsel %vm289, %v597, -inf
      %602 = vmax.xlane.f32.xlu0 %v601
      %v603 = vpop.xlane.xlu0 %602
      %vm604 = vcmp.ge.f32.partialorder %v596, %v600
      %vm605 = vcmp.ge.f32.partialorder %v597, %v603
      %v606 = vsel %vm604, %v288, 16
      %v607 = vsel %vm605, %v288, 16
      %v608 = vsel %vm289, %v606, 2147483647
      %v609 = vand.u32 %v608, 65535
      %v610 = vshra.s32 %v608, 16
      %v611 = vcvt.s32.f32 %v609
      %v612 = vcvt.s32.f32 %v610
      %613 = vmin.xlane.f32.xlu0 %v612
      %v614 = vpop.xlane.xlu0 %613
      %vm615 = vcmp.eq.f32.partialorder %v612, %v614
      %v616 = vsel %vm615, %v611, inf
      %617 = vmin.xlane.f32.xlu0 %v616
      %v618 = vpop.xlane.xlu0 %617
      %v619 = vcvt.f32.s32 %v618
      %v620 = vcvt.f32.s32 %v614
      %v621 = vshll.u32 %v620, 16
      %v622 = vadd.s32 %v621, %v619
      %v623 = vsel %vm289, %v607, 2147483647
      %v624 = vand.u32 %v623, 65535
      %v625 = vshra.s32 %v623, 16
      %v626 = vcvt.s32.f32 %v624
      %v627 = vcvt.s32.f32 %v625
      %628 = vmin.xlane.f32.xlu0 %v627
      %v629 = vpop.xlane.xlu0 %628
      %vm630 = vcmp.eq.f32.partialorder %v627, %v629
      %v631 = vsel %vm630, %v626, inf
      %632 = vmin.xlane.f32.xlu0 %v631
      %v633 = vpop.xlane.xlu0 %632
      %v634 = vcvt.f32.s32 %v633
      %v635 = vcvt.f32.s32 %v629
      %v636 = vshll.u32 %v635, 16
      %v637 = vadd.s32 %v636, %v634
      %vm638 = vcmask 7168
      %v639 = vsel %vm638, %v314, %v358
      %v640 = vsel %vm638, %v329, %v373
      %vm641 = vcmask 15360
      %v642 = vsel %vm641, %v639, %v402
      %v643 = vsel %vm641, %v640, %v417
      %vm644 = vcmask 23552
      %v645 = vsel %vm644, %v642, %v446
      %v646 = vsel %vm644, %v643, %v461
      %vm647 = vcmask 31744
      %v648 = vsel %vm647, %v645, %v490
      %v649 = vsel %vm647, %v646, %v505
      %vm650 = vcmask 39936
      %v651 = vsel %vm650, %v648, %v534
      %v652 = vsel %vm650, %v649, %v549
      %vm653 = vcmask 48128
      %v654 = vsel %vm653, %v651, %v578
      %v655 = vsel %vm653, %v652, %v593
      %vm656 = vcmask 56320
      %v657 = vsel %vm656, %v654, %v622
      %v658 = vsel %vm656, %v655, %v637
      %vm659 = vcmask 64512
      %660 = vst.msk [vmem:[%s226] sm:$0xff] %vm659, %v657
      %661 = vst.msk [vmem:[%s226 + $0x8] sm:$0xff] %vm659, %v658
      %s662 = smul.u32 2, %s19
      %p663 = scmp.lt.s32.totalorder %s18, 1
      %s664 = scalar_select %p663, %s18, 1
      %p665 = scmp.lt.s32.totalorder %s662, 1
      %s666 = scalar_select %p665, %s662, 1
      %s667 = smul.addr %s664, 2
      %s668 = sadd.s32 %s666, %s667
      %s669 = smul.addr %s668, 8
      %s670 = scalar_lea.vmem %s3, %s669
      // Predicated region
      $region33: #{generator_forward.16} parent=31 // pred_check
        %p671 = pneg %p124
      $region34: #{generator_forward.16} parent=31 // pred_check_branch
        %673 = sbr.rel (%p671) target = $region36
      $region35: #{generator_forward.16} parent=31 // pred_region
        %s674 = smul.u32 2, %s19
      $region36: #{generator_forward.16} parent=31 // pred_fallthru
        _
    $region32: #{generator_forward.16} parent=5 // pred_fallthru
      _
    %p675 = scmp.le.s32.totalorder 2, %s9
    // Predicated region
    $region37: #{generator_forward.16} parent=5 // pred_check
      %p676 = pneg %p675
    $region38: #{generator_forward.16} parent=5 // pred_check_branch
      %678 = sbr.rel (%p676) target = $region40
    $region39: #{generator_forward.16} parent=5 // pred_region
      %s679 = ssub.s32 %s9, 2
      // Predicated region
      $region41: #{generator_forward.16} parent=39 // pred_check
        %p680 = pneg %p130
      $region42: #{generator_forward.16} parent=39 // pred_check_branch
        %682 = sbr.rel (%p680) target = $region44
      $region43: #{generator_forward.16} parent=39 // pred_region
        %s683 = smul.u32 2, %s21
        %p684 = scmp.lt.s32.totalorder %s20, 1
        %s685 = scalar_select %p684, %s20, 1
        %p686 = scmp.lt.s32.totalorder %s683, 1
        %s687 = scalar_select %p686, %s683, 1
        %s688 = smul.addr %s685, 2
        %s689 = sadd.s32 %s687, %s688
        %s690 = smul.addr %s689, 8
        %s691 = scalar_lea.vmem %s3, %s690
      $region44: #{generator_forward.16} parent=39 // pred_fallthru
        _
    $region40: #{generator_forward.16} parent=5 // pred_fallthru
      _
  $region6: #{generator_forward.16} parent=0 // loop_footer
    %s13 = sadd.s32 1, %s9
  $region7: #{generator_forward.16} parent=0 // loop_footer_branch
    %8 = sbr.rel target = $region3
  $region8: #{generator_forward.16} parent=0 // loop_exit
    _

// kernel: generator_forward.15
$region0: #{generator_forward.15}
  #allocation0 [shape = 'u32[]', space=smem, size = 0x4, offset = 0x4, fixed_abs, tag = 'smem constant byte address 0x4 - core index']
  #allocation1 [shape = 'u32[72,128]{1,0:T(1,128)}', space=vmem, size = 0x9000, scoped, tag = 'internal scratch']
  #allocation2 [shape = 'f32[32,128]{1,0:T(8,128)}', space=vmem, size = 0x4000, scoped, tag = 'scratch operand']
  %s0 = inlined_call_operand.vmem [shape: bf16[8,32,64], index: 0, kind: input, shape index: {}]
  %s1 = inlined_call_operand.vmem [shape: bf16[32,64], index: 1, kind: input, shape index: {}]
  %s2 = inlined_call_operand.vmem [shape: bf16[64,128], index: 2, kind: input, shape index: {}]
  %s3 = inlined_call_operand.vmem [shape: bf16[64,128], index: 3, kind: input, shape index: {}]
  %s4 = inlined_call_operand.vmem [shape: bf16[32,128], index: 4, kind: output, shape index: {}]
  %s5 = sld [smem:[#allocation0]]
  $region57: #{generator_forward.15} parent=0
    _
  %s7 = ssub.s32 1, %s5
  %s8 = scalar_select 0, %s7, %s5
  loop: start=0, step=1, limit=10
  $region2: #{generator_forward.15} parent=0 // loop_pre_header
    _
  $region3: #{generator_forward.15} parent=0 // loop_header
    %s10 = sphi 0, %s14
    %p11 = scmp.ge.s32.totalorder %s10, 10
    %s17 = sphi 0, %s29
    %s18 = sphi 0, %s25
    %s19 = sphi 0, %s17
    %s20 = sphi 0, %s18
    %s21 = sphi 0, %s19
    %s22 = sphi 0, %s20
    %s34 = sphi 0, %s36
    %s37 = sphi 0, %s34
    %s38 = sphi 0, %s37
    %s54 = sphi 0, %s38
    %s60 = sphi 0, %s62
    %s63 = sphi 0, %s60
    %s64 = sphi 0, %s63
    %s80 = sphi 0, %s64
    %s84 = sphi 0, %s84
    %s86 = sphi 0, %s84
    %s87 = sphi 0, %s86
    %s101 = sphi 0, %s87
    %s105 = sphi 0, %s105
    %s107 = sphi 0, %s105
    %s108 = sphi 0, %s107
    %s122 = sphi 0, %s108
    %s128 = sphi 0, %s130
    %s131 = sphi 0, %s128
    %s132 = sphi 0, %s131
    %s148 = sphi 0, %s132
  $region4: #{generator_forward.15} parent=0 // loop_header_branch
    %13 = sbr.rel (%p11) target = $region8
  $region5: #{generator_forward.15} parent=0 // loop_body
    %s15 = ssub.s32 %s10, 1
    %s16 = ssub.s32 %s10, 2
    %s23 = sadd.s32 1, %s18
    %p24 = scmp.ge.s32.totalorder %s23, 8
    %s25 = scalar_select %p24, 0, %s23
    %s26 = sadd.s32 1, %s17
    %s27 = scalar_select %p24, %s26, %s17
    %p28 = scmp.ge.s32.totalorder %s27, 1
    %s29 = scalar_select %p28, 0, %s27
    %s30 = ssub.s32 %s18, %s25
    %s31 = ssub.s32 %s17, %s29
    %s32 = sor.u32 %s30, %s31
    %p33 = scmp.eq.s32.totalorder %s32, 0
    %s35 = sadd.s32 %s34, 1
    %s36 = scalar_select %p33, %s34, %s35
    %p39 = pneg %p33
    %p40 = scmp.eq.s32.totalorder %s10, 7
    %p41 = por %p39, %p40
    %p42 = scmp.ne.s32.totalorder %s34, %s37
    %p43 = scmp.eq.s32.totalorder %s10, 0
    %p44 = por %p42, %p43
    %p45 = scmp.ne.s32.totalorder %s34, %s37
    %p46 = scmp.eq.s32.totalorder %s15, 7
    %p47 = por %p45, %p46
    %p48 = scmp.ne.s32.totalorder %s37, %s38
    %p49 = scmp.eq.s32.totalorder %s15, 0
    %p50 = por %p48, %p49
    %p51 = scmp.ne.s32.totalorder %s37, %s38
    %p52 = scmp.eq.s32.totalorder %s16, 7
    %p53 = por %p51, %p52
    %p55 = scmp.ne.s32.totalorder %s38, %s54
    %p56 = scmp.eq.s32.totalorder %s16, 0
    %p57 = por %p55, %p56
    %s58 = ssub.s32 %s17, %s29
    %p59 = scmp.eq.s32.totalorder %s58, 0
    %s61 = sadd.s32 %s60, 1
    %s62 = scalar_select %p59, %s60, %s61
    %p65 = pneg %p59
    %p66 = scmp.eq.s32.totalorder %s10, 7
    %p67 = por %p65, %p66
    %p68 = scmp.ne.s32.totalorder %s60, %s63
    %p69 = scmp.eq.s32.totalorder %s10, 0
    %p70 = por %p68, %p69
    %p71 = scmp.ne.s32.totalorder %s60, %s63
    %p72 = scmp.eq.s32.totalorder %s15, 7
    %p73 = por %p71, %p72
    %p74 = scmp.ne.s32.totalorder %s63, %s64
    %p75 = scmp.eq.s32.totalorder %s15, 0
    %p76 = por %p74, %p75
    %p77 = scmp.ne.s32.totalorder %s63, %s64
    %p78 = scmp.eq.s32.totalorder %s16, 7
    %p79 = por %p77, %p78
    %p81 = scmp.ne.s32.totalorder %s64, %s80
    %p82 = scmp.eq.s32.totalorder %s16, 0
    %p83 = por %p81, %p82
    %s85 = sadd.s32 %s84, 1
    %p88 = scmp.eq.s32.totalorder %s10, 7
    %p89 = scmp.ne.s32.totalorder %s84, %s86
    %p90 = scmp.eq.s32.totalorder %s10, 0
    %p91 = por %p89, %p90
    %p92 = scmp.ne.s32.totalorder %s84, %s86
    %p93 = scmp.eq.s32.totalorder %s15, 7
    %p94 = por %p92, %p93
    %p95 = scmp.ne.s32.totalorder %s86, %s87
    %p96 = scmp.eq.s32.totalorder %s15, 0
    %p97 = por %p95, %p96
    %p98 = scmp.ne.s32.totalorder %s86, %s87
    %p99 = scmp.eq.s32.totalorder %s16, 7
    %p100 = por %p98, %p99
    %p102 = scmp.ne.s32.totalorder %s87, %s101
    %p103 = scmp.eq.s32.totalorder %s16, 0
    %p104 = por %p102, %p103
    %s106 = sadd.s32 %s105, 1
    %p109 = scmp.eq.s32.totalorder %s10, 7
    %p110 = scmp.ne.s32.totalorder %s105, %s107
    %p111 = scmp.eq.s32.totalorder %s10, 0
    %p112 = por %p110, %p111
    %p113 = scmp.ne.s32.totalorder %s105, %s107
    %p114 = scmp.eq.s32.totalorder %s15, 7
    %p115 = por %p113, %p114
    %p116 = scmp.ne.s32.totalorder %s107, %s108
    %p117 = scmp.eq.s32.totalorder %s15, 0
    %p118 = por %p116, %p117
    %p119 = scmp.ne.s32.totalorder %s107, %s108
    %p120 = scmp.eq.s32.totalorder %s16, 7
    %p121 = por %p119, %p120
    %p123 = scmp.ne.s32.totalorder %s108, %s122
    %p124 = scmp.eq.s32.totalorder %s16, 0
    %p125 = por %p123, %p124
    %s126 = ssub.s32 %s17, %s29
    %p127 = scmp.eq.s32.totalorder %s126, 0
    %s129 = sadd.s32 %s128, 1
    %s130 = scalar_select %p127, %s128, %s129
    %p133 = pneg %p127
    %p134 = scmp.eq.s32.totalorder %s10, 7
    %p135 = por %p133, %p134
    %p136 = scmp.ne.s32.totalorder %s128, %s131
    %p137 = scmp.eq.s32.totalorder %s10, 0
    %p138 = por %p136, %p137
    %p139 = scmp.ne.s32.totalorder %s128, %s131
    %p140 = scmp.eq.s32.totalorder %s15, 7
    %p141 = por %p139, %p140
    %p142 = scmp.ne.s32.totalorder %s131, %s132
    %p143 = scmp.eq.s32.totalorder %s15, 0
    %p144 = por %p142, %p143
    %p145 = scmp.ne.s32.totalorder %s131, %s132
    %p146 = scmp.eq.s32.totalorder %s16, 7
    %p147 = por %p145, %p146
    %p149 = scmp.ne.s32.totalorder %s132, %s148
    %p150 = scmp.eq.s32.totalorder %s16, 0
    %p151 = por %p149, %p150
    %p152 = scmp.le.s32.totalorder 1, %s10
    %p153 = scmp.lt.s32.totalorder %s10, 9
    %p154 = pnand %p152, %p153
    %p155 = pneg %p154
    // Predicated region
    $region9: #{generator_forward.15} parent=5 // pred_check
      _
    $region10: #{generator_forward.15} parent=5 // pred_check_branch
      %157 = sbr.rel (%p154) target = $region12
    $region11: #{generator_forward.15} parent=5 // pred_region
      %s158 = ssub.s32 %s10, 1
      // Predicated region
      $region13: #{generator_forward.15} parent=11 // pred_check
        %p159 = pneg %p76
      $region14: #{generator_forward.15} parent=11 // pred_check_branch
        %161 = sbr.rel (%p159) target = $region16
      $region15: #{generator_forward.15} parent=11 // pred_region
        %s162 = smul.u32 4, %s19
        %p163 = scmp.lt.s32.totalorder %s162, 3
        %s164 = scalar_select %p163, %s162, 3
        %s165 = smul.addr %s164, 4
        %s166 = scalar_lea.vmem %s1, %s165
        %s167 = smul.u32 4, %s19
      $region16: #{generator_forward.15} parent=11 // pred_fallthru
        _
      // Predicated region
      $region17: #{generator_forward.15} parent=11 // pred_check
        %p168 = pneg %p97
      $region18: #{generator_forward.15} parent=11 // pred_check_branch
        %170 = sbr.rel (%p168) target = $region20
      $region19: #{generator_forward.15} parent=11 // pred_region
        _
      $region20: #{generator_forward.15} parent=11 // pred_fallthru
        _
      // Predicated region
      $region21: #{generator_forward.15} parent=11 // pred_check
        %p171 = pneg %p118
      $region22: #{generator_forward.15} parent=11 // pred_check_branch
        %173 = sbr.rel (%p171) target = $region24
      $region23: #{generator_forward.15} parent=11 // pred_region
        _
      $region24: #{generator_forward.15} parent=11 // pred_fallthru
        _
    $region12: #{generator_forward.15} parent=5 // pred_fallthru
      _
    %p174 = scmp.lt.s32.totalorder %s10, 8
    // Predicated region
    $region25: #{generator_forward.15} parent=5 // pred_check
      %p175 = pneg %p174
    $region26: #{generator_forward.15} parent=5 // pred_check_branch
      %177 = sbr.rel (%p175) target = $region28
    $region27: #{generator_forward.15} parent=5 // pred_region
      // Predicated region
      $region29: #{generator_forward.15} parent=27 // pred_check
        %p178 = pneg %p44
      $region30: #{generator_forward.15} parent=27 // pred_check_branch
        %180 = sbr.rel (%p178) target = $region32
      $region31: #{generator_forward.15} parent=27 // pred_region
        %s181 = smul.u32 4, %s17
        %p182 = scmp.lt.s32.totalorder %s18, 7
        %s183 = scalar_select %p182, %s18, 7
        %p184 = scmp.lt.s32.totalorder %s181, 3
        %s185 = scalar_select %p184, %s181, 3
        %s186 = smul.addr %s183, 4
        %s187 = sadd.s32 %s185, %s186
        %s188 = smul.addr %s187, 4
        %s189 = scalar_lea.vmem %s0, %s188
        %s190 = smul.u32 4, %s17
      $region32: #{generator_forward.15} parent=27 // pred_fallthru
        _
    $region28: #{generator_forward.15} parent=5 // pred_fallthru
      _
    %p191 = scmp.le.s32.totalorder 1, %s10
    %p192 = scmp.lt.s32.totalorder %s10, 9
    %p193 = pnand %p191, %p192
    %p194 = pneg %p193
    // Predicated region
    $region33: #{generator_forward.15} parent=5 // pred_check
      _
    $region34: #{generator_forward.15} parent=5 // pred_check_branch
      %196 = sbr.rel (%p193) target = $region36
    $region35: #{generator_forward.15} parent=5 // pred_region
      %s197 = ssub.s32 %s10, 1
      %s198 = smul.u32 4, %s19
      %p199 = scmp.lt.s32.totalorder %s20, 7
      %s200 = scalar_select %p199, %s20, 7
      %p201 = scmp.lt.s32.totalorder %s198, 3
      %s202 = scalar_select %p201, %s198, 3
      %s203 = smul.addr %s200, 4
      %s204 = sadd.s32 %s202, %s203
      %s205 = smul.addr %s204, 4
      %s206 = scalar_lea.vmem %s0, %s205
      %p207 = pneg %p50
      %p208 = pneg %p47
      %s209 = smul.u32 4, %s19
      %p210 = scmp.lt.s32.totalorder %s209, 3
      %s211 = scalar_select %p210, %s209, 3
      %s212 = smul.addr %s211, 4
      %s213 = scalar_lea.vmem %s1, %s212
      %p214 = pneg %p76
      %p215 = pneg %p73
      %p216 = pneg %p97
      %p217 = pneg %p94
      %p218 = pneg %p118
      %p219 = pneg %p115
      %p220 = pneg %p144
      %p221 = pneg %p141
      %s222 = smul.u32 4, %s19
      %p223 = scmp.lt.s32.totalorder %s222, 3
      %s224 = scalar_select %p223, %s222, 3
      %s225 = smul.addr %s224, 4
      %s226 = scalar_lea.vmem %s4, %s225
      %s227 = smul.u32 4, %s19
      %p228 = scmp.lt.s32.totalorder %s20, 7
      %s229 = scalar_select %p228, %s20, 7
      %p230 = scmp.lt.s32.totalorder %s227, 3
      %s231 = scalar_select %p230, %s227, 3
      %s232 = smul.addr %s229, 4
      %s233 = sadd.s32 %s231, %s232
      %s234 = smul.addr %s233, 4
      %s235 = scalar_lea.vmem %s0, %s234
      %s236 = smul.u32 4, %s19
      %s237 = smul.u32 4, %s19
      %p238 = scmp.lt.s32.totalorder %s237, 3
      %s239 = scalar_select %p238, %s237, 3
      %s240 = smul.addr %s239, 4
      %s241 = scalar_lea.vmem %s1, %s240
      %s242 = smul.u32 4, %s19
      %s243 = smul.u32 4, %s19
      %p244 = scmp.lt.s32.totalorder %s243, 3
      %s245 = scalar_select %p244, %s243, 3
      %s246 = smul.addr %s245, 4
      %s247 = scalar_lea.vmem %s4, %s246
      %s248 = smul.u32 4, %s19
      %p250 = scmp.eq.s32.totalorder %s20, 0
      // Predicated region
      $region37: #{generator_forward.15} parent=35 // pred_check
        %p251 = pneg %p250
      $region38: #{generator_forward.15} parent=35 // pred_check_branch
        %253 = sbr.rel (%p251) target = $region40
      $region39: #{generator_forward.15} parent=35 // pred_region
        %254 = vst [vmem:[#allocation2] sm:$0xff] -inf
        %255 = vst [vmem:[#allocation2 + $0x8] sm:$0xff] -inf
        %256 = vst [vmem:[#allocation2 + $0x10] sm:$0xff] -inf
        %257 = vst [vmem:[#allocation2 + $0x18] sm:$0xff] -inf
      $region40: #{generator_forward.15} parent=35 // pred_fallthru
        _
      %v258 = vld [vmem:[#allocation2] sm:$0xff]
      %v259 = vld [vmem:[#allocation2 + $0x8] sm:$0xff]
      %v260 = vld [vmem:[#allocation2 + $0x10] sm:$0xff]
      %v261 = vld [vmem:[#allocation2 + $0x18] sm:$0xff]
      %v262 = vld [vmem:[%s235] sm:$0xf]
      %v263 = vld [vmem:[%s235 + $0x4] sm:$0xf]
      %v264 = vld [vmem:[%s235 + $0x8] sm:$0xf]
      %v265 = vld [vmem:[%s235 + $0xc] sm:$0xf]
      %v266 = vld [vmem:[%s2] sm:$0xf]
      %v267 = vld [vmem:[%s2 + $0x4] sm:$0xf]
      %v268 = vld [vmem:[%s2 + $0x8] sm:$0xf]
      %v269 = vld [vmem:[%s2 + $0xc] sm:$0xf]
      %v270 = vld [vmem:[%s2 + $0x10] sm:$0xf]
      %v271 = vld [vmem:[%s2 + $0x14] sm:$0xf]
      %v272 = vld [vmem:[%s2 + $0x18] sm:$0xf]
      %v273 = vld [vmem:[%s2 + $0x1c] sm:$0xf]
      %v278 = vunpack.c.l.b16 %v262
      %v279 = vunpack.c.l.b16 %v263
      %v280 = vunpack.c.l.b16 %v264
      %v281 = vunpack.c.l.b16 %v265
      %v282 = vpack.c.b16 %v279, %v278
      %v283 = vpack.c.b16 %v281, %v280
      %v292 = vunpack.c.l.b16 %v266
      %v293 = vunpack.c.l.b16 %v267
      %v294 = vunpack.c.l.b16 %v268
      %v295 = vunpack.c.l.b16 %v269
      %v296 = vunpack.c.l.b16 %v270
      %v297 = vunpack.c.l.b16 %v271
      %v298 = vunpack.c.l.b16 %v272
      %v299 = vunpack.c.l.b16 %v273
      %v300 = vpack.c.b16 %v293, %v292
      %v301 = vpack.c.b16 %v295, %v294
      %v302 = vpack.c.b16 %v297, %v296
      %v303 = vpack.c.b16 %v299, %v298
      %vm308 = vcmask 523264
      %v310 = vsel %vm308, %v282, 0
      %v313 = vsel %vm308, %v283, 0
      %315 = vmatpush.bf16.msra.mxu0 0
      %316 = vmatpush.bf16.msra.mxu0 0
      %317 = vmatpush.bf16.msra.mxu0 0
      %318 = vmatpush.bf16.msra.mxu0 0
      %319 = vmatpush.bf16.msra.mxu0 %v303
      %320 = vmatpush.bf16.msra.mxu0 %v302
      %321 = vmatpush.bf16.msra.mxu0 %v301
      %322 = vmatpush.bf16.msra.mxu0 %v300
      %323 = vmatmul.bf16.gmra.mxu0 %v310
      %v324 = vpop.f32.mrf.mxu0
      %v325 = vadd.f32 0.0, %v324
      %v326 = vpop.f32.mrf.mxu0
      %v327 = vadd.f32 0.0, %v326
      %328 = vmatmul.bf16.gmra.mxu0 %v313
      %v329 = vpop.f32.mrf.mxu0
      %v330 = vadd.f32 0.0, %v329
      %v331 = vpop.f32.mrf.mxu0
      %v332 = vadd.f32 0.0, %v331
      %333 = vdwg.mxu0
      %v334 = vmax.f32 %v258, %v325
      %v335 = vmax.f32 %v259, %v327
      %v336 = vmax.f32 %v260, %v330
      %v337 = vmax.f32 %v261, %v332
      %338 = vst [vmem:[#allocation2] sm:$0xff] %v334
      %339 = vst [vmem:[#allocation2 + $0x8] sm:$0xff] %v335
      %340 = vst [vmem:[#allocation2 + $0x10] sm:$0xff] %v336
      %341 = vst [vmem:[#allocation2 + $0x18] sm:$0xff] %v337
      %p342 = scmp.eq.s32.totalorder %s20, 7
      // Predicated region
      $region41: #{generator_forward.15} parent=35 // pred_check
        %p343 = pneg %p342
      $region42: #{generator_forward.15} parent=35 // pred_check_branch
        %345 = sbr.rel (%p343) target = $region44
      $region43: #{generator_forward.15} parent=35 // pred_region
        %v346 = vld [vmem:[#allocation2] sm:$0xff]
        %v347 = vld [vmem:[#allocation2 + $0x8] sm:$0xff]
        %v348 = vld [vmem:[#allocation2 + $0x10] sm:$0xff]
        %v349 = vld [vmem:[#allocation2 + $0x18] sm:$0xff]
        %v350 = vld [vmem:[%s241] sm:$0xf]
        %v351 = vld [vmem:[%s241 + $0x4] sm:$0xf]
        %v352 = vld [vmem:[%s241 + $0x8] sm:$0xf]
        %v353 = vld [vmem:[%s241 + $0xc] sm:$0xf]
        %v354 = vld [vmem:[%s3] sm:$0xf]
        %v355 = vld [vmem:[%s3 + $0x4] sm:$0xf]
        %v356 = vld [vmem:[%s3 + $0x8] sm:$0xf]
        %v357 = vld [vmem:[%s3 + $0xc] sm:$0xf]
        %v358 = vld [vmem:[%s3 + $0x10] sm:$0xf]
        %v359 = vld [vmem:[%s3 + $0x14] sm:$0xf]
        %v360 = vld [vmem:[%s3 + $0x18] sm:$0xf]
        %v361 = vld [vmem:[%s3 + $0x1c] sm:$0xf]
        %v366 = vunpack.c.l.b16 %v350
        %v367 = vunpack.c.l.b16 %v351
        %v368 = vunpack.c.l.b16 %v352
        %v369 = vunpack.c.l.b16 %v353
        %v370 = vpack.c.b16 %v367, %v366
        %v371 = vpack.c.b16 %v369, %v368
        %v380 = vunpack.c.l.b16 %v354
        %v381 = vunpack.c.l.b16 %v355
        %v382 = vunpack.c.l.b16 %v356
        %v383 = vunpack.c.l.b16 %v357
        %v384 = vunpack.c.l.b16 %v358
        %v385 = vunpack.c.l.b16 %v359
        %v386 = vunpack.c.l.b16 %v360
        %v387 = vunpack.c.l.b16 %v361
        %v388 = vpack.c.b16 %v381, %v380
        %v389 = vpack.c.b16 %v383, %v382
        %v390 = vpack.c.b16 %v385, %v384
        %v391 = vpack.c.b16 %v387, %v386
        %v397 = vsel %vm308, %v370, 0
        %v400 = vsel %vm308, %v371, 0
        %402 = vmatpush.bf16.msra.mxu0 0
        %403 = vmatpush.bf16.msra.mxu0 0
        %404 = vmatpush.bf16.msra.mxu0 0
        %405 = vmatpush.bf16.msra.mxu0 0
        %406 = vmatpush.bf16.msra.mxu0 %v391
        %407 = vmatpush.bf16.msra.mxu0 %v390
        %408 = vmatpush.bf16.msra.mxu0 %v389
        %409 = vmatpush.bf16.msra.mxu0 %v388
        %410 = vmatmul.bf16.gmra.mxu0 %v397
        %v411 = vpop.f32.mrf.mxu0
        %v412 = vadd.f32 0.0, %v411
        %v413 = vpop.f32.mrf.mxu0
        %v414 = vadd.f32 0.0, %v413
        %415 = vmatmul.bf16.gmra.mxu0 %v400
        %v416 = vpop.f32.mrf.mxu0
        %v417 = vadd.f32 0.0, %v416
        %v418 = vpop.f32.mrf.mxu0
        %v419 = vadd.f32 0.0, %v418
        %420 = vdwg.mxu0
        %v421 = vadd.f32 %v346, %v412
        %v422 = vadd.f32 %v347, %v414
        %v423 = vadd.f32 %v348, %v417
        %v424 = vadd.f32 %v349, %v419
        %vm425 = vcmp.ge.f32.partialorder %v421, 0.0
        %vm426 = vcmp.ge.f32.partialorder %v422, 0.0
        %vm427 = vcmp.ge.f32.partialorder %v423, 0.0
        %vm428 = vcmp.ge.f32.partialorder %v424, 0.0
        %v429 = vmul.f32 %v421, 0.2
        %v430 = vmul.f32 %v422, 0.2
        %v431 = vmul.f32 %v423, 0.2
        %v432 = vmul.f32 %v424, 0.2
        %v433 = vsel %vm425, %v421, %v429
        %v434 = vsel %vm426, %v422, %v430
        %v435 = vsel %vm427, %v423, %v431
        %v436 = vsel %vm428, %v424, %v432
        %v437 = vpack.c.bf16 %v433, %v433
        %v438 = vpack.c.bf16 %v434, %v434
        %v439 = vpack.c.bf16 %v435, %v435
        %v440 = vpack.c.bf16 %v436, %v436
        %441 = vst [vmem:[%s247] sm:$0xf] %v437
        %442 = vst [vmem:[%s247 + $0x4] sm:$0xf] %v438
        %443 = vst [vmem:[%s247 + $0x8] sm:$0xf] %v439
        %444 = vst [vmem:[%s247 + $0xc] sm:$0xf] %v440
      $region44: #{generator_forward.15} parent=35 // pred_fallthru
        _
      %s445 = smul.u32 4, %s19
      %p446 = scmp.lt.s32.totalorder %s445, 3
      %s447 = scalar_select %p446, %s445, 3
      %s448 = smul.addr %s447, 4
      %s449 = scalar_lea.vmem %s4, %s448
      // Predicated region
      $region45: #{generator_forward.15} parent=35 // pred_check
        %p450 = pneg %p141
      $region46: #{generator_forward.15} parent=35 // pred_check_branch
        %452 = sbr.rel (%p450) target = $region48
      $region47: #{generator_forward.15} parent=35 // pred_region
        %s453 = smul.u32 4, %s19
      $region48: #{generator_forward.15} parent=35 // pred_fallthru
        _
      // Predicated region
      $region49: #{generator_forward.15} parent=35 // pred_check
        %p454 = pneg %p141
      $region50: #{generator_forward.15} parent=35 // pred_check_branch
        %456 = sbr.rel (%p454) target = $region52
      $region51: #{generator_forward.15} parent=35 // pred_region
        %s457 = smul.u32 4, %s19
        %p458 = scmp.lt.s32.totalorder %s457, 3
        %s459 = scalar_select %p458, %s457, 3
        %s460 = smul.addr %s459, 4
        %s461 = scalar_lea.vmem %s4, %s460
      $region52: #{generator_forward.15} parent=35 // pred_fallthru
        _
    $region36: #{generator_forward.15} parent=5 // pred_fallthru
      _
    %p462 = scmp.le.s32.totalorder 2, %s10
    // Predicated region
    $region53: #{generator_forward.15} parent=5 // pred_check
      %p463 = pneg %p462
    $region54: #{generator_forward.15} parent=5 // pred_check_branch
      %465 = sbr.rel (%p463) target = $region56
    $region55: #{generator_forward.15} parent=5 // pred_region
      %s466 = ssub.s32 %s10, 2
    $region56: #{generator_forward.15} parent=5 // pred_fallthru
      _
  $region6: #{generator_forward.15} parent=0 // loop_footer
    %s14 = sadd.s32 1, %s10
  $region7: #{generator_forward.15} parent=0 // loop_footer_branch
    %9 = sbr.rel target = $region3
  $region8: #{generator_forward.15} parent=0 // loop_exit
    _

// kernel: generator_forward.17
$region0: #{generator_forward.17}
  #allocation0 [shape = 'u32[]', space=smem, size = 0x4, offset = 0x4, fixed_abs, tag = 'smem constant byte address 0x4 - core index']
  #allocation1 [shape = 'u32[72,128]{1,0:T(1,128)}', space=vmem, size = 0x9000, scoped, tag = 'internal scratch']
  #allocation2 [shape = 'f32[32,256]{1,0:T(8,128)}', space=vmem, size = 0x8000, scoped, tag = 'scratch operand']
  %s0 = inlined_call_operand.vmem [shape: bf16[8,32,128], index: 0, kind: input, shape index: {}]
  %s1 = inlined_call_operand.vmem [shape: bf16[32,128], index: 1, kind: input, shape index: {}]
  %s2 = inlined_call_operand.vmem [shape: bf16[128,256], index: 2, kind: input, shape index: {}]
  %s3 = inlined_call_operand.vmem [shape: bf16[128,256], index: 3, kind: input, shape index: {}]
  %s4 = inlined_call_operand.vmem [shape: bf16[32,256], index: 4, kind: output, shape index: {}]
  %s5 = sld [smem:[#allocation0]]
  $region57: #{generator_forward.17} parent=0
    _
  %s7 = ssub.s32 1, %s5
  %s8 = scalar_select 0, %s7, %s5
  loop: start=0, step=1, limit=10
  $region2: #{generator_forward.17} parent=0 // loop_pre_header
    _
  $region3: #{generator_forward.17} parent=0 // loop_header
    %s10 = sphi 0, %s14
    %p11 = scmp.ge.s32.totalorder %s10, 10
    %s17 = sphi 0, %s29
    %s18 = sphi 0, %s25
    %s19 = sphi 0, %s17
    %s20 = sphi 0, %s18
    %s21 = sphi 0, %s19
    %s22 = sphi 0, %s20
    %s34 = sphi 0, %s36
    %s37 = sphi 0, %s34
    %s38 = sphi 0, %s37
    %s54 = sphi 0, %s38
    %s60 = sphi 0, %s62
    %s63 = sphi 0, %s60
    %s64 = sphi 0, %s63
    %s80 = sphi 0, %s64
    %s84 = sphi 0, %s84
    %s86 = sphi 0, %s84
    %s87 = sphi 0, %s86
    %s101 = sphi 0, %s87
    %s105 = sphi 0, %s105
    %s107 = sphi 0, %s105
    %s108 = sphi 0, %s107
    %s122 = sphi 0, %s108
    %s128 = sphi 0, %s130
    %s131 = sphi 0, %s128
    %s132 = sphi 0, %s131
    %s148 = sphi 0, %s132
  $region4: #{generator_forward.17} parent=0 // loop_header_branch
    %13 = sbr.rel (%p11) target = $region8
  $region5: #{generator_forward.17} parent=0 // loop_body
    %s15 = ssub.s32 %s10, 1
    %s16 = ssub.s32 %s10, 2
    %s23 = sadd.s32 1, %s18
    %p24 = scmp.ge.s32.totalorder %s23, 8
    %s25 = scalar_select %p24, 0, %s23
    %s26 = sadd.s32 1, %s17
    %s27 = scalar_select %p24, %s26, %s17
    %p28 = scmp.ge.s32.totalorder %s27, 1
    %s29 = scalar_select %p28, 0, %s27
    %s30 = ssub.s32 %s18, %s25
    %s31 = ssub.s32 %s17, %s29
    %s32 = sor.u32 %s30, %s31
    %p33 = scmp.eq.s32.totalorder %s32, 0
    %s35 = sadd.s32 %s34, 1
    %s36 = scalar_select %p33, %s34, %s35
    %p39 = pneg %p33
    %p40 = scmp.eq.s32.totalorder %s10, 7
    %p41 = por %p39, %p40
    %p42 = scmp.ne.s32.totalorder %s34, %s37
    %p43 = scmp.eq.s32.totalorder %s10, 0
    %p44 = por %p42, %p43
    %p45 = scmp.ne.s32.totalorder %s34, %s37
    %p46 = scmp.eq.s32.totalorder %s15, 7
    %p47 = por %p45, %p46
    %p48 = scmp.ne.s32.totalorder %s37, %s38
    %p49 = scmp.eq.s32.totalorder %s15, 0
    %p50 = por %p48, %p49
    %p51 = scmp.ne.s32.totalorder %s37, %s38
    %p52 = scmp.eq.s32.totalorder %s16, 7
    %p53 = por %p51, %p52
    %p55 = scmp.ne.s32.totalorder %s38, %s54
    %p56 = scmp.eq.s32.totalorder %s16, 0
    %p57 = por %p55, %p56
    %s58 = ssub.s32 %s17, %s29
    %p59 = scmp.eq.s32.totalorder %s58, 0
    %s61 = sadd.s32 %s60, 1
    %s62 = scalar_select %p59, %s60, %s61
    %p65 = pneg %p59
    %p66 = scmp.eq.s32.totalorder %s10, 7
    %p67 = por %p65, %p66
    %p68 = scmp.ne.s32.totalorder %s60, %s63
    %p69 = scmp.eq.s32.totalorder %s10, 0
    %p70 = por %p68, %p69
    %p71 = scmp.ne.s32.totalorder %s60, %s63
    %p72 = scmp.eq.s32.totalorder %s15, 7
    %p73 = por %p71, %p72
    %p74 = scmp.ne.s32.totalorder %s63, %s64
    %p75 = scmp.eq.s32.totalorder %s15, 0
    %p76 = por %p74, %p75
    %p77 = scmp.ne.s32.totalorder %s63, %s64
    %p78 = scmp.eq.s32.totalorder %s16, 7
    %p79 = por %p77, %p78
    %p81 = scmp.ne.s32.totalorder %s64, %s80
    %p82 = scmp.eq.s32.totalorder %s16, 0
    %p83 = por %p81, %p82
    %s85 = sadd.s32 %s84, 1
    %p88 = scmp.eq.s32.totalorder %s10, 7
    %p89 = scmp.ne.s32.totalorder %s84, %s86
    %p90 = scmp.eq.s32.totalorder %s10, 0
    %p91 = por %p89, %p90
    %p92 = scmp.ne.s32.totalorder %s84, %s86
    %p93 = scmp.eq.s32.totalorder %s15, 7
    %p94 = por %p92, %p93
    %p95 = scmp.ne.s32.totalorder %s86, %s87
    %p96 = scmp.eq.s32.totalorder %s15, 0
    %p97 = por %p95, %p96
    %p98 = scmp.ne.s32.totalorder %s86, %s87
    %p99 = scmp.eq.s32.totalorder %s16, 7
    %p100 = por %p98, %p99
    %p102 = scmp.ne.s32.totalorder %s87, %s101
    %p103 = scmp.eq.s32.totalorder %s16, 0
    %p104 = por %p102, %p103
    %s106 = sadd.s32 %s105, 1
    %p109 = scmp.eq.s32.totalorder %s10, 7
    %p110 = scmp.ne.s32.totalorder %s105, %s107
    %p111 = scmp.eq.s32.totalorder %s10, 0
    %p112 = por %p110, %p111
    %p113 = scmp.ne.s32.totalorder %s105, %s107
    %p114 = scmp.eq.s32.totalorder %s15, 7
    %p115 = por %p113, %p114
    %p116 = scmp.ne.s32.totalorder %s107, %s108
    %p117 = scmp.eq.s32.totalorder %s15, 0
    %p118 = por %p116, %p117
    %p119 = scmp.ne.s32.totalorder %s107, %s108
    %p120 = scmp.eq.s32.totalorder %s16, 7
    %p121 = por %p119, %p120
    %p123 = scmp.ne.s32.totalorder %s108, %s122
    %p124 = scmp.eq.s32.totalorder %s16, 0
    %p125 = por %p123, %p124
    %s126 = ssub.s32 %s17, %s29
    %p127 = scmp.eq.s32.totalorder %s126, 0
    %s129 = sadd.s32 %s128, 1
    %s130 = scalar_select %p127, %s128, %s129
    %p133 = pneg %p127
    %p134 = scmp.eq.s32.totalorder %s10, 7
    %p135 = por %p133, %p134
    %p136 = scmp.ne.s32.totalorder %s128, %s131
    %p137 = scmp.eq.s32.totalorder %s10, 0
    %p138 = por %p136, %p137
    %p139 = scmp.ne.s32.totalorder %s128, %s131
    %p140 = scmp.eq.s32.totalorder %s15, 7
    %p141 = por %p139, %p140
    %p142 = scmp.ne.s32.totalorder %s131, %s132
    %p143 = scmp.eq.s32.totalorder %s15, 0
    %p144 = por %p142, %p143
    %p145 = scmp.ne.s32.totalorder %s131, %s132
    %p146 = scmp.eq.s32.totalorder %s16, 7
    %p147 = por %p145, %p146
    %p149 = scmp.ne.s32.totalorder %s132, %s148
    %p150 = scmp.eq.s32.totalorder %s16, 0
    %p151 = por %p149, %p150
    %p152 = scmp.le.s32.totalorder 1, %s10
    %p153 = scmp.lt.s32.totalorder %s10, 9
    %p154 = pnand %p152, %p153
    %p155 = pneg %p154
    // Predicated region
    $region9: #{generator_forward.17} parent=5 // pred_check
      _
    $region10: #{generator_forward.17} parent=5 // pred_check_branch
      %157 = sbr.rel (%p154) target = $region12
    $region11: #{generator_forward.17} parent=5 // pred_region
      %s158 = ssub.s32 %s10, 1
      // Predicated region
      $region13: #{generator_forward.17} parent=11 // pred_check
        %p159 = pneg %p76
      $region14: #{generator_forward.17} parent=11 // pred_check_branch
        %161 = sbr.rel (%p159) target = $region16
      $region15: #{generator_forward.17} parent=11 // pred_region
        %s162 = smul.u32 4, %s19
        %p163 = scmp.lt.s32.totalorder %s162, 3
        %s164 = scalar_select %p163, %s162, 3
        %s165 = smul.addr %s164, 4
        %s166 = scalar_lea.vmem %s1, %s165
        %s167 = smul.u32 4, %s19
      $region16: #{generator_forward.17} parent=11 // pred_fallthru
        _
      // Predicated region
      $region17: #{generator_forward.17} parent=11 // pred_check
        %p168 = pneg %p97
      $region18: #{generator_forward.17} parent=11 // pred_check_branch
        %170 = sbr.rel (%p168) target = $region20
      $region19: #{generator_forward.17} parent=11 // pred_region
        _
      $region20: #{generator_forward.17} parent=11 // pred_fallthru
        _
      // Predicated region
      $region21: #{generator_forward.17} parent=11 // pred_check
        %p171 = pneg %p118
      $region22: #{generator_forward.17} parent=11 // pred_check_branch
        %173 = sbr.rel (%p171) target = $region24
      $region23: #{generator_forward.17} parent=11 // pred_region
        _
      $region24: #{generator_forward.17} parent=11 // pred_fallthru
        _
    $region12: #{generator_forward.17} parent=5 // pred_fallthru
      _
    %p174 = scmp.lt.s32.totalorder %s10, 8
    // Predicated region
    $region25: #{generator_forward.17} parent=5 // pred_check
      %p175 = pneg %p174
    $region26: #{generator_forward.17} parent=5 // pred_check_branch
      %177 = sbr.rel (%p175) target = $region28
    $region27: #{generator_forward.17} parent=5 // pred_region
      // Predicated region
      $region29: #{generator_forward.17} parent=27 // pred_check
        %p178 = pneg %p44
      $region30: #{generator_forward.17} parent=27 // pred_check_branch
        %180 = sbr.rel (%p178) target = $region32
      $region31: #{generator_forward.17} parent=27 // pred_region
        %s181 = smul.u32 4, %s17
        %p182 = scmp.lt.s32.totalorder %s18, 7
        %s183 = scalar_select %p182, %s18, 7
        %p184 = scmp.lt.s32.totalorder %s181, 3
        %s185 = scalar_select %p184, %s181, 3
        %s186 = smul.addr %s183, 4
        %s187 = sadd.s32 %s185, %s186
        %s188 = smul.addr %s187, 4
        %s189 = scalar_lea.vmem %s0, %s188
        %s190 = smul.u32 4, %s17
      $region32: #{generator_forward.17} parent=27 // pred_fallthru
        _
    $region28: #{generator_forward.17} parent=5 // pred_fallthru
      _
    %p191 = scmp.le.s32.totalorder 1, %s10
    %p192 = scmp.lt.s32.totalorder %s10, 9
    %p193 = pnand %p191, %p192
    %p194 = pneg %p193
    // Predicated region
    $region33: #{generator_forward.17} parent=5 // pred_check
      _
    $region34: #{generator_forward.17} parent=5 // pred_check_branch
      %196 = sbr.rel (%p193) target = $region36
    $region35: #{generator_forward.17} parent=5 // pred_region
      %s197 = ssub.s32 %s10, 1
      %s198 = smul.u32 4, %s19
      %p199 = scmp.lt.s32.totalorder %s20, 7
      %s200 = scalar_select %p199, %s20, 7
      %p201 = scmp.lt.s32.totalorder %s198, 3
      %s202 = scalar_select %p201, %s198, 3
      %s203 = smul.addr %s200, 4
      %s204 = sadd.s32 %s202, %s203
      %s205 = smul.addr %s204, 4
      %s206 = scalar_lea.vmem %s0, %s205
      %p207 = pneg %p50
      %p208 = pneg %p47
      %s209 = smul.u32 4, %s19
      %p210 = scmp.lt.s32.totalorder %s209, 3
      %s211 = scalar_select %p210, %s209, 3
      %s212 = smul.addr %s211, 4
      %s213 = scalar_lea.vmem %s1, %s212
      %p214 = pneg %p76
      %p215 = pneg %p73
      %p216 = pneg %p97
      %p217 = pneg %p94
      %p218 = pneg %p118
      %p219 = pneg %p115
      %p220 = pneg %p144
      %p221 = pneg %p141
      %s222 = smul.u32 4, %s19
      %p223 = scmp.lt.s32.totalorder %s222, 3
      %s224 = scalar_select %p223, %s222, 3
      %s225 = smul.addr %s224, 2
      %s226 = smul.addr %s225, 4
      %s227 = scalar_lea.vmem %s4, %s226
      %s228 = smul.u32 4, %s19
      %p229 = scmp.lt.s32.totalorder %s20, 7
      %s230 = scalar_select %p229, %s20, 7
      %p231 = scmp.lt.s32.totalorder %s228, 3
      %s232 = scalar_select %p231, %s228, 3
      %s233 = smul.addr %s230, 4
      %s234 = sadd.s32 %s232, %s233
      %s235 = smul.addr %s234, 4
      %s236 = scalar_lea.vmem %s0, %s235
      %s237 = smul.u32 4, %s19
      %s238 = smul.u32 4, %s19
      %p239 = scmp.lt.s32.totalorder %s238, 3
      %s240 = scalar_select %p239, %s238, 3
      %s241 = smul.addr %s240, 4
      %s242 = scalar_lea.vmem %s1, %s241
      %s243 = smul.u32 4, %s19
      %s244 = smul.u32 4, %s19
      %p245 = scmp.lt.s32.totalorder %s244, 3
      %s246 = scalar_select %p245, %s244, 3
      %s247 = smul.addr %s246, 2
      %s248 = smul.addr %s247, 4
      %s249 = scalar_lea.vmem %s4, %s248
      %s250 = smul.u32 4, %s19
      %p251 = scmp.eq.s32.totalorder %s20, 0
      // Predicated region
      $region37: #{generator_forward.17} parent=35 // pred_check
        %p252 = pneg %p251
      $region38: #{generator_forward.17} parent=35 // pred_check_branch
        %254 = sbr.rel (%p252) target = $region40
      $region39: #{generator_forward.17} parent=35 // pred_region
        %255 = vst [vmem:[#allocation2] sm:$0xff] -inf
        %256 = vst [vmem:[#allocation2 + $0x8] sm:$0xff] -inf
        %257 = vst [vmem:[#allocation2 + $0x10] sm:$0xff] -inf
        %258 = vst [vmem:[#allocation2 + $0x18] sm:$0xff] -inf
        %259 = vst [vmem:[#allocation2 + $0x20] sm:$0xff] -inf
        %260 = vst [vmem:[#allocation2 + $0x28] sm:$0xff] -inf
        %261 = vst [vmem:[#allocation2 + $0x30] sm:$0xff] -inf
        %262 = vst [vmem:[#allocation2 + $0x38] sm:$0xff] -inf
      $region40: #{generator_forward.17} parent=35 // pred_fallthru
        _
      %v263 = vld [vmem:[#allocation2] sm:$0xff]
      %v264 = vld [vmem:[#allocation2 + $0x8] sm:$0xff]
      %v265 = vld [vmem:[#allocation2 + $0x10] sm:$0xff]
      %v266 = vld [vmem:[#allocation2 + $0x18] sm:$0xff]
      %v267 = vld [vmem:[#allocation2 + $0x20] sm:$0xff]
      %v268 = vld [vmem:[#allocation2 + $0x28] sm:$0xff]
      %v269 = vld [vmem:[#allocation2 + $0x30] sm:$0xff]
      %v270 = vld [vmem:[#allocation2 + $0x38] sm:$0xff]
      %v271 = vld [vmem:[%s236] sm:$0xf]
      %v272 = vld [vmem:[%s236 + $0x4] sm:$0xf]
      %v273 = vld [vmem:[%s236 + $0x8] sm:$0xf]
      %v274 = vld [vmem:[%s236 + $0xc] sm:$0xf]
      %v275 = vld [vmem:[%s2] sm:$0xff]
      %v276 = vld [vmem:[%s2 + $0x8] sm:$0xff]
      %v277 = vld [vmem:[%s2 + $0x10] sm:$0xff]
      %v278 = vld [vmem:[%s2 + $0x18] sm:$0xff]
      %v279 = vld [vmem:[%s2 + $0x20] sm:$0xff]
      %v280 = vld [vmem:[%s2 + $0x28] sm:$0xff]
      %v281 = vld [vmem:[%s2 + $0x30] sm:$0xff]
      %v282 = vld [vmem:[%s2 + $0x38] sm:$0xff]
      %v283 = vld [vmem:[%s2 + $0x40] sm:$0xff]
      %v284 = vld [vmem:[%s2 + $0x48] sm:$0xff]
      %v285 = vld [vmem:[%s2 + $0x50] sm:$0xff]
      %v286 = vld [vmem:[%s2 + $0x58] sm:$0xff]
      %v287 = vld [vmem:[%s2 + $0x60] sm:$0xff]
      %v288 = vld [vmem:[%s2 + $0x68] sm:$0xff]
      %v289 = vld [vmem:[%s2 + $0x70] sm:$0xff]
      %v290 = vld [vmem:[%s2 + $0x78] sm:$0xff]
      %v295 = vunpack.c.l.b16 %v271
      %v296 = vunpack.c.l.b16 %v272
      %v297 = vunpack.c.l.b16 %v273
      %v298 = vunpack.c.l.b16 %v274
      %v299 = vpack.c.b16 %v296, %v295
      %v300 = vpack.c.b16 %v298, %v297
      %v319 = vunpack.c.l.b16 %v275
      %v320 = vunpack.c.h.b16 %v275
      %v321 = vunpack.c.l.b16 %v276
      %v322 = vunpack.c.h.b16 %v276
      %v323 = vunpack.c.l.b16 %v277
      %v324 = vunpack.c.h.b16 %v277
      %v325 = vunpack.c.l.b16 %v278
      %v326 = vunpack.c.h.b16 %v278
      %v327 = vunpack.c.l.b16 %v279
      %v328 = vunpack.c.h.b16 %v279
      %v329 = vunpack.c.l.b16 %v280
      %v330 = vunpack.c.h.b16 %v280
      %v331 = vunpack.c.l.b16 %v281
      %v332 = vunpack.c.h.b16 %v281
      %v333 = vunpack.c.l.b16 %v282
      %v334 = vunpack.c.h.b16 %v282
      %v335 = vunpack.c.l.b16 %v283
      %v336 = vunpack.c.h.b16 %v283
      %v337 = vunpack.c.l.b16 %v284
      %v338 = vunpack.c.h.b16 %v284
      %v339 = vunpack.c.l.b16 %v285
      %v340 = vunpack.c.h.b16 %v285
      %v341 = vunpack.c.l.b16 %v286
      %v342 = vunpack.c.h.b16 %v286
      %v343 = vunpack.c.l.b16 %v287
      %v344 = vunpack.c.h.b16 %v287
      %v345 = vunpack.c.l.b16 %v288
      %v346 = vunpack.c.h.b16 %v288
      %v347 = vunpack.c.l.b16 %v289
      %v348 = vunpack.c.h.b16 %v289
      %v349 = vunpack.c.l.b16 %v290
      %v350 = vunpack.c.h.b16 %v290
      %v351 = vpack.c.b16 %v321, %v319
      %v352 = vpack.c.b16 %v322, %v320
      %v353 = vpack.c.b16 %v325, %v323
      %v354 = vpack.c.b16 %v326, %v324
      %v355 = vpack.c.b16 %v329, %v327
      %v356 = vpack.c.b16 %v330, %v328
      %v357 = vpack.c.b16 %v333, %v331
      %v358 = vpack.c.b16 %v334, %v332
      %v359 = vpack.c.b16 %v337, %v335
      %v360 = vpack.c.b16 %v338, %v336
      %v361 = vpack.c.b16 %v341, %v339
      %v362 = vpack.c.b16 %v342, %v340
      %v363 = vpack.c.b16 %v345, %v343
      %v364 = vpack.c.b16 %v346, %v344
      %v365 = vpack.c.b16 %v349, %v347
      %v366 = vpack.c.b16 %v350, %v348
      %383 = vmatpush.bf16.msra.mxu0 %v365
      %384 = vmatpush.bf16.msra.mxu0 %v363
      %385 = vmatpush.bf16.msra.mxu0 %v361
      %386 = vmatpush.bf16.msra.mxu0 %v359
      %387 = vmatpush.bf16.msra.mxu0 %v357
      %388 = vmatpush.bf16.msra.mxu0 %v355
      %389 = vmatpush.bf16.msra.mxu0 %v353
      %390 = vmatpush.bf16.msra.mxu0 %v351
      %391 = vmatmul.bf16.gmra.mxu0 %v299
      %v392 = vpop.f32.mrf.mxu0
      %v393 = vadd.f32 0.0, %v392
      %v394 = vpop.f32.mrf.mxu0
      %v395 = vadd.f32 0.0, %v394
      %396 = vmatmul.bf16.gmra.mxu0 %v300
      %v397 = vpop.f32.mrf.mxu0
      %v398 = vadd.f32 0.0, %v397
      %v399 = vpop.f32.mrf.mxu0
      %v400 = vadd.f32 0.0, %v399
      %401 = vdwg.mxu0
      %402 = vmatpush.bf16.msra.mxu0 %v366
      %403 = vmatpush.bf16.msra.mxu0 %v364
      %404 = vmatpush.bf16.msra.mxu0 %v362
      %405 = vmatpush.bf16.msra.mxu0 %v360
      %406 = vmatpush.bf16.msra.mxu0 %v358
      %407 = vmatpush.bf16.msra.mxu0 %v356
      %408 = vmatpush.bf16.msra.mxu0 %v354
      %409 = vmatpush.bf16.msra.mxu0 %v352
      %410 = vmatmul.bf16.gmra.mxu0 %v299
      %v411 = vpop.f32.mrf.mxu0
      %v412 = vadd.f32 0.0, %v411
      %v413 = vpop.f32.mrf.mxu0
      %v414 = vadd.f32 0.0, %v413
      %415 = vmatmul.bf16.gmra.mxu0 %v300
      %v416 = vpop.f32.mrf.mxu0
      %v417 = vadd.f32 0.0, %v416
      %v418 = vpop.f32.mrf.mxu0
      %v419 = vadd.f32 0.0, %v418
      %420 = vdwg.mxu0
      %v421 = vmax.f32 %v263, %v393
      %v422 = vmax.f32 %v264, %v412
      %v423 = vmax.f32 %v265, %v395
      %v424 = vmax.f32 %v266, %v414
      %v425 = vmax.f32 %v267, %v398
      %v426 = vmax.f32 %v268, %v417
      %v427 = vmax.f32 %v269, %v400
      %v428 = vmax.f32 %v270, %v419
      %429 = vst [vmem:[#allocation2] sm:$0xff] %v421
      %430 = vst [vmem:[#allocation2 + $0x8] sm:$0xff] %v422
      %431 = vst [vmem:[#allocation2 + $0x10] sm:$0xff] %v423
      %432 = vst [vmem:[#allocation2 + $0x18] sm:$0xff] %v424
      %433 = vst [vmem:[#allocation2 + $0x20] sm:$0xff] %v425
      %434 = vst [vmem:[#allocation2 + $0x28] sm:$0xff] %v426
      %435 = vst [vmem:[#allocation2 + $0x30] sm:$0xff] %v427
      %436 = vst [vmem:[#allocation2 + $0x38] sm:$0xff] %v428
      %p437 = scmp.eq.s32.totalorder %s20, 7
      // Predicated region
      $region41: #{generator_forward.17} parent=35 // pred_check
        %p438 = pneg %p437
      $region42: #{generator_forward.17} parent=35 // pred_check_branch
        %440 = sbr.rel (%p438) target = $region44
      $region43: #{generator_forward.17} parent=35 // pred_region
        %v441 = vld [vmem:[#allocation2] sm:$0xff]
        %v442 = vld [vmem:[#allocation2 + $0x8] sm:$0xff]
        %v443 = vld [vmem:[#allocation2 + $0x10] sm:$0xff]
        %v444 = vld [vmem:[#allocation2 + $0x18] sm:$0xff]
        %v445 = vld [vmem:[#allocation2 + $0x20] sm:$0xff]
        %v446 = vld [vmem:[#allocation2 + $0x28] sm:$0xff]
        %v447 = vld [vmem:[#allocation2 + $0x30] sm:$0xff]
        %v448 = vld [vmem:[#allocation2 + $0x38] sm:$0xff]
        %v449 = vld [vmem:[%s242] sm:$0xf]
        %v450 = vld [vmem:[%s242 + $0x4] sm:$0xf]
        %v451 = vld [vmem:[%s242 + $0x8] sm:$0xf]
        %v452 = vld [vmem:[%s242 + $0xc] sm:$0xf]
        %v453 = vld [vmem:[%s3] sm:$0xff]
        %v454 = vld [vmem:[%s3 + $0x8] sm:$0xff]
        %v455 = vld [vmem:[%s3 + $0x10] sm:$0xff]
        %v456 = vld [vmem:[%s3 + $0x18] sm:$0xff]
        %v457 = vld [vmem:[%s3 + $0x20] sm:$0xff]
        %v458 = vld [vmem:[%s3 + $0x28] sm:$0xff]
        %v459 = vld [vmem:[%s3 + $0x30] sm:$0xff]
        %v460 = vld [vmem:[%s3 + $0x38] sm:$0xff]
        %v461 = vld [vmem:[%s3 + $0x40] sm:$0xff]
        %v462 = vld [vmem:[%s3 + $0x48] sm:$0xff]
        %v463 = vld [vmem:[%s3 + $0x50] sm:$0xff]
        %v464 = vld [vmem:[%s3 + $0x58] sm:$0xff]
        %v465 = vld [vmem:[%s3 + $0x60] sm:$0xff]
        %v466 = vld [vmem:[%s3 + $0x68] sm:$0xff]
        %v467 = vld [vmem:[%s3 + $0x70] sm:$0xff]
        %v468 = vld [vmem:[%s3 + $0x78] sm:$0xff]
        %v473 = vunpack.c.l.b16 %v449
        %v474 = vunpack.c.l.b16 %v450
        %v475 = vunpack.c.l.b16 %v451
        %v476 = vunpack.c.l.b16 %v452
        %v477 = vpack.c.b16 %v474, %v473
        %v478 = vpack.c.b16 %v476, %v475
        %v497 = vunpack.c.l.b16 %v453
        %v498 = vunpack.c.h.b16 %v453
        %v499 = vunpack.c.l.b16 %v454
        %v500 = vunpack.c.h.b16 %v454
        %v501 = vunpack.c.l.b16 %v455
        %v502 = vunpack.c.h.b16 %v455
        %v503 = vunpack.c.l.b16 %v456
        %v504 = vunpack.c.h.b16 %v456
        %v505 = vunpack.c.l.b16 %v457
        %v506 = vunpack.c.h.b16 %v457
        %v507 = vunpack.c.l.b16 %v458
        %v508 = vunpack.c.h.b16 %v458
        %v509 = vunpack.c.l.b16 %v459
        %v510 = vunpack.c.h.b16 %v459
        %v511 = vunpack.c.l.b16 %v460
        %v512 = vunpack.c.h.b16 %v460
        %v513 = vunpack.c.l.b16 %v461
        %v514 = vunpack.c.h.b16 %v461
        %v515 = vunpack.c.l.b16 %v462
        %v516 = vunpack.c.h.b16 %v462
        %v517 = vunpack.c.l.b16 %v463
        %v518 = vunpack.c.h.b16 %v463
        %v519 = vunpack.c.l.b16 %v464
        %v520 = vunpack.c.h.b16 %v464
        %v521 = vunpack.c.l.b16 %v465
        %v522 = vunpack.c.h.b16 %v465
        %v523 = vunpack.c.l.b16 %v466
        %v524 = vunpack.c.h.b16 %v466
        %v525 = vunpack.c.l.b16 %v467
        %v526 = vunpack.c.h.b16 %v467
        %v527 = vunpack.c.l.b16 %v468
        %v528 = vunpack.c.h.b16 %v468
        %v529 = vpack.c.b16 %v499, %v497
        %v530 = vpack.c.b16 %v500, %v498
        %v531 = vpack.c.b16 %v503, %v501
        %v532 = vpack.c.b16 %v504, %v502
        %v533 = vpack.c.b16 %v507, %v505
        %v534 = vpack.c.b16 %v508, %v506
        %v535 = vpack.c.b16 %v511, %v509
        %v536 = vpack.c.b16 %v512, %v510
        %v537 = vpack.c.b16 %v515, %v513
        %v538 = vpack.c.b16 %v516, %v514
        %v539 = vpack.c.b16 %v519, %v517
        %v540 = vpack.c.b16 %v520, %v518
        %v541 = vpack.c.b16 %v523, %v521
        %v542 = vpack.c.b16 %v524, %v522
        %v543 = vpack.c.b16 %v527, %v525
        %v544 = vpack.c.b16 %v528, %v526
        %561 = vmatpush.bf16.msra.mxu0 %v543
        %562 = vmatpush.bf16.msra.mxu0 %v541
        %563 = vmatpush.bf16.msra.mxu0 %v539
        %564 = vmatpush.bf16.msra.mxu0 %v537
        %565 = vmatpush.bf16.msra.mxu0 %v535
        %566 = vmatpush.bf16.msra.mxu0 %v533
        %567 = vmatpush.bf16.msra.mxu0 %v531
        %568 = vmatpush.bf16.msra.mxu0 %v529
        %569 = vmatmul.bf16.gmra.mxu0 %v477
        %v570 = vpop.f32.mrf.mxu0
        %v571 = vadd.f32 0.0, %v570
        %v572 = vpop.f32.mrf.mxu0
        %v573 = vadd.f32 0.0, %v572
        %574 = vmatmul.bf16.gmra.mxu0 %v478
        %v575 = vpop.f32.mrf.mxu0
        %v576 = vadd.f32 0.0, %v575
        %v577 = vpop.f32.mrf.mxu0
        %v578 = vadd.f32 0.0, %v577
        %579 = vdwg.mxu0
        %580 = vmatpush.bf16.msra.mxu0 %v544
        %581 = vmatpush.bf16.msra.mxu0 %v542
        %582 = vmatpush.bf16.msra.mxu0 %v540
        %583 = vmatpush.bf16.msra.mxu0 %v538
        %584 = vmatpush.bf16.msra.mxu0 %v536
        %585 = vmatpush.bf16.msra.mxu0 %v534
        %586 = vmatpush.bf16.msra.mxu0 %v532
        %587 = vmatpush.bf16.msra.mxu0 %v530
        %588 = vmatmul.bf16.gmra.mxu0 %v477
        %v589 = vpop.f32.mrf.mxu0
        %v590 = vadd.f32 0.0, %v589
        %v591 = vpop.f32.mrf.mxu0
        %v592 = vadd.f32 0.0, %v591
        %593 = vmatmul.bf16.gmra.mxu0 %v478
        %v594 = vpop.f32.mrf.mxu0
        %v595 = vadd.f32 0.0, %v594
        %v596 = vpop.f32.mrf.mxu0
        %v597 = vadd.f32 0.0, %v596
        %598 = vdwg.mxu0
        %v599 = vadd.f32 %v441, %v571
        %v600 = vadd.f32 %v442, %v590
        %v601 = vadd.f32 %v443, %v573
        %v602 = vadd.f32 %v444, %v592
        %v603 = vadd.f32 %v445, %v576
        %v604 = vadd.f32 %v446, %v595
        %v605 = vadd.f32 %v447, %v578
        %v606 = vadd.f32 %v448, %v597
        %vm607 = vcmp.ge.f32.partialorder %v599, 0.0
        %vm608 = vcmp.ge.f32.partialorder %v600, 0.0
        %vm609 = vcmp.ge.f32.partialorder %v601, 0.0
        %vm610 = vcmp.ge.f32.partialorder %v602, 0.0
        %vm611 = vcmp.ge.f32.partialorder %v603, 0.0
        %vm612 = vcmp.ge.f32.partialorder %v604, 0.0
        %vm613 = vcmp.ge.f32.partialorder %v605, 0.0
        %vm614 = vcmp.ge.f32.partialorder %v606, 0.0
        %v615 = vmul.f32 %v599, 0.2
        %v616 = vmul.f32 %v600, 0.2
        %v617 = vmul.f32 %v601, 0.2
        %v618 = vmul.f32 %v602, 0.2
        %v619 = vmul.f32 %v603, 0.2
        %v620 = vmul.f32 %v604, 0.2
        %v621 = vmul.f32 %v605, 0.2
        %v622 = vmul.f32 %v606, 0.2
        %v623 = vsel %vm607, %v599, %v615
        %v624 = vsel %vm608, %v600, %v616
        %v625 = vsel %vm609, %v601, %v617
        %v626 = vsel %vm610, %v602, %v618
        %v627 = vsel %vm611, %v603, %v619
        %v628 = vsel %vm612, %v604, %v620
        %v629 = vsel %vm613, %v605, %v621
        %v630 = vsel %vm614, %v606, %v622
        %v631 = vpack.c.bf16 %v624, %v623
        %v632 = vpack.c.bf16 %v626, %v625
        %v633 = vpack.c.bf16 %v628, %v627
        %v634 = vpack.c.bf16 %v630, %v629
        %635 = vst [vmem:[%s249] sm:$0xff] %v631
        %636 = vst [vmem:[%s249 + $0x8] sm:$0xff] %v632
        %637 = vst [vmem:[%s249 + $0x10] sm:$0xff] %v633
        %638 = vst [vmem:[%s249 + $0x18] sm:$0xff] %v634
      $region44: #{generator_forward.17} parent=35 // pred_fallthru
        _
      %s639 = smul.u32 4, %s19
      %p640 = scmp.lt.s32.totalorder %s639, 3
      %s641 = scalar_select %p640, %s639, 3
      %s642 = smul.addr %s641, 2
      %s643 = smul.addr %s642, 4
      %s644 = scalar_lea.vmem %s4, %s643
      // Predicated region
      $region45: #{generator_forward.17} parent=35 // pred_check
        %p645 = pneg %p141
      $region46: #{generator_forward.17} parent=35 // pred_check_branch
        %647 = sbr.rel (%p645) target = $region48
      $region47: #{generator_forward.17} parent=35 // pred_region
        %s648 = smul.u32 4, %s19
      $region48: #{generator_forward.17} parent=35 // pred_fallthru
        _
      // Predicated region
      $region49: #{generator_forward.17} parent=35 // pred_check
        %p649 = pneg %p141
      $region50: #{generator_forward.17} parent=35 // pred_check_branch
        %651 = sbr.rel (%p649) target = $region52
      $region51: #{generator_forward.17} parent=35 // pred_region
        %s652 = smul.u32 4, %s19
        %p653 = scmp.lt.s32.totalorder %s652, 3
        %s654 = scalar_select %p653, %s652, 3
        %s655 = smul.addr %s654, 2
        %s656 = smul.addr %s655, 4
        %s657 = scalar_lea.vmem %s4, %s656
      $region52: #{generator_forward.17} parent=35 // pred_fallthru
        _
    $region36: #{generator_forward.17} parent=5 // pred_fallthru
      _
    %p658 = scmp.le.s32.totalorder 2, %s10
    // Predicated region
    $region53: #{generator_forward.17} parent=5 // pred_check
      %p659 = pneg %p658
    $region54: #{generator_forward.17} parent=5 // pred_check_branch
      %661 = sbr.rel (%p659) target = $region56
    $region55: #{generator_forward.17} parent=5 // pred_region
      %s662 = ssub.s32 %s10, 2
    $region56: #{generator_forward.17} parent=5 // pred_fallthru
      _
  $region6: #{generator_forward.17} parent=0 // loop_footer
    %s14 = sadd.s32 1, %s10
  $region7: #{generator_forward.17} parent=0 // loop_footer_branch
    %9 = sbr.rel target = $region3
  $region8: #{generator_forward.17} parent=0 // loop_exit
    _

// kernel: generator_forward.18
$region0: #{generator_forward.18}
  #allocation0 [shape = 'u32[]', space=smem, size = 0x4, offset = 0x4, fixed_abs, tag = 'smem constant byte address 0x4 - core index']
  #allocation1 [shape = 'u32[72,128]{1,0:T(1,128)}', space=vmem, size = 0x9000, scoped, tag = 'internal scratch']
  #allocation2 [shape = 'f32[1,1024]{1,0:T(1,128)}', space=vmem, size = 0x1000, scoped, tag = 'scratch operand']
  %s0 = inlined_call_operand.vmem [shape: bf16[2,16,512], index: 0, kind: input, shape index: {}]
  %s1 = inlined_call_operand.vmem [shape: bf16[512,1024], index: 1, kind: input, shape index: {}]
  %s2 = inlined_call_operand.vmem [shape: f32[2,1,1024], index: 2, kind: output, shape index: {}]
  %s3 = sld [smem:[#allocation0]]
  $region49: #{generator_forward.18} parent=0
    _
  %s5 = ssub.s32 1, %s3
  %s6 = scalar_select 0, %s5, %s3
  loop: start=0, step=1, limit=4
  $region2: #{generator_forward.18} parent=0 // loop_pre_header
    _
  $region3: #{generator_forward.18} parent=0 // loop_header
    %s8 = sphi 0, %s12
    %p9 = scmp.ge.s32.totalorder %s8, 4
    %s15 = sphi 0, %s27
    %s16 = sphi 0, %s23
    %s17 = sphi 0, %s15
    %s18 = sphi 0, %s16
    %s19 = sphi 0, %s17
    %s20 = sphi 0, %s18
    %s32 = sphi 0, %s34
    %s35 = sphi 0, %s32
    %s36 = sphi 0, %s35
    %s52 = sphi 0, %s36
    %s56 = sphi 0, %s56
    %s58 = sphi 0, %s56
    %s59 = sphi 0, %s58
    %s73 = sphi 0, %s59
    %s79 = sphi 0, %s81
    %s82 = sphi 0, %s79
    %s83 = sphi 0, %s82
    %s99 = sphi 0, %s83
  $region4: #{generator_forward.18} parent=0 // loop_header_branch
    %11 = sbr.rel (%p9) target = $region8
  $region5: #{generator_forward.18} parent=0 // loop_body
    %s13 = ssub.s32 %s8, 1
    %s14 = ssub.s32 %s8, 2
    %s21 = sadd.s32 1, %s16
    %p22 = scmp.ge.s32.totalorder %s21, 1
    %s23 = scalar_select %p22, 0, %s21
    %s24 = sadd.s32 1, %s15
    %s25 = scalar_select %p22, %s24, %s15
    %p26 = scmp.ge.s32.totalorder %s25, 2
    %s27 = scalar_select %p26, 0, %s25
    %s28 = ssub.s32 %s15, %s27
    %s29 = ssub.s32 %s16, %s23
    %s30 = sor.u32 %s28, %s29
    %p31 = scmp.eq.s32.totalorder %s30, 0
    %s33 = sadd.s32 %s32, 1
    %s34 = scalar_select %p31, %s32, %s33
    %p37 = pneg %p31
    %p38 = scmp.eq.s32.totalorder %s8, 1
    %p39 = por %p37, %p38
    %p40 = scmp.ne.s32.totalorder %s32, %s35
    %p41 = scmp.eq.s32.totalorder %s8, 0
    %p42 = por %p40, %p41
    %p43 = scmp.ne.s32.totalorder %s32, %s35
    %p44 = scmp.eq.s32.totalorder %s13, 1
    %p45 = por %p43, %p44
    %p46 = scmp.ne.s32.totalorder %s35, %s36
    %p47 = scmp.eq.s32.totalorder %s13, 0
    %p48 = por %p46, %p47
    %p49 = scmp.ne.s32.totalorder %s35, %s36
    %p50 = scmp.eq.s32.totalorder %s14, 1
    %p51 = por %p49, %p50
    %p53 = scmp.ne.s32.totalorder %s36, %s52
    %p54 = scmp.eq.s32.totalorder %s14, 0
    %p55 = por %p53, %p54
    %s57 = sadd.s32 %s56, 1
    %p60 = scmp.eq.s32.totalorder %s8, 1
    %p61 = scmp.ne.s32.totalorder %s56, %s58
    %p62 = scmp.eq.s32.totalorder %s8, 0
    %p63 = por %p61, %p62
    %p64 = scmp.ne.s32.totalorder %s56, %s58
    %p65 = scmp.eq.s32.totalorder %s13, 1
    %p66 = por %p64, %p65
    %p67 = scmp.ne.s32.totalorder %s58, %s59
    %p68 = scmp.eq.s32.totalorder %s13, 0
    %p69 = por %p67, %p68
    %p70 = scmp.ne.s32.totalorder %s58, %s59
    %p71 = scmp.eq.s32.totalorder %s14, 1
    %p72 = por %p70, %p71
    %p74 = scmp.ne.s32.totalorder %s59, %s73
    %p75 = scmp.eq.s32.totalorder %s14, 0
    %p76 = por %p74, %p75
    %s77 = ssub.s32 %s15, %s27
    %p78 = scmp.eq.s32.totalorder %s77, 0
    %s80 = sadd.s32 %s79, 1
    %s81 = scalar_select %p78, %s79, %s80
    %p84 = pneg %p78
    %p85 = scmp.eq.s32.totalorder %s8, 1
    %p86 = por %p84, %p85
    %p87 = scmp.ne.s32.totalorder %s79, %s82
    %p88 = scmp.eq.s32.totalorder %s8, 0
    %p89 = por %p87, %p88
    %p90 = scmp.ne.s32.totalorder %s79, %s82
    %p91 = scmp.eq.s32.totalorder %s13, 1
    %p92 = por %p90, %p91
    %p93 = scmp.ne.s32.totalorder %s82, %s83
    %p94 = scmp.eq.s32.totalorder %s13, 0
    %p95 = por %p93, %p94
    %p96 = scmp.ne.s32.totalorder %s82, %s83
    %p97 = scmp.eq.s32.totalorder %s14, 1
    %p98 = por %p96, %p97
    %p100 = scmp.ne.s32.totalorder %s83, %s99
    %p101 = scmp.eq.s32.totalorder %s14, 0
    %p102 = por %p100, %p101
    %p103 = scmp.le.s32.totalorder 1, %s8
    %p104 = scmp.lt.s32.totalorder %s8, 3
    %p105 = pnand %p103, %p104
    %p106 = pneg %p105
    // Predicated region
    $region9: #{generator_forward.18} parent=5 // pred_check
      _
    $region10: #{generator_forward.18} parent=5 // pred_check_branch
      %108 = sbr.rel (%p105) target = $region12
    $region11: #{generator_forward.18} parent=5 // pred_region
      %s109 = ssub.s32 %s8, 1
      // Predicated region
      $region13: #{generator_forward.18} parent=11 // pred_check
        %p110 = pneg %p69
      $region14: #{generator_forward.18} parent=11 // pred_check_branch
        %112 = sbr.rel (%p110) target = $region16
      $region15: #{generator_forward.18} parent=11 // pred_region
        _
      $region16: #{generator_forward.18} parent=11 // pred_fallthru
        _
    $region12: #{generator_forward.18} parent=5 // pred_fallthru
      _
    %p113 = scmp.lt.s32.totalorder %s8, 2
    // Predicated region
    $region17: #{generator_forward.18} parent=5 // pred_check
      %p114 = pneg %p113
    $region18: #{generator_forward.18} parent=5 // pred_check_branch
      %116 = sbr.rel (%p114) target = $region20
    $region19: #{generator_forward.18} parent=5 // pred_region
      // Predicated region
      $region21: #{generator_forward.18} parent=19 // pred_check
        %p117 = pneg %p42
      $region22: #{generator_forward.18} parent=19 // pred_check_branch
        %119 = sbr.rel (%p117) target = $region24
      $region23: #{generator_forward.18} parent=19 // pred_region
        %s120 = smul.u32 2, %s16
        %p121 = scmp.lt.s32.totalorder %s15, 1
        %s122 = scalar_select %p121, %s15, 1
        %p123 = scmp.lt.s32.totalorder %s120, 1
        %s124 = scalar_select %p123, %s120, 1
        %s125 = smul.addr %s124, 4
        %s126 = smul.addr %s122, 8
        %s127 = sadd.s32 %s125, %s126
        %s128 = smul.addr %s127, 4
        %s129 = scalar_lea.vmem %s0, %s128
        %s130 = smul.u32 2, %s16
      $region24: #{generator_forward.18} parent=19 // pred_fallthru
        _
    $region20: #{generator_forward.18} parent=5 // pred_fallthru
      _
    %p131 = scmp.le.s32.totalorder 1, %s8
    %p132 = scmp.lt.s32.totalorder %s8, 3
    %p133 = pnand %p131, %p132
    %p134 = pneg %p133
    // Predicated region
    $region25: #{generator_forward.18} parent=5 // pred_check
      _
    $region26: #{generator_forward.18} parent=5 // pred_check_branch
      %136 = sbr.rel (%p133) target = $region28
    $region27: #{generator_forward.18} parent=5 // pred_region
      %s137 = ssub.s32 %s8, 1
      %s138 = smul.u32 2, %s18
      %p139 = scmp.lt.s32.totalorder %s17, 1
      %s140 = scalar_select %p139, %s17, 1
      %p141 = scmp.lt.s32.totalorder %s138, 1
      %s142 = scalar_select %p141, %s138, 1
      %s143 = smul.addr %s142, 4
      %s144 = smul.addr %s140, 8
      %s145 = sadd.s32 %s143, %s144
      %s146 = smul.addr %s145, 4
      %s147 = scalar_lea.vmem %s0, %s146
      %p148 = pneg %p48
      %p149 = pneg %p45
      %p150 = pneg %p69
      %p151 = pneg %p66
      %p152 = pneg %p95
      %p153 = pneg %p92
      %p154 = scmp.lt.s32.totalorder %s17, 1
      %s155 = scalar_select %p154, %s17, 1
      %s156 = smul.addr %s155, 8
      %s157 = scalar_lea.vmem %s2, %s156
      %s158 = smul.u32 2, %s18
      %p159 = scmp.lt.s32.totalorder %s17, 1
      %s160 = scalar_select %p159, %s17, 1
      %p161 = scmp.lt.s32.totalorder %s158, 1
      %s162 = scalar_select %p161, %s158, 1
      %s163 = smul.addr %s162, 4
      %s164 = smul.addr %s160, 8
      %s165 = sadd.s32 %s163, %s164
      %s166 = smul.addr %s165, 4
      %s167 = scalar_lea.vmem %s0, %s166
      %s168 = smul.u32 2, %s18
      %p169 = scmp.lt.s32.totalorder %s17, 1
      %s170 = scalar_select %p169, %s17, 1
      %s171 = smul.addr %s170, 8
      %s172 = scalar_lea.vmem %s2, %s171
      %p173 = scmp.eq.s32.totalorder %s18, 0
      // Predicated region
      $region29: #{generator_forward.18} parent=27 // pred_check
        %p174 = pneg %p173
      $region30: #{generator_forward.18} parent=27 // pred_check_branch
        %176 = sbr.rel (%p174) target = $region32
      $region31: #{generator_forward.18} parent=27 // pred_region
        %177 = vst [vmem:[#allocation2] sm:$0xff] -inf
      $region32: #{generator_forward.18} parent=27 // pred_fallthru
        _
      %v178 = vld [vmem:[%s167] sm:$0xff]
      %v179 = vld [vmem:[%s167 + $0x8] sm:$0xff]
      %v180 = vld [vmem:[%s167 + $0x10] sm:$0xff]
      %v181 = vld [vmem:[%s167 + $0x18] sm:$0xff]
      %v182 = vld [vmem:[%s1] sm:$0xff]
      %v183 = vld [vmem:[%s1 + $0x8] sm:$0xff]
      %v184 = vld [vmem:[%s1 + $0x10] sm:$0xff]
      %v185 = vld [vmem:[%s1 + $0x18] sm:$0xff]
      %v186 = vld [vmem:[%s1 + $0x20] sm:$0xff]
      %v187 = vld [vmem:[%s1 + $0x28] sm:$0xff]
      %v188 = vld [vmem:[%s1 + $0x30] sm:$0xff]
      %v189 = vld [vmem:[%s1 + $0x38] sm:$0xff]
      %v190 = vld [vmem:[%s1 + $0x40] sm:$0xff]
      %v191 = vld [vmem:[%s1 + $0x48] sm:$0xff]
      %v192 = vld [vmem:[%s1 + $0x50] sm:$0xff]
      %v193 = vld [vmem:[%s1 + $0x58] sm:$0xff]
      %v194 = vld [vmem:[%s1 + $0x60] sm:$0xff]
      %v195 = vld [vmem:[%s1 + $0x68] sm:$0xff]
      %v196 = vld [vmem:[%s1 + $0x70] sm:$0xff]
      %v197 = vld [vmem:[%s1 + $0x78] sm:$0xff]
      %v198 = vld [vmem:[%s1 + $0x80] sm:$0xff]
      %v199 = vld [vmem:[%s1 + $0x88] sm:$0xff]
      %v200 = vld [vmem:[%s1 + $0x90] sm:$0xff]
      %v201 = vld [vmem:[%s1 + $0x98] sm:$0xff]
      %v202 = vld [vmem:[%s1 + $0xa0] sm:$0xff]
      %v203 = vld [vmem:[%s1 + $0xa8] sm:$0xff]
      %v204 = vld [vmem:[%s1 + $0xb0] sm:$0xff]
      %v205 = vld [vmem:[%s1 + $0xb8] sm:$0xff]
      %v206 = vld [vmem:[%s1 + $0xc0] sm:$0xff]
      %v207 = vld [vmem:[%s1 + $0xc8] sm:$0xff]
      %v208 = vld [vmem:[%s1 + $0xd0] sm:$0xff]
      %v209 = vld [vmem:[%s1 + $0xd8] sm:$0xff]
      %v210 = vld [vmem:[%s1 + $0xe0] sm:$0xff]
      %v211 = vld [vmem:[%s1 + $0xe8] sm:$0xff]
      %v212 = vld [vmem:[%s1 + $0xf0] sm:$0xff]
      %v213 = vld [vmem:[%s1 + $0xf8] sm:$0xff]
      %v214 = vld [vmem:[%s1 + $0x100] sm:$0xff]
      %v215 = vld [vmem:[%s1 + $0x108] sm:$0xff]
      %v216 = vld [vmem:[%s1 + $0x110] sm:$0xff]
      %v217 = vld [vmem:[%s1 + $0x118] sm:$0xff]
      %v218 = vld [vmem:[%s1 + $0x120] sm:$0xff]
      %v219 = vld [vmem:[%s1 + $0x128] sm:$0xff]
      %v220 = vld [vmem:[%s1 + $0x130] sm:$0xff]
      %v221 = vld [vmem:[%s1 + $0x138] sm:$0xff]
      %v222 = vld [vmem:[%s1 + $0x140] sm:$0xff]
      %v223 = vld [vmem:[%s1 + $0x148] sm:$0xff]
      %v224 = vld [vmem:[%s1 + $0x150] sm:$0xff]
      %v225 = vld [vmem:[%s1 + $0x158] sm:$0xff]
      %v226 = vld [vmem:[%s1 + $0x160] sm:$0xff]
      %v227 = vld [vmem:[%s1 + $0x168] sm:$0xff]
      %v228 = vld [vmem:[%s1 + $0x170] sm:$0xff]
      %v229 = vld [vmem:[%s1 + $0x178] sm:$0xff]
      %v230 = vld [vmem:[%s1 + $0x180] sm:$0xff]
      %v231 = vld [vmem:[%s1 + $0x188] sm:$0xff]
      %v232 = vld [vmem:[%s1 + $0x190] sm:$0xff]
      %v233 = vld [vmem:[%s1 + $0x198] sm:$0xff]
      %v234 = vld [vmem:[%s1 + $0x1a0] sm:$0xff]
      %v235 = vld [vmem:[%s1 + $0x1a8] sm:$0xff]
      %v236 = vld [vmem:[%s1 + $0x1b0] sm:$0xff]
      %v237 = vld [vmem:[%s1 + $0x1b8] sm:$0xff]
      %v238 = vld [vmem:[%s1 + $0x1c0] sm:$0xff]
      %v239 = vld [vmem:[%s1 + $0x1c8] sm:$0xff]
      %v240 = vld [vmem:[%s1 + $0x1d0] sm:$0xff]
      %v241 = vld [vmem:[%s1 + $0x1d8] sm:$0xff]
      %v242 = vld [vmem:[%s1 + $0x1e0] sm:$0xff]
      %v243 = vld [vmem:[%s1 + $0x1e8] sm:$0xff]
      %v244 = vld [vmem:[%s1 + $0x1f0] sm:$0xff]
      %v245 = vld [vmem:[%s1 + $0x1f8] sm:$0xff]
      %v246 = vld [vmem:[%s1 + $0x200] sm:$0xff]
      %v247 = vld [vmem:[%s1 + $0x208] sm:$0xff]
      %v248 = vld [vmem:[%s1 + $0x210] sm:$0xff]
      %v249 = vld [vmem:[%s1 + $0x218] sm:$0xff]
      %v250 = vld [vmem:[%s1 + $0x220] sm:$0xff]
      %v251 = vld [vmem:[%s1 + $0x228] sm:$0xff]
      %v252 = vld [vmem:[%s1 + $0x230] sm:$0xff]
      %v253 = vld [vmem:[%s1 + $0x238] sm:$0xff]
      %v254 = vld [vmem:[%s1 + $0x240] sm:$0xff]
      %v255 = vld [vmem:[%s1 + $0x248] sm:$0xff]
      %v256 = vld [vmem:[%s1 + $0x250] sm:$0xff]
      %v257 = vld [vmem:[%s1 + $0x258] sm:$0xff]
      %v258 = vld [vmem:[%s1 + $0x260] sm:$0xff]
      %v259 = vld [vmem:[%s1 + $0x268] sm:$0xff]
      %v260 = vld [vmem:[%s1 + $0x270] sm:$0xff]
      %v261 = vld [vmem:[%s1 + $0x278] sm:$0xff]
      %v262 = vld [vmem:[%s1 + $0x280] sm:$0xff]
      %v263 = vld [vmem:[%s1 + $0x288] sm:$0xff]
      %v264 = vld [vmem:[%s1 + $0x290] sm:$0xff]
      %v265 = vld [vmem:[%s1 + $0x298] sm:$0xff]
      %v266 = vld [vmem:[%s1 + $0x2a0] sm:$0xff]
      %v267 = vld [vmem:[%s1 + $0x2a8] sm:$0xff]
      %v268 = vld [vmem:[%s1 + $0x2b0] sm:$0xff]
      %v269 = vld [vmem:[%s1 + $0x2b8] sm:$0xff]
      %v270 = vld [vmem:[%s1 + $0x2c0] sm:$0xff]
      %v271 = vld [vmem:[%s1 + $0x2c8] sm:$0xff]
      %v272 = vld [vmem:[%s1 + $0x2d0] sm:$0xff]
      %v273 = vld [vmem:[%s1 + $0x2d8] sm:$0xff]
      %v274 = vld [vmem:[%s1 + $0x2e0] sm:$0xff]
      %v275 = vld [vmem:[%s1 + $0x2e8] sm:$0xff]
      %v276 = vld [vmem:[%s1 + $0x2f0] sm:$0xff]
      %v277 = vld [vmem:[%s1 + $0x2f8] sm:$0xff]
      %v278 = vld [vmem:[%s1 + $0x300] sm:$0xff]
      %v279 = vld [vmem:[%s1 + $0x308] sm:$0xff]
      %v280 = vld [vmem:[%s1 + $0x310] sm:$0xff]
      %v281 = vld [vmem:[%s1 + $0x318] sm:$0xff]
      %v282 = vld [vmem:[%s1 + $0x320] sm:$0xff]
      %v283 = vld [vmem:[%s1 + $0x328] sm:$0xff]
      %v284 = vld [vmem:[%s1 + $0x330] sm:$0xff]
      %v285 = vld [vmem:[%s1 + $0x338] sm:$0xff]
      %v286 = vld [vmem:[%s1 + $0x340] sm:$0xff]
      %v287 = vld [vmem:[%s1 + $0x348] sm:$0xff]
      %v288 = vld [vmem:[%s1 + $0x350] sm:$0xff]
      %v289 = vld [vmem:[%s1 + $0x358] sm:$0xff]
      %v290 = vld [vmem:[%s1 + $0x360] sm:$0xff]
      %v291 = vld [vmem:[%s1 + $0x368] sm:$0xff]
      %v292 = vld [vmem:[%s1 + $0x370] sm:$0xff]
      %v293 = vld [vmem:[%s1 + $0x378] sm:$0xff]
      %v294 = vld [vmem:[%s1 + $0x380] sm:$0xff]
      %v295 = vld [vmem:[%s1 + $0x388] sm:$0xff]
      %v296 = vld [vmem:[%s1 + $0x390] sm:$0xff]
      %v297 = vld [vmem:[%s1 + $0x398] sm:$0xff]
      %v298 = vld [vmem:[%s1 + $0x3a0] sm:$0xff]
      %v299 = vld [vmem:[%s1 + $0x3a8] sm:$0xff]
      %v300 = vld [vmem:[%s1 + $0x3b0] sm:$0xff]
      %v301 = vld [vmem:[%s1 + $0x3b8] sm:$0xff]
      %v302 = vld [vmem:[%s1 + $0x3c0] sm:$0xff]
      %v303 = vld [vmem:[%s1 + $0x3c8] sm:$0xff]
      %v304 = vld [vmem:[%s1 + $0x3d0] sm:$0xff]
      %v305 = vld [vmem:[%s1 + $0x3d8] sm:$0xff]
      %v306 = vld [vmem:[%s1 + $0x3e0] sm:$0xff]
      %v307 = vld [vmem:[%s1 + $0x3e8] sm:$0xff]
      %v308 = vld [vmem:[%s1 + $0x3f0] sm:$0xff]
      %v309 = vld [vmem:[%s1 + $0x3f8] sm:$0xff]
      %v310 = vld [vmem:[%s1 + $0x400] sm:$0xff]
      %v311 = vld [vmem:[%s1 + $0x408] sm:$0xff]
      %v312 = vld [vmem:[%s1 + $0x410] sm:$0xff]
      %v313 = vld [vmem:[%s1 + $0x418] sm:$0xff]
      %v314 = vld [vmem:[%s1 + $0x420] sm:$0xff]
      %v315 = vld [vmem:[%s1 + $0x428] sm:$0xff]
      %v316 = vld [vmem:[%s1 + $0x430] sm:$0xff]
      %v317 = vld [vmem:[%s1 + $0x438] sm:$0xff]
      %v318 = vld [vmem:[%s1 + $0x440] sm:$0xff]
      %v319 = vld [vmem:[%s1 + $0x448] sm:$0xff]
      %v320 = vld [vmem:[%s1 + $0x450] sm:$0xff]
      %v321 = vld [vmem:[%s1 + $0x458] sm:$0xff]
      %v322 = vld [vmem:[%s1 + $0x460] sm:$0xff]
      %v323 = vld [vmem:[%s1 + $0x468] sm:$0xff]
      %v324 = vld [vmem:[%s1 + $0x470] sm:$0xff]
      %v325 = vld [vmem:[%s1 + $0x478] sm:$0xff]
      %v326 = vld [vmem:[%s1 + $0x480] sm:$0xff]
      %v327 = vld [vmem:[%s1 + $0x488] sm:$0xff]
      %v328 = vld [vmem:[%s1 + $0x490] sm:$0xff]
      %v329 = vld [vmem:[%s1 + $0x498] sm:$0xff]
      %v330 = vld [vmem:[%s1 + $0x4a0] sm:$0xff]
      %v331 = vld [vmem:[%s1 + $0x4a8] sm:$0xff]
      %v332 = vld [vmem:[%s1 + $0x4b0] sm:$0xff]
      %v333 = vld [vmem:[%s1 + $0x4b8] sm:$0xff]
      %v334 = vld [vmem:[%s1 + $0x4c0] sm:$0xff]
      %v335 = vld [vmem:[%s1 + $0x4c8] sm:$0xff]
      %v336 = vld [vmem:[%s1 + $0x4d0] sm:$0xff]
      %v337 = vld [vmem:[%s1 + $0x4d8] sm:$0xff]
      %v338 = vld [vmem:[%s1 + $0x4e0] sm:$0xff]
      %v339 = vld [vmem:[%s1 + $0x4e8] sm:$0xff]
      %v340 = vld [vmem:[%s1 + $0x4f0] sm:$0xff]
      %v341 = vld [vmem:[%s1 + $0x4f8] sm:$0xff]
      %v342 = vld [vmem:[%s1 + $0x500] sm:$0xff]
      %v343 = vld [vmem:[%s1 + $0x508] sm:$0xff]
      %v344 = vld [vmem:[%s1 + $0x510] sm:$0xff]
      %v345 = vld [vmem:[%s1 + $0x518] sm:$0xff]
      %v346 = vld [vmem:[%s1 + $0x520] sm:$0xff]
      %v347 = vld [vmem:[%s1 + $0x528] sm:$0xff]
      %v348 = vld [vmem:[%s1 + $0x530] sm:$0xff]
      %v349 = vld [vmem:[%s1 + $0x538] sm:$0xff]
      %v350 = vld [vmem:[%s1 + $0x540] sm:$0xff]
      %v351 = vld [vmem:[%s1 + $0x548] sm:$0xff]
      %v352 = vld [vmem:[%s1 + $0x550] sm:$0xff]
      %v353 = vld [vmem:[%s1 + $0x558] sm:$0xff]
      %v354 = vld [vmem:[%s1 + $0x560] sm:$0xff]
      %v355 = vld [vmem:[%s1 + $0x568] sm:$0xff]
      %v356 = vld [vmem:[%s1 + $0x570] sm:$0xff]
      %v357 = vld [vmem:[%s1 + $0x578] sm:$0xff]
      %v358 = vld [vmem:[%s1 + $0x580] sm:$0xff]
      %v359 = vld [vmem:[%s1 + $0x588] sm:$0xff]
      %v360 = vld [vmem:[%s1 + $0x590] sm:$0xff]
      %v361 = vld [vmem:[%s1 + $0x598] sm:$0xff]
      %v362 = vld [vmem:[%s1 + $0x5a0] sm:$0xff]
      %v363 = vld [vmem:[%s1 + $0x5a8] sm:$0xff]
      %v364 = vld [vmem:[%s1 + $0x5b0] sm:$0xff]
      %v365 = vld [vmem:[%s1 + $0x5b8] sm:$0xff]
      %v366 = vld [vmem:[%s1 + $0x5c0] sm:$0xff]
      %v367 = vld [vmem:[%s1 + $0x5c8] sm:$0xff]
      %v368 = vld [vmem:[%s1 + $0x5d0] sm:$0xff]
      %v369 = vld [vmem:[%s1 + $0x5d8] sm:$0xff]
      %v370 = vld [vmem:[%s1 + $0x5e0] sm:$0xff]
      %v371 = vld [vmem:[%s1 + $0x5e8] sm:$0xff]
      %v372 = vld [vmem:[%s1 + $0x5f0] sm:$0xff]
      %v373 = vld [vmem:[%s1 + $0x5f8] sm:$0xff]
      %v374 = vld [vmem:[%s1 + $0x600] sm:$0xff]
      %v375 = vld [vmem:[%s1 + $0x608] sm:$0xff]
      %v376 = vld [vmem:[%s1 + $0x610] sm:$0xff]
      %v377 = vld [vmem:[%s1 + $0x618] sm:$0xff]
      %v378 = vld [vmem:[%s1 + $0x620] sm:$0xff]
      %v379 = vld [vmem:[%s1 + $0x628] sm:$0xff]
      %v380 = vld [vmem:[%s1 + $0x630] sm:$0xff]
      %v381 = vld [vmem:[%s1 + $0x638] sm:$0xff]
      %v382 = vld [vmem:[%s1 + $0x640] sm:$0xff]
      %v383 = vld [vmem:[%s1 + $0x648] sm:$0xff]
      %v384 = vld [vmem:[%s1 + $0x650] sm:$0xff]
      %v385 = vld [vmem:[%s1 + $0x658] sm:$0xff]
      %v386 = vld [vmem:[%s1 + $0x660] sm:$0xff]
      %v387 = vld [vmem:[%s1 + $0x668] sm:$0xff]
      %v388 = vld [vmem:[%s1 + $0x670] sm:$0xff]
      %v389 = vld [vmem:[%s1 + $0x678] sm:$0xff]
      %v390 = vld [vmem:[%s1 + $0x680] sm:$0xff]
      %v391 = vld [vmem:[%s1 + $0x688] sm:$0xff]
      %v392 = vld [vmem:[%s1 + $0x690] sm:$0xff]
      %v393 = vld [vmem:[%s1 + $0x698] sm:$0xff]
      %v394 = vld [vmem:[%s1 + $0x6a0] sm:$0xff]
      %v395 = vld [vmem:[%s1 + $0x6a8] sm:$0xff]
      %v396 = vld [vmem:[%s1 + $0x6b0] sm:$0xff]
      %v397 = vld [vmem:[%s1 + $0x6b8] sm:$0xff]
      %v398 = vld [vmem:[%s1 + $0x6c0] sm:$0xff]
      %v399 = vld [vmem:[%s1 + $0x6c8] sm:$0xff]
      %v400 = vld [vmem:[%s1 + $0x6d0] sm:$0xff]
      %v401 = vld [vmem:[%s1 + $0x6d8] sm:$0xff]
      %v402 = vld [vmem:[%s1 + $0x6e0] sm:$0xff]
      %v403 = vld [vmem:[%s1 + $0x6e8] sm:$0xff]
      %v404 = vld [vmem:[%s1 + $0x6f0] sm:$0xff]
      %v405 = vld [vmem:[%s1 + $0x6f8] sm:$0xff]
      %v406 = vld [vmem:[%s1 + $0x700] sm:$0xff]
      %v407 = vld [vmem:[%s1 + $0x708] sm:$0xff]
      %v408 = vld [vmem:[%s1 + $0x710] sm:$0xff]
      %v409 = vld [vmem:[%s1 + $0x718] sm:$0xff]
      %v410 = vld [vmem:[%s1 + $0x720] sm:$0xff]
      %v411 = vld [vmem:[%s1 + $0x728] sm:$0xff]
      %v412 = vld [vmem:[%s1 + $0x730] sm:$0xff]
      %v413 = vld [vmem:[%s1 + $0x738] sm:$0xff]
      %v414 = vld [vmem:[%s1 + $0x740] sm:$0xff]
      %v415 = vld [vmem:[%s1 + $0x748] sm:$0xff]
      %v416 = vld [vmem:[%s1 + $0x750] sm:$0xff]
      %v417 = vld [vmem:[%s1 + $0x758] sm:$0xff]
      %v418 = vld [vmem:[%s1 + $0x760] sm:$0xff]
      %v419 = vld [vmem:[%s1 + $0x768] sm:$0xff]
      %v420 = vld [vmem:[%s1 + $0x770] sm:$0xff]
      %v421 = vld [vmem:[%s1 + $0x778] sm:$0xff]
      %v422 = vld [vmem:[%s1 + $0x780] sm:$0xff]
      %v423 = vld [vmem:[%s1 + $0x788] sm:$0xff]
      %v424 = vld [vmem:[%s1 + $0x790] sm:$0xff]
      %v425 = vld [vmem:[%s1 + $0x798] sm:$0xff]
      %v426 = vld [vmem:[%s1 + $0x7a0] sm:$0xff]
      %v427 = vld [vmem:[%s1 + $0x7a8] sm:$0xff]
      %v428 = vld [vmem:[%s1 + $0x7b0] sm:$0xff]
      %v429 = vld [vmem:[%s1 + $0x7b8] sm:$0xff]
      %v430 = vld [vmem:[%s1 + $0x7c0] sm:$0xff]
      %v431 = vld [vmem:[%s1 + $0x7c8] sm:$0xff]
      %v432 = vld [vmem:[%s1 + $0x7d0] sm:$0xff]
      %v433 = vld [vmem:[%s1 + $0x7d8] sm:$0xff]
      %v434 = vld [vmem:[%s1 + $0x7e0] sm:$0xff]
      %v435 = vld [vmem:[%s1 + $0x7e8] sm:$0xff]
      %v436 = vld [vmem:[%s1 + $0x7f0] sm:$0xff]
      %v437 = vld [vmem:[%s1 + $0x7f8] sm:$0xff]
      %v442 = vunpack.c.l.b16 %v178
      %v443 = vunpack.c.h.b16 %v178
      %v444 = vunpack.c.l.b16 %v179
      %v445 = vunpack.c.h.b16 %v179
      %v446 = vunpack.c.l.b16 %v180
      %v447 = vunpack.c.h.b16 %v180
      %v448 = vunpack.c.l.b16 %v181
      %v449 = vunpack.c.h.b16 %v181
      %v450 = vpack.c.b16 %v446, %v442
      %v451 = vpack.c.b16 %v447, %v443
      %v452 = vpack.c.b16 %v448, %v444
      %v453 = vpack.c.b16 %v449, %v445
      %v714 = vunpack.c.l.b16 %v182
      %v715 = vunpack.c.h.b16 %v182
      %v716 = vunpack.c.l.b16 %v183
      %v717 = vunpack.c.h.b16 %v183
      %v718 = vunpack.c.l.b16 %v184
      %v719 = vunpack.c.h.b16 %v184
      %v720 = vunpack.c.l.b16 %v185
      %v721 = vunpack.c.h.b16 %v185
      %v722 = vunpack.c.l.b16 %v186
      %v723 = vunpack.c.h.b16 %v186
      %v724 = vunpack.c.l.b16 %v187
      %v725 = vunpack.c.h.b16 %v187
      %v726 = vunpack.c.l.b16 %v188
      %v727 = vunpack.c.h.b16 %v188
      %v728 = vunpack.c.l.b16 %v189
      %v729 = vunpack.c.h.b16 %v189
      %v730 = vunpack.c.l.b16 %v190
      %v731 = vunpack.c.h.b16 %v190
      %v732 = vunpack.c.l.b16 %v191
      %v733 = vunpack.c.h.b16 %v191
      %v734 = vunpack.c.l.b16 %v192
      %v735 = vunpack.c.h.b16 %v192
      %v736 = vunpack.c.l.b16 %v193
      %v737 = vunpack.c.h.b16 %v193
      %v738 = vunpack.c.l.b16 %v194
      %v739 = vunpack.c.h.b16 %v194
      %v740 = vunpack.c.l.b16 %v195
      %v741 = vunpack.c.h.b16 %v195
      %v742 = vunpack.c.l.b16 %v196
      %v743 = vunpack.c.h.b16 %v196
      %v744 = vunpack.c.l.b16 %v197
      %v745 = vunpack.c.h.b16 %v197
      %v746 = vunpack.c.l.b16 %v198
      %v747 = vunpack.c.h.b16 %v198
      %v748 = vunpack.c.l.b16 %v199
      %v749 = vunpack.c.h.b16 %v199
      %v750 = vunpack.c.l.b16 %v200
      %v751 = vunpack.c.h.b16 %v200
      %v752 = vunpack.c.l.b16 %v201
      %v753 = vunpack.c.h.b16 %v201
      %v754 = vunpack.c.l.b16 %v202
      %v755 = vunpack.c.h.b16 %v202
      %v756 = vunpack.c.l.b16 %v203
      %v757 = vunpack.c.h.b16 %v203
      %v758 = vunpack.c.l.b16 %v204
      %v759 = vunpack.c.h.b16 %v204
      %v760 = vunpack.c.l.b16 %v205
      %v761 = vunpack.c.h.b16 %v205
      %v762 = vunpack.c.l.b16 %v206
      %v763 = vunpack.c.h.b16 %v206
      %v764 = vunpack.c.l.b16 %v207
      %v765 = vunpack.c.h.b16 %v207
      %v766 = vunpack.c.l.b16 %v208
      %v767 = vunpack.c.h.b16 %v208
      %v768 = vunpack.c.l.b16 %v209
      %v769 = vunpack.c.h.b16 %v209
      %v770 = vunpack.c.l.b16 %v210
      %v771 = vunpack.c.h.b16 %v210
      %v772 = vunpack.c.l.b16 %v211
      %v773 = vunpack.c.h.b16 %v211
      %v774 = vunpack.c.l.b16 %v212
      %v775 = vunpack.c.h.b16 %v212
      %v776 = vunpack.c.l.b16 %v213
      %v777 = vunpack.c.h.b16 %v213
      %v778 = vunpack.c.l.b16 %v214
      %v779 = vunpack.c.h.b16 %v214
      %v780 = vunpack.c.l.b16 %v215
      %v781 = vunpack.c.h.b16 %v215
      %v782 = vunpack.c.l.b16 %v216
      %v783 = vunpack.c.h.b16 %v216
      %v784 = vunpack.c.l.b16 %v217
      %v785 = vunpack.c.h.b16 %v217
      %v786 = vunpack.c.l.b16 %v218
      %v787 = vunpack.c.h.b16 %v218
      %v788 = vunpack.c.l.b16 %v219
      %v789 = vunpack.c.h.b16 %v219
      %v790 = vunpack.c.l.b16 %v220
      %v791 = vunpack.c.h.b16 %v220
      %v792 = vunpack.c.l.b16 %v221
      %v793 = vunpack.c.h.b16 %v221
      %v794 = vunpack.c.l.b16 %v222
      %v795 = vunpack.c.h.b16 %v222
      %v796 = vunpack.c.l.b16 %v223
      %v797 = vunpack.c.h.b16 %v223
      %v798 = vunpack.c.l.b16 %v224
      %v799 = vunpack.c.h.b16 %v224
      %v800 = vunpack.c.l.b16 %v225
      %v801 = vunpack.c.h.b16 %v225
      %v802 = vunpack.c.l.b16 %v226
      %v803 = vunpack.c.h.b16 %v226
      %v804 = vunpack.c.l.b16 %v227
      %v805 = vunpack.c.h.b16 %v227
      %v806 = vunpack.c.l.b16 %v228
      %v807 = vunpack.c.h.b16 %v228
      %v808 = vunpack.c.l.b16 %v229
      %v809 = vunpack.c.h.b16 %v229
      %v810 = vunpack.c.l.b16 %v230
      %v811 = vunpack.c.h.b16 %v230
      %v812 = vunpack.c.l.b16 %v231
      %v813 = vunpack.c.h.b16 %v231
      %v814 = vunpack.c.l.b16 %v232
      %v815 = vunpack.c.h.b16 %v232
      %v816 = vunpack.c.l.b16 %v233
      %v817 = vunpack.c.h.b16 %v233
      %v818 = vunpack.c.l.b16 %v234
      %v819 = vunpack.c.h.b16 %v234
      %v820 = vunpack.c.l.b16 %v235
      %v821 = vunpack.c.h.b16 %v235
      %v822 = vunpack.c.l.b16 %v236
      %v823 = vunpack.c.h.b16 %v236
      %v824 = vunpack.c.l.b16 %v237
      %v825 = vunpack.c.h.b16 %v237
      %v826 = vunpack.c.l.b16 %v238
      %v827 = vunpack.c.h.b16 %v238
      %v828 = vunpack.c.l.b16 %v239
      %v829 = vunpack.c.h.b16 %v239
      %v830 = vunpack.c.l.b16 %v240
      %v831 = vunpack.c.h.b16 %v240
      %v832 = vunpack.c.l.b16 %v241
      %v833 = vunpack.c.h.b16 %v241
      %v834 = vunpack.c.l.b16 %v242
      %v835 = vunpack.c.h.b16 %v242
      %v836 = vunpack.c.l.b16 %v243
      %v837 = vunpack.c.h.b16 %v243
      %v838 = vunpack.c.l.b16 %v244
      %v839 = vunpack.c.h.b16 %v244
      %v840 = vunpack.c.l.b16 %v245
      %v841 = vunpack.c.h.b16 %v245
      %v842 = vunpack.c.l.b16 %v246
      %v843 = vunpack.c.h.b16 %v246
      %v844 = vunpack.c.l.b16 %v247
      %v845 = vunpack.c.h.b16 %v247
      %v846 = vunpack.c.l.b16 %v248
      %v847 = vunpack.c.h.b16 %v248
      %v848 = vunpack.c.l.b16 %v249
      %v849 = vunpack.c.h.b16 %v249
      %v850 = vunpack.c.l.b16 %v250
      %v851 = vunpack.c.h.b16 %v250
      %v852 = vunpack.c.l.b16 %v251
      %v853 = vunpack.c.h.b16 %v251
      %v854 = vunpack.c.l.b16 %v252
      %v855 = vunpack.c.h.b16 %v252
      %v856 = vunpack.c.l.b16 %v253
      %v857 = vunpack.c.h.b16 %v253
      %v858 = vunpack.c.l.b16 %v254
      %v859 = vunpack.c.h.b16 %v254
      %v860 = vunpack.c.l.b16 %v255
      %v861 = vunpack.c.h.b16 %v255
      %v862 = vunpack.c.l.b16 %v256
      %v863 = vunpack.c.h.b16 %v256
      %v864 = vunpack.c.l.b16 %v257
      %v865 = vunpack.c.h.b16 %v257
      %v866 = vunpack.c.l.b16 %v258
      %v867 = vunpack.c.h.b16 %v258
      %v868 = vunpack.c.l.b16 %v259
      %v869 = vunpack.c.h.b16 %v259
      %v870 = vunpack.c.l.b16 %v260
      %v871 = vunpack.c.h.b16 %v260
      %v872 = vunpack.c.l.b16 %v261
      %v873 = vunpack.c.h.b16 %v261
      %v874 = vunpack.c.l.b16 %v262
      %v875 = vunpack.c.h.b16 %v262
      %v876 = vunpack.c.l.b16 %v263
      %v877 = vunpack.c.h.b16 %v263
      %v878 = vunpack.c.l.b16 %v264
      %v879 = vunpack.c.h.b16 %v264
      %v880 = vunpack.c.l.b16 %v265
      %v881 = vunpack.c.h.b16 %v265
      %v882 = vunpack.c.l.b16 %v266
      %v883 = vunpack.c.h.b16 %v266
      %v884 = vunpack.c.l.b16 %v267
      %v885 = vunpack.c.h.b16 %v267
      %v886 = vunpack.c.l.b16 %v268
      %v887 = vunpack.c.h.b16 %v268
      %v888 = vunpack.c.l.b16 %v269
      %v889 = vunpack.c.h.b16 %v269
      %v890 = vunpack.c.l.b16 %v270
      %v891 = vunpack.c.h.b16 %v270
      %v892 = vunpack.c.l.b16 %v271
      %v893 = vunpack.c.h.b16 %v271
      %v894 = vunpack.c.l.b16 %v272
      %v895 = vunpack.c.h.b16 %v272
      %v896 = vunpack.c.l.b16 %v273
      %v897 = vunpack.c.h.b16 %v273
      %v898 = vunpack.c.l.b16 %v274
      %v899 = vunpack.c.h.b16 %v274
      %v900 = vunpack.c.l.b16 %v275
      %v901 = vunpack.c.h.b16 %v275
      %v902 = vunpack.c.l.b16 %v276
      %v903 = vunpack.c.h.b16 %v276
      %v904 = vunpack.c.l.b16 %v277
      %v905 = vunpack.c.h.b16 %v277
      %v906 = vunpack.c.l.b16 %v278
      %v907 = vunpack.c.h.b16 %v278
      %v908 = vunpack.c.l.b16 %v279
      %v909 = vunpack.c.h.b16 %v279
      %v910 = vunpack.c.l.b16 %v280
      %v911 = vunpack.c.h.b16 %v280
      %v912 = vunpack.c.l.b16 %v281
      %v913 = vunpack.c.h.b16 %v281
      %v914 = vunpack.c.l.b16 %v282
      %v915 = vunpack.c.h.b16 %v282
      %v916 = vunpack.c.l.b16 %v283
      %v917 = vunpack.c.h.b16 %v283
      %v918 = vunpack.c.l.b16 %v284
      %v919 = vunpack.c.h.b16 %v284
      %v920 = vunpack.c.l.b16 %v285
      %v921 = vunpack.c.h.b16 %v285
      %v922 = vunpack.c.l.b16 %v286
      %v923 = vunpack.c.h.b16 %v286
      %v924 = vunpack.c.l.b16 %v287
      %v925 = vunpack.c.h.b16 %v287
      %v926 = vunpack.c.l.b16 %v288
      %v927 = vunpack.c.h.b16 %v288
      %v928 = vunpack.c.l.b16 %v289
      %v929 = vunpack.c.h.b16 %v289
      %v930 = vunpack.c.l.b16 %v290
      %v931 = vunpack.c.h.b16 %v290
      %v932 = vunpack.c.l.b16 %v291
      %v933 = vunpack.c.h.b16 %v291
      %v934 = vunpack.c.l.b16 %v292
      %v935 = vunpack.c.h.b16 %v292
      %v936 = vunpack.c.l.b16 %v293
      %v937 = vunpack.c.h.b16 %v293
      %v938 = vunpack.c.l.b16 %v294
      %v939 = vunpack.c.h.b16 %v294
      %v940 = vunpack.c.l.b16 %v295
      %v941 = vunpack.c.h.b16 %v295
      %v942 = vunpack.c.l.b16 %v296
      %v943 = vunpack.c.h.b16 %v296
      %v944 = vunpack.c.l.b16 %v297
      %v945 = vunpack.c.h.b16 %v297
      %v946 = vunpack.c.l.b16 %v298
      %v947 = vunpack.c.h.b16 %v298
      %v948 = vunpack.c.l.b16 %v299
      %v949 = vunpack.c.h.b16 %v299
      %v950 = vunpack.c.l.b16 %v300
      %v951 = vunpack.c.h.b16 %v300
      %v952 = vunpack.c.l.b16 %v301
      %v953 = vunpack.c.h.b16 %v301
      %v954 = vunpack.c.l.b16 %v302
      %v955 = vunpack.c.h.b16 %v302
      %v956 = vunpack.c.l.b16 %v303
      %v957 = vunpack.c.h.b16 %v303
      %v958 = vunpack.c.l.b16 %v304
      %v959 = vunpack.c.h.b16 %v304
      %v960 = vunpack.c.l.b16 %v305
      %v961 = vunpack.c.h.b16 %v305
      %v962 = vunpack.c.l.b16 %v306
      %v963 = vunpack.c.h.b16 %v306
      %v964 = vunpack.c.l.b16 %v307
      %v965 = vunpack.c.h.b16 %v307
      %v966 = vunpack.c.l.b16 %v308
      %v967 = vunpack.c.h.b16 %v308
      %v968 = vunpack.c.l.b16 %v309
      %v969 = vunpack.c.h.b16 %v309
      %v970 = vunpack.c.l.b16 %v310
      %v971 = vunpack.c.h.b16 %v310
      %v972 = vunpack.c.l.b16 %v311
      %v973 = vunpack.c.h.b16 %v311
      %v974 = vunpack.c.l.b16 %v312
      %v975 = vunpack.c.h.b16 %v312
      %v976 = vunpack.c.l.b16 %v313
      %v977 = vunpack.c.h.b16 %v313
      %v978 = vunpack.c.l.b16 %v314
      %v979 = vunpack.c.h.b16 %v314
      %v980 = vunpack.c.l.b16 %v315
      %v981 = vunpack.c.h.b16 %v315
      %v982 = vunpack.c.l.b16 %v316
      %v983 = vunpack.c.h.b16 %v316
      %v984 = vunpack.c.l.b16 %v317
      %v985 = vunpack.c.h.b16 %v317
      %v986 = vunpack.c.l.b16 %v318
      %v987 = vunpack.c.h.b16 %v318
      %v988 = vunpack.c.l.b16 %v319
      %v989 = vunpack.c.h.b16 %v319
      %v990 = vunpack.c.l.b16 %v320
      %v991 = vunpack.c.h.b16 %v320
      %v992 = vunpack.c.l.b16 %v321
      %v993 = vunpack.c.h.b16 %v321
      %v994 = vunpack.c.l.b16 %v322
      %v995 = vunpack.c.h.b16 %v322
      %v996 = vunpack.c.l.b16 %v323
      %v997 = vunpack.c.h.b16 %v323
      %v998 = vunpack.c.l.b16 %v324
      %v999 = vunpack.c.h.b16 %v324
      %v1000 = vunpack.c.l.b16 %v325
      %v1001 = vunpack.c.h.b16 %v325
      %v1002 = vunpack.c.l.b16 %v326
      %v1003 = vunpack.c.h.b16 %v326
      %v1004 = vunpack.c.l.b16 %v327
      %v1005 = vunpack.c.h.b16 %v327
      %v1006 = vunpack.c.l.b16 %v328
      %v1007 = vunpack.c.h.b16 %v328
      %v1008 = vunpack.c.l.b16 %v329
      %v1009 = vunpack.c.h.b16 %v329
      %v1010 = vunpack.c.l.b16 %v330
      %v1011 = vunpack.c.h.b16 %v330
      %v1012 = vunpack.c.l.b16 %v331
      %v1013 = vunpack.c.h.b16 %v331
      %v1014 = vunpack.c.l.b16 %v332
      %v1015 = vunpack.c.h.b16 %v332
      %v1016 = vunpack.c.l.b16 %v333
      %v1017 = vunpack.c.h.b16 %v333
      %v1018 = vunpack.c.l.b16 %v334
      %v1019 = vunpack.c.h.b16 %v334
      %v1020 = vunpack.c.l.b16 %v335
      %v1021 = vunpack.c.h.b16 %v335
      %v1022 = vunpack.c.l.b16 %v336
      %v1023 = vunpack.c.h.b16 %v336
      %v1024 = vunpack.c.l.b16 %v337
      %v1025 = vunpack.c.h.b16 %v337
      %v1026 = vunpack.c.l.b16 %v338
      %v1027 = vunpack.c.h.b16 %v338
      %v1028 = vunpack.c.l.b16 %v339
      %v1029 = vunpack.c.h.b16 %v339
      %v1030 = vunpack.c.l.b16 %v340
      %v1031 = vunpack.c.h.b16 %v340
      %v1032 = vunpack.c.l.b16 %v341
      %v1033 = vunpack.c.h.b16 %v341
      %v1034 = vunpack.c.l.b16 %v342
      %v1035 = vunpack.c.h.b16 %v342
      %v1036 = vunpack.c.l.b16 %v343
      %v1037 = vunpack.c.h.b16 %v343
      %v1038 = vunpack.c.l.b16 %v344
      %v1039 = vunpack.c.h.b16 %v344
      %v1040 = vunpack.c.l.b16 %v345
      %v1041 = vunpack.c.h.b16 %v345
      %v1042 = vunpack.c.l.b16 %v346
      %v1043 = vunpack.c.h.b16 %v346
      %v1044 = vunpack.c.l.b16 %v347
      %v1045 = vunpack.c.h.b16 %v347
      %v1046 = vunpack.c.l.b16 %v348
      %v1047 = vunpack.c.h.b16 %v348
      %v1048 = vunpack.c.l.b16 %v349
      %v1049 = vunpack.c.h.b16 %v349
      %v1050 = vunpack.c.l.b16 %v350
      %v1051 = vunpack.c.h.b16 %v350
      %v1052 = vunpack.c.l.b16 %v351
      %v1053 = vunpack.c.h.b16 %v351
      %v1054 = vunpack.c.l.b16 %v352
      %v1055 = vunpack.c.h.b16 %v352
      %v1056 = vunpack.c.l.b16 %v353
      %v1057 = vunpack.c.h.b16 %v353
      %v1058 = vunpack.c.l.b16 %v354
      %v1059 = vunpack.c.h.b16 %v354
      %v1060 = vunpack.c.l.b16 %v355
      %v1061 = vunpack.c.h.b16 %v355
      %v1062 = vunpack.c.l.b16 %v356
      %v1063 = vunpack.c.h.b16 %v356
      %v1064 = vunpack.c.l.b16 %v357
      %v1065 = vunpack.c.h.b16 %v357
      %v1066 = vunpack.c.l.b16 %v358
      %v1067 = vunpack.c.h.b16 %v358
      %v1068 = vunpack.c.l.b16 %v359
      %v1069 = vunpack.c.h.b16 %v359
      %v1070 = vunpack.c.l.b16 %v360
      %v1071 = vunpack.c.h.b16 %v360
      %v1072 = vunpack.c.l.b16 %v361
      %v1073 = vunpack.c.h.b16 %v361
      %v1074 = vunpack.c.l.b16 %v362
      %v1075 = vunpack.c.h.b16 %v362
      %v1076 = vunpack.c.l.b16 %v363
      %v1077 = vunpack.c.h.b16 %v363
      %v1078 = vunpack.c.l.b16 %v364
      %v1079 = vunpack.c.h.b16 %v364
      %v1080 = vunpack.c.l.b16 %v365
      %v1081 = vunpack.c.h.b16 %v365
      %v1082 = vunpack.c.l.b16 %v366
      %v1083 = vunpack.c.h.b16 %v366
      %v1084 = vunpack.c.l.b16 %v367
      %v1085 = vunpack.c.h.b16 %v367
      %v1086 = vunpack.c.l.b16 %v368
      %v1087 = vunpack.c.h.b16 %v368
      %v1088 = vunpack.c.l.b16 %v369
      %v1089 = vunpack.c.h.b16 %v369
      %v1090 = vunpack.c.l.b16 %v370
      %v1091 = vunpack.c.h.b16 %v370
      %v1092 = vunpack.c.l.b16 %v371
      %v1093 = vunpack.c.h.b16 %v371
      %v1094 = vunpack.c.l.b16 %v372
      %v1095 = vunpack.c.h.b16 %v372
      %v1096 = vunpack.c.l.b16 %v373
      %v1097 = vunpack.c.h.b16 %v373
      %v1098 = vunpack.c.l.b16 %v374
      %v1099 = vunpack.c.h.b16 %v374
      %v1100 = vunpack.c.l.b16 %v375
      %v1101 = vunpack.c.h.b16 %v375
      %v1102 = vunpack.c.l.b16 %v376
      %v1103 = vunpack.c.h.b16 %v376
      %v1104 = vunpack.c.l.b16 %v377
      %v1105 = vunpack.c.h.b16 %v377
      %v1106 = vunpack.c.l.b16 %v378
      %v1107 = vunpack.c.h.b16 %v378
      %v1108 = vunpack.c.l.b16 %v379
      %v1109 = vunpack.c.h.b16 %v379
      %v1110 = vunpack.c.l.b16 %v380
      %v1111 = vunpack.c.h.b16 %v380
      %v1112 = vunpack.c.l.b16 %v381
      %v1113 = vunpack.c.h.b16 %v381
      %v1114 = vunpack.c.l.b16 %v382
      %v1115 = vunpack.c.h.b16 %v382
      %v1116 = vunpack.c.l.b16 %v383
      %v1117 = vunpack.c.h.b16 %v383
      %v1118 = vunpack.c.l.b16 %v384
      %v1119 = vunpack.c.h.b16 %v384
      %v1120 = vunpack.c.l.b16 %v385
      %v1121 = vunpack.c.h.b16 %v385
      %v1122 = vunpack.c.l.b16 %v386
      %v1123 = vunpack.c.h.b16 %v386
      %v1124 = vunpack.c.l.b16 %v387
      %v1125 = vunpack.c.h.b16 %v387
      %v1126 = vunpack.c.l.b16 %v388
      %v1127 = vunpack.c.h.b16 %v388
      %v1128 = vunpack.c.l.b16 %v389
      %v1129 = vunpack.c.h.b16 %v389
      %v1130 = vunpack.c.l.b16 %v390
      %v1131 = vunpack.c.h.b16 %v390
      %v1132 = vunpack.c.l.b16 %v391
      %v1133 = vunpack.c.h.b16 %v391
      %v1134 = vunpack.c.l.b16 %v392
      %v1135 = vunpack.c.h.b16 %v392
      %v1136 = vunpack.c.l.b16 %v393
      %v1137 = vunpack.c.h.b16 %v393
      %v1138 = vunpack.c.l.b16 %v394
      %v1139 = vunpack.c.h.b16 %v394
      %v1140 = vunpack.c.l.b16 %v395
      %v1141 = vunpack.c.h.b16 %v395
      %v1142 = vunpack.c.l.b16 %v396
      %v1143 = vunpack.c.h.b16 %v396
      %v1144 = vunpack.c.l.b16 %v397
      %v1145 = vunpack.c.h.b16 %v397
      %v1146 = vunpack.c.l.b16 %v398
      %v1147 = vunpack.c.h.b16 %v398
      %v1148 = vunpack.c.l.b16 %v399
      %v1149 = vunpack.c.h.b16 %v399
      %v1150 = vunpack.c.l.b16 %v400
      %v1151 = vunpack.c.h.b16 %v400
      %v1152 = vunpack.c.l.b16 %v401
      %v1153 = vunpack.c.h.b16 %v401
      %v1154 = vunpack.c.l.b16 %v402
      %v1155 = vunpack.c.h.b16 %v402
      %v1156 = vunpack.c.l.b16 %v403
      %v1157 = vunpack.c.h.b16 %v403
      %v1158 = vunpack.c.l.b16 %v404
      %v1159 = vunpack.c.h.b16 %v404
      %v1160 = vunpack.c.l.b16 %v405
      %v1161 = vunpack.c.h.b16 %v405
      %v1162 = vunpack.c.l.b16 %v406
      %v1163 = vunpack.c.h.b16 %v406
      %v1164 = vunpack.c.l.b16 %v407
      %v1165 = vunpack.c.h.b16 %v407
      %v1166 = vunpack.c.l.b16 %v408
      %v1167 = vunpack.c.h.b16 %v408
      %v1168 = vunpack.c.l.b16 %v409
      %v1169 = vunpack.c.h.b16 %v409
      %v1170 = vunpack.c.l.b16 %v410
      %v1171 = vunpack.c.h.b16 %v410
      %v1172 = vunpack.c.l.b16 %v411
      %v1173 = vunpack.c.h.b16 %v411
      %v1174 = vunpack.c.l.b16 %v412
      %v1175 = vunpack.c.h.b16 %v412
      %v1176 = vunpack.c.l.b16 %v413
      %v1177 = vunpack.c.h.b16 %v413
      %v1178 = vunpack.c.l.b16 %v414
      %v1179 = vunpack.c.h.b16 %v414
      %v1180 = vunpack.c.l.b16 %v415
      %v1181 = vunpack.c.h.b16 %v415
      %v1182 = vunpack.c.l.b16 %v416
      %v1183 = vunpack.c.h.b16 %v416
      %v1184 = vunpack.c.l.b16 %v417
      %v1185 = vunpack.c.h.b16 %v417
      %v1186 = vunpack.c.l.b16 %v418
      %v1187 = vunpack.c.h.b16 %v418
      %v1188 = vunpack.c.l.b16 %v419
      %v1189 = vunpack.c.h.b16 %v419
      %v1190 = vunpack.c.l.b16 %v420
      %v1191 = vunpack.c.h.b16 %v420
      %v1192 = vunpack.c.l.b16 %v421
      %v1193 = vunpack.c.h.b16 %v421
      %v1194 = vunpack.c.l.b16 %v422
      %v1195 = vunpack.c.h.b16 %v422
      %v1196 = vunpack.c.l.b16 %v423
      %v1197 = vunpack.c.h.b16 %v423
      %v1198 = vunpack.c.l.b16 %v424
      %v1199 = vunpack.c.h.b16 %v424
      %v1200 = vunpack.c.l.b16 %v425
      %v1201 = vunpack.c.h.b16 %v425
      %v1202 = vunpack.c.l.b16 %v426
      %v1203 = vunpack.c.h.b16 %v426
      %v1204 = vunpack.c.l.b16 %v427
      %v1205 = vunpack.c.h.b16 %v427
      %v1206 = vunpack.c.l.b16 %v428
      %v1207 = vunpack.c.h.b16 %v428
      %v1208 = vunpack.c.l.b16 %v429
      %v1209 = vunpack.c.h.b16 %v429
      %v1210 = vunpack.c.l.b16 %v430
      %v1211 = vunpack.c.h.b16 %v430
      %v1212 = vunpack.c.l.b16 %v431
      %v1213 = vunpack.c.h.b16 %v431
      %v1214 = vunpack.c.l.b16 %v432
      %v1215 = vunpack.c.h.b16 %v432
      %v1216 = vunpack.c.l.b16 %v433
      %v1217 = vunpack.c.h.b16 %v433
      %v1218 = vunpack.c.l.b16 %v434
      %v1219 = vunpack.c.h.b16 %v434
      %v1220 = vunpack.c.l.b16 %v435
      %v1221 = vunpack.c.h.b16 %v435
      %v1222 = vunpack.c.l.b16 %v436
      %v1223 = vunpack.c.h.b16 %v436
      %v1224 = vunpack.c.l.b16 %v437
      %v1225 = vunpack.c.h.b16 %v437
      %v1226 = vpack.c.b16 %v722, %v714
      %v1227 = vpack.c.b16 %v723, %v715
      %v1228 = vpack.c.b16 %v724, %v716
      %v1229 = vpack.c.b16 %v725, %v717
      %v1230 = vpack.c.b16 %v726, %v718
      %v1231 = vpack.c.b16 %v727, %v719
      %v1232 = vpack.c.b16 %v728, %v720
      %v1233 = vpack.c.b16 %v729, %v721
      %v1234 = vpack.c.b16 %v738, %v730
      %v1235 = vpack.c.b16 %v739, %v731
      %v1236 = vpack.c.b16 %v740, %v732
      %v1237 = vpack.c.b16 %v741, %v733
      %v1238 = vpack.c.b16 %v742, %v734
      %v1239 = vpack.c.b16 %v743, %v735
      %v1240 = vpack.c.b16 %v744, %v736
      %v1241 = vpack.c.b16 %v745, %v737
      %v1242 = vpack.c.b16 %v754, %v746
      %v1243 = vpack.c.b16 %v755, %v747
      %v1244 = vpack.c.b16 %v756, %v748
      %v1245 = vpack.c.b16 %v757, %v749
      %v1246 = vpack.c.b16 %v758, %v750
      %v1247 = vpack.c.b16 %v759, %v751
      %v1248 = vpack.c.b16 %v760, %v752
      %v1249 = vpack.c.b16 %v761, %v753
      %v1250 = vpack.c.b16 %v770, %v762
      %v1251 = vpack.c.b16 %v771, %v763
      %v1252 = vpack.c.b16 %v772, %v764
      %v1253 = vpack.c.b16 %v773, %v765
      %v1254 = vpack.c.b16 %v774, %v766
      %v1255 = vpack.c.b16 %v775, %v767
      %v1256 = vpack.c.b16 %v776, %v768
      %v1257 = vpack.c.b16 %v777, %v769
      %v1258 = vpack.c.b16 %v786, %v778
      %v1259 = vpack.c.b16 %v787, %v779
      %v1260 = vpack.c.b16 %v788, %v780
      %v1261 = vpack.c.b16 %v789, %v781
      %v1262 = vpack.c.b16 %v790, %v782
      %v1263 = vpack.c.b16 %v791, %v783
      %v1264 = vpack.c.b16 %v792, %v784
      %v1265 = vpack.c.b16 %v793, %v785
      %v1266 = vpack.c.b16 %v802, %v794
      %v1267 = vpack.c.b16 %v803, %v795
      %v1268 = vpack.c.b16 %v804, %v796
      %v1269 = vpack.c.b16 %v805, %v797
      %v1270 = vpack.c.b16 %v806, %v798
      %v1271 = vpack.c.b16 %v807, %v799
      %v1272 = vpack.c.b16 %v808, %v800
      %v1273 = vpack.c.b16 %v809, %v801
      %v1274 = vpack.c.b16 %v818, %v810
      %v1275 = vpack.c.b16 %v819, %v811
      %v1276 = vpack.c.b16 %v820, %v812
      %v1277 = vpack.c.b16 %v821, %v813
      %v1278 = vpack.c.b16 %v822, %v814
      %v1279 = vpack.c.b16 %v823, %v815
      %v1280 = vpack.c.b16 %v824, %v816
      %v1281 = vpack.c.b16 %v825, %v817
      %v1282 = vpack.c.b16 %v834, %v826
      %v1283 = vpack.c.b16 %v835, %v827
      %v1284 = vpack.c.b16 %v836, %v828
      %v1285 = vpack.c.b16 %v837, %v829
      %v1286 = vpack.c.b16 %v838, %v830
      %v1287 = vpack.c.b16 %v839, %v831
      %v1288 = vpack.c.b16 %v840, %v832
      %v1289 = vpack.c.b16 %v841, %v833
      %v1290 = vpack.c.b16 %v850, %v842
      %v1291 = vpack.c.b16 %v851, %v843
      %v1292 = vpack.c.b16 %v852, %v844
      %v1293 = vpack.c.b16 %v853, %v845
      %v1294 = vpack.c.b16 %v854, %v846
      %v1295 = vpack.c.b16 %v855, %v847
      %v1296 = vpack.c.b16 %v856, %v848
      %v1297 = vpack.c.b16 %v857, %v849
      %v1298 = vpack.c.b16 %v866, %v858
      %v1299 = vpack.c.b16 %v867, %v859
      %v1300 = vpack.c.b16 %v868, %v860
      %v1301 = vpack.c.b16 %v869, %v861
      %v1302 = vpack.c.b16 %v870, %v862
      %v1303 = vpack.c.b16 %v871, %v863
      %v1304 = vpack.c.b16 %v872, %v864
      %v1305 = vpack.c.b16 %v873, %v865
      %v1306 = vpack.c.b16 %v882, %v874
      %v1307 = vpack.c.b16 %v883, %v875
      %v1308 = vpack.c.b16 %v884, %v876
      %v1309 = vpack.c.b16 %v885, %v877
      %v1310 = vpack.c.b16 %v886, %v878
      %v1311 = vpack.c.b16 %v887, %v879
      %v1312 = vpack.c.b16 %v888, %v880
      %v1313 = vpack.c.b16 %v889, %v881
      %v1314 = vpack.c.b16 %v898, %v890
      %v1315 = vpack.c.b16 %v899, %v891
      %v1316 = vpack.c.b16 %v900, %v892
      %v1317 = vpack.c.b16 %v901, %v893
      %v1318 = vpack.c.b16 %v902, %v894
      %v1319 = vpack.c.b16 %v903, %v895
      %v1320 = vpack.c.b16 %v904, %v896
      %v1321 = vpack.c.b16 %v905, %v897
      %v1322 = vpack.c.b16 %v914, %v906
      %v1323 = vpack.c.b16 %v915, %v907
      %v1324 = vpack.c.b16 %v916, %v908
      %v1325 = vpack.c.b16 %v917, %v909
      %v1326 = vpack.c.b16 %v918, %v910
      %v1327 = vpack.c.b16 %v919, %v911
      %v1328 = vpack.c.b16 %v920, %v912
      %v1329 = vpack.c.b16 %v921, %v913
      %v1330 = vpack.c.b16 %v930, %v922
      %v1331 = vpack.c.b16 %v931, %v923
      %v1332 = vpack.c.b16 %v932, %v924
      %v1333 = vpack.c.b16 %v933, %v925
      %v1334 = vpack.c.b16 %v934, %v926
      %v1335 = vpack.c.b16 %v935, %v927
      %v1336 = vpack.c.b16 %v936, %v928
      %v1337 = vpack.c.b16 %v937, %v929
      %v1338 = vpack.c.b16 %v946, %v938
      %v1339 = vpack.c.b16 %v947, %v939
      %v1340 = vpack.c.b16 %v948, %v940
      %v1341 = vpack.c.b16 %v949, %v941
      %v1342 = vpack.c.b16 %v950, %v942
      %v1343 = vpack.c.b16 %v951, %v943
      %v1344 = vpack.c.b16 %v952, %v944
      %v1345 = vpack.c.b16 %v953, %v945
      %v1346 = vpack.c.b16 %v962, %v954
      %v1347 = vpack.c.b16 %v963, %v955
      %v1348 = vpack.c.b16 %v964, %v956
      %v1349 = vpack.c.b16 %v965, %v957
      %v1350 = vpack.c.b16 %v966, %v958
      %v1351 = vpack.c.b16 %v967, %v959
      %v1352 = vpack.c.b16 %v968, %v960
      %v1353 = vpack.c.b16 %v969, %v961
      %v1354 = vpack.c.b16 %v978, %v970
      %v1355 = vpack.c.b16 %v979, %v971
      %v1356 = vpack.c.b16 %v980, %v972
      %v1357 = vpack.c.b16 %v981, %v973
      %v1358 = vpack.c.b16 %v982, %v974
      %v1359 = vpack.c.b16 %v983, %v975
      %v1360 = vpack.c.b16 %v984, %v976
      %v1361 = vpack.c.b16 %v985, %v977
      %v1362 = vpack.c.b16 %v994, %v986
      %v1363 = vpack.c.b16 %v995, %v987
      %v1364 = vpack.c.b16 %v996, %v988
      %v1365 = vpack.c.b16 %v997, %v989
      %v1366 = vpack.c.b16 %v998, %v990
      %v1367 = vpack.c.b16 %v999, %v991
      %v1368 = vpack.c.b16 %v1000, %v992
      %v1369 = vpack.c.b16 %v1001, %v993
      %v1370 = vpack.c.b16 %v1010, %v1002
      %v1371 = vpack.c.b16 %v1011, %v1003
      %v1372 = vpack.c.b16 %v1012, %v1004
      %v1373 = vpack.c.b16 %v1013, %v1005
      %v1374 = vpack.c.b16 %v1014, %v1006
      %v1375 = vpack.c.b16 %v1015, %v1007
      %v1376 = vpack.c.b16 %v1016, %v1008
      %v1377 = vpack.c.b16 %v1017, %v1009
      %v1378 = vpack.c.b16 %v1026, %v1018
      %v1379 = vpack.c.b16 %v1027, %v1019
      %v1380 = vpack.c.b16 %v1028, %v1020
      %v1381 = vpack.c.b16 %v1029, %v1021
      %v1382 = vpack.c.b16 %v1030, %v1022
      %v1383 = vpack.c.b16 %v1031, %v1023
      %v1384 = vpack.c.b16 %v1032, %v1024
      %v1385 = vpack.c.b16 %v1033, %v1025
      %v1386 = vpack.c.b16 %v1042, %v1034
      %v1387 = vpack.c.b16 %v1043, %v1035
      %v1388 = vpack.c.b16 %v1044, %v1036
      %v1389 = vpack.c.b16 %v1045, %v1037
      %v1390 = vpack.c.b16 %v1046, %v1038
      %v1391 = vpack.c.b16 %v1047, %v1039
      %v1392 = vpack.c.b16 %v1048, %v1040
      %v1393 = vpack.c.b16 %v1049, %v1041
      %v1394 = vpack.c.b16 %v1058, %v1050
      %v1395 = vpack.c.b16 %v1059, %v1051
      %v1396 = vpack.c.b16 %v1060, %v1052
      %v1397 = vpack.c.b16 %v1061, %v1053
      %v1398 = vpack.c.b16 %v1062, %v1054
      %v1399 = vpack.c.b16 %v1063, %v1055
      %v1400 = vpack.c.b16 %v1064, %v1056
      %v1401 = vpack.c.b16 %v1065, %v1057
      %v1402 = vpack.c.b16 %v1074, %v1066
      %v1403 = vpack.c.b16 %v1075, %v1067
      %v1404 = vpack.c.b16 %v1076, %v1068
      %v1405 = vpack.c.b16 %v1077, %v1069
      %v1406 = vpack.c.b16 %v1078, %v1070
      %v1407 = vpack.c.b16 %v1079, %v1071
      %v1408 = vpack.c.b16 %v1080, %v1072
      %v1409 = vpack.c.b16 %v1081, %v1073
      %v1410 = vpack.c.b16 %v1090, %v1082
      %v1411 = vpack.c.b16 %v1091, %v1083
      %v1412 = vpack.c.b16 %v1092, %v1084
      %v1413 = vpack.c.b16 %v1093, %v1085
      %v1414 = vpack.c.b16 %v1094, %v1086
      %v1415 = vpack.c.b16 %v1095, %v1087
      %v1416 = vpack.c.b16 %v1096, %v1088
      %v1417 = vpack.c.b16 %v1097, %v1089
      %v1418 = vpack.c.b16 %v1106, %v1098
      %v1419 = vpack.c.b16 %v1107, %v1099
      %v1420 = vpack.c.b16 %v1108, %v1100
      %v1421 = vpack.c.b16 %v1109, %v1101
      %v1422 = vpack.c.b16 %v1110, %v1102
      %v1423 = vpack.c.b16 %v1111, %v1103
      %v1424 = vpack.c.b16 %v1112, %v1104
      %v1425 = vpack.c.b16 %v1113, %v1105
      %v1426 = vpack.c.b16 %v1122, %v1114
      %v1427 = vpack.c.b16 %v1123, %v1115
      %v1428 = vpack.c.b16 %v1124, %v1116
      %v1429 = vpack.c.b16 %v1125, %v1117
      %v1430 = vpack.c.b16 %v1126, %v1118
      %v1431 = vpack.c.b16 %v1127, %v1119
      %v1432 = vpack.c.b16 %v1128, %v1120
      %v1433 = vpack.c.b16 %v1129, %v1121
      %v1434 = vpack.c.b16 %v1138, %v1130
      %v1435 = vpack.c.b16 %v1139, %v1131
      %v1436 = vpack.c.b16 %v1140, %v1132
      %v1437 = vpack.c.b16 %v1141, %v1133
      %v1438 = vpack.c.b16 %v1142, %v1134
      %v1439 = vpack.c.b16 %v1143, %v1135
      %v1440 = vpack.c.b16 %v1144, %v1136
      %v1441 = vpack.c.b16 %v1145, %v1137
      %v1442 = vpack.c.b16 %v1154, %v1146
      %v1443 = vpack.c.b16 %v1155, %v1147
      %v1444 = vpack.c.b16 %v1156, %v1148
      %v1445 = vpack.c.b16 %v1157, %v1149
      %v1446 = vpack.c.b16 %v1158, %v1150
      %v1447 = vpack.c.b16 %v1159, %v1151
      %v1448 = vpack.c.b16 %v1160, %v1152
      %v1449 = vpack.c.b16 %v1161, %v1153
      %v1450 = vpack.c.b16 %v1170, %v1162
      %v1451 = vpack.c.b16 %v1171, %v1163
      %v1452 = vpack.c.b16 %v1172, %v1164
      %v1453 = vpack.c.b16 %v1173, %v1165
      %v1454 = vpack.c.b16 %v1174, %v1166
      %v1455 = vpack.c.b16 %v1175, %v1167
      %v1456 = vpack.c.b16 %v1176, %v1168
      %v1457 = vpack.c.b16 %v1177, %v1169
      %v1458 = vpack.c.b16 %v1186, %v1178
      %v1459 = vpack.c.b16 %v1187, %v1179
      %v1460 = vpack.c.b16 %v1188, %v1180
      %v1461 = vpack.c.b16 %v1189, %v1181
      %v1462 = vpack.c.b16 %v1190, %v1182
      %v1463 = vpack.c.b16 %v1191, %v1183
      %v1464 = vpack.c.b16 %v1192, %v1184
      %v1465 = vpack.c.b16 %v1193, %v1185
      %v1466 = vpack.c.b16 %v1202, %v1194
      %v1467 = vpack.c.b16 %v1203, %v1195
      %v1468 = vpack.c.b16 %v1204, %v1196
      %v1469 = vpack.c.b16 %v1205, %v1197
      %v1470 = vpack.c.b16 %v1206, %v1198
      %v1471 = vpack.c.b16 %v1207, %v1199
      %v1472 = vpack.c.b16 %v1208, %v1200
      %v1473 = vpack.c.b16 %v1209, %v1201
      %v1474 = vpack.c.b16 %v1218, %v1210
      %v1475 = vpack.c.b16 %v1219, %v1211
      %v1476 = vpack.c.b16 %v1220, %v1212
      %v1477 = vpack.c.b16 %v1221, %v1213
      %v1478 = vpack.c.b16 %v1222, %v1214
      %v1479 = vpack.c.b16 %v1223, %v1215
      %v1480 = vpack.c.b16 %v1224, %v1216
      %v1481 = vpack.c.b16 %v1225, %v1217
      %1738 = vmatpush.bf16.msra.mxu0 %v1282
      %1739 = vmatpush.bf16.msra.mxu0 %v1274
      %1740 = vmatpush.bf16.msra.mxu0 %v1266
      %1741 = vmatpush.bf16.msra.mxu0 %v1258
      %1742 = vmatpush.bf16.msra.mxu0 %v1250
      %1743 = vmatpush.bf16.msra.mxu0 %v1242
      %1744 = vmatpush.bf16.msra.mxu0 %v1234
      %1745 = vmatpush.bf16.msra.mxu0 %v1226
      %1746 = vmatmul.bf16.gmra.mxu0 %v450
      %v1747 = vpop.f32.mrf.mxu0
      %v1748 = vadd.f32 0.0, %v1747
      %v1749 = vpop.f32.mrf.mxu0
      %v1750 = vadd.f32 0.0, %v1749
      %1751 = vdwg.mxu0
      %1752 = vmatpush.bf16.msra.mxu0 %v1346
      %1753 = vmatpush.bf16.msra.mxu0 %v1338
      %1754 = vmatpush.bf16.msra.mxu0 %v1330
      %1755 = vmatpush.bf16.msra.mxu0 %v1322
      %1756 = vmatpush.bf16.msra.mxu0 %v1314
      %1757 = vmatpush.bf16.msra.mxu0 %v1306
      %1758 = vmatpush.bf16.msra.mxu0 %v1298
      %1759 = vmatpush.bf16.msra.mxu0 %v1290
      %1760 = vmatmul.bf16.gmra.mxu0 %v451
      %v1761 = vpop.f32.mrf.mxu0
      %v1762 = vadd.f32 %v1748, %v1761
      %v1763 = vpop.f32.mrf.mxu0
      %v1764 = vadd.f32 %v1750, %v1763
      %1765 = vdwg.mxu0
      %1766 = vmatpush.bf16.msra.mxu0 %v1410
      %1767 = vmatpush.bf16.msra.mxu0 %v1402
      %1768 = vmatpush.bf16.msra.mxu0 %v1394
      %1769 = vmatpush.bf16.msra.mxu0 %v1386
      %1770 = vmatpush.bf16.msra.mxu0 %v1378
      %1771 = vmatpush.bf16.msra.mxu0 %v1370
      %1772 = vmatpush.bf16.msra.mxu0 %v1362
      %1773 = vmatpush.bf16.msra.mxu0 %v1354
      %1774 = vmatmul.bf16.gmra.mxu0 %v452
      %v1775 = vpop.f32.mrf.mxu0
      %v1776 = vadd.f32 %v1762, %v1775
      %v1777 = vpop.f32.mrf.mxu0
      %v1778 = vadd.f32 %v1764, %v1777
      %1779 = vdwg.mxu0
      %1780 = vmatpush.bf16.msra.mxu0 %v1474
      %1781 = vmatpush.bf16.msra.mxu0 %v1466
      %1782 = vmatpush.bf16.msra.mxu0 %v1458
      %1783 = vmatpush.bf16.msra.mxu0 %v1450
      %1784 = vmatpush.bf16.msra.mxu0 %v1442
      %1785 = vmatpush.bf16.msra.mxu0 %v1434
      %1786 = vmatpush.bf16.msra.mxu0 %v1426
      %1787 = vmatpush.bf16.msra.mxu0 %v1418
      %1788 = vmatmul.bf16.gmra.mxu0 %v453
      %v1789 = vpop.f32.mrf.mxu0
      %v1790 = vadd.f32 %v1776, %v1789
      %v1791 = vpop.f32.mrf.mxu0
      %v1792 = vadd.f32 %v1778, %v1791
      %1793 = vdwg.mxu0
      %1794 = vmatpush.bf16.msra.mxu0 %v1283
      %1795 = vmatpush.bf16.msra.mxu0 %v1275
      %1796 = vmatpush.bf16.msra.mxu0 %v1267
      %1797 = vmatpush.bf16.msra.mxu0 %v1259
      %1798 = vmatpush.bf16.msra.mxu0 %v1251
      %1799 = vmatpush.bf16.msra.mxu0 %v1243
      %1800 = vmatpush.bf16.msra.mxu0 %v1235
      %1801 = vmatpush.bf16.msra.mxu0 %v1227
      %1802 = vmatmul.bf16.gmra.mxu0 %v450
      %v1803 = vpop.f32.mrf.mxu0
      %v1804 = vadd.f32 0.0, %v1803
      %v1805 = vpop.f32.mrf.mxu0
      %v1806 = vadd.f32 0.0, %v1805
      %1807 = vdwg.mxu0
      %1808 = vmatpush.bf16.msra.mxu0 %v1347
      %1809 = vmatpush.bf16.msra.mxu0 %v1339
      %1810 = vmatpush.bf16.msra.mxu0 %v1331
      %1811 = vmatpush.bf16.msra.mxu0 %v1323
      %1812 = vmatpush.bf16.msra.mxu0 %v1315
      %1813 = vmatpush.bf16.msra.mxu0 %v1307
      %1814 = vmatpush.bf16.msra.mxu0 %v1299
      %1815 = vmatpush.bf16.msra.mxu0 %v1291
      %1816 = vmatmul.bf16.gmra.mxu0 %v451
      %v1817 = vpop.f32.mrf.mxu0
      %v1818 = vadd.f32 %v1804, %v1817
      %v1819 = vpop.f32.mrf.mxu0
      %v1820 = vadd.f32 %v1806, %v1819
      %1821 = vdwg.mxu0
      %1822 = vmatpush.bf16.msra.mxu0 %v1411
      %1823 = vmatpush.bf16.msra.mxu0 %v1403
      %1824 = vmatpush.bf16.msra.mxu0 %v1395
      %1825 = vmatpush.bf16.msra.mxu0 %v1387
      %1826 = vmatpush.bf16.msra.mxu0 %v1379
      %1827 = vmatpush.bf16.msra.mxu0 %v1371
      %1828 = vmatpush.bf16.msra.mxu0 %v1363
      %1829 = vmatpush.bf16.msra.mxu0 %v1355
      %1830 = vmatmul.bf16.gmra.mxu0 %v452
      %v1831 = vpop.f32.mrf.mxu0
      %v1832 = vadd.f32 %v1818, %v1831
      %v1833 = vpop.f32.mrf.mxu0
      %v1834 = vadd.f32 %v1820, %v1833
      %1835 = vdwg.mxu0
      %1836 = vmatpush.bf16.msra.mxu0 %v1475
      %1837 = vmatpush.bf16.msra.mxu0 %v1467
      %1838 = vmatpush.bf16.msra.mxu0 %v1459
      %1839 = vmatpush.bf16.msra.mxu0 %v1451
      %1840 = vmatpush.bf16.msra.mxu0 %v1443
      %1841 = vmatpush.bf16.msra.mxu0 %v1435
      %1842 = vmatpush.bf16.msra.mxu0 %v1427
      %1843 = vmatpush.bf16.msra.mxu0 %v1419
      %1844 = vmatmul.bf16.gmra.mxu0 %v453
      %v1845 = vpop.f32.mrf.mxu0
      %v1846 = vadd.f32 %v1832, %v1845
      %v1847 = vpop.f32.mrf.mxu0
      %v1848 = vadd.f32 %v1834, %v1847
      %1849 = vdwg.mxu0
      %1850 = vmatpush.bf16.msra.mxu0 %v1284
      %1851 = vmatpush.bf16.msra.mxu0 %v1276
      %1852 = vmatpush.bf16.msra.mxu0 %v1268
      %1853 = vmatpush.bf16.msra.mxu0 %v1260
      %1854 = vmatpush.bf16.msra.mxu0 %v1252
      %1855 = vmatpush.bf16.msra.mxu0 %v1244
      %1856 = vmatpush.bf16.msra.mxu0 %v1236
      %1857 = vmatpush.bf16.msra.mxu0 %v1228
      %1858 = vmatmul.bf16.gmra.mxu0 %v450
      %v1859 = vpop.f32.mrf.mxu0
      %v1860 = vadd.f32 0.0, %v1859
      %v1861 = vpop.f32.mrf.mxu0
      %v1862 = vadd.f32 0.0, %v1861
      %1863 = vdwg.mxu0
      %1864 = vmatpush.bf16.msra.mxu0 %v1348
      %1865 = vmatpush.bf16.msra.mxu0 %v1340
      %1866 = vmatpush.bf16.msra.mxu0 %v1332
      %1867 = vmatpush.bf16.msra.mxu0 %v1324
      %1868 = vmatpush.bf16.msra.mxu0 %v1316
      %1869 = vmatpush.bf16.msra.mxu0 %v1308
      %1870 = vmatpush.bf16.msra.mxu0 %v1300
      %1871 = vmatpush.bf16.msra.mxu0 %v1292
      %1872 = vmatmul.bf16.gmra.mxu0 %v451
      %v1873 = vpop.f32.mrf.mxu0
      %v1874 = vadd.f32 %v1860, %v1873
      %v1875 = vpop.f32.mrf.mxu0
      %v1876 = vadd.f32 %v1862, %v1875
      %1877 = vdwg.mxu0
      %1878 = vmatpush.bf16.msra.mxu0 %v1412
      %1879 = vmatpush.bf16.msra.mxu0 %v1404
      %1880 = vmatpush.bf16.msra.mxu0 %v1396
      %1881 = vmatpush.bf16.msra.mxu0 %v1388
      %1882 = vmatpush.bf16.msra.mxu0 %v1380
      %1883 = vmatpush.bf16.msra.mxu0 %v1372
      %1884 = vmatpush.bf16.msra.mxu0 %v1364
      %1885 = vmatpush.bf16.msra.mxu0 %v1356
      %1886 = vmatmul.bf16.gmra.mxu0 %v452
      %v1887 = vpop.f32.mrf.mxu0
      %v1888 = vadd.f32 %v1874, %v1887
      %v1889 = vpop.f32.mrf.mxu0
      %v1890 = vadd.f32 %v1876, %v1889
      %1891 = vdwg.mxu0
      %1892 = vmatpush.bf16.msra.mxu0 %v1476
      %1893 = vmatpush.bf16.msra.mxu0 %v1468
      %1894 = vmatpush.bf16.msra.mxu0 %v1460
      %1895 = vmatpush.bf16.msra.mxu0 %v1452
      %1896 = vmatpush.bf16.msra.mxu0 %v1444
      %1897 = vmatpush.bf16.msra.mxu0 %v1436
      %1898 = vmatpush.bf16.msra.mxu0 %v1428
      %1899 = vmatpush.bf16.msra.mxu0 %v1420
      %1900 = vmatmul.bf16.gmra.mxu0 %v453
      %v1901 = vpop.f32.mrf.mxu0
      %v1902 = vadd.f32 %v1888, %v1901
      %v1903 = vpop.f32.mrf.mxu0
      %v1904 = vadd.f32 %v1890, %v1903
      %1905 = vdwg.mxu0
      %1906 = vmatpush.bf16.msra.mxu0 %v1285
      %1907 = vmatpush.bf16.msra.mxu0 %v1277
      %1908 = vmatpush.bf16.msra.mxu0 %v1269
      %1909 = vmatpush.bf16.msra.mxu0 %v1261
      %1910 = vmatpush.bf16.msra.mxu0 %v1253
      %1911 = vmatpush.bf16.msra.mxu0 %v1245
      %1912 = vmatpush.bf16.msra.mxu0 %v1237
      %1913 = vmatpush.bf16.msra.mxu0 %v1229
      %1914 = vmatmul.bf16.gmra.mxu0 %v450
      %v1915 = vpop.f32.mrf.mxu0
      %v1916 = vadd.f32 0.0, %v1915
      %v1917 = vpop.f32.mrf.mxu0
      %v1918 = vadd.f32 0.0, %v1917
      %1919 = vdwg.mxu0
      %1920 = vmatpush.bf16.msra.mxu0 %v1349
      %1921 = vmatpush.bf16.msra.mxu0 %v1341
      %1922 = vmatpush.bf16.msra.mxu0 %v1333
      %1923 = vmatpush.bf16.msra.mxu0 %v1325
      %1924 = vmatpush.bf16.msra.mxu0 %v1317
      %1925 = vmatpush.bf16.msra.mxu0 %v1309
      %1926 = vmatpush.bf16.msra.mxu0 %v1301
      %1927 = vmatpush.bf16.msra.mxu0 %v1293
      %1928 = vmatmul.bf16.gmra.mxu0 %v451
      %v1929 = vpop.f32.mrf.mxu0
      %v1930 = vadd.f32 %v1916, %v1929
      %v1931 = vpop.f32.mrf.mxu0
      %v1932 = vadd.f32 %v1918, %v1931
      %1933 = vdwg.mxu0
      %1934 = vmatpush.bf16.msra.mxu0 %v1413
      %1935 = vmatpush.bf16.msra.mxu0 %v1405
      %1936 = vmatpush.bf16.msra.mxu0 %v1397
      %1937 = vmatpush.bf16.msra.mxu0 %v1389
      %1938 = vmatpush.bf16.msra.mxu0 %v1381
      %1939 = vmatpush.bf16.msra.mxu0 %v1373
      %1940 = vmatpush.bf16.msra.mxu0 %v1365
      %1941 = vmatpush.bf16.msra.mxu0 %v1357
      %1942 = vmatmul.bf16.gmra.mxu0 %v452
      %v1943 = vpop.f32.mrf.mxu0
      %v1944 = vadd.f32 %v1930, %v1943
      %v1945 = vpop.f32.mrf.mxu0
      %v1946 = vadd.f32 %v1932, %v1945
      %1947 = vdwg.mxu0
      %1948 = vmatpush.bf16.msra.mxu0 %v1477
      %1949 = vmatpush.bf16.msra.mxu0 %v1469
      %1950 = vmatpush.bf16.msra.mxu0 %v1461
      %1951 = vmatpush.bf16.msra.mxu0 %v1453
      %1952 = vmatpush.bf16.msra.mxu0 %v1445
      %1953 = vmatpush.bf16.msra.mxu0 %v1437
      %1954 = vmatpush.bf16.msra.mxu0 %v1429
      %1955 = vmatpush.bf16.msra.mxu0 %v1421
      %1956 = vmatmul.bf16.gmra.mxu0 %v453
      %v1957 = vpop.f32.mrf.mxu0
      %v1958 = vadd.f32 %v1944, %v1957
      %v1959 = vpop.f32.mrf.mxu0
      %v1960 = vadd.f32 %v1946, %v1959
      %1961 = vdwg.mxu0
      %1962 = vmatpush.bf16.msra.mxu0 %v1286
      %1963 = vmatpush.bf16.msra.mxu0 %v1278
      %1964 = vmatpush.bf16.msra.mxu0 %v1270
      %1965 = vmatpush.bf16.msra.mxu0 %v1262
      %1966 = vmatpush.bf16.msra.mxu0 %v1254
      %1967 = vmatpush.bf16.msra.mxu0 %v1246
      %1968 = vmatpush.bf16.msra.mxu0 %v1238
      %1969 = vmatpush.bf16.msra.mxu0 %v1230
      %1970 = vmatmul.bf16.gmra.mxu0 %v450
      %v1971 = vpop.f32.mrf.mxu0
      %v1972 = vadd.f32 0.0, %v1971
      %v1973 = vpop.f32.mrf.mxu0
      %v1974 = vadd.f32 0.0, %v1973
      %1975 = vdwg.mxu0
      %1976 = vmatpush.bf16.msra.mxu0 %v1350
      %1977 = vmatpush.bf16.msra.mxu0 %v1342
      %1978 = vmatpush.bf16.msra.mxu0 %v1334
      %1979 = vmatpush.bf16.msra.mxu0 %v1326
      %1980 = vmatpush.bf16.msra.mxu0 %v1318
      %1981 = vmatpush.bf16.msra.mxu0 %v1310
      %1982 = vmatpush.bf16.msra.mxu0 %v1302
      %1983 = vmatpush.bf16.msra.mxu0 %v1294
      %1984 = vmatmul.bf16.gmra.mxu0 %v451
      %v1985 = vpop.f32.mrf.mxu0
      %v1986 = vadd.f32 %v1972, %v1985
      %v1987 = vpop.f32.mrf.mxu0
      %v1988 = vadd.f32 %v1974, %v1987
      %1989 = vdwg.mxu0
      %1990 = vmatpush.bf16.msra.mxu0 %v1414
      %1991 = vmatpush.bf16.msra.mxu0 %v1406
      %1992 = vmatpush.bf16.msra.mxu0 %v1398
      %1993 = vmatpush.bf16.msra.mxu0 %v1390
      %1994 = vmatpush.bf16.msra.mxu0 %v1382
      %1995 = vmatpush.bf16.msra.mxu0 %v1374
      %1996 = vmatpush.bf16.msra.mxu0 %v1366
      %1997 = vmatpush.bf16.msra.mxu0 %v1358
      %1998 = vmatmul.bf16.gmra.mxu0 %v452
      %v1999 = vpop.f32.mrf.mxu0
      %v2000 = vadd.f32 %v1986, %v1999
      %v2001 = vpop.f32.mrf.mxu0
      %v2002 = vadd.f32 %v1988, %v2001
      %2003 = vdwg.mxu0
      %2004 = vmatpush.bf16.msra.mxu0 %v1478
      %2005 = vmatpush.bf16.msra.mxu0 %v1470
      %2006 = vmatpush.bf16.msra.mxu0 %v1462
      %2007 = vmatpush.bf16.msra.mxu0 %v1454
      %2008 = vmatpush.bf16.msra.mxu0 %v1446
      %2009 = vmatpush.bf16.msra.mxu0 %v1438
      %2010 = vmatpush.bf16.msra.mxu0 %v1430
      %2011 = vmatpush.bf16.msra.mxu0 %v1422
      %2012 = vmatmul.bf16.gmra.mxu0 %v453
      %v2013 = vpop.f32.mrf.mxu0
      %v2014 = vadd.f32 %v2000, %v2013
      %v2015 = vpop.f32.mrf.mxu0
      %v2016 = vadd.f32 %v2002, %v2015
      %2017 = vdwg.mxu0
      %2018 = vmatpush.bf16.msra.mxu0 %v1287
      %2019 = vmatpush.bf16.msra.mxu0 %v1279
      %2020 = vmatpush.bf16.msra.mxu0 %v1271
      %2021 = vmatpush.bf16.msra.mxu0 %v1263
      %2022 = vmatpush.bf16.msra.mxu0 %v1255
      %2023 = vmatpush.bf16.msra.mxu0 %v1247
      %2024 = vmatpush.bf16.msra.mxu0 %v1239
      %2025 = vmatpush.bf16.msra.mxu0 %v1231
      %2026 = vmatmul.bf16.gmra.mxu0 %v450
      %v2027 = vpop.f32.mrf.mxu0
      %v2028 = vadd.f32 0.0, %v2027
      %v2029 = vpop.f32.mrf.mxu0
      %v2030 = vadd.f32 0.0, %v2029
      %2031 = vdwg.mxu0
      %2032 = vmatpush.bf16.msra.mxu0 %v1351
      %2033 = vmatpush.bf16.msra.mxu0 %v1343
      %2034 = vmatpush.bf16.msra.mxu0 %v1335
      %2035 = vmatpush.bf16.msra.mxu0 %v1327
      %2036 = vmatpush.bf16.msra.mxu0 %v1319
      %2037 = vmatpush.bf16.msra.mxu0 %v1311
      %2038 = vmatpush.bf16.msra.mxu0 %v1303
      %2039 = vmatpush.bf16.msra.mxu0 %v1295
      %2040 = vmatmul.bf16.gmra.mxu0 %v451
      %v2041 = vpop.f32.mrf.mxu0
      %v2042 = vadd.f32 %v2028, %v2041
      %v2043 = vpop.f32.mrf.mxu0
      %v2044 = vadd.f32 %v2030, %v2043
      %2045 = vdwg.mxu0
      %2046 = vmatpush.bf16.msra.mxu0 %v1415
      %2047 = vmatpush.bf16.msra.mxu0 %v1407
      %2048 = vmatpush.bf16.msra.mxu0 %v1399
      %2049 = vmatpush.bf16.msra.mxu0 %v1391
      %2050 = vmatpush.bf16.msra.mxu0 %v1383
      %2051 = vmatpush.bf16.msra.mxu0 %v1375
      %2052 = vmatpush.bf16.msra.mxu0 %v1367
      %2053 = vmatpush.bf16.msra.mxu0 %v1359
      %2054 = vmatmul.bf16.gmra.mxu0 %v452
      %v2055 = vpop.f32.mrf.mxu0
      %v2056 = vadd.f32 %v2042, %v2055
      %v2057 = vpop.f32.mrf.mxu0
      %v2058 = vadd.f32 %v2044, %v2057
      %2059 = vdwg.mxu0
      %2060 = vmatpush.bf16.msra.mxu0 %v1479
      %2061 = vmatpush.bf16.msra.mxu0 %v1471
      %2062 = vmatpush.bf16.msra.mxu0 %v1463
      %2063 = vmatpush.bf16.msra.mxu0 %v1455
      %2064 = vmatpush.bf16.msra.mxu0 %v1447
      %2065 = vmatpush.bf16.msra.mxu0 %v1439
      %2066 = vmatpush.bf16.msra.mxu0 %v1431
      %2067 = vmatpush.bf16.msra.mxu0 %v1423
      %2068 = vmatmul.bf16.gmra.mxu0 %v453
      %v2069 = vpop.f32.mrf.mxu0
      %v2070 = vadd.f32 %v2056, %v2069
      %v2071 = vpop.f32.mrf.mxu0
      %v2072 = vadd.f32 %v2058, %v2071
      %2073 = vdwg.mxu0
      %2074 = vmatpush.bf16.msra.mxu0 %v1288
      %2075 = vmatpush.bf16.msra.mxu0 %v1280
      %2076 = vmatpush.bf16.msra.mxu0 %v1272
      %2077 = vmatpush.bf16.msra.mxu0 %v1264
      %2078 = vmatpush.bf16.msra.mxu0 %v1256
      %2079 = vmatpush.bf16.msra.mxu0 %v1248
      %2080 = vmatpush.bf16.msra.mxu0 %v1240
      %2081 = vmatpush.bf16.msra.mxu0 %v1232
      %2082 = vmatmul.bf16.gmra.mxu0 %v450
      %v2083 = vpop.f32.mrf.mxu0
      %v2084 = vadd.f32 0.0, %v2083
      %v2085 = vpop.f32.mrf.mxu0
      %v2086 = vadd.f32 0.0, %v2085
      %2087 = vdwg.mxu0
      %2088 = vmatpush.bf16.msra.mxu0 %v1352
      %2089 = vmatpush.bf16.msra.mxu0 %v1344
      %2090 = vmatpush.bf16.msra.mxu0 %v1336
      %2091 = vmatpush.bf16.msra.mxu0 %v1328
      %2092 = vmatpush.bf16.msra.mxu0 %v1320
      %2093 = vmatpush.bf16.msra.mxu0 %v1312
      %2094 = vmatpush.bf16.msra.mxu0 %v1304
      %2095 = vmatpush.bf16.msra.mxu0 %v1296
      %2096 = vmatmul.bf16.gmra.mxu0 %v451
      %v2097 = vpop.f32.mrf.mxu0
      %v2098 = vadd.f32 %v2084, %v2097
      %v2099 = vpop.f32.mrf.mxu0
      %v2100 = vadd.f32 %v2086, %v2099
      %2101 = vdwg.mxu0
      %2102 = vmatpush.bf16.msra.mxu0 %v1416
      %2103 = vmatpush.bf16.msra.mxu0 %v1408
      %2104 = vmatpush.bf16.msra.mxu0 %v1400
      %2105 = vmatpush.bf16.msra.mxu0 %v1392
      %2106 = vmatpush.bf16.msra.mxu0 %v1384
      %2107 = vmatpush.bf16.msra.mxu0 %v1376
      %2108 = vmatpush.bf16.msra.mxu0 %v1368
      %2109 = vmatpush.bf16.msra.mxu0 %v1360
      %2110 = vmatmul.bf16.gmra.mxu0 %v452
      %v2111 = vpop.f32.mrf.mxu0
      %v2112 = vadd.f32 %v2098, %v2111
      %v2113 = vpop.f32.mrf.mxu0
      %v2114 = vadd.f32 %v2100, %v2113
      %2115 = vdwg.mxu0
      %2116 = vmatpush.bf16.msra.mxu0 %v1480
      %2117 = vmatpush.bf16.msra.mxu0 %v1472
      %2118 = vmatpush.bf16.msra.mxu0 %v1464
      %2119 = vmatpush.bf16.msra.mxu0 %v1456
      %2120 = vmatpush.bf16.msra.mxu0 %v1448
      %2121 = vmatpush.bf16.msra.mxu0 %v1440
      %2122 = vmatpush.bf16.msra.mxu0 %v1432
      %2123 = vmatpush.bf16.msra.mxu0 %v1424
      %2124 = vmatmul.bf16.gmra.mxu0 %v453
      %v2125 = vpop.f32.mrf.mxu0
      %v2126 = vadd.f32 %v2112, %v2125
      %v2127 = vpop.f32.mrf.mxu0
      %v2128 = vadd.f32 %v2114, %v2127
      %2129 = vdwg.mxu0
      %2130 = vmatpush.bf16.msra.mxu0 %v1289
      %2131 = vmatpush.bf16.msra.mxu0 %v1281
      %2132 = vmatpush.bf16.msra.mxu0 %v1273
      %2133 = vmatpush.bf16.msra.mxu0 %v1265
      %2134 = vmatpush.bf16.msra.mxu0 %v1257
      %2135 = vmatpush.bf16.msra.mxu0 %v1249
      %2136 = vmatpush.bf16.msra.mxu0 %v1241
      %2137 = vmatpush.bf16.msra.mxu0 %v1233
      %2138 = vmatmul.bf16.gmra.mxu0 %v450
      %v2139 = vpop.f32.mrf.mxu0
      %v2140 = vadd.f32 0.0, %v2139
      %v2141 = vpop.f32.mrf.mxu0
      %v2142 = vadd.f32 0.0, %v2141
      %2143 = vdwg.mxu0
      %2144 = vmatpush.bf16.msra.mxu0 %v1353
      %2145 = vmatpush.bf16.msra.mxu0 %v1345
      %2146 = vmatpush.bf16.msra.mxu0 %v1337
      %2147 = vmatpush.bf16.msra.mxu0 %v1329
      %2148 = vmatpush.bf16.msra.mxu0 %v1321
      %2149 = vmatpush.bf16.msra.mxu0 %v1313
      %2150 = vmatpush.bf16.msra.mxu0 %v1305
      %2151 = vmatpush.bf16.msra.mxu0 %v1297
      %2152 = vmatmul.bf16.gmra.mxu0 %v451
      %v2153 = vpop.f32.mrf.mxu0
      %v2154 = vadd.f32 %v2140, %v2153
      %v2155 = vpop.f32.mrf.mxu0
      %v2156 = vadd.f32 %v2142, %v2155
      %2157 = vdwg.mxu0
      %2158 = vmatpush.bf16.msra.mxu0 %v1417
      %2159 = vmatpush.bf16.msra.mxu0 %v1409
      %2160 = vmatpush.bf16.msra.mxu0 %v1401
      %2161 = vmatpush.bf16.msra.mxu0 %v1393
      %2162 = vmatpush.bf16.msra.mxu0 %v1385
      %2163 = vmatpush.bf16.msra.mxu0 %v1377
      %2164 = vmatpush.bf16.msra.mxu0 %v1369
      %2165 = vmatpush.bf16.msra.mxu0 %v1361
      %2166 = vmatmul.bf16.gmra.mxu0 %v452
      %v2167 = vpop.f32.mrf.mxu0
      %v2168 = vadd.f32 %v2154, %v2167
      %v2169 = vpop.f32.mrf.mxu0
      %v2170 = vadd.f32 %v2156, %v2169
      %2171 = vdwg.mxu0
      %2172 = vmatpush.bf16.msra.mxu0 %v1481
      %2173 = vmatpush.bf16.msra.mxu0 %v1473
      %2174 = vmatpush.bf16.msra.mxu0 %v1465
      %2175 = vmatpush.bf16.msra.mxu0 %v1457
      %2176 = vmatpush.bf16.msra.mxu0 %v1449
      %2177 = vmatpush.bf16.msra.mxu0 %v1441
      %2178 = vmatpush.bf16.msra.mxu0 %v1433
      %2179 = vmatpush.bf16.msra.mxu0 %v1425
      %2180 = vmatmul.bf16.gmra.mxu0 %v453
      %v2181 = vpop.f32.mrf.mxu0
      %v2182 = vadd.f32 %v2168, %v2181
      %v2183 = vpop.f32.mrf.mxu0
      %v2184 = vadd.f32 %v2170, %v2183
      %2185 = vdwg.mxu0
      %v2186 = vld [vmem:[#allocation2] sm:$0xff]
      %v2187 = vmax.f32 %v1790, %v1792
      %v2188 = vrot.slane %v2187, 4
      %v2189 = vmax.f32 %v2187, %v2188
      %v2190 = vrot.slane %v2189, 2
      %v2191 = vmax.f32 %v2189, %v2190
      %v2192 = vrot.slane %v2191, 1
      %v2193 = vmax.f32 %v2191, %v2192
      %v2194 = vmax.f32 %v1846, %v1848
      %v2195 = vrot.slane %v2194, 4
      %v2196 = vmax.f32 %v2194, %v2195
      %v2197 = vrot.slane %v2196, 2
      %v2198 = vmax.f32 %v2196, %v2197
      %v2199 = vrot.slane %v2198, 1
      %v2200 = vmax.f32 %v2198, %v2199
      %v2201 = vmax.f32 %v1902, %v1904
      %v2202 = vrot.slane %v2201, 4
      %v2203 = vmax.f32 %v2201, %v2202
      %v2204 = vrot.slane %v2203, 2
      %v2205 = vmax.f32 %v2203, %v2204
      %v2206 = vrot.slane %v2205, 1
      %v2207 = vmax.f32 %v2205, %v2206
      %v2208 = vmax.f32 %v1958, %v1960
      %v2209 = vrot.slane %v2208, 4
      %v2210 = vmax.f32 %v2208, %v2209
      %v2211 = vrot.slane %v2210, 2
      %v2212 = vmax.f32 %v2210, %v2211
      %v2213 = vrot.slane %v2212, 1
      %v2214 = vmax.f32 %v2212, %v2213
      %v2215 = vmax.f32 %v2014, %v2016
      %v2216 = vrot.slane %v2215, 4
      %v2217 = vmax.f32 %v2215, %v2216
      %v2218 = vrot.slane %v2217, 2
      %v2219 = vmax.f32 %v2217, %v2218
      %v2220 = vrot.slane %v2219, 1
      %v2221 = vmax.f32 %v2219, %v2220
      %v2222 = vmax.f32 %v2070, %v2072
      %v2223 = vrot.slane %v2222, 4
      %v2224 = vmax.f32 %v2222, %v2223
      %v2225 = vrot.slane %v2224, 2
      %v2226 = vmax.f32 %v2224, %v2225
      %v2227 = vrot.slane %v2226, 1
      %v2228 = vmax.f32 %v2226, %v2227
      %v2229 = vmax.f32 %v2126, %v2128
      %v2230 = vrot.slane %v2229, 4
      %v2231 = vmax.f32 %v2229, %v2230
      %v2232 = vrot.slane %v2231, 2
      %v2233 = vmax.f32 %v2231, %v2232
      %v2234 = vrot.slane %v2233, 1
      %v2235 = vmax.f32 %v2233, %v2234
      %v2236 = vmax.f32 %v2182, %v2184
      %v2237 = vrot.slane %v2236, 4
      %v2238 = vmax.f32 %v2236, %v2237
      %v2239 = vrot.slane %v2238, 2
      %v2240 = vmax.f32 %v2238, %v2239
      %v2241 = vrot.slane %v2240, 1
      %v2242 = vmax.f32 %v2240, %v2241
      %v2251 = vrot.slane %v2200, 7
      %v2252 = vrot.slane %v2207, 6
      %v2253 = vrot.slane %v2214, 5
      %v2254 = vrot.slane %v2221, 4
      %v2255 = vrot.slane %v2228, 3
      %v2256 = vrot.slane %v2235, 2
      %v2257 = vrot.slane %v2242, 1
      %vm2258 = vcmask 1040384
      %v2259 = vsel %vm2258, %v2193, %v2251
      %vm2260 = vcmask 1042434
      %v2261 = vsel %vm2260, %v2252, %v2253
      %vm2262 = vcmask 1041408
      %v2263 = vsel %vm2262, %v2259, %v2261
      %vm2264 = vcmask 1044484
      %v2265 = vsel %vm2264, %v2254, %v2255
      %vm2266 = vcmask 1046534
      %v2267 = vsel %vm2266, %v2256, %v2257
      %vm2268 = vcmask 1045508
      %v2269 = vsel %vm2268, %v2265, %v2267
      %vm2270 = vcmask 1043456
      %v2271 = vsel %vm2270, %v2263, %v2269
      %v2273 = vmax.f32 %v2186, %v2271
      %2274 = vst [vmem:[#allocation2] sm:$0xff] %v2273
      // Predicated region
      $region33: #{generator_forward.18} parent=27 // pred_check
        %p2275 = pneg %p173
      $region34: #{generator_forward.18} parent=27 // pred_check_branch
        %2277 = sbr.rel (%p2275) target = $region36
      $region35: #{generator_forward.18} parent=27 // pred_region
        %v2278 = vld [vmem:[#allocation2] sm:$0xff]
        %vm2279 = vcmp.ge.f32.partialorder %v2278, 0.0
        %v2280 = vmul.f32 %v2278, 0.2
        %v2281 = vsel %vm2279, %v2278, %v2280
        %2282 = vst [vmem:[%s172] sm:$0xff] %v2281
      $region36: #{generator_forward.18} parent=27 // pred_fallthru
        _
      %p2283 = scmp.lt.s32.totalorder %s17, 1
      %s2284 = scalar_select %p2283, %s17, 1
      %s2285 = smul.addr %s2284, 8
      %s2286 = scalar_lea.vmem %s2, %s2285
      // Predicated region
      $region37: #{generator_forward.18} parent=27 // pred_check
        %p2287 = pneg %p92
      $region38: #{generator_forward.18} parent=27 // pred_check_branch
        %2289 = sbr.rel (%p2287) target = $region40
      $region39: #{generator_forward.18} parent=27 // pred_region
        _
      $region40: #{generator_forward.18} parent=27 // pred_fallthru
        _
    $region28: #{generator_forward.18} parent=5 // pred_fallthru
      _
    %p2290 = scmp.le.s32.totalorder 2, %s8
    // Predicated region
    $region41: #{generator_forward.18} parent=5 // pred_check
      %p2291 = pneg %p2290
    $region42: #{generator_forward.18} parent=5 // pred_check_branch
      %2293 = sbr.rel (%p2291) target = $region44
    $region43: #{generator_forward.18} parent=5 // pred_region
      %s2294 = ssub.s32 %s8, 2
      // Predicated region
      $region45: #{generator_forward.18} parent=43 // pred_check
        %p2295 = pneg %p98
      $region46: #{generator_forward.18} parent=43 // pred_check_branch
        %2297 = sbr.rel (%p2295) target = $region48
      $region47: #{generator_forward.18} parent=43 // pred_region
        %p2298 = scmp.lt.s32.totalorder %s19, 1
        %s2299 = scalar_select %p2298, %s19, 1
        %s2300 = smul.addr %s2299, 8
        %s2301 = scalar_lea.vmem %s2, %s2300
      $region48: #{generator_forward.18} parent=43 // pred_fallthru
        _
    $region44: #{generator_forward.18} parent=5 // pred_fallthru
      _
  $region6: #{generator_forward.18} parent=0 // loop_footer
    %s12 = sadd.s32 1, %s8
  $region7: #{generator_forward.18} parent=0 // loop_footer_branch
    %7 = sbr.rel target = $region3
  $region8: #{generator_forward.18} parent=0 // loop_exit
    _

// kernel: generator_forward.19
$region0: #{generator_forward.19}
  #allocation0 [shape = 'u32[]', space=smem, size = 0x4, offset = 0x4, fixed_abs, tag = 'smem constant byte address 0x4 - core index']
  #allocation1 [shape = 'u32[72,128]{1,0:T(1,128)}', space=vmem, size = 0x9000, scoped, tag = 'internal scratch']
  %s0 = inlined_call_operand.vmem [shape: bf16[2,1024], index: 0, kind: input, shape index: {}]
  %s1 = inlined_call_operand.vmem [shape: bf16[1024,512], index: 1, kind: input, shape index: {}]
  %s2 = inlined_call_operand.vmem [shape: f32[1,512], index: 2, kind: input, shape index: {}]
  %s3 = inlined_call_operand.vmem [shape: bf16[512,256], index: 3, kind: input, shape index: {}]
  %s4 = inlined_call_operand.vmem [shape: f32[1,256], index: 4, kind: input, shape index: {}]
  %s5 = inlined_call_operand.vmem [shape: bf16[256,128], index: 5, kind: input, shape index: {}]
  %s6 = inlined_call_operand.vmem [shape: f32[1,128], index: 6, kind: input, shape index: {}]
  %s7 = inlined_call_operand.hbm [shape: f32[2,128], index: 7, kind: output, shape index: {}]
  %s8 = sld [smem:[#allocation0]]
  $region38: #{generator_forward.19} parent=0
    _
  %s10 = ssub.s32 1, %s8
  %s11 = scalar_select 0, %s10, %s8
  $region1: #{generator_forward.19} parent=0
    #allocation2 [shape = 'u8[1024]{0}', space=vmem, size = 0x400, scoped, tag = 'output window, operand 0, single buffered']
    #allocation3 [shape = 's32[1]{0}', space=sflag, size = 0x4, scoped, tag = 'scoped memory for generator_forward.19']
    %12 = vsyncpa [#allocation3], 0
    // Predicated region
    $region2: #{generator_forward.19} parent=1 // pred_check
      _
    $region3: #{generator_forward.19} parent=1 // pred_check_branch
      %14 = sbr.rel (0) target = $region5
    $region4: #{generator_forward.19} parent=1 // pred_region
      _
    $region5: #{generator_forward.19} parent=1 // pred_fallthru
      _
    // Predicated region
    $region6: #{generator_forward.19} parent=1 // pred_check
      _
    $region7: #{generator_forward.19} parent=1 // pred_check_branch
      %16 = sbr.rel (0) target = $region9
    $region8: #{generator_forward.19} parent=1 // pred_region
      _
    $region9: #{generator_forward.19} parent=1 // pred_fallthru
      _
    // Predicated region
    $region10: #{generator_forward.19} parent=1 // pred_check
      _
    $region11: #{generator_forward.19} parent=1 // pred_check_branch
      %18 = sbr.rel (0) target = $region13
    $region12: #{generator_forward.19} parent=1 // pred_region
      _
    $region13: #{generator_forward.19} parent=1 // pred_fallthru
      _
    // Predicated region
    $region14: #{generator_forward.19} parent=1 // pred_check
      _
    $region15: #{generator_forward.19} parent=1 // pred_check_branch
      %20 = sbr.rel (0) target = $region17
    $region16: #{generator_forward.19} parent=1 // pred_region
      _
    $region17: #{generator_forward.19} parent=1 // pred_fallthru
      _
    // Predicated region
    $region18: #{generator_forward.19} parent=1 // pred_check
      _
    $region19: #{generator_forward.19} parent=1 // pred_check_branch
      %22 = sbr.rel (0) target = $region21
    $region20: #{generator_forward.19} parent=1 // pred_region
      _
    $region21: #{generator_forward.19} parent=1 // pred_fallthru
      _
    // Predicated region
    $region22: #{generator_forward.19} parent=1 // pred_check
      _
    $region23: #{generator_forward.19} parent=1 // pred_check_branch
      %24 = sbr.rel (0) target = $region25
    $region24: #{generator_forward.19} parent=1 // pred_region
      _
    $region25: #{generator_forward.19} parent=1 // pred_fallthru
      _
    // Predicated region
    $region26: #{generator_forward.19} parent=1 // pred_check
      _
    $region27: #{generator_forward.19} parent=1 // pred_check_branch
      %26 = sbr.rel (0) target = $region29
    $region28: #{generator_forward.19} parent=1 // pred_region
      _
    $region29: #{generator_forward.19} parent=1 // pred_fallthru
      _
    %v27 = vld [vmem:[%s0] sm:$0xff]
    %v28 = vld [vmem:[%s1] sm:$0xff]
    %v29 = vld [vmem:[%s1 + $0x8] sm:$0xff]
    %v30 = vld [vmem:[%s1 + $0x10] sm:$0xff]
    %v31 = vld [vmem:[%s1 + $0x18] sm:$0xff]
    %v32 = vld [vmem:[%s1 + $0x20] sm:$0xff]
    %v33 = vld [vmem:[%s1 + $0x28] sm:$0xff]
    %v34 = vld [vmem:[%s1 + $0x30] sm:$0xff]
    %v35 = vld [vmem:[%s1 + $0x38] sm:$0xff]
    %v36 = vld [vmem:[%s1 + $0x40] sm:$0xff]
    %v37 = vld [vmem:[%s1 + $0x48] sm:$0xff]
    %v38 = vld [vmem:[%s1 + $0x50] sm:$0xff]
    %v39 = vld [vmem:[%s1 + $0x58] sm:$0xff]
    %v40 = vld [vmem:[%s1 + $0x60] sm:$0xff]
    %v41 = vld [vmem:[%s1 + $0x68] sm:$0xff]
    %v42 = vld [vmem:[%s1 + $0x70] sm:$0xff]
    %v43 = vld [vmem:[%s1 + $0x78] sm:$0xff]
    %v44 = vld [vmem:[%s1 + $0x80] sm:$0xff]
    %v45 = vld [vmem:[%s1 + $0x88] sm:$0xff]
    %v46 = vld [vmem:[%s1 + $0x90] sm:$0xff]
    %v47 = vld [vmem:[%s1 + $0x98] sm:$0xff]
    %v48 = vld [vmem:[%s1 + $0xa0] sm:$0xff]
    %v49 = vld [vmem:[%s1 + $0xa8] sm:$0xff]
    %v50 = vld [vmem:[%s1 + $0xb0] sm:$0xff]
    %v51 = vld [vmem:[%s1 + $0xb8] sm:$0xff]
    %v52 = vld [vmem:[%s1 + $0xc0] sm:$0xff]
    %v53 = vld [vmem:[%s1 + $0xc8] sm:$0xff]
    %v54 = vld [vmem:[%s1 + $0xd0] sm:$0xff]
    %v55 = vld [vmem:[%s1 + $0xd8] sm:$0xff]
    %v56 = vld [vmem:[%s1 + $0xe0] sm:$0xff]
    %v57 = vld [vmem:[%s1 + $0xe8] sm:$0xff]
    %v58 = vld [vmem:[%s1 + $0xf0] sm:$0xff]
    %v59 = vld [vmem:[%s1 + $0xf8] sm:$0xff]
    %v60 = vld [vmem:[%s1 + $0x100] sm:$0xff]
    %v61 = vld [vmem:[%s1 + $0x108] sm:$0xff]
    %v62 = vld [vmem:[%s1 + $0x110] sm:$0xff]
    %v63 = vld [vmem:[%s1 + $0x118] sm:$0xff]
    %v64 = vld [vmem:[%s1 + $0x120] sm:$0xff]
    %v65 = vld [vmem:[%s1 + $0x128] sm:$0xff]
    %v66 = vld [vmem:[%s1 + $0x130] sm:$0xff]
    %v67 = vld [vmem:[%s1 + $0x138] sm:$0xff]
    %v68 = vld [vmem:[%s1 + $0x140] sm:$0xff]
    %v69 = vld [vmem:[%s1 + $0x148] sm:$0xff]
    %v70 = vld [vmem:[%s1 + $0x150] sm:$0xff]
    %v71 = vld [vmem:[%s1 + $0x158] sm:$0xff]
    %v72 = vld [vmem:[%s1 + $0x160] sm:$0xff]
    %v73 = vld [vmem:[%s1 + $0x168] sm:$0xff]
    %v74 = vld [vmem:[%s1 + $0x170] sm:$0xff]
    %v75 = vld [vmem:[%s1 + $0x178] sm:$0xff]
    %v76 = vld [vmem:[%s1 + $0x180] sm:$0xff]
    %v77 = vld [vmem:[%s1 + $0x188] sm:$0xff]
    %v78 = vld [vmem:[%s1 + $0x190] sm:$0xff]
    %v79 = vld [vmem:[%s1 + $0x198] sm:$0xff]
    %v80 = vld [vmem:[%s1 + $0x1a0] sm:$0xff]
    %v81 = vld [vmem:[%s1 + $0x1a8] sm:$0xff]
    %v82 = vld [vmem:[%s1 + $0x1b0] sm:$0xff]
    %v83 = vld [vmem:[%s1 + $0x1b8] sm:$0xff]
    %v84 = vld [vmem:[%s1 + $0x1c0] sm:$0xff]
    %v85 = vld [vmem:[%s1 + $0x1c8] sm:$0xff]
    %v86 = vld [vmem:[%s1 + $0x1d0] sm:$0xff]
    %v87 = vld [vmem:[%s1 + $0x1d8] sm:$0xff]
    %v88 = vld [vmem:[%s1 + $0x1e0] sm:$0xff]
    %v89 = vld [vmem:[%s1 + $0x1e8] sm:$0xff]
    %v90 = vld [vmem:[%s1 + $0x1f0] sm:$0xff]
    %v91 = vld [vmem:[%s1 + $0x1f8] sm:$0xff]
    %v92 = vld [vmem:[%s1 + $0x200] sm:$0xff]
    %v93 = vld [vmem:[%s1 + $0x208] sm:$0xff]
    %v94 = vld [vmem:[%s1 + $0x210] sm:$0xff]
    %v95 = vld [vmem:[%s1 + $0x218] sm:$0xff]
    %v96 = vld [vmem:[%s1 + $0x220] sm:$0xff]
    %v97 = vld [vmem:[%s1 + $0x228] sm:$0xff]
    %v98 = vld [vmem:[%s1 + $0x230] sm:$0xff]
    %v99 = vld [vmem:[%s1 + $0x238] sm:$0xff]
    %v100 = vld [vmem:[%s1 + $0x240] sm:$0xff]
    %v101 = vld [vmem:[%s1 + $0x248] sm:$0xff]
    %v102 = vld [vmem:[%s1 + $0x250] sm:$0xff]
    %v103 = vld [vmem:[%s1 + $0x258] sm:$0xff]
    %v104 = vld [vmem:[%s1 + $0x260] sm:$0xff]
    %v105 = vld [vmem:[%s1 + $0x268] sm:$0xff]
    %v106 = vld [vmem:[%s1 + $0x270] sm:$0xff]
    %v107 = vld [vmem:[%s1 + $0x278] sm:$0xff]
    %v108 = vld [vmem:[%s1 + $0x280] sm:$0xff]
    %v109 = vld [vmem:[%s1 + $0x288] sm:$0xff]
    %v110 = vld [vmem:[%s1 + $0x290] sm:$0xff]
    %v111 = vld [vmem:[%s1 + $0x298] sm:$0xff]
    %v112 = vld [vmem:[%s1 + $0x2a0] sm:$0xff]
    %v113 = vld [vmem:[%s1 + $0x2a8] sm:$0xff]
    %v114 = vld [vmem:[%s1 + $0x2b0] sm:$0xff]
    %v115 = vld [vmem:[%s1 + $0x2b8] sm:$0xff]
    %v116 = vld [vmem:[%s1 + $0x2c0] sm:$0xff]
    %v117 = vld [vmem:[%s1 + $0x2c8] sm:$0xff]
    %v118 = vld [vmem:[%s1 + $0x2d0] sm:$0xff]
    %v119 = vld [vmem:[%s1 + $0x2d8] sm:$0xff]
    %v120 = vld [vmem:[%s1 + $0x2e0] sm:$0xff]
    %v121 = vld [vmem:[%s1 + $0x2e8] sm:$0xff]
    %v122 = vld [vmem:[%s1 + $0x2f0] sm:$0xff]
    %v123 = vld [vmem:[%s1 + $0x2f8] sm:$0xff]
    %v124 = vld [vmem:[%s1 + $0x300] sm:$0xff]
    %v125 = vld [vmem:[%s1 + $0x308] sm:$0xff]
    %v126 = vld [vmem:[%s1 + $0x310] sm:$0xff]
    %v127 = vld [vmem:[%s1 + $0x318] sm:$0xff]
    %v128 = vld [vmem:[%s1 + $0x320] sm:$0xff]
    %v129 = vld [vmem:[%s1 + $0x328] sm:$0xff]
    %v130 = vld [vmem:[%s1 + $0x330] sm:$0xff]
    %v131 = vld [vmem:[%s1 + $0x338] sm:$0xff]
    %v132 = vld [vmem:[%s1 + $0x340] sm:$0xff]
    %v133 = vld [vmem:[%s1 + $0x348] sm:$0xff]
    %v134 = vld [vmem:[%s1 + $0x350] sm:$0xff]
    %v135 = vld [vmem:[%s1 + $0x358] sm:$0xff]
    %v136 = vld [vmem:[%s1 + $0x360] sm:$0xff]
    %v137 = vld [vmem:[%s1 + $0x368] sm:$0xff]
    %v138 = vld [vmem:[%s1 + $0x370] sm:$0xff]
    %v139 = vld [vmem:[%s1 + $0x378] sm:$0xff]
    %v140 = vld [vmem:[%s1 + $0x380] sm:$0xff]
    %v141 = vld [vmem:[%s1 + $0x388] sm:$0xff]
    %v142 = vld [vmem:[%s1 + $0x390] sm:$0xff]
    %v143 = vld [vmem:[%s1 + $0x398] sm:$0xff]
    %v144 = vld [vmem:[%s1 + $0x3a0] sm:$0xff]
    %v145 = vld [vmem:[%s1 + $0x3a8] sm:$0xff]
    %v146 = vld [vmem:[%s1 + $0x3b0] sm:$0xff]
    %v147 = vld [vmem:[%s1 + $0x3b8] sm:$0xff]
    %v148 = vld [vmem:[%s1 + $0x3c0] sm:$0xff]
    %v149 = vld [vmem:[%s1 + $0x3c8] sm:$0xff]
    %v150 = vld [vmem:[%s1 + $0x3d0] sm:$0xff]
    %v151 = vld [vmem:[%s1 + $0x3d8] sm:$0xff]
    %v152 = vld [vmem:[%s1 + $0x3e0] sm:$0xff]
    %v153 = vld [vmem:[%s1 + $0x3e8] sm:$0xff]
    %v154 = vld [vmem:[%s1 + $0x3f0] sm:$0xff]
    %v155 = vld [vmem:[%s1 + $0x3f8] sm:$0xff]
    %v156 = vld [vmem:[%s1 + $0x400] sm:$0xff]
    %v157 = vld [vmem:[%s1 + $0x408] sm:$0xff]
    %v158 = vld [vmem:[%s1 + $0x410] sm:$0xff]
    %v159 = vld [vmem:[%s1 + $0x418] sm:$0xff]
    %v160 = vld [vmem:[%s1 + $0x420] sm:$0xff]
    %v161 = vld [vmem:[%s1 + $0x428] sm:$0xff]
    %v162 = vld [vmem:[%s1 + $0x430] sm:$0xff]
    %v163 = vld [vmem:[%s1 + $0x438] sm:$0xff]
    %v164 = vld [vmem:[%s1 + $0x440] sm:$0xff]
    %v165 = vld [vmem:[%s1 + $0x448] sm:$0xff]
    %v166 = vld [vmem:[%s1 + $0x450] sm:$0xff]
    %v167 = vld [vmem:[%s1 + $0x458] sm:$0xff]
    %v168 = vld [vmem:[%s1 + $0x460] sm:$0xff]
    %v169 = vld [vmem:[%s1 + $0x468] sm:$0xff]
    %v170 = vld [vmem:[%s1 + $0x470] sm:$0xff]
    %v171 = vld [vmem:[%s1 + $0x478] sm:$0xff]
    %v172 = vld [vmem:[%s1 + $0x480] sm:$0xff]
    %v173 = vld [vmem:[%s1 + $0x488] sm:$0xff]
    %v174 = vld [vmem:[%s1 + $0x490] sm:$0xff]
    %v175 = vld [vmem:[%s1 + $0x498] sm:$0xff]
    %v176 = vld [vmem:[%s1 + $0x4a0] sm:$0xff]
    %v177 = vld [vmem:[%s1 + $0x4a8] sm:$0xff]
    %v178 = vld [vmem:[%s1 + $0x4b0] sm:$0xff]
    %v179 = vld [vmem:[%s1 + $0x4b8] sm:$0xff]
    %v180 = vld [vmem:[%s1 + $0x4c0] sm:$0xff]
    %v181 = vld [vmem:[%s1 + $0x4c8] sm:$0xff]
    %v182 = vld [vmem:[%s1 + $0x4d0] sm:$0xff]
    %v183 = vld [vmem:[%s1 + $0x4d8] sm:$0xff]
    %v184 = vld [vmem:[%s1 + $0x4e0] sm:$0xff]
    %v185 = vld [vmem:[%s1 + $0x4e8] sm:$0xff]
    %v186 = vld [vmem:[%s1 + $0x4f0] sm:$0xff]
    %v187 = vld [vmem:[%s1 + $0x4f8] sm:$0xff]
    %v188 = vld [vmem:[%s1 + $0x500] sm:$0xff]
    %v189 = vld [vmem:[%s1 + $0x508] sm:$0xff]
    %v190 = vld [vmem:[%s1 + $0x510] sm:$0xff]
    %v191 = vld [vmem:[%s1 + $0x518] sm:$0xff]
    %v192 = vld [vmem:[%s1 + $0x520] sm:$0xff]
    %v193 = vld [vmem:[%s1 + $0x528] sm:$0xff]
    %v194 = vld [vmem:[%s1 + $0x530] sm:$0xff]
    %v195 = vld [vmem:[%s1 + $0x538] sm:$0xff]
    %v196 = vld [vmem:[%s1 + $0x540] sm:$0xff]
    %v197 = vld [vmem:[%s1 + $0x548] sm:$0xff]
    %v198 = vld [vmem:[%s1 + $0x550] sm:$0xff]
    %v199 = vld [vmem:[%s1 + $0x558] sm:$0xff]
    %v200 = vld [vmem:[%s1 + $0x560] sm:$0xff]
    %v201 = vld [vmem:[%s1 + $0x568] sm:$0xff]
    %v202 = vld [vmem:[%s1 + $0x570] sm:$0xff]
    %v203 = vld [vmem:[%s1 + $0x578] sm:$0xff]
    %v204 = vld [vmem:[%s1 + $0x580] sm:$0xff]
    %v205 = vld [vmem:[%s1 + $0x588] sm:$0xff]
    %v206 = vld [vmem:[%s1 + $0x590] sm:$0xff]
    %v207 = vld [vmem:[%s1 + $0x598] sm:$0xff]
    %v208 = vld [vmem:[%s1 + $0x5a0] sm:$0xff]
    %v209 = vld [vmem:[%s1 + $0x5a8] sm:$0xff]
    %v210 = vld [vmem:[%s1 + $0x5b0] sm:$0xff]
    %v211 = vld [vmem:[%s1 + $0x5b8] sm:$0xff]
    %v212 = vld [vmem:[%s1 + $0x5c0] sm:$0xff]
    %v213 = vld [vmem:[%s1 + $0x5c8] sm:$0xff]
    %v214 = vld [vmem:[%s1 + $0x5d0] sm:$0xff]
    %v215 = vld [vmem:[%s1 + $0x5d8] sm:$0xff]
    %v216 = vld [vmem:[%s1 + $0x5e0] sm:$0xff]
    %v217 = vld [vmem:[%s1 + $0x5e8] sm:$0xff]
    %v218 = vld [vmem:[%s1 + $0x5f0] sm:$0xff]
    %v219 = vld [vmem:[%s1 + $0x5f8] sm:$0xff]
    %v220 = vld [vmem:[%s1 + $0x600] sm:$0xff]
    %v221 = vld [vmem:[%s1 + $0x608] sm:$0xff]
    %v222 = vld [vmem:[%s1 + $0x610] sm:$0xff]
    %v223 = vld [vmem:[%s1 + $0x618] sm:$0xff]
    %v224 = vld [vmem:[%s1 + $0x620] sm:$0xff]
    %v225 = vld [vmem:[%s1 + $0x628] sm:$0xff]
    %v226 = vld [vmem:[%s1 + $0x630] sm:$0xff]
    %v227 = vld [vmem:[%s1 + $0x638] sm:$0xff]
    %v228 = vld [vmem:[%s1 + $0x640] sm:$0xff]
    %v229 = vld [vmem:[%s1 + $0x648] sm:$0xff]
    %v230 = vld [vmem:[%s1 + $0x650] sm:$0xff]
    %v231 = vld [vmem:[%s1 + $0x658] sm:$0xff]
    %v232 = vld [vmem:[%s1 + $0x660] sm:$0xff]
    %v233 = vld [vmem:[%s1 + $0x668] sm:$0xff]
    %v234 = vld [vmem:[%s1 + $0x670] sm:$0xff]
    %v235 = vld [vmem:[%s1 + $0x678] sm:$0xff]
    %v236 = vld [vmem:[%s1 + $0x680] sm:$0xff]
    %v237 = vld [vmem:[%s1 + $0x688] sm:$0xff]
    %v238 = vld [vmem:[%s1 + $0x690] sm:$0xff]
    %v239 = vld [vmem:[%s1 + $0x698] sm:$0xff]
    %v240 = vld [vmem:[%s1 + $0x6a0] sm:$0xff]
    %v241 = vld [vmem:[%s1 + $0x6a8] sm:$0xff]
    %v242 = vld [vmem:[%s1 + $0x6b0] sm:$0xff]
    %v243 = vld [vmem:[%s1 + $0x6b8] sm:$0xff]
    %v244 = vld [vmem:[%s1 + $0x6c0] sm:$0xff]
    %v245 = vld [vmem:[%s1 + $0x6c8] sm:$0xff]
    %v246 = vld [vmem:[%s1 + $0x6d0] sm:$0xff]
    %v247 = vld [vmem:[%s1 + $0x6d8] sm:$0xff]
    %v248 = vld [vmem:[%s1 + $0x6e0] sm:$0xff]
    %v249 = vld [vmem:[%s1 + $0x6e8] sm:$0xff]
    %v250 = vld [vmem:[%s1 + $0x6f0] sm:$0xff]
    %v251 = vld [vmem:[%s1 + $0x6f8] sm:$0xff]
    %v252 = vld [vmem:[%s1 + $0x700] sm:$0xff]
    %v253 = vld [vmem:[%s1 + $0x708] sm:$0xff]
    %v254 = vld [vmem:[%s1 + $0x710] sm:$0xff]
    %v255 = vld [vmem:[%s1 + $0x718] sm:$0xff]
    %v256 = vld [vmem:[%s1 + $0x720] sm:$0xff]
    %v257 = vld [vmem:[%s1 + $0x728] sm:$0xff]
    %v258 = vld [vmem:[%s1 + $0x730] sm:$0xff]
    %v259 = vld [vmem:[%s1 + $0x738] sm:$0xff]
    %v260 = vld [vmem:[%s1 + $0x740] sm:$0xff]
    %v261 = vld [vmem:[%s1 + $0x748] sm:$0xff]
    %v262 = vld [vmem:[%s1 + $0x750] sm:$0xff]
    %v263 = vld [vmem:[%s1 + $0x758] sm:$0xff]
    %v264 = vld [vmem:[%s1 + $0x760] sm:$0xff]
    %v265 = vld [vmem:[%s1 + $0x768] sm:$0xff]
    %v266 = vld [vmem:[%s1 + $0x770] sm:$0xff]
    %v267 = vld [vmem:[%s1 + $0x778] sm:$0xff]
    %v268 = vld [vmem:[%s1 + $0x780] sm:$0xff]
    %v269 = vld [vmem:[%s1 + $0x788] sm:$0xff]
    %v270 = vld [vmem:[%s1 + $0x790] sm:$0xff]
    %v271 = vld [vmem:[%s1 + $0x798] sm:$0xff]
    %v272 = vld [vmem:[%s1 + $0x7a0] sm:$0xff]
    %v273 = vld [vmem:[%s1 + $0x7a8] sm:$0xff]
    %v274 = vld [vmem:[%s1 + $0x7b0] sm:$0xff]
    %v275 = vld [vmem:[%s1 + $0x7b8] sm:$0xff]
    %v276 = vld [vmem:[%s1 + $0x7c0] sm:$0xff]
    %v277 = vld [vmem:[%s1 + $0x7c8] sm:$0xff]
    %v278 = vld [vmem:[%s1 + $0x7d0] sm:$0xff]
    %v279 = vld [vmem:[%s1 + $0x7d8] sm:$0xff]
    %v280 = vld [vmem:[%s1 + $0x7e0] sm:$0xff]
    %v281 = vld [vmem:[%s1 + $0x7e8] sm:$0xff]
    %v282 = vld [vmem:[%s1 + $0x7f0] sm:$0xff]
    %v283 = vld [vmem:[%s1 + $0x7f8] sm:$0xff]
    %v284 = vld [vmem:[%s2] sm:$0xf]
    %v286 = vperm.slane %v284, 0
    %v287 = vperm.slane %v284, 1
    %v288 = vperm.slane %v284, 2
    %v289 = vperm.slane %v284, 3
    %295 = vst [vmem:[#allocation1] ss:$9 sm:$0xff] %v27
    %v296 = vld [vmem:[#allocation1] sm:$0xff]
    %v297 = vld [vmem:[#allocation1 + $0x9] sm:$0xff]
    %v298 = vld [vmem:[#allocation1 + $0x12] sm:$0xff]
    %v299 = vld [vmem:[#allocation1 + $0x1b] sm:$0xff]
    %v300 = vld [vmem:[#allocation1 + $0x24] sm:$0xff]
    %v301 = vld [vmem:[#allocation1 + $0x2d] sm:$0xff]
    %v302 = vld [vmem:[#allocation1 + $0x36] sm:$0xff]
    %v303 = vld [vmem:[#allocation1 + $0x3f] sm:$0xff]
    %v568 = vunpack.c.l.b16 %v28
    %v569 = vunpack.c.h.b16 %v28
    %v570 = vunpack.c.l.b16 %v29
    %v571 = vunpack.c.h.b16 %v29
    %v572 = vunpack.c.l.b16 %v30
    %v573 = vunpack.c.h.b16 %v30
    %v574 = vunpack.c.l.b16 %v31
    %v575 = vunpack.c.h.b16 %v31
    %v576 = vunpack.c.l.b16 %v32
    %v577 = vunpack.c.h.b16 %v32
    %v578 = vunpack.c.l.b16 %v33
    %v579 = vunpack.c.h.b16 %v33
    %v580 = vunpack.c.l.b16 %v34
    %v581 = vunpack.c.h.b16 %v34
    %v582 = vunpack.c.l.b16 %v35
    %v583 = vunpack.c.h.b16 %v35
    %v584 = vunpack.c.l.b16 %v36
    %v585 = vunpack.c.h.b16 %v36
    %v586 = vunpack.c.l.b16 %v37
    %v587 = vunpack.c.h.b16 %v37
    %v588 = vunpack.c.l.b16 %v38
    %v589 = vunpack.c.h.b16 %v38
    %v590 = vunpack.c.l.b16 %v39
    %v591 = vunpack.c.h.b16 %v39
    %v592 = vunpack.c.l.b16 %v40
    %v593 = vunpack.c.h.b16 %v40
    %v594 = vunpack.c.l.b16 %v41
    %v595 = vunpack.c.h.b16 %v41
    %v596 = vunpack.c.l.b16 %v42
    %v597 = vunpack.c.h.b16 %v42
    %v598 = vunpack.c.l.b16 %v43
    %v599 = vunpack.c.h.b16 %v43
    %v600 = vunpack.c.l.b16 %v44
    %v601 = vunpack.c.h.b16 %v44
    %v602 = vunpack.c.l.b16 %v45
    %v603 = vunpack.c.h.b16 %v45
    %v604 = vunpack.c.l.b16 %v46
    %v605 = vunpack.c.h.b16 %v46
    %v606 = vunpack.c.l.b16 %v47
    %v607 = vunpack.c.h.b16 %v47
    %v608 = vunpack.c.l.b16 %v48
    %v609 = vunpack.c.h.b16 %v48
    %v610 = vunpack.c.l.b16 %v49
    %v611 = vunpack.c.h.b16 %v49
    %v612 = vunpack.c.l.b16 %v50
    %v613 = vunpack.c.h.b16 %v50
    %v614 = vunpack.c.l.b16 %v51
    %v615 = vunpack.c.h.b16 %v51
    %v616 = vunpack.c.l.b16 %v52
    %v617 = vunpack.c.h.b16 %v52
    %v618 = vunpack.c.l.b16 %v53
    %v619 = vunpack.c.h.b16 %v53
    %v620 = vunpack.c.l.b16 %v54
    %v621 = vunpack.c.h.b16 %v54
    %v622 = vunpack.c.l.b16 %v55
    %v623 = vunpack.c.h.b16 %v55
    %v624 = vunpack.c.l.b16 %v56
    %v625 = vunpack.c.h.b16 %v56
    %v626 = vunpack.c.l.b16 %v57
    %v627 = vunpack.c.h.b16 %v57
    %v628 = vunpack.c.l.b16 %v58
    %v629 = vunpack.c.h.b16 %v58
    %v630 = vunpack.c.l.b16 %v59
    %v631 = vunpack.c.h.b16 %v59
    %v632 = vunpack.c.l.b16 %v60
    %v633 = vunpack.c.h.b16 %v60
    %v634 = vunpack.c.l.b16 %v61
    %v635 = vunpack.c.h.b16 %v61
    %v636 = vunpack.c.l.b16 %v62
    %v637 = vunpack.c.h.b16 %v62
    %v638 = vunpack.c.l.b16 %v63
    %v639 = vunpack.c.h.b16 %v63
    %v640 = vunpack.c.l.b16 %v64
    %v641 = vunpack.c.h.b16 %v64
    %v642 = vunpack.c.l.b16 %v65
    %v643 = vunpack.c.h.b16 %v65
    %v644 = vunpack.c.l.b16 %v66
    %v645 = vunpack.c.h.b16 %v66
    %v646 = vunpack.c.l.b16 %v67
    %v647 = vunpack.c.h.b16 %v67
    %v648 = vunpack.c.l.b16 %v68
    %v649 = vunpack.c.h.b16 %v68
    %v650 = vunpack.c.l.b16 %v69
    %v651 = vunpack.c.h.b16 %v69
    %v652 = vunpack.c.l.b16 %v70
    %v653 = vunpack.c.h.b16 %v70
    %v654 = vunpack.c.l.b16 %v71
    %v655 = vunpack.c.h.b16 %v71
    %v656 = vunpack.c.l.b16 %v72
    %v657 = vunpack.c.h.b16 %v72
    %v658 = vunpack.c.l.b16 %v73
    %v659 = vunpack.c.h.b16 %v73
    %v660 = vunpack.c.l.b16 %v74
    %v661 = vunpack.c.h.b16 %v74
    %v662 = vunpack.c.l.b16 %v75
    %v663 = vunpack.c.h.b16 %v75
    %v664 = vunpack.c.l.b16 %v76
    %v665 = vunpack.c.h.b16 %v76
    %v666 = vunpack.c.l.b16 %v77
    %v667 = vunpack.c.h.b16 %v77
    %v668 = vunpack.c.l.b16 %v78
    %v669 = vunpack.c.h.b16 %v78
    %v670 = vunpack.c.l.b16 %v79
    %v671 = vunpack.c.h.b16 %v79
    %v672 = vunpack.c.l.b16 %v80
    %v673 = vunpack.c.h.b16 %v80
    %v674 = vunpack.c.l.b16 %v81
    %v675 = vunpack.c.h.b16 %v81
    %v676 = vunpack.c.l.b16 %v82
    %v677 = vunpack.c.h.b16 %v82
    %v678 = vunpack.c.l.b16 %v83
    %v679 = vunpack.c.h.b16 %v83
    %v680 = vunpack.c.l.b16 %v84
    %v681 = vunpack.c.h.b16 %v84
    %v682 = vunpack.c.l.b16 %v85
    %v683 = vunpack.c.h.b16 %v85
    %v684 = vunpack.c.l.b16 %v86
    %v685 = vunpack.c.h.b16 %v86
    %v686 = vunpack.c.l.b16 %v87
    %v687 = vunpack.c.h.b16 %v87
    %v688 = vunpack.c.l.b16 %v88
    %v689 = vunpack.c.h.b16 %v88
    %v690 = vunpack.c.l.b16 %v89
    %v691 = vunpack.c.h.b16 %v89
    %v692 = vunpack.c.l.b16 %v90
    %v693 = vunpack.c.h.b16 %v90
    %v694 = vunpack.c.l.b16 %v91
    %v695 = vunpack.c.h.b16 %v91
    %v696 = vunpack.c.l.b16 %v92
    %v697 = vunpack.c.h.b16 %v92
    %v698 = vunpack.c.l.b16 %v93
    %v699 = vunpack.c.h.b16 %v93
    %v700 = vunpack.c.l.b16 %v94
    %v701 = vunpack.c.h.b16 %v94
    %v702 = vunpack.c.l.b16 %v95
    %v703 = vunpack.c.h.b16 %v95
    %v704 = vunpack.c.l.b16 %v96
    %v705 = vunpack.c.h.b16 %v96
    %v706 = vunpack.c.l.b16 %v97
    %v707 = vunpack.c.h.b16 %v97
    %v708 = vunpack.c.l.b16 %v98
    %v709 = vunpack.c.h.b16 %v98
    %v710 = vunpack.c.l.b16 %v99
    %v711 = vunpack.c.h.b16 %v99
    %v712 = vunpack.c.l.b16 %v100
    %v713 = vunpack.c.h.b16 %v100
    %v714 = vunpack.c.l.b16 %v101
    %v715 = vunpack.c.h.b16 %v101
    %v716 = vunpack.c.l.b16 %v102
    %v717 = vunpack.c.h.b16 %v102
    %v718 = vunpack.c.l.b16 %v103
    %v719 = vunpack.c.h.b16 %v103
    %v720 = vunpack.c.l.b16 %v104
    %v721 = vunpack.c.h.b16 %v104
    %v722 = vunpack.c.l.b16 %v105
    %v723 = vunpack.c.h.b16 %v105
    %v724 = vunpack.c.l.b16 %v106
    %v725 = vunpack.c.h.b16 %v106
    %v726 = vunpack.c.l.b16 %v107
    %v727 = vunpack.c.h.b16 %v107
    %v728 = vunpack.c.l.b16 %v108
    %v729 = vunpack.c.h.b16 %v108
    %v730 = vunpack.c.l.b16 %v109
    %v731 = vunpack.c.h.b16 %v109
    %v732 = vunpack.c.l.b16 %v110
    %v733 = vunpack.c.h.b16 %v110
    %v734 = vunpack.c.l.b16 %v111
    %v735 = vunpack.c.h.b16 %v111
    %v736 = vunpack.c.l.b16 %v112
    %v737 = vunpack.c.h.b16 %v112
    %v738 = vunpack.c.l.b16 %v113
    %v739 = vunpack.c.h.b16 %v113
    %v740 = vunpack.c.l.b16 %v114
    %v741 = vunpack.c.h.b16 %v114
    %v742 = vunpack.c.l.b16 %v115
    %v743 = vunpack.c.h.b16 %v115
    %v744 = vunpack.c.l.b16 %v116
    %v745 = vunpack.c.h.b16 %v116
    %v746 = vunpack.c.l.b16 %v117
    %v747 = vunpack.c.h.b16 %v117
    %v748 = vunpack.c.l.b16 %v118
    %v749 = vunpack.c.h.b16 %v118
    %v750 = vunpack.c.l.b16 %v119
    %v751 = vunpack.c.h.b16 %v119
    %v752 = vunpack.c.l.b16 %v120
    %v753 = vunpack.c.h.b16 %v120
    %v754 = vunpack.c.l.b16 %v121
    %v755 = vunpack.c.h.b16 %v121
    %v756 = vunpack.c.l.b16 %v122
    %v757 = vunpack.c.h.b16 %v122
    %v758 = vunpack.c.l.b16 %v123
    %v759 = vunpack.c.h.b16 %v123
    %v760 = vunpack.c.l.b16 %v124
    %v761 = vunpack.c.h.b16 %v124
    %v762 = vunpack.c.l.b16 %v125
    %v763 = vunpack.c.h.b16 %v125
    %v764 = vunpack.c.l.b16 %v126
    %v765 = vunpack.c.h.b16 %v126
    %v766 = vunpack.c.l.b16 %v127
    %v767 = vunpack.c.h.b16 %v127
    %v768 = vunpack.c.l.b16 %v128
    %v769 = vunpack.c.h.b16 %v128
    %v770 = vunpack.c.l.b16 %v129
    %v771 = vunpack.c.h.b16 %v129
    %v772 = vunpack.c.l.b16 %v130
    %v773 = vunpack.c.h.b16 %v130
    %v774 = vunpack.c.l.b16 %v131
    %v775 = vunpack.c.h.b16 %v131
    %v776 = vunpack.c.l.b16 %v132
    %v777 = vunpack.c.h.b16 %v132
    %v778 = vunpack.c.l.b16 %v133
    %v779 = vunpack.c.h.b16 %v133
    %v780 = vunpack.c.l.b16 %v134
    %v781 = vunpack.c.h.b16 %v134
    %v782 = vunpack.c.l.b16 %v135
    %v783 = vunpack.c.h.b16 %v135
    %v784 = vunpack.c.l.b16 %v136
    %v785 = vunpack.c.h.b16 %v136
    %v786 = vunpack.c.l.b16 %v137
    %v787 = vunpack.c.h.b16 %v137
    %v788 = vunpack.c.l.b16 %v138
    %v789 = vunpack.c.h.b16 %v138
    %v790 = vunpack.c.l.b16 %v139
    %v791 = vunpack.c.h.b16 %v139
    %v792 = vunpack.c.l.b16 %v140
    %v793 = vunpack.c.h.b16 %v140
    %v794 = vunpack.c.l.b16 %v141
    %v795 = vunpack.c.h.b16 %v141
    %v796 = vunpack.c.l.b16 %v142
    %v797 = vunpack.c.h.b16 %v142
    %v798 = vunpack.c.l.b16 %v143
    %v799 = vunpack.c.h.b16 %v143
    %v800 = vunpack.c.l.b16 %v144
    %v801 = vunpack.c.h.b16 %v144
    %v802 = vunpack.c.l.b16 %v145
    %v803 = vunpack.c.h.b16 %v145
    %v804 = vunpack.c.l.b16 %v146
    %v805 = vunpack.c.h.b16 %v146
    %v806 = vunpack.c.l.b16 %v147
    %v807 = vunpack.c.h.b16 %v147
    %v808 = vunpack.c.l.b16 %v148
    %v809 = vunpack.c.h.b16 %v148
    %v810 = vunpack.c.l.b16 %v149
    %v811 = vunpack.c.h.b16 %v149
    %v812 = vunpack.c.l.b16 %v150
    %v813 = vunpack.c.h.b16 %v150
    %v814 = vunpack.c.l.b16 %v151
    %v815 = vunpack.c.h.b16 %v151
    %v816 = vunpack.c.l.b16 %v152
    %v817 = vunpack.c.h.b16 %v152
    %v818 = vunpack.c.l.b16 %v153
    %v819 = vunpack.c.h.b16 %v153
    %v820 = vunpack.c.l.b16 %v154
    %v821 = vunpack.c.h.b16 %v154
    %v822 = vunpack.c.l.b16 %v155
    %v823 = vunpack.c.h.b16 %v155
    %v824 = vunpack.c.l.b16 %v156
    %v825 = vunpack.c.h.b16 %v156
    %v826 = vunpack.c.l.b16 %v157
    %v827 = vunpack.c.h.b16 %v157
    %v828 = vunpack.c.l.b16 %v158
    %v829 = vunpack.c.h.b16 %v158
    %v830 = vunpack.c.l.b16 %v159
    %v831 = vunpack.c.h.b16 %v159
    %v832 = vunpack.c.l.b16 %v160
    %v833 = vunpack.c.h.b16 %v160
    %v834 = vunpack.c.l.b16 %v161
    %v835 = vunpack.c.h.b16 %v161
    %v836 = vunpack.c.l.b16 %v162
    %v837 = vunpack.c.h.b16 %v162
    %v838 = vunpack.c.l.b16 %v163
    %v839 = vunpack.c.h.b16 %v163
    %v840 = vunpack.c.l.b16 %v164
    %v841 = vunpack.c.h.b16 %v164
    %v842 = vunpack.c.l.b16 %v165
    %v843 = vunpack.c.h.b16 %v165
    %v844 = vunpack.c.l.b16 %v166
    %v845 = vunpack.c.h.b16 %v166
    %v846 = vunpack.c.l.b16 %v167
    %v847 = vunpack.c.h.b16 %v167
    %v848 = vunpack.c.l.b16 %v168
    %v849 = vunpack.c.h.b16 %v168
    %v850 = vunpack.c.l.b16 %v169
    %v851 = vunpack.c.h.b16 %v169
    %v852 = vunpack.c.l.b16 %v170
    %v853 = vunpack.c.h.b16 %v170
    %v854 = vunpack.c.l.b16 %v171
    %v855 = vunpack.c.h.b16 %v171
    %v856 = vunpack.c.l.b16 %v172
    %v857 = vunpack.c.h.b16 %v172
    %v858 = vunpack.c.l.b16 %v173
    %v859 = vunpack.c.h.b16 %v173
    %v860 = vunpack.c.l.b16 %v174
    %v861 = vunpack.c.h.b16 %v174
    %v862 = vunpack.c.l.b16 %v175
    %v863 = vunpack.c.h.b16 %v175
    %v864 = vunpack.c.l.b16 %v176
    %v865 = vunpack.c.h.b16 %v176
    %v866 = vunpack.c.l.b16 %v177
    %v867 = vunpack.c.h.b16 %v177
    %v868 = vunpack.c.l.b16 %v178
    %v869 = vunpack.c.h.b16 %v178
    %v870 = vunpack.c.l.b16 %v179
    %v871 = vunpack.c.h.b16 %v179
    %v872 = vunpack.c.l.b16 %v180
    %v873 = vunpack.c.h.b16 %v180
    %v874 = vunpack.c.l.b16 %v181
    %v875 = vunpack.c.h.b16 %v181
    %v876 = vunpack.c.l.b16 %v182
    %v877 = vunpack.c.h.b16 %v182
    %v878 = vunpack.c.l.b16 %v183
    %v879 = vunpack.c.h.b16 %v183
    %v880 = vunpack.c.l.b16 %v184
    %v881 = vunpack.c.h.b16 %v184
    %v882 = vunpack.c.l.b16 %v185
    %v883 = vunpack.c.h.b16 %v185
    %v884 = vunpack.c.l.b16 %v186
    %v885 = vunpack.c.h.b16 %v186
    %v886 = vunpack.c.l.b16 %v187
    %v887 = vunpack.c.h.b16 %v187
    %v888 = vunpack.c.l.b16 %v188
    %v889 = vunpack.c.h.b16 %v188
    %v890 = vunpack.c.l.b16 %v189
    %v891 = vunpack.c.h.b16 %v189
    %v892 = vunpack.c.l.b16 %v190
    %v893 = vunpack.c.h.b16 %v190
    %v894 = vunpack.c.l.b16 %v191
    %v895 = vunpack.c.h.b16 %v191
    %v896 = vunpack.c.l.b16 %v192
    %v897 = vunpack.c.h.b16 %v192
    %v898 = vunpack.c.l.b16 %v193
    %v899 = vunpack.c.h.b16 %v193
    %v900 = vunpack.c.l.b16 %v194
    %v901 = vunpack.c.h.b16 %v194
    %v902 = vunpack.c.l.b16 %v195
    %v903 = vunpack.c.h.b16 %v195
    %v904 = vunpack.c.l.b16 %v196
    %v905 = vunpack.c.h.b16 %v196
    %v906 = vunpack.c.l.b16 %v197
    %v907 = vunpack.c.h.b16 %v197
    %v908 = vunpack.c.l.b16 %v198
    %v909 = vunpack.c.h.b16 %v198
    %v910 = vunpack.c.l.b16 %v199
    %v911 = vunpack.c.h.b16 %v199
    %v912 = vunpack.c.l.b16 %v200
    %v913 = vunpack.c.h.b16 %v200
    %v914 = vunpack.c.l.b16 %v201
    %v915 = vunpack.c.h.b16 %v201
    %v916 = vunpack.c.l.b16 %v202
    %v917 = vunpack.c.h.b16 %v202
    %v918 = vunpack.c.l.b16 %v203
    %v919 = vunpack.c.h.b16 %v203
    %v920 = vunpack.c.l.b16 %v204
    %v921 = vunpack.c.h.b16 %v204
    %v922 = vunpack.c.l.b16 %v205
    %v923 = vunpack.c.h.b16 %v205
    %v924 = vunpack.c.l.b16 %v206
    %v925 = vunpack.c.h.b16 %v206
    %v926 = vunpack.c.l.b16 %v207
    %v927 = vunpack.c.h.b16 %v207
    %v928 = vunpack.c.l.b16 %v208
    %v929 = vunpack.c.h.b16 %v208
    %v930 = vunpack.c.l.b16 %v209
    %v931 = vunpack.c.h.b16 %v209
    %v932 = vunpack.c.l.b16 %v210
    %v933 = vunpack.c.h.b16 %v210
    %v934 = vunpack.c.l.b16 %v211
    %v935 = vunpack.c.h.b16 %v211
    %v936 = vunpack.c.l.b16 %v212
    %v937 = vunpack.c.h.b16 %v212
    %v938 = vunpack.c.l.b16 %v213
    %v939 = vunpack.c.h.b16 %v213
    %v940 = vunpack.c.l.b16 %v214
    %v941 = vunpack.c.h.b16 %v214
    %v942 = vunpack.c.l.b16 %v215
    %v943 = vunpack.c.h.b16 %v215
    %v944 = vunpack.c.l.b16 %v216
    %v945 = vunpack.c.h.b16 %v216
    %v946 = vunpack.c.l.b16 %v217
    %v947 = vunpack.c.h.b16 %v217
    %v948 = vunpack.c.l.b16 %v218
    %v949 = vunpack.c.h.b16 %v218
    %v950 = vunpack.c.l.b16 %v219
    %v951 = vunpack.c.h.b16 %v219
    %v952 = vunpack.c.l.b16 %v220
    %v953 = vunpack.c.h.b16 %v220
    %v954 = vunpack.c.l.b16 %v221
    %v955 = vunpack.c.h.b16 %v221
    %v956 = vunpack.c.l.b16 %v222
    %v957 = vunpack.c.h.b16 %v222
    %v958 = vunpack.c.l.b16 %v223
    %v959 = vunpack.c.h.b16 %v223
    %v960 = vunpack.c.l.b16 %v224
    %v961 = vunpack.c.h.b16 %v224
    %v962 = vunpack.c.l.b16 %v225
    %v963 = vunpack.c.h.b16 %v225
    %v964 = vunpack.c.l.b16 %v226
    %v965 = vunpack.c.h.b16 %v226
    %v966 = vunpack.c.l.b16 %v227
    %v967 = vunpack.c.h.b16 %v227
    %v968 = vunpack.c.l.b16 %v228
    %v969 = vunpack.c.h.b16 %v228
    %v970 = vunpack.c.l.b16 %v229
    %v971 = vunpack.c.h.b16 %v229
    %v972 = vunpack.c.l.b16 %v230
    %v973 = vunpack.c.h.b16 %v230
    %v974 = vunpack.c.l.b16 %v231
    %v975 = vunpack.c.h.b16 %v231
    %v976 = vunpack.c.l.b16 %v232
    %v977 = vunpack.c.h.b16 %v232
    %v978 = vunpack.c.l.b16 %v233
    %v979 = vunpack.c.h.b16 %v233
    %v980 = vunpack.c.l.b16 %v234
    %v981 = vunpack.c.h.b16 %v234
    %v982 = vunpack.c.l.b16 %v235
    %v983 = vunpack.c.h.b16 %v235
    %v984 = vunpack.c.l.b16 %v236
    %v985 = vunpack.c.h.b16 %v236
    %v986 = vunpack.c.l.b16 %v237
    %v987 = vunpack.c.h.b16 %v237
    %v988 = vunpack.c.l.b16 %v238
    %v989 = vunpack.c.h.b16 %v238
    %v990 = vunpack.c.l.b16 %v239
    %v991 = vunpack.c.h.b16 %v239
    %v992 = vunpack.c.l.b16 %v240
    %v993 = vunpack.c.h.b16 %v240
    %v994 = vunpack.c.l.b16 %v241
    %v995 = vunpack.c.h.b16 %v241
    %v996 = vunpack.c.l.b16 %v242
    %v997 = vunpack.c.h.b16 %v242
    %v998 = vunpack.c.l.b16 %v243
    %v999 = vunpack.c.h.b16 %v243
    %v1000 = vunpack.c.l.b16 %v244
    %v1001 = vunpack.c.h.b16 %v244
    %v1002 = vunpack.c.l.b16 %v245
    %v1003 = vunpack.c.h.b16 %v245
    %v1004 = vunpack.c.l.b16 %v246
    %v1005 = vunpack.c.h.b16 %v246
    %v1006 = vunpack.c.l.b16 %v247
    %v1007 = vunpack.c.h.b16 %v247
    %v1008 = vunpack.c.l.b16 %v248
    %v1009 = vunpack.c.h.b16 %v248
    %v1010 = vunpack.c.l.b16 %v249
    %v1011 = vunpack.c.h.b16 %v249
    %v1012 = vunpack.c.l.b16 %v250
    %v1013 = vunpack.c.h.b16 %v250
    %v1014 = vunpack.c.l.b16 %v251
    %v1015 = vunpack.c.h.b16 %v251
    %v1016 = vunpack.c.l.b16 %v252
    %v1017 = vunpack.c.h.b16 %v252
    %v1018 = vunpack.c.l.b16 %v253
    %v1019 = vunpack.c.h.b16 %v253
    %v1020 = vunpack.c.l.b16 %v254
    %v1021 = vunpack.c.h.b16 %v254
    %v1022 = vunpack.c.l.b16 %v255
    %v1023 = vunpack.c.h.b16 %v255
    %v1024 = vunpack.c.l.b16 %v256
    %v1025 = vunpack.c.h.b16 %v256
    %v1026 = vunpack.c.l.b16 %v257
    %v1027 = vunpack.c.h.b16 %v257
    %v1028 = vunpack.c.l.b16 %v258
    %v1029 = vunpack.c.h.b16 %v258
    %v1030 = vunpack.c.l.b16 %v259
    %v1031 = vunpack.c.h.b16 %v259
    %v1032 = vunpack.c.l.b16 %v260
    %v1033 = vunpack.c.h.b16 %v260
    %v1034 = vunpack.c.l.b16 %v261
    %v1035 = vunpack.c.h.b16 %v261
    %v1036 = vunpack.c.l.b16 %v262
    %v1037 = vunpack.c.h.b16 %v262
    %v1038 = vunpack.c.l.b16 %v263
    %v1039 = vunpack.c.h.b16 %v263
    %v1040 = vunpack.c.l.b16 %v264
    %v1041 = vunpack.c.h.b16 %v264
    %v1042 = vunpack.c.l.b16 %v265
    %v1043 = vunpack.c.h.b16 %v265
    %v1044 = vunpack.c.l.b16 %v266
    %v1045 = vunpack.c.h.b16 %v266
    %v1046 = vunpack.c.l.b16 %v267
    %v1047 = vunpack.c.h.b16 %v267
    %v1048 = vunpack.c.l.b16 %v268
    %v1049 = vunpack.c.h.b16 %v268
    %v1050 = vunpack.c.l.b16 %v269
    %v1051 = vunpack.c.h.b16 %v269
    %v1052 = vunpack.c.l.b16 %v270
    %v1053 = vunpack.c.h.b16 %v270
    %v1054 = vunpack.c.l.b16 %v271
    %v1055 = vunpack.c.h.b16 %v271
    %v1056 = vunpack.c.l.b16 %v272
    %v1057 = vunpack.c.h.b16 %v272
    %v1058 = vunpack.c.l.b16 %v273
    %v1059 = vunpack.c.h.b16 %v273
    %v1060 = vunpack.c.l.b16 %v274
    %v1061 = vunpack.c.h.b16 %v274
    %v1062 = vunpack.c.l.b16 %v275
    %v1063 = vunpack.c.h.b16 %v275
    %v1064 = vunpack.c.l.b16 %v276
    %v1065 = vunpack.c.h.b16 %v276
    %v1066 = vunpack.c.l.b16 %v277
    %v1067 = vunpack.c.h.b16 %v277
    %v1068 = vunpack.c.l.b16 %v278
    %v1069 = vunpack.c.h.b16 %v278
    %v1070 = vunpack.c.l.b16 %v279
    %v1071 = vunpack.c.h.b16 %v279
    %v1072 = vunpack.c.l.b16 %v280
    %v1073 = vunpack.c.h.b16 %v280
    %v1074 = vunpack.c.l.b16 %v281
    %v1075 = vunpack.c.h.b16 %v281
    %v1076 = vunpack.c.l.b16 %v282
    %v1077 = vunpack.c.h.b16 %v282
    %v1078 = vunpack.c.l.b16 %v283
    %v1079 = vunpack.c.h.b16 %v283
    %v1080 = vpack.c.b16 %v572, %v568
    %v1081 = vpack.c.b16 %v573, %v569
    %v1082 = vpack.c.b16 %v574, %v570
    %v1083 = vpack.c.b16 %v575, %v571
    %v1084 = vpack.c.b16 %v580, %v576
    %v1085 = vpack.c.b16 %v581, %v577
    %v1086 = vpack.c.b16 %v582, %v578
    %v1087 = vpack.c.b16 %v583, %v579
    %v1088 = vpack.c.b16 %v588, %v584
    %v1089 = vpack.c.b16 %v589, %v585
    %v1090 = vpack.c.b16 %v590, %v586
    %v1091 = vpack.c.b16 %v591, %v587
    %v1092 = vpack.c.b16 %v596, %v592
    %v1093 = vpack.c.b16 %v597, %v593
    %v1094 = vpack.c.b16 %v598, %v594
    %v1095 = vpack.c.b16 %v599, %v595
    %v1096 = vpack.c.b16 %v604, %v600
    %v1097 = vpack.c.b16 %v605, %v601
    %v1098 = vpack.c.b16 %v606, %v602
    %v1099 = vpack.c.b16 %v607, %v603
    %v1100 = vpack.c.b16 %v612, %v608
    %v1101 = vpack.c.b16 %v613, %v609
    %v1102 = vpack.c.b16 %v614, %v610
    %v1103 = vpack.c.b16 %v615, %v611
    %v1104 = vpack.c.b16 %v620, %v616
    %v1105 = vpack.c.b16 %v621, %v617
    %v1106 = vpack.c.b16 %v622, %v618
    %v1107 = vpack.c.b16 %v623, %v619
    %v1108 = vpack.c.b16 %v628, %v624
    %v1109 = vpack.c.b16 %v629, %v625
    %v1110 = vpack.c.b16 %v630, %v626
    %v1111 = vpack.c.b16 %v631, %v627
    %v1112 = vpack.c.b16 %v636, %v632
    %v1113 = vpack.c.b16 %v637, %v633
    %v1114 = vpack.c.b16 %v638, %v634
    %v1115 = vpack.c.b16 %v639, %v635
    %v1116 = vpack.c.b16 %v644, %v640
    %v1117 = vpack.c.b16 %v645, %v641
    %v1118 = vpack.c.b16 %v646, %v642
    %v1119 = vpack.c.b16 %v647, %v643
    %v1120 = vpack.c.b16 %v652, %v648
    %v1121 = vpack.c.b16 %v653, %v649
    %v1122 = vpack.c.b16 %v654, %v650
    %v1123 = vpack.c.b16 %v655, %v651
    %v1124 = vpack.c.b16 %v660, %v656
    %v1125 = vpack.c.b16 %v661, %v657
    %v1126 = vpack.c.b16 %v662, %v658
    %v1127 = vpack.c.b16 %v663, %v659
    %v1128 = vpack.c.b16 %v668, %v664
    %v1129 = vpack.c.b16 %v669, %v665
    %v1130 = vpack.c.b16 %v670, %v666
    %v1131 = vpack.c.b16 %v671, %v667
    %v1132 = vpack.c.b16 %v676, %v672
    %v1133 = vpack.c.b16 %v677, %v673
    %v1134 = vpack.c.b16 %v678, %v674
    %v1135 = vpack.c.b16 %v679, %v675
    %v1136 = vpack.c.b16 %v684, %v680
    %v1137 = vpack.c.b16 %v685, %v681
    %v1138 = vpack.c.b16 %v686, %v682
    %v1139 = vpack.c.b16 %v687, %v683
    %v1140 = vpack.c.b16 %v692, %v688
    %v1141 = vpack.c.b16 %v693, %v689
    %v1142 = vpack.c.b16 %v694, %v690
    %v1143 = vpack.c.b16 %v695, %v691
    %v1144 = vpack.c.b16 %v700, %v696
    %v1145 = vpack.c.b16 %v701, %v697
    %v1146 = vpack.c.b16 %v702, %v698
    %v1147 = vpack.c.b16 %v703, %v699
    %v1148 = vpack.c.b16 %v708, %v704
    %v1149 = vpack.c.b16 %v709, %v705
    %v1150 = vpack.c.b16 %v710, %v706
    %v1151 = vpack.c.b16 %v711, %v707
    %v1152 = vpack.c.b16 %v716, %v712
    %v1153 = vpack.c.b16 %v717, %v713
    %v1154 = vpack.c.b16 %v718, %v714
    %v1155 = vpack.c.b16 %v719, %v715
    %v1156 = vpack.c.b16 %v724, %v720
    %v1157 = vpack.c.b16 %v725, %v721
    %v1158 = vpack.c.b16 %v726, %v722
    %v1159 = vpack.c.b16 %v727, %v723
    %v1160 = vpack.c.b16 %v732, %v728
    %v1161 = vpack.c.b16 %v733, %v729
    %v1162 = vpack.c.b16 %v734, %v730
    %v1163 = vpack.c.b16 %v735, %v731
    %v1164 = vpack.c.b16 %v740, %v736
    %v1165 = vpack.c.b16 %v741, %v737
    %v1166 = vpack.c.b16 %v742, %v738
    %v1167 = vpack.c.b16 %v743, %v739
    %v1168 = vpack.c.b16 %v748, %v744
    %v1169 = vpack.c.b16 %v749, %v745
    %v1170 = vpack.c.b16 %v750, %v746
    %v1171 = vpack.c.b16 %v751, %v747
    %v1172 = vpack.c.b16 %v756, %v752
    %v1173 = vpack.c.b16 %v757, %v753
    %v1174 = vpack.c.b16 %v758, %v754
    %v1175 = vpack.c.b16 %v759, %v755
    %v1176 = vpack.c.b16 %v764, %v760
    %v1177 = vpack.c.b16 %v765, %v761
    %v1178 = vpack.c.b16 %v766, %v762
    %v1179 = vpack.c.b16 %v767, %v763
    %v1180 = vpack.c.b16 %v772, %v768
    %v1181 = vpack.c.b16 %v773, %v769
    %v1182 = vpack.c.b16 %v774, %v770
    %v1183 = vpack.c.b16 %v775, %v771
    %v1184 = vpack.c.b16 %v780, %v776
    %v1185 = vpack.c.b16 %v781, %v777
    %v1186 = vpack.c.b16 %v782, %v778
    %v1187 = vpack.c.b16 %v783, %v779
    %v1188 = vpack.c.b16 %v788, %v784
    %v1189 = vpack.c.b16 %v789, %v785
    %v1190 = vpack.c.b16 %v790, %v786
    %v1191 = vpack.c.b16 %v791, %v787
    %v1192 = vpack.c.b16 %v796, %v792
    %v1193 = vpack.c.b16 %v797, %v793
    %v1194 = vpack.c.b16 %v798, %v794
    %v1195 = vpack.c.b16 %v799, %v795
    %v1196 = vpack.c.b16 %v804, %v800
    %v1197 = vpack.c.b16 %v805, %v801
    %v1198 = vpack.c.b16 %v806, %v802
    %v1199 = vpack.c.b16 %v807, %v803
    %v1200 = vpack.c.b16 %v812, %v808
    %v1201 = vpack.c.b16 %v813, %v809
    %v1202 = vpack.c.b16 %v814, %v810
    %v1203 = vpack.c.b16 %v815, %v811
    %v1204 = vpack.c.b16 %v820, %v816
    %v1205 = vpack.c.b16 %v821, %v817
    %v1206 = vpack.c.b16 %v822, %v818
    %v1207 = vpack.c.b16 %v823, %v819
    %v1208 = vpack.c.b16 %v828, %v824
    %v1209 = vpack.c.b16 %v829, %v825
    %v1210 = vpack.c.b16 %v830, %v826
    %v1211 = vpack.c.b16 %v831, %v827
    %v1212 = vpack.c.b16 %v836, %v832
    %v1213 = vpack.c.b16 %v837, %v833
    %v1214 = vpack.c.b16 %v838, %v834
    %v1215 = vpack.c.b16 %v839, %v835
    %v1216 = vpack.c.b16 %v844, %v840
    %v1217 = vpack.c.b16 %v845, %v841
    %v1218 = vpack.c.b16 %v846, %v842
    %v1219 = vpack.c.b16 %v847, %v843
    %v1220 = vpack.c.b16 %v852, %v848
    %v1221 = vpack.c.b16 %v853, %v849
    %v1222 = vpack.c.b16 %v854, %v850
    %v1223 = vpack.c.b16 %v855, %v851
    %v1224 = vpack.c.b16 %v860, %v856
    %v1225 = vpack.c.b16 %v861, %v857
    %v1226 = vpack.c.b16 %v862, %v858
    %v1227 = vpack.c.b16 %v863, %v859
    %v1228 = vpack.c.b16 %v868, %v864
    %v1229 = vpack.c.b16 %v869, %v865
    %v1230 = vpack.c.b16 %v870, %v866
    %v1231 = vpack.c.b16 %v871, %v867
    %v1232 = vpack.c.b16 %v876, %v872
    %v1233 = vpack.c.b16 %v877, %v873
    %v1234 = vpack.c.b16 %v878, %v874
    %v1235 = vpack.c.b16 %v879, %v875
    %v1236 = vpack.c.b16 %v884, %v880
    %v1237 = vpack.c.b16 %v885, %v881
    %v1238 = vpack.c.b16 %v886, %v882
    %v1239 = vpack.c.b16 %v887, %v883
    %v1240 = vpack.c.b16 %v892, %v888
    %v1241 = vpack.c.b16 %v893, %v889
    %v1242 = vpack.c.b16 %v894, %v890
    %v1243 = vpack.c.b16 %v895, %v891
    %v1244 = vpack.c.b16 %v900, %v896
    %v1245 = vpack.c.b16 %v901, %v897
    %v1246 = vpack.c.b16 %v902, %v898
    %v1247 = vpack.c.b16 %v903, %v899
    %v1248 = vpack.c.b16 %v908, %v904
    %v1249 = vpack.c.b16 %v909, %v905
    %v1250 = vpack.c.b16 %v910, %v906
    %v1251 = vpack.c.b16 %v911, %v907
    %v1252 = vpack.c.b16 %v916, %v912
    %v1253 = vpack.c.b16 %v917, %v913
    %v1254 = vpack.c.b16 %v918, %v914
    %v1255 = vpack.c.b16 %v919, %v915
    %v1256 = vpack.c.b16 %v924, %v920
    %v1257 = vpack.c.b16 %v925, %v921
    %v1258 = vpack.c.b16 %v926, %v922
    %v1259 = vpack.c.b16 %v927, %v923
    %v1260 = vpack.c.b16 %v932, %v928
    %v1261 = vpack.c.b16 %v933, %v929
    %v1262 = vpack.c.b16 %v934, %v930
    %v1263 = vpack.c.b16 %v935, %v931
    %v1264 = vpack.c.b16 %v940, %v936
    %v1265 = vpack.c.b16 %v941, %v937
    %v1266 = vpack.c.b16 %v942, %v938
    %v1267 = vpack.c.b16 %v943, %v939
    %v1268 = vpack.c.b16 %v948, %v944
    %v1269 = vpack.c.b16 %v949, %v945
    %v1270 = vpack.c.b16 %v950, %v946
    %v1271 = vpack.c.b16 %v951, %v947
    %v1272 = vpack.c.b16 %v956, %v952
    %v1273 = vpack.c.b16 %v957, %v953
    %v1274 = vpack.c.b16 %v958, %v954
    %v1275 = vpack.c.b16 %v959, %v955
    %v1276 = vpack.c.b16 %v964, %v960
    %v1277 = vpack.c.b16 %v965, %v961
    %v1278 = vpack.c.b16 %v966, %v962
    %v1279 = vpack.c.b16 %v967, %v963
    %v1280 = vpack.c.b16 %v972, %v968
    %v1281 = vpack.c.b16 %v973, %v969
    %v1282 = vpack.c.b16 %v974, %v970
    %v1283 = vpack.c.b16 %v975, %v971
    %v1284 = vpack.c.b16 %v980, %v976
    %v1285 = vpack.c.b16 %v981, %v977
    %v1286 = vpack.c.b16 %v982, %v978
    %v1287 = vpack.c.b16 %v983, %v979
    %v1288 = vpack.c.b16 %v988, %v984
    %v1289 = vpack.c.b16 %v989, %v985
    %v1290 = vpack.c.b16 %v990, %v986
    %v1291 = vpack.c.b16 %v991, %v987
    %v1292 = vpack.c.b16 %v996, %v992
    %v1293 = vpack.c.b16 %v997, %v993
    %v1294 = vpack.c.b16 %v998, %v994
    %v1295 = vpack.c.b16 %v999, %v995
    %v1296 = vpack.c.b16 %v1004, %v1000
    %v1297 = vpack.c.b16 %v1005, %v1001
    %v1298 = vpack.c.b16 %v1006, %v1002
    %v1299 = vpack.c.b16 %v1007, %v1003
    %v1300 = vpack.c.b16 %v1012, %v1008
    %v1301 = vpack.c.b16 %v1013, %v1009
    %v1302 = vpack.c.b16 %v1014, %v1010
    %v1303 = vpack.c.b16 %v1015, %v1011
    %v1304 = vpack.c.b16 %v1020, %v1016
    %v1305 = vpack.c.b16 %v1021, %v1017
    %v1306 = vpack.c.b16 %v1022, %v1018
    %v1307 = vpack.c.b16 %v1023, %v1019
    %v1308 = vpack.c.b16 %v1028, %v1024
    %v1309 = vpack.c.b16 %v1029, %v1025
    %v1310 = vpack.c.b16 %v1030, %v1026
    %v1311 = vpack.c.b16 %v1031, %v1027
    %v1312 = vpack.c.b16 %v1036, %v1032
    %v1313 = vpack.c.b16 %v1037, %v1033
    %v1314 = vpack.c.b16 %v1038, %v1034
    %v1315 = vpack.c.b16 %v1039, %v1035
    %v1316 = vpack.c.b16 %v1044, %v1040
    %v1317 = vpack.c.b16 %v1045, %v1041
    %v1318 = vpack.c.b16 %v1046, %v1042
    %v1319 = vpack.c.b16 %v1047, %v1043
    %v1320 = vpack.c.b16 %v1052, %v1048
    %v1321 = vpack.c.b16 %v1053, %v1049
    %v1322 = vpack.c.b16 %v1054, %v1050
    %v1323 = vpack.c.b16 %v1055, %v1051
    %v1324 = vpack.c.b16 %v1060, %v1056
    %v1325 = vpack.c.b16 %v1061, %v1057
    %v1326 = vpack.c.b16 %v1062, %v1058
    %v1327 = vpack.c.b16 %v1063, %v1059
    %v1328 = vpack.c.b16 %v1068, %v1064
    %v1329 = vpack.c.b16 %v1069, %v1065
    %v1330 = vpack.c.b16 %v1070, %v1066
    %v1331 = vpack.c.b16 %v1071, %v1067
    %v1332 = vpack.c.b16 %v1076, %v1072
    %v1333 = vpack.c.b16 %v1077, %v1073
    %v1334 = vpack.c.b16 %v1078, %v1074
    %v1335 = vpack.c.b16 %v1079, %v1075
    %1592 = vmatpush.bf16.msra.mxu0 %v1108
    %1593 = vmatpush.bf16.msra.mxu0 %v1104
    %1594 = vmatpush.bf16.msra.mxu0 %v1100
    %1595 = vmatpush.bf16.msra.mxu0 %v1096
    %1596 = vmatpush.bf16.msra.mxu0 %v1092
    %1597 = vmatpush.bf16.msra.mxu0 %v1088
    %1598 = vmatpush.bf16.msra.mxu0 %v1084
    %1599 = vmatpush.bf16.msra.mxu0 %v1080
    %1600 = vmatmul.bf16.gmra.mxu0 %v296
    %v1601 = vpop.f32.mrf.mxu0
    %v1602 = vadd.f32 %v286, %v1601
    %v1603 = vpop.f32.mrf.mxu0
    %1604 = vdwg.mxu0
    %1605 = vmatpush.bf16.msra.mxu0 %v1140
    %1606 = vmatpush.bf16.msra.mxu0 %v1136
    %1607 = vmatpush.bf16.msra.mxu0 %v1132
    %1608 = vmatpush.bf16.msra.mxu0 %v1128
    %1609 = vmatpush.bf16.msra.mxu0 %v1124
    %1610 = vmatpush.bf16.msra.mxu0 %v1120
    %1611 = vmatpush.bf16.msra.mxu0 %v1116
    %1612 = vmatpush.bf16.msra.mxu0 %v1112
    %1613 = vmatmul.bf16.gmra.mxu0 %v297
    %v1614 = vpop.f32.mrf.mxu0
    %v1615 = vadd.f32 %v1602, %v1614
    %v1616 = vpop.f32.mrf.mxu0
    %1617 = vdwg.mxu0
    %1618 = vmatpush.bf16.msra.mxu0 %v1172
    %1619 = vmatpush.bf16.msra.mxu0 %v1168
    %1620 = vmatpush.bf16.msra.mxu0 %v1164
    %1621 = vmatpush.bf16.msra.mxu0 %v1160
    %1622 = vmatpush.bf16.msra.mxu0 %v1156
    %1623 = vmatpush.bf16.msra.mxu0 %v1152
    %1624 = vmatpush.bf16.msra.mxu0 %v1148
    %1625 = vmatpush.bf16.msra.mxu0 %v1144
    %1626 = vmatmul.bf16.gmra.mxu0 %v298
    %v1627 = vpop.f32.mrf.mxu0
    %v1628 = vadd.f32 %v1615, %v1627
    %v1629 = vpop.f32.mrf.mxu0
    %1630 = vdwg.mxu0
    %1631 = vmatpush.bf16.msra.mxu0 %v1204
    %1632 = vmatpush.bf16.msra.mxu0 %v1200
    %1633 = vmatpush.bf16.msra.mxu0 %v1196
    %1634 = vmatpush.bf16.msra.mxu0 %v1192
    %1635 = vmatpush.bf16.msra.mxu0 %v1188
    %1636 = vmatpush.bf16.msra.mxu0 %v1184
    %1637 = vmatpush.bf16.msra.mxu0 %v1180
    %1638 = vmatpush.bf16.msra.mxu0 %v1176
    %1639 = vmatmul.bf16.gmra.mxu0 %v299
    %v1640 = vpop.f32.mrf.mxu0
    %v1641 = vadd.f32 %v1628, %v1640
    %v1642 = vpop.f32.mrf.mxu0
    %1643 = vdwg.mxu0
    %1644 = vmatpush.bf16.msra.mxu0 %v1236
    %1645 = vmatpush.bf16.msra.mxu0 %v1232
    %1646 = vmatpush.bf16.msra.mxu0 %v1228
    %1647 = vmatpush.bf16.msra.mxu0 %v1224
    %1648 = vmatpush.bf16.msra.mxu0 %v1220
    %1649 = vmatpush.bf16.msra.mxu0 %v1216
    %1650 = vmatpush.bf16.msra.mxu0 %v1212
    %1651 = vmatpush.bf16.msra.mxu0 %v1208
    %1652 = vmatmul.bf16.gmra.mxu0 %v300
    %v1653 = vpop.f32.mrf.mxu0
    %v1654 = vadd.f32 %v1641, %v1653
    %v1655 = vpop.f32.mrf.mxu0
    %1656 = vdwg.mxu0
    %1657 = vmatpush.bf16.msra.mxu0 %v1268
    %1658 = vmatpush.bf16.msra.mxu0 %v1264
    %1659 = vmatpush.bf16.msra.mxu0 %v1260
    %1660 = vmatpush.bf16.msra.mxu0 %v1256
    %1661 = vmatpush.bf16.msra.mxu0 %v1252
    %1662 = vmatpush.bf16.msra.mxu0 %v1248
    %1663 = vmatpush.bf16.msra.mxu0 %v1244
    %1664 = vmatpush.bf16.msra.mxu0 %v1240
    %1665 = vmatmul.bf16.gmra.mxu0 %v301
    %v1666 = vpop.f32.mrf.mxu0
    %v1667 = vadd.f32 %v1654, %v1666
    %v1668 = vpop.f32.mrf.mxu0
    %1669 = vdwg.mxu0
    %1670 = vmatpush.bf16.msra.mxu0 %v1300
    %1671 = vmatpush.bf16.msra.mxu0 %v1296
    %1672 = vmatpush.bf16.msra.mxu0 %v1292
    %1673 = vmatpush.bf16.msra.mxu0 %v1288
    %1674 = vmatpush.bf16.msra.mxu0 %v1284
    %1675 = vmatpush.bf16.msra.mxu0 %v1280
    %1676 = vmatpush.bf16.msra.mxu0 %v1276
    %1677 = vmatpush.bf16.msra.mxu0 %v1272
    %1678 = vmatmul.bf16.gmra.mxu0 %v302
    %v1679 = vpop.f32.mrf.mxu0
    %v1680 = vadd.f32 %v1667, %v1679
    %v1681 = vpop.f32.mrf.mxu0
    %1682 = vdwg.mxu0
    %1683 = vmatpush.bf16.msra.mxu0 %v1332
    %1684 = vmatpush.bf16.msra.mxu0 %v1328
    %1685 = vmatpush.bf16.msra.mxu0 %v1324
    %1686 = vmatpush.bf16.msra.mxu0 %v1320
    %1687 = vmatpush.bf16.msra.mxu0 %v1316
    %1688 = vmatpush.bf16.msra.mxu0 %v1312
    %1689 = vmatpush.bf16.msra.mxu0 %v1308
    %1690 = vmatpush.bf16.msra.mxu0 %v1304
    %1691 = vmatmul.bf16.gmra.mxu0 %v303
    %v1692 = vpop.f32.mrf.mxu0
    %v1693 = vadd.f32 %v1680, %v1692
    %v1694 = vpop.f32.mrf.mxu0
    %1695 = vdwg.mxu0
    %1696 = vmatpush.bf16.msra.mxu0 %v1109
    %1697 = vmatpush.bf16.msra.mxu0 %v1105
    %1698 = vmatpush.bf16.msra.mxu0 %v1101
    %1699 = vmatpush.bf16.msra.mxu0 %v1097
    %1700 = vmatpush.bf16.msra.mxu0 %v1093
    %1701 = vmatpush.bf16.msra.mxu0 %v1089
    %1702 = vmatpush.bf16.msra.mxu0 %v1085
    %1703 = vmatpush.bf16.msra.mxu0 %v1081
    %1704 = vmatmul.bf16.gmra.mxu0 %v296
    %v1705 = vpop.f32.mrf.mxu0
    %v1706 = vadd.f32 %v287, %v1705
    %v1707 = vpop.f32.mrf.mxu0
    %1708 = vdwg.mxu0
    %1709 = vmatpush.bf16.msra.mxu0 %v1141
    %1710 = vmatpush.bf16.msra.mxu0 %v1137
    %1711 = vmatpush.bf16.msra.mxu0 %v1133
    %1712 = vmatpush.bf16.msra.mxu0 %v1129
    %1713 = vmatpush.bf16.msra.mxu0 %v1125
    %1714 = vmatpush.bf16.msra.mxu0 %v1121
    %1715 = vmatpush.bf16.msra.mxu0 %v1117
    %1716 = vmatpush.bf16.msra.mxu0 %v1113
    %1717 = vmatmul.bf16.gmra.mxu0 %v297
    %v1718 = vpop.f32.mrf.mxu0
    %v1719 = vadd.f32 %v1706, %v1718
    %v1720 = vpop.f32.mrf.mxu0
    %1721 = vdwg.mxu0
    %1722 = vmatpush.bf16.msra.mxu0 %v1173
    %1723 = vmatpush.bf16.msra.mxu0 %v1169
    %1724 = vmatpush.bf16.msra.mxu0 %v1165
    %1725 = vmatpush.bf16.msra.mxu0 %v1161
    %1726 = vmatpush.bf16.msra.mxu0 %v1157
    %1727 = vmatpush.bf16.msra.mxu0 %v1153
    %1728 = vmatpush.bf16.msra.mxu0 %v1149
    %1729 = vmatpush.bf16.msra.mxu0 %v1145
    %1730 = vmatmul.bf16.gmra.mxu0 %v298
    %v1731 = vpop.f32.mrf.mxu0
    %v1732 = vadd.f32 %v1719, %v1731
    %v1733 = vpop.f32.mrf.mxu0
    %1734 = vdwg.mxu0
    %1735 = vmatpush.bf16.msra.mxu0 %v1205
    %1736 = vmatpush.bf16.msra.mxu0 %v1201
    %1737 = vmatpush.bf16.msra.mxu0 %v1197
    %1738 = vmatpush.bf16.msra.mxu0 %v1193
    %1739 = vmatpush.bf16.msra.mxu0 %v1189
    %1740 = vmatpush.bf16.msra.mxu0 %v1185
    %1741 = vmatpush.bf16.msra.mxu0 %v1181
    %1742 = vmatpush.bf16.msra.mxu0 %v1177
    %1743 = vmatmul.bf16.gmra.mxu0 %v299
    %v1744 = vpop.f32.mrf.mxu0
    %v1745 = vadd.f32 %v1732, %v1744
    %v1746 = vpop.f32.mrf.mxu0
    %1747 = vdwg.mxu0
    %1748 = vmatpush.bf16.msra.mxu0 %v1237
    %1749 = vmatpush.bf16.msra.mxu0 %v1233
    %1750 = vmatpush.bf16.msra.mxu0 %v1229
    %1751 = vmatpush.bf16.msra.mxu0 %v1225
    %1752 = vmatpush.bf16.msra.mxu0 %v1221
    %1753 = vmatpush.bf16.msra.mxu0 %v1217
    %1754 = vmatpush.bf16.msra.mxu0 %v1213
    %1755 = vmatpush.bf16.msra.mxu0 %v1209
    %1756 = vmatmul.bf16.gmra.mxu0 %v300
    %v1757 = vpop.f32.mrf.mxu0
    %v1758 = vadd.f32 %v1745, %v1757
    %v1759 = vpop.f32.mrf.mxu0
    %1760 = vdwg.mxu0
    %1761 = vmatpush.bf16.msra.mxu0 %v1269
    %1762 = vmatpush.bf16.msra.mxu0 %v1265
    %1763 = vmatpush.bf16.msra.mxu0 %v1261
    %1764 = vmatpush.bf16.msra.mxu0 %v1257
    %1765 = vmatpush.bf16.msra.mxu0 %v1253
    %1766 = vmatpush.bf16.msra.mxu0 %v1249
    %1767 = vmatpush.bf16.msra.mxu0 %v1245
    %1768 = vmatpush.bf16.msra.mxu0 %v1241
    %1769 = vmatmul.bf16.gmra.mxu0 %v301
    %v1770 = vpop.f32.mrf.mxu0
    %v1771 = vadd.f32 %v1758, %v1770
    %v1772 = vpop.f32.mrf.mxu0
    %1773 = vdwg.mxu0
    %1774 = vmatpush.bf16.msra.mxu0 %v1301
    %1775 = vmatpush.bf16.msra.mxu0 %v1297
    %1776 = vmatpush.bf16.msra.mxu0 %v1293
    %1777 = vmatpush.bf16.msra.mxu0 %v1289
    %1778 = vmatpush.bf16.msra.mxu0 %v1285
    %1779 = vmatpush.bf16.msra.mxu0 %v1281
    %1780 = vmatpush.bf16.msra.mxu0 %v1277
    %1781 = vmatpush.bf16.msra.mxu0 %v1273
    %1782 = vmatmul.bf16.gmra.mxu0 %v302
    %v1783 = vpop.f32.mrf.mxu0
    %v1784 = vadd.f32 %v1771, %v1783
    %v1785 = vpop.f32.mrf.mxu0
    %1786 = vdwg.mxu0
    %1787 = vmatpush.bf16.msra.mxu0 %v1333
    %1788 = vmatpush.bf16.msra.mxu0 %v1329
    %1789 = vmatpush.bf16.msra.mxu0 %v1325
    %1790 = vmatpush.bf16.msra.mxu0 %v1321
    %1791 = vmatpush.bf16.msra.mxu0 %v1317
    %1792 = vmatpush.bf16.msra.mxu0 %v1313
    %1793 = vmatpush.bf16.msra.mxu0 %v1309
    %1794 = vmatpush.bf16.msra.mxu0 %v1305
    %1795 = vmatmul.bf16.gmra.mxu0 %v303
    %v1796 = vpop.f32.mrf.mxu0
    %v1797 = vadd.f32 %v1784, %v1796
    %v1798 = vpop.f32.mrf.mxu0
    %1799 = vdwg.mxu0
    %1800 = vmatpush.bf16.msra.mxu0 %v1110
    %1801 = vmatpush.bf16.msra.mxu0 %v1106
    %1802 = vmatpush.bf16.msra.mxu0 %v1102
    %1803 = vmatpush.bf16.msra.mxu0 %v1098
    %1804 = vmatpush.bf16.msra.mxu0 %v1094
    %1805 = vmatpush.bf16.msra.mxu0 %v1090
    %1806 = vmatpush.bf16.msra.mxu0 %v1086
    %1807 = vmatpush.bf16.msra.mxu0 %v1082
    %1808 = vmatmul.bf16.gmra.mxu0 %v296
    %v1809 = vpop.f32.mrf.mxu0
    %v1810 = vadd.f32 %v288, %v1809
    %v1811 = vpop.f32.mrf.mxu0
    %1812 = vdwg.mxu0
    %1813 = vmatpush.bf16.msra.mxu0 %v1142
    %1814 = vmatpush.bf16.msra.mxu0 %v1138
    %1815 = vmatpush.bf16.msra.mxu0 %v1134
    %1816 = vmatpush.bf16.msra.mxu0 %v1130
    %1817 = vmatpush.bf16.msra.mxu0 %v1126
    %1818 = vmatpush.bf16.msra.mxu0 %v1122
    %1819 = vmatpush.bf16.msra.mxu0 %v1118
    %1820 = vmatpush.bf16.msra.mxu0 %v1114
    %1821 = vmatmul.bf16.gmra.mxu0 %v297
    %v1822 = vpop.f32.mrf.mxu0
    %v1823 = vadd.f32 %v1810, %v1822
    %v1824 = vpop.f32.mrf.mxu0
    %1825 = vdwg.mxu0
    %1826 = vmatpush.bf16.msra.mxu0 %v1174
    %1827 = vmatpush.bf16.msra.mxu0 %v1170
    %1828 = vmatpush.bf16.msra.mxu0 %v1166
    %1829 = vmatpush.bf16.msra.mxu0 %v1162
    %1830 = vmatpush.bf16.msra.mxu0 %v1158
    %1831 = vmatpush.bf16.msra.mxu0 %v1154
    %1832 = vmatpush.bf16.msra.mxu0 %v1150
    %1833 = vmatpush.bf16.msra.mxu0 %v1146
    %1834 = vmatmul.bf16.gmra.mxu0 %v298
    %v1835 = vpop.f32.mrf.mxu0
    %v1836 = vadd.f32 %v1823, %v1835
    %v1837 = vpop.f32.mrf.mxu0
    %1838 = vdwg.mxu0
    %1839 = vmatpush.bf16.msra.mxu0 %v1206
    %1840 = vmatpush.bf16.msra.mxu0 %v1202
    %1841 = vmatpush.bf16.msra.mxu0 %v1198
    %1842 = vmatpush.bf16.msra.mxu0 %v1194
    %1843 = vmatpush.bf16.msra.mxu0 %v1190
    %1844 = vmatpush.bf16.msra.mxu0 %v1186
    %1845 = vmatpush.bf16.msra.mxu0 %v1182
    %1846 = vmatpush.bf16.msra.mxu0 %v1178
    %1847 = vmatmul.bf16.gmra.mxu0 %v299
    %v1848 = vpop.f32.mrf.mxu0
    %v1849 = vadd.f32 %v1836, %v1848
    %v1850 = vpop.f32.mrf.mxu0
    %1851 = vdwg.mxu0
    %1852 = vmatpush.bf16.msra.mxu0 %v1238
    %1853 = vmatpush.bf16.msra.mxu0 %v1234
    %1854 = vmatpush.bf16.msra.mxu0 %v1230
    %1855 = vmatpush.bf16.msra.mxu0 %v1226
    %1856 = vmatpush.bf16.msra.mxu0 %v1222
    %1857 = vmatpush.bf16.msra.mxu0 %v1218
    %1858 = vmatpush.bf16.msra.mxu0 %v1214
    %1859 = vmatpush.bf16.msra.mxu0 %v1210
    %1860 = vmatmul.bf16.gmra.mxu0 %v300
    %v1861 = vpop.f32.mrf.mxu0
    %v1862 = vadd.f32 %v1849, %v1861
    %v1863 = vpop.f32.mrf.mxu0
    %1864 = vdwg.mxu0
    %1865 = vmatpush.bf16.msra.mxu0 %v1270
    %1866 = vmatpush.bf16.msra.mxu0 %v1266
    %1867 = vmatpush.bf16.msra.mxu0 %v1262
    %1868 = vmatpush.bf16.msra.mxu0 %v1258
    %1869 = vmatpush.bf16.msra.mxu0 %v1254
    %1870 = vmatpush.bf16.msra.mxu0 %v1250
    %1871 = vmatpush.bf16.msra.mxu0 %v1246
    %1872 = vmatpush.bf16.msra.mxu0 %v1242
    %1873 = vmatmul.bf16.gmra.mxu0 %v301
    %v1874 = vpop.f32.mrf.mxu0
    %v1875 = vadd.f32 %v1862, %v1874
    %v1876 = vpop.f32.mrf.mxu0
    %1877 = vdwg.mxu0
    %1878 = vmatpush.bf16.msra.mxu0 %v1302
    %1879 = vmatpush.bf16.msra.mxu0 %v1298
    %1880 = vmatpush.bf16.msra.mxu0 %v1294
    %1881 = vmatpush.bf16.msra.mxu0 %v1290
    %1882 = vmatpush.bf16.msra.mxu0 %v1286
    %1883 = vmatpush.bf16.msra.mxu0 %v1282
    %1884 = vmatpush.bf16.msra.mxu0 %v1278
    %1885 = vmatpush.bf16.msra.mxu0 %v1274
    %1886 = vmatmul.bf16.gmra.mxu0 %v302
    %v1887 = vpop.f32.mrf.mxu0
    %v1888 = vadd.f32 %v1875, %v1887
    %v1889 = vpop.f32.mrf.mxu0
    %1890 = vdwg.mxu0
    %1891 = vmatpush.bf16.msra.mxu0 %v1334
    %1892 = vmatpush.bf16.msra.mxu0 %v1330
    %1893 = vmatpush.bf16.msra.mxu0 %v1326
    %1894 = vmatpush.bf16.msra.mxu0 %v1322
    %1895 = vmatpush.bf16.msra.mxu0 %v1318
    %1896 = vmatpush.bf16.msra.mxu0 %v1314
    %1897 = vmatpush.bf16.msra.mxu0 %v1310
    %1898 = vmatpush.bf16.msra.mxu0 %v1306
    %1899 = vmatmul.bf16.gmra.mxu0 %v303
    %v1900 = vpop.f32.mrf.mxu0
    %v1901 = vadd.f32 %v1888, %v1900
    %v1902 = vpop.f32.mrf.mxu0
    %1903 = vdwg.mxu0
    %1904 = vmatpush.bf16.msra.mxu0 %v1111
    %1905 = vmatpush.bf16.msra.mxu0 %v1107
    %1906 = vmatpush.bf16.msra.mxu0 %v1103
    %1907 = vmatpush.bf16.msra.mxu0 %v1099
    %1908 = vmatpush.bf16.msra.mxu0 %v1095
    %1909 = vmatpush.bf16.msra.mxu0 %v1091
    %1910 = vmatpush.bf16.msra.mxu0 %v1087
    %1911 = vmatpush.bf16.msra.mxu0 %v1083
    %1912 = vmatmul.bf16.gmra.mxu0 %v296
    %v1913 = vpop.f32.mrf.mxu0
    %v1914 = vadd.f32 %v289, %v1913
    %v1915 = vpop.f32.mrf.mxu0
    %1916 = vdwg.mxu0
    %1917 = vmatpush.bf16.msra.mxu0 %v1143
    %1918 = vmatpush.bf16.msra.mxu0 %v1139
    %1919 = vmatpush.bf16.msra.mxu0 %v1135
    %1920 = vmatpush.bf16.msra.mxu0 %v1131
    %1921 = vmatpush.bf16.msra.mxu0 %v1127
    %1922 = vmatpush.bf16.msra.mxu0 %v1123
    %1923 = vmatpush.bf16.msra.mxu0 %v1119
    %1924 = vmatpush.bf16.msra.mxu0 %v1115
    %1925 = vmatmul.bf16.gmra.mxu0 %v297
    %v1926 = vpop.f32.mrf.mxu0
    %v1927 = vadd.f32 %v1914, %v1926
    %v1928 = vpop.f32.mrf.mxu0
    %1929 = vdwg.mxu0
    %1930 = vmatpush.bf16.msra.mxu0 %v1175
    %1931 = vmatpush.bf16.msra.mxu0 %v1171
    %1932 = vmatpush.bf16.msra.mxu0 %v1167
    %1933 = vmatpush.bf16.msra.mxu0 %v1163
    %1934 = vmatpush.bf16.msra.mxu0 %v1159
    %1935 = vmatpush.bf16.msra.mxu0 %v1155
    %1936 = vmatpush.bf16.msra.mxu0 %v1151
    %1937 = vmatpush.bf16.msra.mxu0 %v1147
    %1938 = vmatmul.bf16.gmra.mxu0 %v298
    %v1939 = vpop.f32.mrf.mxu0
    %v1940 = vadd.f32 %v1927, %v1939
    %v1941 = vpop.f32.mrf.mxu0
    %1942 = vdwg.mxu0
    %1943 = vmatpush.bf16.msra.mxu0 %v1207
    %1944 = vmatpush.bf16.msra.mxu0 %v1203
    %1945 = vmatpush.bf16.msra.mxu0 %v1199
    %1946 = vmatpush.bf16.msra.mxu0 %v1195
    %1947 = vmatpush.bf16.msra.mxu0 %v1191
    %1948 = vmatpush.bf16.msra.mxu0 %v1187
    %1949 = vmatpush.bf16.msra.mxu0 %v1183
    %1950 = vmatpush.bf16.msra.mxu0 %v1179
    %1951 = vmatmul.bf16.gmra.mxu0 %v299
    %v1952 = vpop.f32.mrf.mxu0
    %v1953 = vadd.f32 %v1940, %v1952
    %v1954 = vpop.f32.mrf.mxu0
    %1955 = vdwg.mxu0
    %1956 = vmatpush.bf16.msra.mxu0 %v1239
    %1957 = vmatpush.bf16.msra.mxu0 %v1235
    %1958 = vmatpush.bf16.msra.mxu0 %v1231
    %1959 = vmatpush.bf16.msra.mxu0 %v1227
    %1960 = vmatpush.bf16.msra.mxu0 %v1223
    %1961 = vmatpush.bf16.msra.mxu0 %v1219
    %1962 = vmatpush.bf16.msra.mxu0 %v1215
    %1963 = vmatpush.bf16.msra.mxu0 %v1211
    %1964 = vmatmul.bf16.gmra.mxu0 %v300
    %v1965 = vpop.f32.mrf.mxu0
    %v1966 = vadd.f32 %v1953, %v1965
    %v1967 = vpop.f32.mrf.mxu0
    %1968 = vdwg.mxu0
    %1969 = vmatpush.bf16.msra.mxu0 %v1271
    %1970 = vmatpush.bf16.msra.mxu0 %v1267
    %1971 = vmatpush.bf16.msra.mxu0 %v1263
    %1972 = vmatpush.bf16.msra.mxu0 %v1259
    %1973 = vmatpush.bf16.msra.mxu0 %v1255
    %1974 = vmatpush.bf16.msra.mxu0 %v1251
    %1975 = vmatpush.bf16.msra.mxu0 %v1247
    %1976 = vmatpush.bf16.msra.mxu0 %v1243
    %1977 = vmatmul.bf16.gmra.mxu0 %v301
    %v1978 = vpop.f32.mrf.mxu0
    %v1979 = vadd.f32 %v1966, %v1978
    %v1980 = vpop.f32.mrf.mxu0
    %1981 = vdwg.mxu0
    %1982 = vmatpush.bf16.msra.mxu0 %v1303
    %1983 = vmatpush.bf16.msra.mxu0 %v1299
    %1984 = vmatpush.bf16.msra.mxu0 %v1295
    %1985 = vmatpush.bf16.msra.mxu0 %v1291
    %1986 = vmatpush.bf16.msra.mxu0 %v1287
    %1987 = vmatpush.bf16.msra.mxu0 %v1283
    %1988 = vmatpush.bf16.msra.mxu0 %v1279
    %1989 = vmatpush.bf16.msra.mxu0 %v1275
    %1990 = vmatmul.bf16.gmra.mxu0 %v302
    %v1991 = vpop.f32.mrf.mxu0
    %v1992 = vadd.f32 %v1979, %v1991
    %v1993 = vpop.f32.mrf.mxu0
    %1994 = vdwg.mxu0
    %1995 = vmatpush.bf16.msra.mxu0 %v1335
    %1996 = vmatpush.bf16.msra.mxu0 %v1331
    %1997 = vmatpush.bf16.msra.mxu0 %v1327
    %1998 = vmatpush.bf16.msra.mxu0 %v1323
    %1999 = vmatpush.bf16.msra.mxu0 %v1319
    %2000 = vmatpush.bf16.msra.mxu0 %v1315
    %2001 = vmatpush.bf16.msra.mxu0 %v1311
    %2002 = vmatpush.bf16.msra.mxu0 %v1307
    %2003 = vmatmul.bf16.gmra.mxu0 %v303
    %v2004 = vpop.f32.mrf.mxu0
    %v2005 = vadd.f32 %v1992, %v2004
    %v2006 = vpop.f32.mrf.mxu0
    %2007 = vdwg.mxu0
    %v2008 = vmax.f32 %v1693, 0.0
    %v2009 = vmax.f32 %v1797, 0.0
    %v2010 = vmax.f32 %v1901, 0.0
    %v2011 = vmax.f32 %v2005, 0.0
    %v2012 = vpack.c.bf16 %v2008, %v2008
    %v2013 = vpack.c.bf16 %v2009, %v2009
    %v2014 = vpack.c.bf16 %v2010, %v2010
    %v2015 = vpack.c.bf16 %v2011, %v2011
    %v2016 = vld [vmem:[%s3] sm:$0xff]
    %v2017 = vld [vmem:[%s3 + $0x8] sm:$0xff]
    %v2018 = vld [vmem:[%s3 + $0x10] sm:$0xff]
    %v2019 = vld [vmem:[%s3 + $0x18] sm:$0xff]
    %v2020 = vld [vmem:[%s3 + $0x20] sm:$0xff]
    %v2021 = vld [vmem:[%s3 + $0x28] sm:$0xff]
    %v2022 = vld [vmem:[%s3 + $0x30] sm:$0xff]
    %v2023 = vld [vmem:[%s3 + $0x38] sm:$0xff]
    %v2024 = vld [vmem:[%s3 + $0x40] sm:$0xff]
    %v2025 = vld [vmem:[%s3 + $0x48] sm:$0xff]
    %v2026 = vld [vmem:[%s3 + $0x50] sm:$0xff]
    %v2027 = vld [vmem:[%s3 + $0x58] sm:$0xff]
    %v2028 = vld [vmem:[%s3 + $0x60] sm:$0xff]
    %v2029 = vld [vmem:[%s3 + $0x68] sm:$0xff]
    %v2030 = vld [vmem:[%s3 + $0x70] sm:$0xff]
    %v2031 = vld [vmem:[%s3 + $0x78] sm:$0xff]
    %v2032 = vld [vmem:[%s3 + $0x80] sm:$0xff]
    %v2033 = vld [vmem:[%s3 + $0x88] sm:$0xff]
    %v2034 = vld [vmem:[%s3 + $0x90] sm:$0xff]
    %v2035 = vld [vmem:[%s3 + $0x98] sm:$0xff]
    %v2036 = vld [vmem:[%s3 + $0xa0] sm:$0xff]
    %v2037 = vld [vmem:[%s3 + $0xa8] sm:$0xff]
    %v2038 = vld [vmem:[%s3 + $0xb0] sm:$0xff]
    %v2039 = vld [vmem:[%s3 + $0xb8] sm:$0xff]
    %v2040 = vld [vmem:[%s3 + $0xc0] sm:$0xff]
    %v2041 = vld [vmem:[%s3 + $0xc8] sm:$0xff]
    %v2042 = vld [vmem:[%s3 + $0xd0] sm:$0xff]
    %v2043 = vld [vmem:[%s3 + $0xd8] sm:$0xff]
    %v2044 = vld [vmem:[%s3 + $0xe0] sm:$0xff]
    %v2045 = vld [vmem:[%s3 + $0xe8] sm:$0xff]
    %v2046 = vld [vmem:[%s3 + $0xf0] sm:$0xff]
    %v2047 = vld [vmem:[%s3 + $0xf8] sm:$0xff]
    %v2048 = vld [vmem:[%s3 + $0x100] sm:$0xff]
    %v2049 = vld [vmem:[%s3 + $0x108] sm:$0xff]
    %v2050 = vld [vmem:[%s3 + $0x110] sm:$0xff]
    %v2051 = vld [vmem:[%s3 + $0x118] sm:$0xff]
    %v2052 = vld [vmem:[%s3 + $0x120] sm:$0xff]
    %v2053 = vld [vmem:[%s3 + $0x128] sm:$0xff]
    %v2054 = vld [vmem:[%s3 + $0x130] sm:$0xff]
    %v2055 = vld [vmem:[%s3 + $0x138] sm:$0xff]
    %v2056 = vld [vmem:[%s3 + $0x140] sm:$0xff]
    %v2057 = vld [vmem:[%s3 + $0x148] sm:$0xff]
    %v2058 = vld [vmem:[%s3 + $0x150] sm:$0xff]
    %v2059 = vld [vmem:[%s3 + $0x158] sm:$0xff]
    %v2060 = vld [vmem:[%s3 + $0x160] sm:$0xff]
    %v2061 = vld [vmem:[%s3 + $0x168] sm:$0xff]
    %v2062 = vld [vmem:[%s3 + $0x170] sm:$0xff]
    %v2063 = vld [vmem:[%s3 + $0x178] sm:$0xff]
    %v2064 = vld [vmem:[%s3 + $0x180] sm:$0xff]
    %v2065 = vld [vmem:[%s3 + $0x188] sm:$0xff]
    %v2066 = vld [vmem:[%s3 + $0x190] sm:$0xff]
    %v2067 = vld [vmem:[%s3 + $0x198] sm:$0xff]
    %v2068 = vld [vmem:[%s3 + $0x1a0] sm:$0xff]
    %v2069 = vld [vmem:[%s3 + $0x1a8] sm:$0xff]
    %v2070 = vld [vmem:[%s3 + $0x1b0] sm:$0xff]
    %v2071 = vld [vmem:[%s3 + $0x1b8] sm:$0xff]
    %v2072 = vld [vmem:[%s3 + $0x1c0] sm:$0xff]
    %v2073 = vld [vmem:[%s3 + $0x1c8] sm:$0xff]
    %v2074 = vld [vmem:[%s3 + $0x1d0] sm:$0xff]
    %v2075 = vld [vmem:[%s3 + $0x1d8] sm:$0xff]
    %v2076 = vld [vmem:[%s3 + $0x1e0] sm:$0xff]
    %v2077 = vld [vmem:[%s3 + $0x1e8] sm:$0xff]
    %v2078 = vld [vmem:[%s3 + $0x1f0] sm:$0xff]
    %v2079 = vld [vmem:[%s3 + $0x1f8] sm:$0xff]
    %v2080 = vld [vmem:[%s4] sm:$0x3]
    %v2082 = vperm.slane %v2080, 0
    %v2083 = vperm.slane %v2080, 1
    %v2150 = vunpack.c.l.b16 %v2016
    %v2151 = vunpack.c.h.b16 %v2016
    %v2152 = vunpack.c.l.b16 %v2017
    %v2153 = vunpack.c.h.b16 %v2017
    %v2154 = vunpack.c.l.b16 %v2018
    %v2155 = vunpack.c.h.b16 %v2018
    %v2156 = vunpack.c.l.b16 %v2019
    %v2157 = vunpack.c.h.b16 %v2019
    %v2158 = vunpack.c.l.b16 %v2020
    %v2159 = vunpack.c.h.b16 %v2020
    %v2160 = vunpack.c.l.b16 %v2021
    %v2161 = vunpack.c.h.b16 %v2021
    %v2162 = vunpack.c.l.b16 %v2022
    %v2163 = vunpack.c.h.b16 %v2022
    %v2164 = vunpack.c.l.b16 %v2023
    %v2165 = vunpack.c.h.b16 %v2023
    %v2166 = vunpack.c.l.b16 %v2024
    %v2167 = vunpack.c.h.b16 %v2024
    %v2168 = vunpack.c.l.b16 %v2025
    %v2169 = vunpack.c.h.b16 %v2025
    %v2170 = vunpack.c.l.b16 %v2026
    %v2171 = vunpack.c.h.b16 %v2026
    %v2172 = vunpack.c.l.b16 %v2027
    %v2173 = vunpack.c.h.b16 %v2027
    %v2174 = vunpack.c.l.b16 %v2028
    %v2175 = vunpack.c.h.b16 %v2028
    %v2176 = vunpack.c.l.b16 %v2029
    %v2177 = vunpack.c.h.b16 %v2029
    %v2178 = vunpack.c.l.b16 %v2030
    %v2179 = vunpack.c.h.b16 %v2030
    %v2180 = vunpack.c.l.b16 %v2031
    %v2181 = vunpack.c.h.b16 %v2031
    %v2182 = vunpack.c.l.b16 %v2032
    %v2183 = vunpack.c.h.b16 %v2032
    %v2184 = vunpack.c.l.b16 %v2033
    %v2185 = vunpack.c.h.b16 %v2033
    %v2186 = vunpack.c.l.b16 %v2034
    %v2187 = vunpack.c.h.b16 %v2034
    %v2188 = vunpack.c.l.b16 %v2035
    %v2189 = vunpack.c.h.b16 %v2035
    %v2190 = vunpack.c.l.b16 %v2036
    %v2191 = vunpack.c.h.b16 %v2036
    %v2192 = vunpack.c.l.b16 %v2037
    %v2193 = vunpack.c.h.b16 %v2037
    %v2194 = vunpack.c.l.b16 %v2038
    %v2195 = vunpack.c.h.b16 %v2038
    %v2196 = vunpack.c.l.b16 %v2039
    %v2197 = vunpack.c.h.b16 %v2039
    %v2198 = vunpack.c.l.b16 %v2040
    %v2199 = vunpack.c.h.b16 %v2040
    %v2200 = vunpack.c.l.b16 %v2041
    %v2201 = vunpack.c.h.b16 %v2041
    %v2202 = vunpack.c.l.b16 %v2042
    %v2203 = vunpack.c.h.b16 %v2042
    %v2204 = vunpack.c.l.b16 %v2043
    %v2205 = vunpack.c.h.b16 %v2043
    %v2206 = vunpack.c.l.b16 %v2044
    %v2207 = vunpack.c.h.b16 %v2044
    %v2208 = vunpack.c.l.b16 %v2045
    %v2209 = vunpack.c.h.b16 %v2045
    %v2210 = vunpack.c.l.b16 %v2046
    %v2211 = vunpack.c.h.b16 %v2046
    %v2212 = vunpack.c.l.b16 %v2047
    %v2213 = vunpack.c.h.b16 %v2047
    %v2214 = vunpack.c.l.b16 %v2048
    %v2215 = vunpack.c.h.b16 %v2048
    %v2216 = vunpack.c.l.b16 %v2049
    %v2217 = vunpack.c.h.b16 %v2049
    %v2218 = vunpack.c.l.b16 %v2050
    %v2219 = vunpack.c.h.b16 %v2050
    %v2220 = vunpack.c.l.b16 %v2051
    %v2221 = vunpack.c.h.b16 %v2051
    %v2222 = vunpack.c.l.b16 %v2052
    %v2223 = vunpack.c.h.b16 %v2052
    %v2224 = vunpack.c.l.b16 %v2053
    %v2225 = vunpack.c.h.b16 %v2053
    %v2226 = vunpack.c.l.b16 %v2054
    %v2227 = vunpack.c.h.b16 %v2054
    %v2228 = vunpack.c.l.b16 %v2055
    %v2229 = vunpack.c.h.b16 %v2055
    %v2230 = vunpack.c.l.b16 %v2056
    %v2231 = vunpack.c.h.b16 %v2056
    %v2232 = vunpack.c.l.b16 %v2057
    %v2233 = vunpack.c.h.b16 %v2057
    %v2234 = vunpack.c.l.b16 %v2058
    %v2235 = vunpack.c.h.b16 %v2058
    %v2236 = vunpack.c.l.b16 %v2059
    %v2237 = vunpack.c.h.b16 %v2059
    %v2238 = vunpack.c.l.b16 %v2060
    %v2239 = vunpack.c.h.b16 %v2060
    %v2240 = vunpack.c.l.b16 %v2061
    %v2241 = vunpack.c.h.b16 %v2061
    %v2242 = vunpack.c.l.b16 %v2062
    %v2243 = vunpack.c.h.b16 %v2062
    %v2244 = vunpack.c.l.b16 %v2063
    %v2245 = vunpack.c.h.b16 %v2063
    %v2246 = vunpack.c.l.b16 %v2064
    %v2247 = vunpack.c.h.b16 %v2064
    %v2248 = vunpack.c.l.b16 %v2065
    %v2249 = vunpack.c.h.b16 %v2065
    %v2250 = vunpack.c.l.b16 %v2066
    %v2251 = vunpack.c.h.b16 %v2066
    %v2252 = vunpack.c.l.b16 %v2067
    %v2253 = vunpack.c.h.b16 %v2067
    %v2254 = vunpack.c.l.b16 %v2068
    %v2255 = vunpack.c.h.b16 %v2068
    %v2256 = vunpack.c.l.b16 %v2069
    %v2257 = vunpack.c.h.b16 %v2069
    %v2258 = vunpack.c.l.b16 %v2070
    %v2259 = vunpack.c.h.b16 %v2070
    %v2260 = vunpack.c.l.b16 %v2071
    %v2261 = vunpack.c.h.b16 %v2071
    %v2262 = vunpack.c.l.b16 %v2072
    %v2263 = vunpack.c.h.b16 %v2072
    %v2264 = vunpack.c.l.b16 %v2073
    %v2265 = vunpack.c.h.b16 %v2073
    %v2266 = vunpack.c.l.b16 %v2074
    %v2267 = vunpack.c.h.b16 %v2074
    %v2268 = vunpack.c.l.b16 %v2075
    %v2269 = vunpack.c.h.b16 %v2075
    %v2270 = vunpack.c.l.b16 %v2076
    %v2271 = vunpack.c.h.b16 %v2076
    %v2272 = vunpack.c.l.b16 %v2077
    %v2273 = vunpack.c.h.b16 %v2077
    %v2274 = vunpack.c.l.b16 %v2078
    %v2275 = vunpack.c.h.b16 %v2078
    %v2276 = vunpack.c.l.b16 %v2079
    %v2277 = vunpack.c.h.b16 %v2079
    %v2278 = vpack.c.b16 %v2152, %v2150
    %v2279 = vpack.c.b16 %v2153, %v2151
    %v2280 = vpack.c.b16 %v2156, %v2154
    %v2281 = vpack.c.b16 %v2157, %v2155
    %v2282 = vpack.c.b16 %v2160, %v2158
    %v2283 = vpack.c.b16 %v2161, %v2159
    %v2284 = vpack.c.b16 %v2164, %v2162
    %v2285 = vpack.c.b16 %v2165, %v2163
    %v2286 = vpack.c.b16 %v2168, %v2166
    %v2287 = vpack.c.b16 %v2169, %v2167
    %v2288 = vpack.c.b16 %v2172, %v2170
    %v2289 = vpack.c.b16 %v2173, %v2171
    %v2290 = vpack.c.b16 %v2176, %v2174
    %v2291 = vpack.c.b16 %v2177, %v2175
    %v2292 = vpack.c.b16 %v2180, %v2178
    %v2293 = vpack.c.b16 %v2181, %v2179
    %v2294 = vpack.c.b16 %v2184, %v2182
    %v2295 = vpack.c.b16 %v2185, %v2183
    %v2296 = vpack.c.b16 %v2188, %v2186
    %v2297 = vpack.c.b16 %v2189, %v2187
    %v2298 = vpack.c.b16 %v2192, %v2190
    %v2299 = vpack.c.b16 %v2193, %v2191
    %v2300 = vpack.c.b16 %v2196, %v2194
    %v2301 = vpack.c.b16 %v2197, %v2195
    %v2302 = vpack.c.b16 %v2200, %v2198
    %v2303 = vpack.c.b16 %v2201, %v2199
    %v2304 = vpack.c.b16 %v2204, %v2202
    %v2305 = vpack.c.b16 %v2205, %v2203
    %v2306 = vpack.c.b16 %v2208, %v2206
    %v2307 = vpack.c.b16 %v2209, %v2207
    %v2308 = vpack.c.b16 %v2212, %v2210
    %v2309 = vpack.c.b16 %v2213, %v2211
    %v2310 = vpack.c.b16 %v2216, %v2214
    %v2311 = vpack.c.b16 %v2217, %v2215
    %v2312 = vpack.c.b16 %v2220, %v2218
    %v2313 = vpack.c.b16 %v2221, %v2219
    %v2314 = vpack.c.b16 %v2224, %v2222
    %v2315 = vpack.c.b16 %v2225, %v2223
    %v2316 = vpack.c.b16 %v2228, %v2226
    %v2317 = vpack.c.b16 %v2229, %v2227
    %v2318 = vpack.c.b16 %v2232, %v2230
    %v2319 = vpack.c.b16 %v2233, %v2231
    %v2320 = vpack.c.b16 %v2236, %v2234
    %v2321 = vpack.c.b16 %v2237, %v2235
    %v2322 = vpack.c.b16 %v2240, %v2238
    %v2323 = vpack.c.b16 %v2241, %v2239
    %v2324 = vpack.c.b16 %v2244, %v2242
    %v2325 = vpack.c.b16 %v2245, %v2243
    %v2326 = vpack.c.b16 %v2248, %v2246
    %v2327 = vpack.c.b16 %v2249, %v2247
    %v2328 = vpack.c.b16 %v2252, %v2250
    %v2329 = vpack.c.b16 %v2253, %v2251
    %v2330 = vpack.c.b16 %v2256, %v2254
    %v2331 = vpack.c.b16 %v2257, %v2255
    %v2332 = vpack.c.b16 %v2260, %v2258
    %v2333 = vpack.c.b16 %v2261, %v2259
    %v2334 = vpack.c.b16 %v2264, %v2262
    %v2335 = vpack.c.b16 %v2265, %v2263
    %v2336 = vpack.c.b16 %v2268, %v2266
    %v2337 = vpack.c.b16 %v2269, %v2267
    %v2338 = vpack.c.b16 %v2272, %v2270
    %v2339 = vpack.c.b16 %v2273, %v2271
    %v2340 = vpack.c.b16 %v2276, %v2274
    %v2341 = vpack.c.b16 %v2277, %v2275
    %2406 = vmatpush.bf16.msra.mxu0 %v2292
    %2407 = vmatpush.bf16.msra.mxu0 %v2290
    %2408 = vmatpush.bf16.msra.mxu0 %v2288
    %2409 = vmatpush.bf16.msra.mxu0 %v2286
    %2410 = vmatpush.bf16.msra.mxu0 %v2284
    %2411 = vmatpush.bf16.msra.mxu0 %v2282
    %2412 = vmatpush.bf16.msra.mxu0 %v2280
    %2413 = vmatpush.bf16.msra.mxu0 %v2278
    %2414 = vmatmul.bf16.gmra.mxu0 %v2012
    %v2415 = vpop.f32.mrf.mxu0
    %v2416 = vadd.f32 %v2082, %v2415
    %v2417 = vpop.f32.mrf.mxu0
    %2418 = vdwg.mxu0
    %2419 = vmatpush.bf16.msra.mxu0 %v2308
    %2420 = vmatpush.bf16.msra.mxu0 %v2306
    %2421 = vmatpush.bf16.msra.mxu0 %v2304
    %2422 = vmatpush.bf16.msra.mxu0 %v2302
    %2423 = vmatpush.bf16.msra.mxu0 %v2300
    %2424 = vmatpush.bf16.msra.mxu0 %v2298
    %2425 = vmatpush.bf16.msra.mxu0 %v2296
    %2426 = vmatpush.bf16.msra.mxu0 %v2294
    %2427 = vmatmul.bf16.gmra.mxu0 %v2013
    %v2428 = vpop.f32.mrf.mxu0
    %v2429 = vadd.f32 %v2416, %v2428
    %v2430 = vpop.f32.mrf.mxu0
    %2431 = vdwg.mxu0
    %2432 = vmatpush.bf16.msra.mxu0 %v2324
    %2433 = vmatpush.bf16.msra.mxu0 %v2322
    %2434 = vmatpush.bf16.msra.mxu0 %v2320
    %2435 = vmatpush.bf16.msra.mxu0 %v2318
    %2436 = vmatpush.bf16.msra.mxu0 %v2316
    %2437 = vmatpush.bf16.msra.mxu0 %v2314
    %2438 = vmatpush.bf16.msra.mxu0 %v2312
    %2439 = vmatpush.bf16.msra.mxu0 %v2310
    %2440 = vmatmul.bf16.gmra.mxu0 %v2014
    %v2441 = vpop.f32.mrf.mxu0
    %v2442 = vadd.f32 %v2429, %v2441
    %v2443 = vpop.f32.mrf.mxu0
    %2444 = vdwg.mxu0
    %2445 = vmatpush.bf16.msra.mxu0 %v2340
    %2446 = vmatpush.bf16.msra.mxu0 %v2338
    %2447 = vmatpush.bf16.msra.mxu0 %v2336
    %2448 = vmatpush.bf16.msra.mxu0 %v2334
    %2449 = vmatpush.bf16.msra.mxu0 %v2332
    %2450 = vmatpush.bf16.msra.mxu0 %v2330
    %2451 = vmatpush.bf16.msra.mxu0 %v2328
    %2452 = vmatpush.bf16.msra.mxu0 %v2326
    %2453 = vmatmul.bf16.gmra.mxu0 %v2015
    %v2454 = vpop.f32.mrf.mxu0
    %v2455 = vadd.f32 %v2442, %v2454
    %v2456 = vpop.f32.mrf.mxu0
    %2457 = vdwg.mxu0
    %2458 = vmatpush.bf16.msra.mxu0 %v2293
    %2459 = vmatpush.bf16.msra.mxu0 %v2291
    %2460 = vmatpush.bf16.msra.mxu0 %v2289
    %2461 = vmatpush.bf16.msra.mxu0 %v2287
    %2462 = vmatpush.bf16.msra.mxu0 %v2285
    %2463 = vmatpush.bf16.msra.mxu0 %v2283
    %2464 = vmatpush.bf16.msra.mxu0 %v2281
    %2465 = vmatpush.bf16.msra.mxu0 %v2279
    %2466 = vmatmul.bf16.gmra.mxu0 %v2012
    %v2467 = vpop.f32.mrf.mxu0
    %v2468 = vadd.f32 %v2083, %v2467
    %v2469 = vpop.f32.mrf.mxu0
    %2470 = vdwg.mxu0
    %2471 = vmatpush.bf16.msra.mxu0 %v2309
    %2472 = vmatpush.bf16.msra.mxu0 %v2307
    %2473 = vmatpush.bf16.msra.mxu0 %v2305
    %2474 = vmatpush.bf16.msra.mxu0 %v2303
    %2475 = vmatpush.bf16.msra.mxu0 %v2301
    %2476 = vmatpush.bf16.msra.mxu0 %v2299
    %2477 = vmatpush.bf16.msra.mxu0 %v2297
    %2478 = vmatpush.bf16.msra.mxu0 %v2295
    %2479 = vmatmul.bf16.gmra.mxu0 %v2013
    %v2480 = vpop.f32.mrf.mxu0
    %v2481 = vadd.f32 %v2468, %v2480
    %v2482 = vpop.f32.mrf.mxu0
    %2483 = vdwg.mxu0
    %2484 = vmatpush.bf16.msra.mxu0 %v2325
    %2485 = vmatpush.bf16.msra.mxu0 %v2323
    %2486 = vmatpush.bf16.msra.mxu0 %v2321
    %2487 = vmatpush.bf16.msra.mxu0 %v2319
    %2488 = vmatpush.bf16.msra.mxu0 %v2317
    %2489 = vmatpush.bf16.msra.mxu0 %v2315
    %2490 = vmatpush.bf16.msra.mxu0 %v2313
    %2491 = vmatpush.bf16.msra.mxu0 %v2311
    %2492 = vmatmul.bf16.gmra.mxu0 %v2014
    %v2493 = vpop.f32.mrf.mxu0
    %v2494 = vadd.f32 %v2481, %v2493
    %v2495 = vpop.f32.mrf.mxu0
    %2496 = vdwg.mxu0
    %2497 = vmatpush.bf16.msra.mxu0 %v2341
    %2498 = vmatpush.bf16.msra.mxu0 %v2339
    %2499 = vmatpush.bf16.msra.mxu0 %v2337
    %2500 = vmatpush.bf16.msra.mxu0 %v2335
    %2501 = vmatpush.bf16.msra.mxu0 %v2333
    %2502 = vmatpush.bf16.msra.mxu0 %v2331
    %2503 = vmatpush.bf16.msra.mxu0 %v2329
    %2504 = vmatpush.bf16.msra.mxu0 %v2327
    %2505 = vmatmul.bf16.gmra.mxu0 %v2015
    %v2506 = vpop.f32.mrf.mxu0
    %v2507 = vadd.f32 %v2494, %v2506
    %v2508 = vpop.f32.mrf.mxu0
    %2509 = vdwg.mxu0
    %v2510 = vmax.f32 %v2455, 0.0
    %v2511 = vmax.f32 %v2507, 0.0
    %v2512 = vpack.c.bf16 %v2510, %v2510
    %v2513 = vpack.c.bf16 %v2511, %v2511
    %v2514 = vld [vmem:[%s5] sm:$0xf]
    %v2515 = vld [vmem:[%s5 + $0x4] sm:$0xf]
    %v2516 = vld [vmem:[%s5 + $0x8] sm:$0xf]
    %v2517 = vld [vmem:[%s5 + $0xc] sm:$0xf]
    %v2518 = vld [vmem:[%s5 + $0x10] sm:$0xf]
    %v2519 = vld [vmem:[%s5 + $0x14] sm:$0xf]
    %v2520 = vld [vmem:[%s5 + $0x18] sm:$0xf]
    %v2521 = vld [vmem:[%s5 + $0x1c] sm:$0xf]
    %v2522 = vld [vmem:[%s5 + $0x20] sm:$0xf]
    %v2523 = vld [vmem:[%s5 + $0x24] sm:$0xf]
    %v2524 = vld [vmem:[%s5 + $0x28] sm:$0xf]
    %v2525 = vld [vmem:[%s5 + $0x2c] sm:$0xf]
    %v2526 = vld [vmem:[%s5 + $0x30] sm:$0xf]
    %v2527 = vld [vmem:[%s5 + $0x34] sm:$0xf]
    %v2528 = vld [vmem:[%s5 + $0x38] sm:$0xf]
    %v2529 = vld [vmem:[%s5 + $0x3c] sm:$0xf]
    %v2530 = vld [vmem:[%s5 + $0x40] sm:$0xf]
    %v2531 = vld [vmem:[%s5 + $0x44] sm:$0xf]
    %v2532 = vld [vmem:[%s5 + $0x48] sm:$0xf]
    %v2533 = vld [vmem:[%s5 + $0x4c] sm:$0xf]
    %v2534 = vld [vmem:[%s5 + $0x50] sm:$0xf]
    %v2535 = vld [vmem:[%s5 + $0x54] sm:$0xf]
    %v2536 = vld [vmem:[%s5 + $0x58] sm:$0xf]
    %v2537 = vld [vmem:[%s5 + $0x5c] sm:$0xf]
    %v2538 = vld [vmem:[%s5 + $0x60] sm:$0xf]
    %v2539 = vld [vmem:[%s5 + $0x64] sm:$0xf]
    %v2540 = vld [vmem:[%s5 + $0x68] sm:$0xf]
    %v2541 = vld [vmem:[%s5 + $0x6c] sm:$0xf]
    %v2542 = vld [vmem:[%s5 + $0x70] sm:$0xf]
    %v2543 = vld [vmem:[%s5 + $0x74] sm:$0xf]
    %v2544 = vld [vmem:[%s5 + $0x78] sm:$0xf]
    %v2545 = vld [vmem:[%s5 + $0x7c] sm:$0xf]
    %v2546 = vld [vmem:[%s6] sm:$0x1]
    %v2548 = vperm.slane %v2546, 0
    %v2582 = vunpack.c.l.b16 %v2514
    %v2583 = vunpack.c.l.b16 %v2515
    %v2584 = vunpack.c.l.b16 %v2516
    %v2585 = vunpack.c.l.b16 %v2517
    %v2586 = vunpack.c.l.b16 %v2518
    %v2587 = vunpack.c.l.b16 %v2519
    %v2588 = vunpack.c.l.b16 %v2520
    %v2589 = vunpack.c.l.b16 %v2521
    %v2590 = vunpack.c.l.b16 %v2522
    %v2591 = vunpack.c.l.b16 %v2523
    %v2592 = vunpack.c.l.b16 %v2524
    %v2593 = vunpack.c.l.b16 %v2525
    %v2594 = vunpack.c.l.b16 %v2526
    %v2595 = vunpack.c.l.b16 %v2527
    %v2596 = vunpack.c.l.b16 %v2528
    %v2597 = vunpack.c.l.b16 %v2529
    %v2598 = vunpack.c.l.b16 %v2530
    %v2599 = vunpack.c.l.b16 %v2531
    %v2600 = vunpack.c.l.b16 %v2532
    %v2601 = vunpack.c.l.b16 %v2533
    %v2602 = vunpack.c.l.b16 %v2534
    %v2603 = vunpack.c.l.b16 %v2535
    %v2604 = vunpack.c.l.b16 %v2536
    %v2605 = vunpack.c.l.b16 %v2537
    %v2606 = vunpack.c.l.b16 %v2538
    %v2607 = vunpack.c.l.b16 %v2539
    %v2608 = vunpack.c.l.b16 %v2540
    %v2609 = vunpack.c.l.b16 %v2541
    %v2610 = vunpack.c.l.b16 %v2542
    %v2611 = vunpack.c.l.b16 %v2543
    %v2612 = vunpack.c.l.b16 %v2544
    %v2613 = vunpack.c.l.b16 %v2545
    %v2614 = vpack.c.b16 %v2583, %v2582
    %v2615 = vpack.c.b16 %v2585, %v2584
    %v2616 = vpack.c.b16 %v2587, %v2586
    %v2617 = vpack.c.b16 %v2589, %v2588
    %v2618 = vpack.c.b16 %v2591, %v2590
    %v2619 = vpack.c.b16 %v2593, %v2592
    %v2620 = vpack.c.b16 %v2595, %v2594
    %v2621 = vpack.c.b16 %v2597, %v2596
    %v2622 = vpack.c.b16 %v2599, %v2598
    %v2623 = vpack.c.b16 %v2601, %v2600
    %v2624 = vpack.c.b16 %v2603, %v2602
    %v2625 = vpack.c.b16 %v2605, %v2604
    %v2626 = vpack.c.b16 %v2607, %v2606
    %v2627 = vpack.c.b16 %v2609, %v2608
    %v2628 = vpack.c.b16 %v2611, %v2610
    %v2629 = vpack.c.b16 %v2613, %v2612
    %2646 = vmatpush.bf16.msra.mxu0 %v2621
    %2647 = vmatpush.bf16.msra.mxu0 %v2620
    %2648 = vmatpush.bf16.msra.mxu0 %v2619
    %2649 = vmatpush.bf16.msra.mxu0 %v2618
    %2650 = vmatpush.bf16.msra.mxu0 %v2617
    %2651 = vmatpush.bf16.msra.mxu0 %v2616
    %2652 = vmatpush.bf16.msra.mxu0 %v2615
    %2653 = vmatpush.bf16.msra.mxu0 %v2614
    %2654 = vmatmul.bf16.gmra.mxu0 %v2512
    %v2655 = vpop.f32.mrf.mxu0
    %v2656 = vadd.f32 %v2548, %v2655
    %v2657 = vpop.f32.mrf.mxu0
    %2658 = vdwg.mxu0
    %2659 = vmatpush.bf16.msra.mxu0 %v2629
    %2660 = vmatpush.bf16.msra.mxu0 %v2628
    %2661 = vmatpush.bf16.msra.mxu0 %v2627
    %2662 = vmatpush.bf16.msra.mxu0 %v2626
    %2663 = vmatpush.bf16.msra.mxu0 %v2625
    %2664 = vmatpush.bf16.msra.mxu0 %v2624
    %2665 = vmatpush.bf16.msra.mxu0 %v2623
    %2666 = vmatpush.bf16.msra.mxu0 %v2622
    %2667 = vmatmul.bf16.gmra.mxu0 %v2513
    %v2668 = vpop.f32.mrf.mxu0
    %v2669 = vadd.f32 %v2656, %v2668
    %v2670 = vpop.f32.mrf.mxu0
    %2671 = vdwg.mxu0
    %2672 = vst [vmem:[#allocation2] sm:$0x3] %v2669
    // Predicated region
    $region30: #{generator_forward.19} parent=1 // pred_check
      _
    $region31: #{generator_forward.19} parent=1 // pred_check_branch
      %2674 = sbr.rel (0) target = $region33
    $region32: #{generator_forward.19} parent=1 // pred_region
      %2676 = vsyncadd [#allocation3], 0
      %s2678 = sshll.u32 [#allocation2], 4
      %s2679 = int_to_ptr.vmem [resolvable:$true] %s2678
      %s2680 = sshll.u32 %s7, 4
      %s2681 = int_to_ptr.hbm [resolvable:$true] %s2680
      %2683 = dma.vmem_to_hbm [thread:$0]  %s2679, 32, %s2681, [#allocation3]
    $region33: #{generator_forward.19} parent=1 // pred_fallthru
      _
    // Predicated region
    $region34: #{generator_forward.19} parent=1 // pred_check
      _
    $region35: #{generator_forward.19} parent=1 // pred_check_branch
      %2685 = sbr.rel (0) target = $region37
    $region36: #{generator_forward.19} parent=1 // pred_region
      %2687 = dma.done [#allocation3], 32
    $region37: #{generator_forward.19} parent=1 // pred_fallthru
      _
    %2688 = vsyncpa [#allocation3], 1

</llo_original>
